<compile_context>
chip_gen: v6e
topology: v6e:2x2x1
jax: 0.10.0
libtpu: 0.0.40
codegen_flags: <defaults>
</compile_context>

<pallas_src>
import functools

import jax
import jax.numpy as jnp
from jax import lax
from jax.experimental import pallas as pl
from jax.experimental.pallas import tpu as pltpu

EPS = 1e-5  # nn.BatchNorm2d default eps


# ---------------------------------------------------------------------------
# Trace-time BN folding helpers (tiny XLA ops on the weights only)
# ---------------------------------------------------------------------------

def _bn_scale_shift(bn):
    s = bn["gamma"] / jnp.sqrt(bn["var"] + EPS)
    t = bn["beta"] - bn["mean"] * s
    return s, t


def _fold_conv_bn(w, bn):
    """Fold an inference BN that follows the conv into conv weight + bias."""
    s, t = _bn_scale_shift(bn)
    K, _, Cin, Cout = w.shape
    w_f = (w * s[None, None, None, :]).reshape(K * K * Cin, Cout)
    return w_f, t.reshape(1, Cout)


def _flatten_w(w):
    K, _, Cin, Cout = w.shape
    return w.reshape(K * K * Cin, Cout)


# ---------------------------------------------------------------------------
# Static op-plan construction (Python-level; shapes are static under jit)
# ---------------------------------------------------------------------------

def _build_plan(params):
    """Returns (plan, arrays): a static list of fused ops and the flat list of
    parameter arrays consumed by the kernel, in order."""
    plan = []
    arrays = []

    # --- first block: conv -> BN -> ReLU (BN folded, ReLU as conv epilogue) ---
    k0 = params["first_conv"].shape[0]
    c0 = params["first_conv"].shape[-1]
    assert k0 % 2 == 1, "only odd kernel sizes supported"  # TODO(synk): even K
    w_f, b = _fold_conv_bn(params["first_conv"], params["first_bn"])
    plan.append(("conv", k0, c0, True))
    arrays += [w_f, b]

    # --- basic blocks ---
    for i, blk in enumerate(params["blocks"]):
        k = blk["conv1"].shape[0]
        cin = blk["conv1"].shape[2]
        cout = blk["conv1"].shape[3]
        assert k % 2 == 1, "only odd kernel sizes supported"
        plan.append(("save_identity",))
        if i != 0:  # is_first_block skips bn1 / relu1 / dropout1
            s, t = _bn_scale_shift(blk["bn1"])
            plan.append(("bn_relu",))
            arrays += [s.reshape(1, cin), t.reshape(1, cin)]
        w1, b1 = _fold_conv_bn(blk["conv1"], blk["bn2"])
        plan.append(("conv", k, cout, True))          # conv1 + bn2 + relu2
        arrays += [w1, b1]
        plan.append(("conv", k, cout, False))         # conv2 (no epilogue)
        arrays += [_flatten_w(blk["conv2"])]
        ch1 = (cout - cin) // 2
        ch2 = cout - cin - ch1
        plan.append(("add_identity", ch1, ch2))       # zero-pad channels + add

    # --- last block: BN -> ReLU -> conv(k=3) ---
    clast = params["last_conv"].shape[2]
    cout = params["last_conv"].shape[-1]
    klast = params["last_conv"].shape[0]
    s, t = _bn_scale_shift(params["last_bn"])
    plan.append(("bn_relu",))
    arrays += [s.reshape(1, clast), t.reshape(1, clast)]
    plan.append(("conv", klast, cout, False))
    arrays += [_flatten_w(params["last_conv"])]

    return plan, arrays


# ---------------------------------------------------------------------------
# Fused whole-network Pallas kernel
# ---------------------------------------------------------------------------

def _conv_circular(x, w_flat, K, Cout, bias, relu):
    """Circular conv on a VMEM-resident (H, W, Cin) tile:
    wrap-pad via concatenation -> im2col -> ONE MXU matmul -> bias/ReLU epilogue."""
    H, W, Cin = x.shape
    pad = K // 2
    if pad:
        # circular padding: pure VMEM data movement
        x = jnp.concatenate([x[H - pad:], x, x[:pad]], axis=0)
        x = jnp.concatenate([x[:, W - pad:], x, x[:, :pad]], axis=1)
    # im2col: contraction length K*K*Cin in a single matmul
    cols = [x[kh:kh + H, kw:kw + W, :] for kh in range(K) for kw in range(K)]
    patches = jnp.concatenate(cols, axis=-1) if len(cols) > 1 else cols[0]
    patches = patches.reshape(H * W, K * K * Cin)
    y = jnp.dot(patches, w_flat, preferred_element_type=jnp.float32)
    if bias is not None:
        y = y + bias
    if relu:
        y = jnp.maximum(y, 0.0)
    return y.reshape(H, W, Cout)


def _make_fused_kernel(plan):
    def kernel(x_ref, *refs):
        out_ref = refs[-1]
        prefs = refs[:-1]
        h = x_ref[0].astype(jnp.float32)          # (H, W, Cin), VMEM-resident
        identity = h
        pi = 0
        for op in plan:
            kind = op[0]
            if kind == "conv":
                _, K, Cout, fused_relu = op
                w = prefs[pi][...]
                pi += 1
                b = None
                if fused_relu:
                    b = prefs[pi][...]
                    pi += 1
                h = _conv_circular(h, w, K, Cout, b, fused_relu)
            elif kind == "bn_relu":
                s = prefs[pi][...]
                t = prefs[pi + 1][...]
                pi += 2
                h = jnp.maximum(h * s[0] + t[0], 0.0)
            elif kind == "save_identity":
                identity = h
            elif kind == "add_identity":
                _, ch1, ch2 = op
                idt = identity
                if ch1 or ch2:
                    Hh, Ww, _ = idt.shape
                    pieces = []
                    if ch1:
                        pieces.append(jnp.zeros((Hh, Ww, ch1), idt.dtype))
                    pieces.append(idt)
                    if ch2:
                        pieces.append(jnp.zeros((Hh, Ww, ch2), idt.dtype))
                    idt = jnp.concatenate(pieces, axis=-1)
                h = h + idt
        out_ref[0] = h.astype(out_ref.dtype)

    return kernel


def _const_index_map(ndim):
    return lambda n: (0,) * ndim


def resnet2d_forward(x_nchw, params):
    """Fused ResNet2d forward. x_nchw: (N, C_in, H, W) -> (N, C_out, H, W)."""
    N, Cin, H, W = x_nchw.shape
    x = jnp.transpose(x_nchw, (0, 2, 3, 1))       # NHWC inside the kernel
    plan, arrays = _build_plan(params)
    out_channels = params["last_conv"].shape[-1]

    in_specs = [pl.BlockSpec((1, H, W, Cin), lambda n: (n, 0, 0, 0))]
    for a in arrays:
        in_specs.append(pl.BlockSpec(a.shape, _const_index_map(a.ndim)))

    out = pl.pallas_call(
        _make_fused_kernel(plan),
        out_shape=jax.ShapeDtypeStruct((N, H, W, out_channels), x.dtype),
        grid=(N,),
        in_specs=in_specs,
        out_specs=pl.BlockSpec((1, H, W, out_channels), lambda n: (n, 0, 0, 0)),
        compiler_params=pltpu.CompilerParams(
            dimension_semantics=("parallel",)),
    )(x, *arrays)
    return jnp.transpose(out, (0, 3, 1, 2))


# ---------------------------------------------------------------------------
# Pure-JAX reference (unfused, unfolded BN) -- correctness check only
# ---------------------------------------------------------------------------

def _conv2d_circular_ref(x_nhwc, w):
    pad = w.shape[0] // 2
    xp = jnp.pad(x_nhwc, ((0, 0), (pad, pad), (pad, pad), (0, 0)), mode="wrap")
    return lax.conv_general_dilated(
        xp, w, window_strides=(1, 1), padding="VALID",
        dimension_numbers=("NHWC", "HWIO", "NHWC"))


def _bn_relu_ref(x, bn):
    y = (x - bn["mean"]) / jnp.sqrt(bn["var"] + EPS) * bn["gamma"] + bn["beta"]
    return jnp.maximum(y, 0.0)


def _forward_ref_nhwc(x, params):
    out = _conv2d_circular_ref(x, params["first_conv"])
    out = _bn_relu_ref(out, params["first_bn"])
    for i, blk in enumerate(params["blocks"]):
        identity = out
        h = out
        if i != 0:
            h = _bn_relu_ref(h, blk["bn1"])
        h = _conv2d_circular_ref(h, blk["conv1"])
        h = _bn_relu_ref(h, blk["bn2"])
        h = _conv2d_circular_ref(h, blk["conv2"])
        cin, cout = identity.shape[-1], h.shape[-1]
        if cout != cin:
            ch1 = (cout - cin) // 2
            ch2 = cout - cin - ch1
            identity = jnp.pad(identity, ((0, 0), (0, 0), (0, 0), (ch1, ch2)))
        out = h + identity
    out = _bn_relu_ref(out, params["last_bn"])
    out = _conv2d_circular_ref(out, params["last_conv"])
    return out


# ---------------------------------------------------------------------------
# Parameter init (deterministic; mirrors ResNet2d / BasicBlock structure)
# ---------------------------------------------------------------------------

def init_params(key, in_channels, out_channels, kernel_sizes, n_channels):
    def conv_w(k, ksize, cin, cout):
        return (jax.random.normal(k, (ksize, ksize, cin, cout), jnp.float32)
                / jnp.sqrt(float(ksize * ksize * cin)))

    def bn_p(k, c):
        k1, k2, k3, k4 = jax.random.split(k, 4)
        return dict(
            gamma=1.0 + 0.1 * jax.random.normal(k1, (c,), jnp.float32),
            beta=0.05 * jax.random.normal(k2, (c,), jnp.float32),
            mean=0.1 * jax.random.normal(k3, (c,), jnp.float32),
            var=jax.random.uniform(k4, (c,), jnp.float32, 0.5, 1.5),
        )

    keys = iter(jax.random.split(key, 4 + 4 * len(n_channels)))
    params = {
        "first_conv": conv_w(next(keys), kernel_sizes[0], in_channels, n_channels[0]),
        "first_bn": bn_p(next(keys), n_channels[0]),
        "blocks": [],
    }
    for i in range(len(n_channels) - 1):
        cin, cout, k = n_channels[i], n_channels[i + 1], kernel_sizes[i]
        params["blocks"].append(dict(
            bn1=bn_p(next(keys), cin),
            conv1=conv_w(next(keys), k, cin, cout),
            bn2=bn_p(next(keys), cout),
            conv2=conv_w(next(keys), k, cout, cout),
        ))
    params["last_bn"] = bn_p(next(keys), n_channels[-1])
    params["last_conv"] = conv_w(next(keys), 3, n_channels[-1], out_channels)
    return params


# ---------------------------------------------------------------------------
# Demo / smoke test
# ---------------------------------------------------------------------------

if __name__ == "__main__":
    key = jax.random.PRNGKey(0)
    kx, kp = jax.random.split(key)

    # ResNet2d(in_channels=4, out_channels=4, kernel_sizes=[3,3,3],
    #          n_channels=[8,8,16], dropout=0.0)
    N, Cin, H, W = 2, 4, 16, 16
    out_channels = 4
    kernel_sizes = [3, 3, 3]
    n_channels = [8, 8, 16]

    x = jax.random.normal(kx, (N, Cin, H, W), jnp.float32)
    params = init_params(kp, Cin, out_channels, kernel_sizes, n_channels)

    fwd = jax.jit(resnet2d_forward)
    out = jax.block_until_ready(fwd(x, params))
    assert out.shape == (N, out_channels, H, W), out.shape

    # correctness check against a pure-JAX reference of the same forward pass
    ref_nhwc = _forward_ref_nhwc(jnp.transpose(x, (0, 2, 3, 1)), params)
    ref = jax.block_until_ready(jnp.transpose(ref_nhwc, (0, 3, 1, 2)))
    max_err = float(jnp.max(jnp.abs(out - ref)))
    assert jnp.allclose(out, ref, atol=5e-4, rtol=5e-4), max_err

    print("KERNEL_OK")
</pallas_src>

<mosaic_0001>
module attributes {stable_mosaic.version = 11 : i64} {
  func.func @kernel(%arg0: i32, %arg1: memref<1x16x16x4xf32, #tpu.memory_space<vmem>>, %arg2: memref<36x8xf32, #tpu.memory_space<vmem>>, %arg3: memref<1x8xf32, #tpu.memory_space<vmem>>, %arg4: memref<72x8xf32, #tpu.memory_space<vmem>>, %arg5: memref<1x8xf32, #tpu.memory_space<vmem>>, %arg6: memref<72x8xf32, #tpu.memory_space<vmem>>, %arg7: memref<1x8xf32, #tpu.memory_space<vmem>>, %arg8: memref<1x8xf32, #tpu.memory_space<vmem>>, %arg9: memref<72x16xf32, #tpu.memory_space<vmem>>, %arg10: memref<1x16xf32, #tpu.memory_space<vmem>>, %arg11: memref<144x16xf32, #tpu.memory_space<vmem>>, %arg12: memref<1x16xf32, #tpu.memory_space<vmem>>, %arg13: memref<1x16xf32, #tpu.memory_space<vmem>>, %arg14: memref<144x4xf32, #tpu.memory_space<vmem>>, %arg15: memref<1x16x16x4xf32, #tpu.memory_space<vmem>>) attributes {dimension_semantics = [#tpu.dimension_semantics<parallel>], iteration_bounds = array<i64: 2>, scalar_prefetch = 0 : i64, scratch_operands = 0 : i64, tpu.core_type = #tpu.core_type<tc>, window_params = [{transform_indices = @transform_0, window_bounds = array<i64: 1, 16, 16, 4>}, {pipeline_mode = #tpu.pipeline_mode<synchronous>, transform_indices = @transform_1, window_bounds = array<i64: 36, 8>}, {pipeline_mode = #tpu.pipeline_mode<synchronous>, transform_indices = @transform_2, window_bounds = array<i64: 1, 8>}, {pipeline_mode = #tpu.pipeline_mode<synchronous>, transform_indices = @transform_3, window_bounds = array<i64: 72, 8>}, {pipeline_mode = #tpu.pipeline_mode<synchronous>, transform_indices = @transform_4, window_bounds = array<i64: 1, 8>}, {pipeline_mode = #tpu.pipeline_mode<synchronous>, transform_indices = @transform_5, window_bounds = array<i64: 72, 8>}, {pipeline_mode = #tpu.pipeline_mode<synchronous>, transform_indices = @transform_6, window_bounds = array<i64: 1, 8>}, {pipeline_mode = #tpu.pipeline_mode<synchronous>, transform_indices = @transform_7, window_bounds = array<i64: 1, 8>}, {pipeline_mode = #tpu.pipeline_mode<synchronous>, transform_indices = @transform_8, window_bounds = array<i64: 72, 16>}, {pipeline_mode = #tpu.pipeline_mode<synchronous>, transform_indices = @transform_9, window_bounds = array<i64: 1, 16>}, {pipeline_mode = #tpu.pipeline_mode<synchronous>, transform_indices = @transform_10, window_bounds = array<i64: 144, 16>}, {pipeline_mode = #tpu.pipeline_mode<synchronous>, transform_indices = @transform_11, window_bounds = array<i64: 1, 16>}, {pipeline_mode = #tpu.pipeline_mode<synchronous>, transform_indices = @transform_12, window_bounds = array<i64: 1, 16>}, {pipeline_mode = #tpu.pipeline_mode<synchronous>, transform_indices = @transform_13, window_bounds = array<i64: 144, 4>}, {transform_indices = @transform_14, window_bounds = array<i64: 1, 16, 16, 4>}]} {
    %c0 = arith.constant 0 : index
    %c0_0 = arith.constant 0 : index
    %c0_1 = arith.constant 0 : index
    %c0_2 = arith.constant 0 : index
    %0 = vector.load %arg1[%c0, %c0_0, %c0_1, %c0_2] : memref<1x16x16x4xf32, #tpu.memory_space<vmem>>, vector<1x16x16x4xf32>
    %1 = vector.shape_cast %0 : vector<1x16x16x4xf32> to vector<16x16x4xf32>
    %c0_3 = arith.constant 0 : index
    %c0_4 = arith.constant 0 : index
    %2 = vector.load %arg2[%c0_3, %c0_4] : memref<36x8xf32, #tpu.memory_space<vmem>>, vector<36x8xf32>
    %c0_5 = arith.constant 0 : index
    %c0_6 = arith.constant 0 : index
    %3 = vector.load %arg3[%c0_5, %c0_6] : memref<1x8xf32, #tpu.memory_space<vmem>>, vector<1x8xf32>
    %4 = vector.extract_strided_slice %1 {offsets = [15, 0, 0], sizes = [1, 16, 4], strides = [1, 1, 1]} : vector<16x16x4xf32> to vector<1x16x4xf32>
    %5 = vector.extract_strided_slice %1 {offsets = [0, 0, 0], sizes = [1, 16, 4], strides = [1, 1, 1]} : vector<16x16x4xf32> to vector<1x16x4xf32>
    %6 = tpu.concatenate %4, %1, %5 in 0 : vector<1x16x4xf32>, vector<16x16x4xf32>, vector<1x16x4xf32> -> vector<18x16x4xf32>
    %7 = vector.extract_strided_slice %6 {offsets = [0, 15, 0], sizes = [18, 1, 4], strides = [1, 1, 1]} : vector<18x16x4xf32> to vector<18x1x4xf32>
    %8 = vector.extract_strided_slice %6 {offsets = [0, 0, 0], sizes = [18, 1, 4], strides = [1, 1, 1]} : vector<18x16x4xf32> to vector<18x1x4xf32>
    %9 = tpu.concatenate %7, %6, %8 in 1 : vector<18x1x4xf32>, vector<18x16x4xf32>, vector<18x1x4xf32> -> vector<18x18x4xf32>
    %10 = vector.extract_strided_slice %9 {offsets = [0, 0, 0], sizes = [16, 16, 4], strides = [1, 1, 1]} : vector<18x18x4xf32> to vector<16x16x4xf32>
    %11 = vector.extract_strided_slice %9 {offsets = [0, 1, 0], sizes = [16, 16, 4], strides = [1, 1, 1]} : vector<18x18x4xf32> to vector<16x16x4xf32>
    %12 = vector.extract_strided_slice %9 {offsets = [0, 2, 0], sizes = [16, 16, 4], strides = [1, 1, 1]} : vector<18x18x4xf32> to vector<16x16x4xf32>
    %13 = vector.extract_strided_slice %9 {offsets = [1, 0, 0], sizes = [16, 16, 4], strides = [1, 1, 1]} : vector<18x18x4xf32> to vector<16x16x4xf32>
    %14 = vector.extract_strided_slice %9 {offsets = [1, 1, 0], sizes = [16, 16, 4], strides = [1, 1, 1]} : vector<18x18x4xf32> to vector<16x16x4xf32>
    %15 = vector.extract_strided_slice %9 {offsets = [1, 2, 0], sizes = [16, 16, 4], strides = [1, 1, 1]} : vector<18x18x4xf32> to vector<16x16x4xf32>
    %16 = vector.extract_strided_slice %9 {offsets = [2, 0, 0], sizes = [16, 16, 4], strides = [1, 1, 1]} : vector<18x18x4xf32> to vector<16x16x4xf32>
    %17 = vector.extract_strided_slice %9 {offsets = [2, 1, 0], sizes = [16, 16, 4], strides = [1, 1, 1]} : vector<18x18x4xf32> to vector<16x16x4xf32>
    %18 = vector.extract_strided_slice %9 {offsets = [2, 2, 0], sizes = [16, 16, 4], strides = [1, 1, 1]} : vector<18x18x4xf32> to vector<16x16x4xf32>
    %19 = tpu.concatenate %10, %11, %12, %13, %14, %15, %16, %17, %18 in 2 : vector<16x16x4xf32>, vector<16x16x4xf32>, vector<16x16x4xf32>, vector<16x16x4xf32>, vector<16x16x4xf32>, vector<16x16x4xf32>, vector<16x16x4xf32>, vector<16x16x4xf32>, vector<16x16x4xf32> -> vector<16x16x36xf32>
    %20 = vector.shape_cast %19 : vector<16x16x36xf32> to vector<256x36xf32>
    %cst = arith.constant dense<0.000000e+00> : vector<256x8xf32>
    %21 = tpu.matmul %20, %2, %cst {dimension_numbers = #tpu.dot_dimension_numbers<[1], [0], [0], [1], [0, 0, 1, 1], [], []>} : vector<256x36xf32>, vector<36x8xf32>, vector<256x8xf32> -> vector<256x8xf32>
    %22 = vector.broadcast %3 : vector<1x8xf32> to vector<256x8xf32>
    %23 = arith.addf %21, %22 : vector<256x8xf32>
    %cst_7 = arith.constant 0.000000e+00 : f32
    %24 = vector.broadcast %cst_7 : f32 to vector<256x8xf32>
    %25 = arith.maximumf %23, %24 : vector<256x8xf32>
    %26 = vector.shape_cast %25 : vector<256x8xf32> to vector<16x16x8xf32>
    %c0_8 = arith.constant 0 : index
    %c0_9 = arith.constant 0 : index
    %27 = vector.load %arg4[%c0_8, %c0_9] : memref<72x8xf32, #tpu.memory_space<vmem>>, vector<72x8xf32>
    %c0_10 = arith.constant 0 : index
    %c0_11 = arith.constant 0 : index
    %28 = vector.load %arg5[%c0_10, %c0_11] : memref<1x8xf32, #tpu.memory_space<vmem>>, vector<1x8xf32>
    %29 = vector.extract_strided_slice %26 {offsets = [15, 0, 0], sizes = [1, 16, 8], strides = [1, 1, 1]} : vector<16x16x8xf32> to vector<1x16x8xf32>
    %30 = vector.extract_strided_slice %26 {offsets = [0, 0, 0], sizes = [1, 16, 8], strides = [1, 1, 1]} : vector<16x16x8xf32> to vector<1x16x8xf32>
    %31 = tpu.concatenate %29, %26, %30 in 0 : vector<1x16x8xf32>, vector<16x16x8xf32>, vector<1x16x8xf32> -> vector<18x16x8xf32>
    %32 = vector.extract_strided_slice %31 {offsets = [0, 15, 0], sizes = [18, 1, 8], strides = [1, 1, 1]} : vector<18x16x8xf32> to vector<18x1x8xf32>
    %33 = vector.extract_strided_slice %31 {offsets = [0, 0, 0], sizes = [18, 1, 8], strides = [1, 1, 1]} : vector<18x16x8xf32> to vector<18x1x8xf32>
    %34 = tpu.concatenate %32, %31, %33 in 1 : vector<18x1x8xf32>, vector<18x16x8xf32>, vector<18x1x8xf32> -> vector<18x18x8xf32>
    %35 = vector.extract_strided_slice %34 {offsets = [0, 0, 0], sizes = [16, 16, 8], strides = [1, 1, 1]} : vector<18x18x8xf32> to vector<16x16x8xf32>
    %36 = vector.extract_strided_slice %34 {offsets = [0, 1, 0], sizes = [16, 16, 8], strides = [1, 1, 1]} : vector<18x18x8xf32> to vector<16x16x8xf32>
    %37 = vector.extract_strided_slice %34 {offsets = [0, 2, 0], sizes = [16, 16, 8], strides = [1, 1, 1]} : vector<18x18x8xf32> to vector<16x16x8xf32>
    %38 = vector.extract_strided_slice %34 {offsets = [1, 0, 0], sizes = [16, 16, 8], strides = [1, 1, 1]} : vector<18x18x8xf32> to vector<16x16x8xf32>
    %39 = vector.extract_strided_slice %34 {offsets = [1, 1, 0], sizes = [16, 16, 8], strides = [1, 1, 1]} : vector<18x18x8xf32> to vector<16x16x8xf32>
    %40 = vector.extract_strided_slice %34 {offsets = [1, 2, 0], sizes = [16, 16, 8], strides = [1, 1, 1]} : vector<18x18x8xf32> to vector<16x16x8xf32>
    %41 = vector.extract_strided_slice %34 {offsets = [2, 0, 0], sizes = [16, 16, 8], strides = [1, 1, 1]} : vector<18x18x8xf32> to vector<16x16x8xf32>
    %42 = vector.extract_strided_slice %34 {offsets = [2, 1, 0], sizes = [16, 16, 8], strides = [1, 1, 1]} : vector<18x18x8xf32> to vector<16x16x8xf32>
    %43 = vector.extract_strided_slice %34 {offsets = [2, 2, 0], sizes = [16, 16, 8], strides = [1, 1, 1]} : vector<18x18x8xf32> to vector<16x16x8xf32>
    %44 = tpu.concatenate %35, %36, %37, %38, %39, %40, %41, %42, %43 in 2 : vector<16x16x8xf32>, vector<16x16x8xf32>, vector<16x16x8xf32>, vector<16x16x8xf32>, vector<16x16x8xf32>, vector<16x16x8xf32>, vector<16x16x8xf32>, vector<16x16x8xf32>, vector<16x16x8xf32> -> vector<16x16x72xf32>
    %45 = vector.shape_cast %44 : vector<16x16x72xf32> to vector<256x72xf32>
    %cst_12 = arith.constant dense<0.000000e+00> : vector<256x8xf32>
    %46 = tpu.matmul %45, %27, %cst_12 {dimension_numbers = #tpu.dot_dimension_numbers<[1], [0], [0], [1], [0, 0, 1, 1], [], []>} : vector<256x72xf32>, vector<72x8xf32>, vector<256x8xf32> -> vector<256x8xf32>
    %47 = vector.broadcast %28 : vector<1x8xf32> to vector<256x8xf32>
    %48 = arith.addf %46, %47 : vector<256x8xf32>
    %cst_13 = arith.constant 0.000000e+00 : f32
    %49 = vector.broadcast %cst_13 : f32 to vector<256x8xf32>
    %50 = arith.maximumf %48, %49 : vector<256x8xf32>
    %51 = vector.shape_cast %50 : vector<256x8xf32> to vector<16x16x8xf32>
    %c0_14 = arith.constant 0 : index
    %c0_15 = arith.constant 0 : index
    %52 = vector.load %arg6[%c0_14, %c0_15] : memref<72x8xf32, #tpu.memory_space<vmem>>, vector<72x8xf32>
    %53 = vector.extract_strided_slice %51 {offsets = [15, 0, 0], sizes = [1, 16, 8], strides = [1, 1, 1]} : vector<16x16x8xf32> to vector<1x16x8xf32>
    %54 = vector.extract_strided_slice %51 {offsets = [0, 0, 0], sizes = [1, 16, 8], strides = [1, 1, 1]} : vector<16x16x8xf32> to vector<1x16x8xf32>
    %55 = tpu.concatenate %53, %51, %54 in 0 : vector<1x16x8xf32>, vector<16x16x8xf32>, vector<1x16x8xf32> -> vector<18x16x8xf32>
    %56 = vector.extract_strided_slice %55 {offsets = [0, 15, 0], sizes = [18, 1, 8], strides = [1, 1, 1]} : vector<18x16x8xf32> to vector<18x1x8xf32>
    %57 = vector.extract_strided_slice %55 {offsets = [0, 0, 0], sizes = [18, 1, 8], strides = [1, 1, 1]} : vector<18x16x8xf32> to vector<18x1x8xf32>
    %58 = tpu.concatenate %56, %55, %57 in 1 : vector<18x1x8xf32>, vector<18x16x8xf32>, vector<18x1x8xf32> -> vector<18x18x8xf32>
    %59 = vector.extract_strided_slice %58 {offsets = [0, 0, 0], sizes = [16, 16, 8], strides = [1, 1, 1]} : vector<18x18x8xf32> to vector<16x16x8xf32>
    %60 = vector.extract_strided_slice %58 {offsets = [0, 1, 0], sizes = [16, 16, 8], strides = [1, 1, 1]} : vector<18x18x8xf32> to vector<16x16x8xf32>
    %61 = vector.extract_strided_slice %58 {offsets = [0, 2, 0], sizes = [16, 16, 8], strides = [1, 1, 1]} : vector<18x18x8xf32> to vector<16x16x8xf32>
    %62 = vector.extract_strided_slice %58 {offsets = [1, 0, 0], sizes = [16, 16, 8], strides = [1, 1, 1]} : vector<18x18x8xf32> to vector<16x16x8xf32>
    %63 = vector.extract_strided_slice %58 {offsets = [1, 1, 0], sizes = [16, 16, 8], strides = [1, 1, 1]} : vector<18x18x8xf32> to vector<16x16x8xf32>
    %64 = vector.extract_strided_slice %58 {offsets = [1, 2, 0], sizes = [16, 16, 8], strides = [1, 1, 1]} : vector<18x18x8xf32> to vector<16x16x8xf32>
    %65 = vector.extract_strided_slice %58 {offsets = [2, 0, 0], sizes = [16, 16, 8], strides = [1, 1, 1]} : vector<18x18x8xf32> to vector<16x16x8xf32>
    %66 = vector.extract_strided_slice %58 {offsets = [2, 1, 0], sizes = [16, 16, 8], strides = [1, 1, 1]} : vector<18x18x8xf32> to vector<16x16x8xf32>
    %67 = vector.extract_strided_slice %58 {offsets = [2, 2, 0], sizes = [16, 16, 8], strides = [1, 1, 1]} : vector<18x18x8xf32> to vector<16x16x8xf32>
    %68 = tpu.concatenate %59, %60, %61, %62, %63, %64, %65, %66, %67 in 2 : vector<16x16x8xf32>, vector<16x16x8xf32>, vector<16x16x8xf32>, vector<16x16x8xf32>, vector<16x16x8xf32>, vector<16x16x8xf32>, vector<16x16x8xf32>, vector<16x16x8xf32>, vector<16x16x8xf32> -> vector<16x16x72xf32>
    %69 = vector.shape_cast %68 : vector<16x16x72xf32> to vector<256x72xf32>
    %cst_16 = arith.constant dense<0.000000e+00> : vector<256x8xf32>
    %70 = tpu.matmul %69, %52, %cst_16 {dimension_numbers = #tpu.dot_dimension_numbers<[1], [0], [0], [1], [0, 0, 1, 1], [], []>} : vector<256x72xf32>, vector<72x8xf32>, vector<256x8xf32> -> vector<256x8xf32>
    %71 = vector.shape_cast %70 : vector<256x8xf32> to vector<16x16x8xf32>
    %72 = arith.addf %71, %26 : vector<16x16x8xf32>
    %c0_17 = arith.constant 0 : index
    %c0_18 = arith.constant 0 : index
    %73 = vector.load %arg7[%c0_17, %c0_18] : memref<1x8xf32, #tpu.memory_space<vmem>>, vector<1x8xf32>
    %c0_19 = arith.constant 0 : index
    %c0_20 = arith.constant 0 : index
    %74 = vector.load %arg8[%c0_19, %c0_20] : memref<1x8xf32, #tpu.memory_space<vmem>>, vector<1x8xf32>
    %75 = vector.shape_cast %73 : vector<1x8xf32> to vector<8xf32>
    %76 = vector.shape_cast %75 : vector<8xf32> to vector<1x1x8xf32>
    %77 = vector.broadcast %76 : vector<1x1x8xf32> to vector<16x16x8xf32>
    %78 = arith.mulf %72, %77 : vector<16x16x8xf32>
    %79 = vector.shape_cast %74 : vector<1x8xf32> to vector<8xf32>
    %80 = vector.shape_cast %79 : vector<8xf32> to vector<1x1x8xf32>
    %81 = vector.broadcast %80 : vector<1x1x8xf32> to vector<16x16x8xf32>
    %82 = arith.addf %78, %81 : vector<16x16x8xf32>
    %cst_21 = arith.constant 0.000000e+00 : f32
    %83 = vector.broadcast %cst_21 : f32 to vector<16x16x8xf32>
    %84 = arith.maximumf %82, %83 : vector<16x16x8xf32>
    %c0_22 = arith.constant 0 : index
    %c0_23 = arith.constant 0 : index
    %85 = vector.load %arg9[%c0_22, %c0_23] : memref<72x16xf32, #tpu.memory_space<vmem>>, vector<72x16xf32>
    %c0_24 = arith.constant 0 : index
    %c0_25 = arith.constant 0 : index
    %86 = vector.load %arg10[%c0_24, %c0_25] : memref<1x16xf32, #tpu.memory_space<vmem>>, vector<1x16xf32>
    %87 = vector.extract_strided_slice %84 {offsets = [15, 0, 0], sizes = [1, 16, 8], strides = [1, 1, 1]} : vector<16x16x8xf32> to vector<1x16x8xf32>
    %88 = vector.extract_strided_slice %84 {offsets = [0, 0, 0], sizes = [1, 16, 8], strides = [1, 1, 1]} : vector<16x16x8xf32> to vector<1x16x8xf32>
    %89 = tpu.concatenate %87, %84, %88 in 0 : vector<1x16x8xf32>, vector<16x16x8xf32>, vector<1x16x8xf32> -> vector<18x16x8xf32>
    %90 = vector.extract_strided_slice %89 {offsets = [0, 15, 0], sizes = [18, 1, 8], strides = [1, 1, 1]} : vector<18x16x8xf32> to vector<18x1x8xf32>
    %91 = vector.extract_strided_slice %89 {offsets = [0, 0, 0], sizes = [18, 1, 8], strides = [1, 1, 1]} : vector<18x16x8xf32> to vector<18x1x8xf32>
    %92 = tpu.concatenate %90, %89, %91 in 1 : vector<18x1x8xf32>, vector<18x16x8xf32>, vector<18x1x8xf32> -> vector<18x18x8xf32>
    %93 = vector.extract_strided_slice %92 {offsets = [0, 0, 0], sizes = [16, 16, 8], strides = [1, 1, 1]} : vector<18x18x8xf32> to vector<16x16x8xf32>
    %94 = vector.extract_strided_slice %92 {offsets = [0, 1, 0], sizes = [16, 16, 8], strides = [1, 1, 1]} : vector<18x18x8xf32> to vector<16x16x8xf32>
    %95 = vector.extract_strided_slice %92 {offsets = [0, 2, 0], sizes = [16, 16, 8], strides = [1, 1, 1]} : vector<18x18x8xf32> to vector<16x16x8xf32>
    %96 = vector.extract_strided_slice %92 {offsets = [1, 0, 0], sizes = [16, 16, 8], strides = [1, 1, 1]} : vector<18x18x8xf32> to vector<16x16x8xf32>
    %97 = vector.extract_strided_slice %92 {offsets = [1, 1, 0], sizes = [16, 16, 8], strides = [1, 1, 1]} : vector<18x18x8xf32> to vector<16x16x8xf32>
    %98 = vector.extract_strided_slice %92 {offsets = [1, 2, 0], sizes = [16, 16, 8], strides = [1, 1, 1]} : vector<18x18x8xf32> to vector<16x16x8xf32>
    %99 = vector.extract_strided_slice %92 {offsets = [2, 0, 0], sizes = [16, 16, 8], strides = [1, 1, 1]} : vector<18x18x8xf32> to vector<16x16x8xf32>
    %100 = vector.extract_strided_slice %92 {offsets = [2, 1, 0], sizes = [16, 16, 8], strides = [1, 1, 1]} : vector<18x18x8xf32> to vector<16x16x8xf32>
    %101 = vector.extract_strided_slice %92 {offsets = [2, 2, 0], sizes = [16, 16, 8], strides = [1, 1, 1]} : vector<18x18x8xf32> to vector<16x16x8xf32>
    %102 = tpu.concatenate %93, %94, %95, %96, %97, %98, %99, %100, %101 in 2 : vector<16x16x8xf32>, vector<16x16x8xf32>, vector<16x16x8xf32>, vector<16x16x8xf32>, vector<16x16x8xf32>, vector<16x16x8xf32>, vector<16x16x8xf32>, vector<16x16x8xf32>, vector<16x16x8xf32> -> vector<16x16x72xf32>
    %103 = vector.shape_cast %102 : vector<16x16x72xf32> to vector<256x72xf32>
    %cst_26 = arith.constant dense<0.000000e+00> : vector<256x16xf32>
    %104 = tpu.matmul %103, %85, %cst_26 {dimension_numbers = #tpu.dot_dimension_numbers<[1], [0], [0], [1], [0, 0, 1, 1], [], []>} : vector<256x72xf32>, vector<72x16xf32>, vector<256x16xf32> -> vector<256x16xf32>
    %105 = vector.broadcast %86 : vector<1x16xf32> to vector<256x16xf32>
    %106 = arith.addf %104, %105 : vector<256x16xf32>
    %cst_27 = arith.constant 0.000000e+00 : f32
    %107 = vector.broadcast %cst_27 : f32 to vector<256x16xf32>
    %108 = arith.maximumf %106, %107 : vector<256x16xf32>
    %109 = vector.shape_cast %108 : vector<256x16xf32> to vector<16x16x16xf32>
    %c0_28 = arith.constant 0 : index
    %c0_29 = arith.constant 0 : index
    %110 = vector.load %arg11[%c0_28, %c0_29] : memref<144x16xf32, #tpu.memory_space<vmem>>, vector<144x16xf32>
    %111 = vector.extract_strided_slice %109 {offsets = [15, 0, 0], sizes = [1, 16, 16], strides = [1, 1, 1]} : vector<16x16x16xf32> to vector<1x16x16xf32>
    %112 = vector.extract_strided_slice %109 {offsets = [0, 0, 0], sizes = [1, 16, 16], strides = [1, 1, 1]} : vector<16x16x16xf32> to vector<1x16x16xf32>
    %113 = tpu.concatenate %111, %109, %112 in 0 : vector<1x16x16xf32>, vector<16x16x16xf32>, vector<1x16x16xf32> -> vector<18x16x16xf32>
    %114 = vector.extract_strided_slice %113 {offsets = [0, 15, 0], sizes = [18, 1, 16], strides = [1, 1, 1]} : vector<18x16x16xf32> to vector<18x1x16xf32>
    %115 = vector.extract_strided_slice %113 {offsets = [0, 0, 0], sizes = [18, 1, 16], strides = [1, 1, 1]} : vector<18x16x16xf32> to vector<18x1x16xf32>
    %116 = tpu.concatenate %114, %113, %115 in 1 : vector<18x1x16xf32>, vector<18x16x16xf32>, vector<18x1x16xf32> -> vector<18x18x16xf32>
    %117 = vector.extract_strided_slice %116 {offsets = [0, 0, 0], sizes = [16, 16, 16], strides = [1, 1, 1]} : vector<18x18x16xf32> to vector<16x16x16xf32>
    %118 = vector.extract_strided_slice %116 {offsets = [0, 1, 0], sizes = [16, 16, 16], strides = [1, 1, 1]} : vector<18x18x16xf32> to vector<16x16x16xf32>
    %119 = vector.extract_strided_slice %116 {offsets = [0, 2, 0], sizes = [16, 16, 16], strides = [1, 1, 1]} : vector<18x18x16xf32> to vector<16x16x16xf32>
    %120 = vector.extract_strided_slice %116 {offsets = [1, 0, 0], sizes = [16, 16, 16], strides = [1, 1, 1]} : vector<18x18x16xf32> to vector<16x16x16xf32>
    %121 = vector.extract_strided_slice %116 {offsets = [1, 1, 0], sizes = [16, 16, 16], strides = [1, 1, 1]} : vector<18x18x16xf32> to vector<16x16x16xf32>
    %122 = vector.extract_strided_slice %116 {offsets = [1, 2, 0], sizes = [16, 16, 16], strides = [1, 1, 1]} : vector<18x18x16xf32> to vector<16x16x16xf32>
    %123 = vector.extract_strided_slice %116 {offsets = [2, 0, 0], sizes = [16, 16, 16], strides = [1, 1, 1]} : vector<18x18x16xf32> to vector<16x16x16xf32>
    %124 = vector.extract_strided_slice %116 {offsets = [2, 1, 0], sizes = [16, 16, 16], strides = [1, 1, 1]} : vector<18x18x16xf32> to vector<16x16x16xf32>
    %125 = vector.extract_strided_slice %116 {offsets = [2, 2, 0], sizes = [16, 16, 16], strides = [1, 1, 1]} : vector<18x18x16xf32> to vector<16x16x16xf32>
    %126 = tpu.concatenate %117, %118, %119, %120, %121, %122, %123, %124, %125 in 2 : vector<16x16x16xf32>, vector<16x16x16xf32>, vector<16x16x16xf32>, vector<16x16x16xf32>, vector<16x16x16xf32>, vector<16x16x16xf32>, vector<16x16x16xf32>, vector<16x16x16xf32>, vector<16x16x16xf32> -> vector<16x16x144xf32>
    %127 = vector.shape_cast %126 : vector<16x16x144xf32> to vector<256x144xf32>
    %cst_30 = arith.constant dense<0.000000e+00> : vector<256x16xf32>
    %128 = tpu.matmul %127, %110, %cst_30 {dimension_numbers = #tpu.dot_dimension_numbers<[1], [0], [0], [1], [0, 0, 1, 1], [], []>} : vector<256x144xf32>, vector<144x16xf32>, vector<256x16xf32> -> vector<256x16xf32>
    %129 = vector.shape_cast %128 : vector<256x16xf32> to vector<16x16x16xf32>
    %cst_31 = arith.constant 0.000000e+00 : f32
    %130 = vector.broadcast %cst_31 : f32 to vector<16x16x4xf32>
    %cst_32 = arith.constant 0.000000e+00 : f32
    %131 = vector.broadcast %cst_32 : f32 to vector<16x16x4xf32>
    %132 = tpu.concatenate %130, %72, %131 in 2 : vector<16x16x4xf32>, vector<16x16x8xf32>, vector<16x16x4xf32> -> vector<16x16x16xf32>
    %133 = arith.addf %129, %132 : vector<16x16x16xf32>
    %c0_33 = arith.constant 0 : index
    %c0_34 = arith.constant 0 : index
    %134 = vector.load %arg12[%c0_33, %c0_34] : memref<1x16xf32, #tpu.memory_space<vmem>>, vector<1x16xf32>
    %c0_35 = arith.constant 0 : index
    %c0_36 = arith.constant 0 : index
    %135 = vector.load %arg13[%c0_35, %c0_36] : memref<1x16xf32, #tpu.memory_space<vmem>>, vector<1x16xf32>
    %136 = vector.shape_cast %134 : vector<1x16xf32> to vector<16xf32>
    %137 = vector.shape_cast %136 : vector<16xf32> to vector<1x1x16xf32>
    %138 = vector.broadcast %137 : vector<1x1x16xf32> to vector<16x16x16xf32>
    %139 = arith.mulf %133, %138 : vector<16x16x16xf32>
    %140 = vector.shape_cast %135 : vector<1x16xf32> to vector<16xf32>
    %141 = vector.shape_cast %140 : vector<16xf32> to vector<1x1x16xf32>
    %142 = vector.broadcast %141 : vector<1x1x16xf32> to vector<16x16x16xf32>
    %143 = arith.addf %139, %142 : vector<16x16x16xf32>
    %cst_37 = arith.constant 0.000000e+00 : f32
    %144 = vector.broadcast %cst_37 : f32 to vector<16x16x16xf32>
    %145 = arith.maximumf %143, %144 : vector<16x16x16xf32>
    %c0_38 = arith.constant 0 : index
    %c0_39 = arith.constant 0 : index
    %146 = vector.load %arg14[%c0_38, %c0_39] : memref<144x4xf32, #tpu.memory_space<vmem>>, vector<144x4xf32>
    %147 = vector.extract_strided_slice %145 {offsets = [15, 0, 0], sizes = [1, 16, 16], strides = [1, 1, 1]} : vector<16x16x16xf32> to vector<1x16x16xf32>
    %148 = vector.extract_strided_slice %145 {offsets = [0, 0, 0], sizes = [1, 16, 16], strides = [1, 1, 1]} : vector<16x16x16xf32> to vector<1x16x16xf32>
    %149 = tpu.concatenate %147, %145, %148 in 0 : vector<1x16x16xf32>, vector<16x16x16xf32>, vector<1x16x16xf32> -> vector<18x16x16xf32>
    %150 = vector.extract_strided_slice %149 {offsets = [0, 15, 0], sizes = [18, 1, 16], strides = [1, 1, 1]} : vector<18x16x16xf32> to vector<18x1x16xf32>
    %151 = vector.extract_strided_slice %149 {offsets = [0, 0, 0], sizes = [18, 1, 16], strides = [1, 1, 1]} : vector<18x16x16xf32> to vector<18x1x16xf32>
    %152 = tpu.concatenate %150, %149, %151 in 1 : vector<18x1x16xf32>, vector<18x16x16xf32>, vector<18x1x16xf32> -> vector<18x18x16xf32>
    %153 = vector.extract_strided_slice %152 {offsets = [0, 0, 0], sizes = [16, 16, 16], strides = [1, 1, 1]} : vector<18x18x16xf32> to vector<16x16x16xf32>
    %154 = vector.extract_strided_slice %152 {offsets = [0, 1, 0], sizes = [16, 16, 16], strides = [1, 1, 1]} : vector<18x18x16xf32> to vector<16x16x16xf32>
    %155 = vector.extract_strided_slice %152 {offsets = [0, 2, 0], sizes = [16, 16, 16], strides = [1, 1, 1]} : vector<18x18x16xf32> to vector<16x16x16xf32>
    %156 = vector.extract_strided_slice %152 {offsets = [1, 0, 0], sizes = [16, 16, 16], strides = [1, 1, 1]} : vector<18x18x16xf32> to vector<16x16x16xf32>
    %157 = vector.extract_strided_slice %152 {offsets = [1, 1, 0], sizes = [16, 16, 16], strides = [1, 1, 1]} : vector<18x18x16xf32> to vector<16x16x16xf32>
    %158 = vector.extract_strided_slice %152 {offsets = [1, 2, 0], sizes = [16, 16, 16], strides = [1, 1, 1]} : vector<18x18x16xf32> to vector<16x16x16xf32>
    %159 = vector.extract_strided_slice %152 {offsets = [2, 0, 0], sizes = [16, 16, 16], strides = [1, 1, 1]} : vector<18x18x16xf32> to vector<16x16x16xf32>
    %160 = vector.extract_strided_slice %152 {offsets = [2, 1, 0], sizes = [16, 16, 16], strides = [1, 1, 1]} : vector<18x18x16xf32> to vector<16x16x16xf32>
    %161 = vector.extract_strided_slice %152 {offsets = [2, 2, 0], sizes = [16, 16, 16], strides = [1, 1, 1]} : vector<18x18x16xf32> to vector<16x16x16xf32>
    %162 = tpu.concatenate %153, %154, %155, %156, %157, %158, %159, %160, %161 in 2 : vector<16x16x16xf32>, vector<16x16x16xf32>, vector<16x16x16xf32>, vector<16x16x16xf32>, vector<16x16x16xf32>, vector<16x16x16xf32>, vector<16x16x16xf32>, vector<16x16x16xf32>, vector<16x16x16xf32> -> vector<16x16x144xf32>
    %163 = vector.shape_cast %162 : vector<16x16x144xf32> to vector<256x144xf32>
    %cst_40 = arith.constant dense<0.000000e+00> : vector<256x4xf32>
    %164 = tpu.matmul %163, %146, %cst_40 {dimension_numbers = #tpu.dot_dimension_numbers<[1], [0], [0], [1], [0, 0, 1, 1], [], []>} : vector<256x144xf32>, vector<144x4xf32>, vector<256x4xf32> -> vector<256x4xf32>
    %165 = vector.shape_cast %164 : vector<256x4xf32> to vector<16x16x4xf32>
    %c0_41 = arith.constant 0 : index
    %c0_42 = arith.constant 0 : index
    %c0_43 = arith.constant 0 : index
    %c0_44 = arith.constant 0 : index
    %166 = vector.load %arg15[%c0_41, %c0_42, %c0_43, %c0_44] : memref<1x16x16x4xf32, #tpu.memory_space<vmem>>, vector<1x16x16x4xf32>
    %167 = vector.shape_cast %166 : vector<1x16x16x4xf32> to vector<16x16x4xf32>
    %168 = vector.shape_cast %165 : vector<16x16x4xf32> to vector<1x16x16x4xf32>
    tpu.vector_store %arg15[%c0_41, %c0_42, %c0_43, %c0_44], %168 {strides = array<i32>} : memref<1x16x16x4xf32, #tpu.memory_space<vmem>>, vector<1x16x16x4xf32>,
    return
  }
  func.func @transform_0(%arg0: i32) -> (i32, i32, i32, i32) {
    %c0_i32 = arith.constant 0 : i32
    %c0_i32_0 = arith.constant 0 : i32
    %c0_i32_1 = arith.constant 0 : i32
    %c0_i32_2 = arith.constant 0 : i32
    return %arg0, %c0_i32, %c0_i32_0, %c0_i32_1 : i32, i32, i32, i32
  }
  func.func @transform_1(%arg0: i32) -> (i32, i32) {
    %c0_i32 = arith.constant 0 : i32
    %c0_i32_0 = arith.constant 0 : i32
    %c0_i32_1 = arith.constant 0 : i32
    return %c0_i32, %c0_i32_0 : i32, i32
  }
  func.func @transform_2(%arg0: i32) -> (i32, i32) {
    %c0_i32 = arith.constant 0 : i32
    %c0_i32_0 = arith.constant 0 : i32
    %c0_i32_1 = arith.constant 0 : i32
    return %c0_i32, %c0_i32_0 : i32, i32
  }
  func.func @transform_3(%arg0: i32) -> (i32, i32) {
    %c0_i32 = arith.constant 0 : i32
    %c0_i32_0 = arith.constant 0 : i32
    %c0_i32_1 = arith.constant 0 : i32
    return %c0_i32, %c0_i32_0 : i32, i32
  }
  func.func @transform_4(%arg0: i32) -> (i32, i32) {
    %c0_i32 = arith.constant 0 : i32
    %c0_i32_0 = arith.constant 0 : i32
    %c0_i32_1 = arith.constant 0 : i32
    return %c0_i32, %c0_i32_0 : i32, i32
  }
  func.func @transform_5(%arg0: i32) -> (i32, i32) {
    %c0_i32 = arith.constant 0 : i32
    %c0_i32_0 = arith.constant 0 : i32
    %c0_i32_1 = arith.constant 0 : i32
    return %c0_i32, %c0_i32_0 : i32, i32
  }
  func.func @transform_6(%arg0: i32) -> (i32, i32) {
    %c0_i32 = arith.constant 0 : i32
    %c0_i32_0 = arith.constant 0 : i32
    %c0_i32_1 = arith.constant 0 : i32
    return %c0_i32, %c0_i32_0 : i32, i32
  }
  func.func @transform_7(%arg0: i32) -> (i32, i32) {
    %c0_i32 = arith.constant 0 : i32
    %c0_i32_0 = arith.constant 0 : i32
    %c0_i32_1 = arith.constant 0 : i32
    return %c0_i32, %c0_i32_0 : i32, i32
  }
  func.func @transform_8(%arg0: i32) -> (i32, i32) {
    %c0_i32 = arith.constant 0 : i32
    %c0_i32_0 = arith.constant 0 : i32
    %c0_i32_1 = arith.constant 0 : i32
    return %c0_i32, %c0_i32_0 : i32, i32
  }
  func.func @transform_9(%arg0: i32) -> (i32, i32) {
    %c0_i32 = arith.constant 0 : i32
    %c0_i32_0 = arith.constant 0 : i32
    %c0_i32_1 = arith.constant 0 : i32
    return %c0_i32, %c0_i32_0 : i32, i32
  }
  func.func @transform_10(%arg0: i32) -> (i32, i32) {
    %c0_i32 = arith.constant 0 : i32
    %c0_i32_0 = arith.constant 0 : i32
    %c0_i32_1 = arith.constant 0 : i32
    return %c0_i32, %c0_i32_0 : i32, i32
  }
  func.func @transform_11(%arg0: i32) -> (i32, i32) {
    %c0_i32 = arith.constant 0 : i32
    %c0_i32_0 = arith.constant 0 : i32
    %c0_i32_1 = arith.constant 0 : i32
    return %c0_i32, %c0_i32_0 : i32, i32
  }
  func.func @transform_12(%arg0: i32) -> (i32, i32) {
    %c0_i32 = arith.constant 0 : i32
    %c0_i32_0 = arith.constant 0 : i32
    %c0_i32_1 = arith.constant 0 : i32
    return %c0_i32, %c0_i32_0 : i32, i32
  }
  func.func @transform_13(%arg0: i32) -> (i32, i32) {
    %c0_i32 = arith.constant 0 : i32
    %c0_i32_0 = arith.constant 0 : i32
    %c0_i32_1 = arith.constant 0 : i32
    return %c0_i32, %c0_i32_0 : i32, i32
  }
  func.func @transform_14(%arg0: i32) -> (i32, i32, i32, i32) {
    %c0_i32 = arith.constant 0 : i32
    %c0_i32_0 = arith.constant 0 : i32
    %c0_i32_1 = arith.constant 0 : i32
    %c0_i32_2 = arith.constant 0 : i32
    return %arg0, %c0_i32, %c0_i32_0, %c0_i32_1 : i32, i32, i32, i32
  }
}

</mosaic_0001>

<llo_original>
// kernel: resnet2d_forward.1
$region0: #{resnet2d_forward.1}
  #allocation0 [shape = 'u32[]', space=smem, size = 0x4, offset = 0x4, fixed_abs, tag = 'smem constant byte address 0x4 - core index']
  #allocation1 [shape = 'u32[144,128]{1,0:T(1,128)}', space=vmem, size = 0x12000, scoped, tag = 'internal scratch']
  %s0 = inlined_call_operand.vmem [shape: f32[2,16,16,4], index: 0, kind: input, shape index: {}]
  %s1 = inlined_call_operand.vmem [shape: f32[36,8], index: 1, kind: input, shape index: {}]
  %s2 = inlined_call_operand.vmem [shape: f32[1,8], index: 2, kind: input, shape index: {}]
  %s3 = inlined_call_operand.vmem [shape: f32[72,8], index: 3, kind: input, shape index: {}]
  %s4 = inlined_call_operand.vmem [shape: f32[1,8], index: 4, kind: input, shape index: {}]
  %s5 = inlined_call_operand.vmem [shape: f32[72,8], index: 5, kind: input, shape index: {}]
  %s6 = inlined_call_operand.vmem [shape: f32[1,8], index: 6, kind: input, shape index: {}]
  %s7 = inlined_call_operand.vmem [shape: f32[1,8], index: 7, kind: input, shape index: {}]
  %s8 = inlined_call_operand.vmem [shape: f32[72,16], index: 8, kind: input, shape index: {}]
  %s9 = inlined_call_operand.vmem [shape: f32[1,16], index: 9, kind: input, shape index: {}]
  %s10 = inlined_call_operand.vmem [shape: f32[144,16], index: 10, kind: input, shape index: {}]
  %s11 = inlined_call_operand.vmem [shape: f32[1,16], index: 11, kind: input, shape index: {}]
  %s12 = inlined_call_operand.vmem [shape: f32[1,16], index: 12, kind: input, shape index: {}]
  %s13 = inlined_call_operand.vmem [shape: f32[144,4], index: 13, kind: input, shape index: {}]
  %s14 = inlined_call_operand.vmem [shape: f32[2,16,16,4], index: 14, kind: output, shape index: {}]
  %s15 = sld [smem:[#allocation0]]
  $region89: #{resnet2d_forward.1} parent=0
    _
  %s17 = ssub.s32 1, %s15
  %s18 = scalar_select 0, %s17, %s15
  loop: start=0, step=1, limit=4
  $region2: #{resnet2d_forward.1} parent=0 // loop_pre_header
    _
  $region3: #{resnet2d_forward.1} parent=0 // loop_header
    %s20 = sphi 0, %s24
    %p21 = scmp.ge.s32.totalorder %s20, 4
    %s30 = sphi 0, %s32
    %s33 = sphi 0, %s30
    %s34 = sphi 0, %s33
    %s50 = sphi 0, %s34
    %s54 = sphi 0, %s54
    %s56 = sphi 0, %s54
    %s57 = sphi 0, %s56
    %s71 = sphi 0, %s57
    %s75 = sphi 0, %s75
    %s77 = sphi 0, %s75
    %s78 = sphi 0, %s77
    %s92 = sphi 0, %s78
    %s96 = sphi 0, %s96
    %s98 = sphi 0, %s96
    %s99 = sphi 0, %s98
    %s113 = sphi 0, %s99
    %s117 = sphi 0, %s117
    %s119 = sphi 0, %s117
    %s120 = sphi 0, %s119
    %s134 = sphi 0, %s120
    %s138 = sphi 0, %s138
    %s140 = sphi 0, %s138
    %s141 = sphi 0, %s140
    %s155 = sphi 0, %s141
    %s159 = sphi 0, %s159
    %s161 = sphi 0, %s159
    %s162 = sphi 0, %s161
    %s176 = sphi 0, %s162
    %s180 = sphi 0, %s180
    %s182 = sphi 0, %s180
    %s183 = sphi 0, %s182
    %s197 = sphi 0, %s183
    %s201 = sphi 0, %s201
    %s203 = sphi 0, %s201
    %s204 = sphi 0, %s203
    %s218 = sphi 0, %s204
    %s222 = sphi 0, %s222
    %s224 = sphi 0, %s222
    %s225 = sphi 0, %s224
    %s239 = sphi 0, %s225
    %s243 = sphi 0, %s243
    %s245 = sphi 0, %s243
    %s246 = sphi 0, %s245
    %s260 = sphi 0, %s246
    %s264 = sphi 0, %s264
    %s266 = sphi 0, %s264
    %s267 = sphi 0, %s266
    %s281 = sphi 0, %s267
    %s285 = sphi 0, %s285
    %s287 = sphi 0, %s285
    %s288 = sphi 0, %s287
    %s302 = sphi 0, %s288
    %s306 = sphi 0, %s306
    %s308 = sphi 0, %s306
    %s309 = sphi 0, %s308
    %s323 = sphi 0, %s309
    %s329 = sphi 0, %s331
    %s332 = sphi 0, %s329
    %s333 = sphi 0, %s332
    %s349 = sphi 0, %s333
  $region4: #{resnet2d_forward.1} parent=0 // loop_header_branch
    %23 = sbr.rel (%p21) target = $region8
  $region5: #{resnet2d_forward.1} parent=0 // loop_body
    %s25 = ssub.s32 %s20, 1
    %s26 = ssub.s32 %s20, 2
    %s27 = sadd.s32 %s20, 1
    %s28 = ssub.s32 %s20, %s27
    %p29 = scmp.eq.s32.totalorder %s28, 0
    %s31 = sadd.s32 %s30, 1
    %s32 = scalar_select %p29, %s30, %s31
    %p35 = pneg %p29
    %p36 = scmp.eq.s32.totalorder %s20, 1
    %p37 = por %p35, %p36
    %p38 = scmp.ne.s32.totalorder %s30, %s33
    %p39 = scmp.eq.s32.totalorder %s20, 0
    %p40 = por %p38, %p39
    %p41 = scmp.ne.s32.totalorder %s30, %s33
    %p42 = scmp.eq.s32.totalorder %s25, 1
    %p43 = por %p41, %p42
    %p44 = scmp.ne.s32.totalorder %s33, %s34
    %p45 = scmp.eq.s32.totalorder %s25, 0
    %p46 = por %p44, %p45
    %p47 = scmp.ne.s32.totalorder %s33, %s34
    %p48 = scmp.eq.s32.totalorder %s26, 1
    %p49 = por %p47, %p48
    %p51 = scmp.ne.s32.totalorder %s34, %s50
    %p52 = scmp.eq.s32.totalorder %s26, 0
    %p53 = por %p51, %p52
    %s55 = sadd.s32 %s54, 1
    %p58 = scmp.eq.s32.totalorder %s20, 1
    %p59 = scmp.ne.s32.totalorder %s54, %s56
    %p60 = scmp.eq.s32.totalorder %s20, 0
    %p61 = por %p59, %p60
    %p62 = scmp.ne.s32.totalorder %s54, %s56
    %p63 = scmp.eq.s32.totalorder %s25, 1
    %p64 = por %p62, %p63
    %p65 = scmp.ne.s32.totalorder %s56, %s57
    %p66 = scmp.eq.s32.totalorder %s25, 0
    %p67 = por %p65, %p66
    %p68 = scmp.ne.s32.totalorder %s56, %s57
    %p69 = scmp.eq.s32.totalorder %s26, 1
    %p70 = por %p68, %p69
    %p72 = scmp.ne.s32.totalorder %s57, %s71
    %p73 = scmp.eq.s32.totalorder %s26, 0
    %p74 = por %p72, %p73
    %s76 = sadd.s32 %s75, 1
    %p79 = scmp.eq.s32.totalorder %s20, 1
    %p80 = scmp.ne.s32.totalorder %s75, %s77
    %p81 = scmp.eq.s32.totalorder %s20, 0
    %p82 = por %p80, %p81
    %p83 = scmp.ne.s32.totalorder %s75, %s77
    %p84 = scmp.eq.s32.totalorder %s25, 1
    %p85 = por %p83, %p84
    %p86 = scmp.ne.s32.totalorder %s77, %s78
    %p87 = scmp.eq.s32.totalorder %s25, 0
    %p88 = por %p86, %p87
    %p89 = scmp.ne.s32.totalorder %s77, %s78
    %p90 = scmp.eq.s32.totalorder %s26, 1
    %p91 = por %p89, %p90
    %p93 = scmp.ne.s32.totalorder %s78, %s92
    %p94 = scmp.eq.s32.totalorder %s26, 0
    %p95 = por %p93, %p94
    %s97 = sadd.s32 %s96, 1
    %p100 = scmp.eq.s32.totalorder %s20, 1
    %p101 = scmp.ne.s32.totalorder %s96, %s98
    %p102 = scmp.eq.s32.totalorder %s20, 0
    %p103 = por %p101, %p102
    %p104 = scmp.ne.s32.totalorder %s96, %s98
    %p105 = scmp.eq.s32.totalorder %s25, 1
    %p106 = por %p104, %p105
    %p107 = scmp.ne.s32.totalorder %s98, %s99
    %p108 = scmp.eq.s32.totalorder %s25, 0
    %p109 = por %p107, %p108
    %p110 = scmp.ne.s32.totalorder %s98, %s99
    %p111 = scmp.eq.s32.totalorder %s26, 1
    %p112 = por %p110, %p111
    %p114 = scmp.ne.s32.totalorder %s99, %s113
    %p115 = scmp.eq.s32.totalorder %s26, 0
    %p116 = por %p114, %p115
    %s118 = sadd.s32 %s117, 1
    %p121 = scmp.eq.s32.totalorder %s20, 1
    %p122 = scmp.ne.s32.totalorder %s117, %s119
    %p123 = scmp.eq.s32.totalorder %s20, 0
    %p124 = por %p122, %p123
    %p125 = scmp.ne.s32.totalorder %s117, %s119
    %p126 = scmp.eq.s32.totalorder %s25, 1
    %p127 = por %p125, %p126
    %p128 = scmp.ne.s32.totalorder %s119, %s120
    %p129 = scmp.eq.s32.totalorder %s25, 0
    %p130 = por %p128, %p129
    %p131 = scmp.ne.s32.totalorder %s119, %s120
    %p132 = scmp.eq.s32.totalorder %s26, 1
    %p133 = por %p131, %p132
    %p135 = scmp.ne.s32.totalorder %s120, %s134
    %p136 = scmp.eq.s32.totalorder %s26, 0
    %p137 = por %p135, %p136
    %s139 = sadd.s32 %s138, 1
    %p142 = scmp.eq.s32.totalorder %s20, 1
    %p143 = scmp.ne.s32.totalorder %s138, %s140
    %p144 = scmp.eq.s32.totalorder %s20, 0
    %p145 = por %p143, %p144
    %p146 = scmp.ne.s32.totalorder %s138, %s140
    %p147 = scmp.eq.s32.totalorder %s25, 1
    %p148 = por %p146, %p147
    %p149 = scmp.ne.s32.totalorder %s140, %s141
    %p150 = scmp.eq.s32.totalorder %s25, 0
    %p151 = por %p149, %p150
    %p152 = scmp.ne.s32.totalorder %s140, %s141
    %p153 = scmp.eq.s32.totalorder %s26, 1
    %p154 = por %p152, %p153
    %p156 = scmp.ne.s32.totalorder %s141, %s155
    %p157 = scmp.eq.s32.totalorder %s26, 0
    %p158 = por %p156, %p157
    %s160 = sadd.s32 %s159, 1
    %p163 = scmp.eq.s32.totalorder %s20, 1
    %p164 = scmp.ne.s32.totalorder %s159, %s161
    %p165 = scmp.eq.s32.totalorder %s20, 0
    %p166 = por %p164, %p165
    %p167 = scmp.ne.s32.totalorder %s159, %s161
    %p168 = scmp.eq.s32.totalorder %s25, 1
    %p169 = por %p167, %p168
    %p170 = scmp.ne.s32.totalorder %s161, %s162
    %p171 = scmp.eq.s32.totalorder %s25, 0
    %p172 = por %p170, %p171
    %p173 = scmp.ne.s32.totalorder %s161, %s162
    %p174 = scmp.eq.s32.totalorder %s26, 1
    %p175 = por %p173, %p174
    %p177 = scmp.ne.s32.totalorder %s162, %s176
    %p178 = scmp.eq.s32.totalorder %s26, 0
    %p179 = por %p177, %p178
    %s181 = sadd.s32 %s180, 1
    %p184 = scmp.eq.s32.totalorder %s20, 1
    %p185 = scmp.ne.s32.totalorder %s180, %s182
    %p186 = scmp.eq.s32.totalorder %s20, 0
    %p187 = por %p185, %p186
    %p188 = scmp.ne.s32.totalorder %s180, %s182
    %p189 = scmp.eq.s32.totalorder %s25, 1
    %p190 = por %p188, %p189
    %p191 = scmp.ne.s32.totalorder %s182, %s183
    %p192 = scmp.eq.s32.totalorder %s25, 0
    %p193 = por %p191, %p192
    %p194 = scmp.ne.s32.totalorder %s182, %s183
    %p195 = scmp.eq.s32.totalorder %s26, 1
    %p196 = por %p194, %p195
    %p198 = scmp.ne.s32.totalorder %s183, %s197
    %p199 = scmp.eq.s32.totalorder %s26, 0
    %p200 = por %p198, %p199
    %s202 = sadd.s32 %s201, 1
    %p205 = scmp.eq.s32.totalorder %s20, 1
    %p206 = scmp.ne.s32.totalorder %s201, %s203
    %p207 = scmp.eq.s32.totalorder %s20, 0
    %p208 = por %p206, %p207
    %p209 = scmp.ne.s32.totalorder %s201, %s203
    %p210 = scmp.eq.s32.totalorder %s25, 1
    %p211 = por %p209, %p210
    %p212 = scmp.ne.s32.totalorder %s203, %s204
    %p213 = scmp.eq.s32.totalorder %s25, 0
    %p214 = por %p212, %p213
    %p215 = scmp.ne.s32.totalorder %s203, %s204
    %p216 = scmp.eq.s32.totalorder %s26, 1
    %p217 = por %p215, %p216
    %p219 = scmp.ne.s32.totalorder %s204, %s218
    %p220 = scmp.eq.s32.totalorder %s26, 0
    %p221 = por %p219, %p220
    %s223 = sadd.s32 %s222, 1
    %p226 = scmp.eq.s32.totalorder %s20, 1
    %p227 = scmp.ne.s32.totalorder %s222, %s224
    %p228 = scmp.eq.s32.totalorder %s20, 0
    %p229 = por %p227, %p228
    %p230 = scmp.ne.s32.totalorder %s222, %s224
    %p231 = scmp.eq.s32.totalorder %s25, 1
    %p232 = por %p230, %p231
    %p233 = scmp.ne.s32.totalorder %s224, %s225
    %p234 = scmp.eq.s32.totalorder %s25, 0
    %p235 = por %p233, %p234
    %p236 = scmp.ne.s32.totalorder %s224, %s225
    %p237 = scmp.eq.s32.totalorder %s26, 1
    %p238 = por %p236, %p237
    %p240 = scmp.ne.s32.totalorder %s225, %s239
    %p241 = scmp.eq.s32.totalorder %s26, 0
    %p242 = por %p240, %p241
    %s244 = sadd.s32 %s243, 1
    %p247 = scmp.eq.s32.totalorder %s20, 1
    %p248 = scmp.ne.s32.totalorder %s243, %s245
    %p249 = scmp.eq.s32.totalorder %s20, 0
    %p250 = por %p248, %p249
    %p251 = scmp.ne.s32.totalorder %s243, %s245
    %p252 = scmp.eq.s32.totalorder %s25, 1
    %p253 = por %p251, %p252
    %p254 = scmp.ne.s32.totalorder %s245, %s246
    %p255 = scmp.eq.s32.totalorder %s25, 0
    %p256 = por %p254, %p255
    %p257 = scmp.ne.s32.totalorder %s245, %s246
    %p258 = scmp.eq.s32.totalorder %s26, 1
    %p259 = por %p257, %p258
    %p261 = scmp.ne.s32.totalorder %s246, %s260
    %p262 = scmp.eq.s32.totalorder %s26, 0
    %p263 = por %p261, %p262
    %s265 = sadd.s32 %s264, 1
    %p268 = scmp.eq.s32.totalorder %s20, 1
    %p269 = scmp.ne.s32.totalorder %s264, %s266
    %p270 = scmp.eq.s32.totalorder %s20, 0
    %p271 = por %p269, %p270
    %p272 = scmp.ne.s32.totalorder %s264, %s266
    %p273 = scmp.eq.s32.totalorder %s25, 1
    %p274 = por %p272, %p273
    %p275 = scmp.ne.s32.totalorder %s266, %s267
    %p276 = scmp.eq.s32.totalorder %s25, 0
    %p277 = por %p275, %p276
    %p278 = scmp.ne.s32.totalorder %s266, %s267
    %p279 = scmp.eq.s32.totalorder %s26, 1
    %p280 = por %p278, %p279
    %p282 = scmp.ne.s32.totalorder %s267, %s281
    %p283 = scmp.eq.s32.totalorder %s26, 0
    %p284 = por %p282, %p283
    %s286 = sadd.s32 %s285, 1
    %p289 = scmp.eq.s32.totalorder %s20, 1
    %p290 = scmp.ne.s32.totalorder %s285, %s287
    %p291 = scmp.eq.s32.totalorder %s20, 0
    %p292 = por %p290, %p291
    %p293 = scmp.ne.s32.totalorder %s285, %s287
    %p294 = scmp.eq.s32.totalorder %s25, 1
    %p295 = por %p293, %p294
    %p296 = scmp.ne.s32.totalorder %s287, %s288
    %p297 = scmp.eq.s32.totalorder %s25, 0
    %p298 = por %p296, %p297
    %p299 = scmp.ne.s32.totalorder %s287, %s288
    %p300 = scmp.eq.s32.totalorder %s26, 1
    %p301 = por %p299, %p300
    %p303 = scmp.ne.s32.totalorder %s288, %s302
    %p304 = scmp.eq.s32.totalorder %s26, 0
    %p305 = por %p303, %p304
    %s307 = sadd.s32 %s306, 1
    %p310 = scmp.eq.s32.totalorder %s20, 1
    %p311 = scmp.ne.s32.totalorder %s306, %s308
    %p312 = scmp.eq.s32.totalorder %s20, 0
    %p313 = por %p311, %p312
    %p314 = scmp.ne.s32.totalorder %s306, %s308
    %p315 = scmp.eq.s32.totalorder %s25, 1
    %p316 = por %p314, %p315
    %p317 = scmp.ne.s32.totalorder %s308, %s309
    %p318 = scmp.eq.s32.totalorder %s25, 0
    %p319 = por %p317, %p318
    %p320 = scmp.ne.s32.totalorder %s308, %s309
    %p321 = scmp.eq.s32.totalorder %s26, 1
    %p322 = por %p320, %p321
    %p324 = scmp.ne.s32.totalorder %s309, %s323
    %p325 = scmp.eq.s32.totalorder %s26, 0
    %p326 = por %p324, %p325
    %s327 = ssub.s32 %s20, %s27
    %p328 = scmp.eq.s32.totalorder %s327, 0
    %s330 = sadd.s32 %s329, 1
    %s331 = scalar_select %p328, %s329, %s330
    %p334 = pneg %p328
    %p335 = scmp.eq.s32.totalorder %s20, 1
    %p336 = por %p334, %p335
    %p337 = scmp.ne.s32.totalorder %s329, %s332
    %p338 = scmp.eq.s32.totalorder %s20, 0
    %p339 = por %p337, %p338
    %p340 = scmp.ne.s32.totalorder %s329, %s332
    %p341 = scmp.eq.s32.totalorder %s25, 1
    %p342 = por %p340, %p341
    %p343 = scmp.ne.s32.totalorder %s332, %s333
    %p344 = scmp.eq.s32.totalorder %s25, 0
    %p345 = por %p343, %p344
    %p346 = scmp.ne.s32.totalorder %s332, %s333
    %p347 = scmp.eq.s32.totalorder %s26, 1
    %p348 = por %p346, %p347
    %p350 = scmp.ne.s32.totalorder %s333, %s349
    %p351 = scmp.eq.s32.totalorder %s26, 0
    %p352 = por %p350, %p351
    %p353 = scmp.le.s32.totalorder 1, %s20
    %p354 = scmp.lt.s32.totalorder %s20, 3
    %p355 = pnand %p353, %p354
    %p356 = pneg %p355
    // Predicated region
    $region9: #{resnet2d_forward.1} parent=5 // pred_check
      _
    $region10: #{resnet2d_forward.1} parent=5 // pred_check_branch
      %358 = sbr.rel (%p355) target = $region12
    $region11: #{resnet2d_forward.1} parent=5 // pred_region
      %s359 = ssub.s32 %s20, 1
      // Predicated region
      $region13: #{resnet2d_forward.1} parent=11 // pred_check
        %p360 = pneg %p67
      $region14: #{resnet2d_forward.1} parent=11 // pred_check_branch
        %362 = sbr.rel (%p360) target = $region16
      $region15: #{resnet2d_forward.1} parent=11 // pred_region
        _
      $region16: #{resnet2d_forward.1} parent=11 // pred_fallthru
        _
      // Predicated region
      $region17: #{resnet2d_forward.1} parent=11 // pred_check
        %p363 = pneg %p88
      $region18: #{resnet2d_forward.1} parent=11 // pred_check_branch
        %365 = sbr.rel (%p363) target = $region20
      $region19: #{resnet2d_forward.1} parent=11 // pred_region
        _
      $region20: #{resnet2d_forward.1} parent=11 // pred_fallthru
        _
      // Predicated region
      $region21: #{resnet2d_forward.1} parent=11 // pred_check
        %p366 = pneg %p109
      $region22: #{resnet2d_forward.1} parent=11 // pred_check_branch
        %368 = sbr.rel (%p366) target = $region24
      $region23: #{resnet2d_forward.1} parent=11 // pred_region
        _
      $region24: #{resnet2d_forward.1} parent=11 // pred_fallthru
        _
      // Predicated region
      $region25: #{resnet2d_forward.1} parent=11 // pred_check
        %p369 = pneg %p130
      $region26: #{resnet2d_forward.1} parent=11 // pred_check_branch
        %371 = sbr.rel (%p369) target = $region28
      $region27: #{resnet2d_forward.1} parent=11 // pred_region
        _
      $region28: #{resnet2d_forward.1} parent=11 // pred_fallthru
        _
      // Predicated region
      $region29: #{resnet2d_forward.1} parent=11 // pred_check
        %p372 = pneg %p151
      $region30: #{resnet2d_forward.1} parent=11 // pred_check_branch
        %374 = sbr.rel (%p372) target = $region32
      $region31: #{resnet2d_forward.1} parent=11 // pred_region
        _
      $region32: #{resnet2d_forward.1} parent=11 // pred_fallthru
        _
      // Predicated region
      $region33: #{resnet2d_forward.1} parent=11 // pred_check
        %p375 = pneg %p172
      $region34: #{resnet2d_forward.1} parent=11 // pred_check_branch
        %377 = sbr.rel (%p375) target = $region36
      $region35: #{resnet2d_forward.1} parent=11 // pred_region
        _
      $region36: #{resnet2d_forward.1} parent=11 // pred_fallthru
        _
      // Predicated region
      $region37: #{resnet2d_forward.1} parent=11 // pred_check
        %p378 = pneg %p193
      $region38: #{resnet2d_forward.1} parent=11 // pred_check_branch
        %380 = sbr.rel (%p378) target = $region40
      $region39: #{resnet2d_forward.1} parent=11 // pred_region
        _
      $region40: #{resnet2d_forward.1} parent=11 // pred_fallthru
        _
      // Predicated region
      $region41: #{resnet2d_forward.1} parent=11 // pred_check
        %p381 = pneg %p214
      $region42: #{resnet2d_forward.1} parent=11 // pred_check_branch
        %383 = sbr.rel (%p381) target = $region44
      $region43: #{resnet2d_forward.1} parent=11 // pred_region
        _
      $region44: #{resnet2d_forward.1} parent=11 // pred_fallthru
        _
      // Predicated region
      $region45: #{resnet2d_forward.1} parent=11 // pred_check
        %p384 = pneg %p235
      $region46: #{resnet2d_forward.1} parent=11 // pred_check_branch
        %386 = sbr.rel (%p384) target = $region48
      $region47: #{resnet2d_forward.1} parent=11 // pred_region
        _
      $region48: #{resnet2d_forward.1} parent=11 // pred_fallthru
        _
      // Predicated region
      $region49: #{resnet2d_forward.1} parent=11 // pred_check
        %p387 = pneg %p256
      $region50: #{resnet2d_forward.1} parent=11 // pred_check_branch
        %389 = sbr.rel (%p387) target = $region52
      $region51: #{resnet2d_forward.1} parent=11 // pred_region
        _
      $region52: #{resnet2d_forward.1} parent=11 // pred_fallthru
        _
      // Predicated region
      $region53: #{resnet2d_forward.1} parent=11 // pred_check
        %p390 = pneg %p277
      $region54: #{resnet2d_forward.1} parent=11 // pred_check_branch
        %392 = sbr.rel (%p390) target = $region56
      $region55: #{resnet2d_forward.1} parent=11 // pred_region
        _
      $region56: #{resnet2d_forward.1} parent=11 // pred_fallthru
        _
      // Predicated region
      $region57: #{resnet2d_forward.1} parent=11 // pred_check
        %p393 = pneg %p298
      $region58: #{resnet2d_forward.1} parent=11 // pred_check_branch
        %395 = sbr.rel (%p393) target = $region60
      $region59: #{resnet2d_forward.1} parent=11 // pred_region
        _
      $region60: #{resnet2d_forward.1} parent=11 // pred_fallthru
        _
      // Predicated region
      $region61: #{resnet2d_forward.1} parent=11 // pred_check
        %p396 = pneg %p319
      $region62: #{resnet2d_forward.1} parent=11 // pred_check_branch
        %398 = sbr.rel (%p396) target = $region64
      $region63: #{resnet2d_forward.1} parent=11 // pred_region
        _
      $region64: #{resnet2d_forward.1} parent=11 // pred_fallthru
        _
    $region12: #{resnet2d_forward.1} parent=5 // pred_fallthru
      _
    %p399 = scmp.lt.s32.totalorder %s20, 2
    // Predicated region
    $region65: #{resnet2d_forward.1} parent=5 // pred_check
      %p400 = pneg %p399
    $region66: #{resnet2d_forward.1} parent=5 // pred_check_branch
      %402 = sbr.rel (%p400) target = $region68
    $region67: #{resnet2d_forward.1} parent=5 // pred_region
      // Predicated region
      $region69: #{resnet2d_forward.1} parent=67 // pred_check
        %p403 = pneg %p40
      $region70: #{resnet2d_forward.1} parent=67 // pred_check_branch
        %405 = sbr.rel (%p403) target = $region72
      $region71: #{resnet2d_forward.1} parent=67 // pred_region
        %p406 = scmp.lt.s32.totalorder %s20, 1
        %s407 = scalar_select %p406, %s20, 1
        %s408 = smul.addr %s407, 32
        %s409 = smul.addr %s408, 8
        %s410 = scalar_lea.vmem %s0, %s409
      $region72: #{resnet2d_forward.1} parent=67 // pred_fallthru
        _
    $region68: #{resnet2d_forward.1} parent=5 // pred_fallthru
      _
    %p411 = scmp.le.s32.totalorder 1, %s20
    %p412 = scmp.lt.s32.totalorder %s20, 3
    %p413 = pnand %p411, %p412
    %p414 = pneg %p413
    // Predicated region
    $region73: #{resnet2d_forward.1} parent=5 // pred_check
      _
    $region74: #{resnet2d_forward.1} parent=5 // pred_check_branch
      %416 = sbr.rel (%p413) target = $region76
    $region75: #{resnet2d_forward.1} parent=5 // pred_region
      %s417 = ssub.s32 %s20, 1
      %p418 = scmp.lt.s32.totalorder %s25, 1
      %s419 = scalar_select %p418, %s25, 1
      %s420 = smul.addr %s419, 32
      %s421 = smul.addr %s420, 8
      %s422 = scalar_lea.vmem %s0, %s421
      %p423 = pneg %p46
      %p424 = pneg %p43
      %p425 = pneg %p67
      %p426 = pneg %p64
      %p427 = pneg %p88
      %p428 = pneg %p85
      %p429 = pneg %p109
      %p430 = pneg %p106
      %p431 = pneg %p130
      %p432 = pneg %p127
      %p433 = pneg %p151
      %p434 = pneg %p148
      %p435 = pneg %p172
      %p436 = pneg %p169
      %p437 = pneg %p193
      %p438 = pneg %p190
      %p439 = pneg %p214
      %p440 = pneg %p211
      %p441 = pneg %p235
      %p442 = pneg %p232
      %p443 = pneg %p256
      %p444 = pneg %p253
      %p445 = pneg %p277
      %p446 = pneg %p274
      %p447 = pneg %p298
      %p448 = pneg %p295
      %p449 = pneg %p319
      %p450 = pneg %p316
      %p451 = pneg %p345
      %p452 = pneg %p342
      %p453 = scmp.lt.s32.totalorder %s25, 1
      %s454 = scalar_select %p453, %s25, 1
      %s455 = smul.addr %s454, 32
      %s456 = smul.addr %s455, 8
      %s457 = scalar_lea.vmem %s14, %s456
      %p458 = scmp.lt.s32.totalorder %s25, 1
      %s459 = scalar_select %p458, %s25, 1
      %s460 = smul.addr %s459, 32
      %s461 = smul.addr %s460, 8
      %s462 = scalar_lea.vmem %s0, %s461
      %p463 = scmp.lt.s32.totalorder %s25, 1
      %s464 = scalar_select %p463, %s25, 1
      %s465 = smul.addr %s464, 32
      %s466 = smul.addr %s465, 8
      %s467 = scalar_lea.vmem %s14, %s466
      %v468 = vld [vmem:[%s462] sm:$0xff]
      %v469 = vld [vmem:[%s462 + $0x8] sm:$0xff]
      %v470 = vld [vmem:[%s462 + $0x10] sm:$0xff]
      %v471 = vld [vmem:[%s462 + $0x18] sm:$0xff]
      %v472 = vld [vmem:[%s462 + $0x20] sm:$0xff]
      %v473 = vld [vmem:[%s462 + $0x28] sm:$0xff]
      %v474 = vld [vmem:[%s462 + $0x30] sm:$0xff]
      %v475 = vld [vmem:[%s462 + $0x38] sm:$0xff]
      %v476 = vld [vmem:[%s462 + $0x40] sm:$0xff]
      %v477 = vld [vmem:[%s462 + $0x48] sm:$0xff]
      %v478 = vld [vmem:[%s462 + $0x50] sm:$0xff]
      %v479 = vld [vmem:[%s462 + $0x58] sm:$0xff]
      %v480 = vld [vmem:[%s462 + $0x60] sm:$0xff]
      %v481 = vld [vmem:[%s462 + $0x68] sm:$0xff]
      %v482 = vld [vmem:[%s462 + $0x70] sm:$0xff]
      %v483 = vld [vmem:[%s462 + $0x78] sm:$0xff]
      %v484 = vld [vmem:[%s462 + $0x80] sm:$0xff]
      %v485 = vld [vmem:[%s462 + $0x88] sm:$0xff]
      %v486 = vld [vmem:[%s462 + $0x90] sm:$0xff]
      %v487 = vld [vmem:[%s462 + $0x98] sm:$0xff]
      %v488 = vld [vmem:[%s462 + $0xa0] sm:$0xff]
      %v489 = vld [vmem:[%s462 + $0xa8] sm:$0xff]
      %v490 = vld [vmem:[%s462 + $0xb0] sm:$0xff]
      %v491 = vld [vmem:[%s462 + $0xb8] sm:$0xff]
      %v492 = vld [vmem:[%s462 + $0xc0] sm:$0xff]
      %v493 = vld [vmem:[%s462 + $0xc8] sm:$0xff]
      %v494 = vld [vmem:[%s462 + $0xd0] sm:$0xff]
      %v495 = vld [vmem:[%s462 + $0xd8] sm:$0xff]
      %v496 = vld [vmem:[%s462 + $0xe0] sm:$0xff]
      %v497 = vld [vmem:[%s462 + $0xe8] sm:$0xff]
      %v498 = vld [vmem:[%s462 + $0xf0] sm:$0xff]
      %v499 = vld [vmem:[%s462 + $0xf8] sm:$0xff]
      %v500 = vld [vmem:[%s1] sm:$0xff]
      %v501 = vld [vmem:[%s1 + $0x8] sm:$0xff]
      %v502 = vld [vmem:[%s1 + $0x10] sm:$0xff]
      %v503 = vld [vmem:[%s1 + $0x18] sm:$0xff]
      %v504 = vld [vmem:[%s1 + $0x20] sm:$0xf]
      %v505 = vld [vmem:[%s2] sm:$0x1]
      %v522 = vrot.slane %v499, 7
      %v523 = vrot.slane %v469, 7
      %v524 = vrot.slane %v471, 7
      %v525 = vrot.slane %v473, 7
      %v526 = vrot.slane %v475, 7
      %v527 = vrot.slane %v477, 7
      %v528 = vrot.slane %v479, 7
      %v529 = vrot.slane %v481, 7
      %v530 = vrot.slane %v483, 7
      %v531 = vrot.slane %v485, 7
      %v532 = vrot.slane %v487, 7
      %v533 = vrot.slane %v489, 7
      %v534 = vrot.slane %v491, 7
      %v535 = vrot.slane %v493, 7
      %v536 = vrot.slane %v495, 7
      %v537 = vrot.slane %v497, 7
      %vm570 = vcmask 1040384
      %v571 = vrot.slane %v498, 7
      %v572 = vsel %vm570, %v571, %v522
      %v573 = vrot.slane %v468, 7
      %v574 = vsel %vm570, %v573, %v523
      %v575 = vrot.slane %v470, 7
      %v576 = vsel %vm570, %v575, %v524
      %v577 = vrot.slane %v472, 7
      %v578 = vsel %vm570, %v577, %v525
      %v579 = vrot.slane %v474, 7
      %v580 = vsel %vm570, %v579, %v526
      %v581 = vrot.slane %v476, 7
      %v582 = vsel %vm570, %v581, %v527
      %v583 = vrot.slane %v478, 7
      %v584 = vsel %vm570, %v583, %v528
      %v585 = vrot.slane %v480, 7
      %v586 = vsel %vm570, %v585, %v529
      %v587 = vrot.slane %v482, 7
      %v588 = vsel %vm570, %v587, %v530
      %v589 = vrot.slane %v484, 7
      %v590 = vsel %vm570, %v589, %v531
      %v591 = vrot.slane %v486, 7
      %v592 = vsel %vm570, %v591, %v532
      %v593 = vrot.slane %v488, 7
      %v594 = vsel %vm570, %v593, %v533
      %v595 = vrot.slane %v490, 7
      %v596 = vsel %vm570, %v595, %v534
      %v597 = vrot.slane %v492, 7
      %v598 = vsel %vm570, %v597, %v535
      %v599 = vrot.slane %v494, 7
      %v600 = vsel %vm570, %v599, %v536
      %v601 = vrot.slane %v496, 7
      %v602 = vsel %vm570, %v601, %v537
      %v635 = vsel %vm570, %v522, %v571
      %v636 = vsel %vm570, %v523, %v573
      %v637 = vsel %vm570, %v524, %v575
      %v638 = vsel %vm570, %v525, %v577
      %v639 = vsel %vm570, %v526, %v579
      %v640 = vsel %vm570, %v527, %v581
      %v641 = vsel %vm570, %v528, %v583
      %v642 = vsel %vm570, %v529, %v585
      %v643 = vsel %vm570, %v530, %v587
      %v644 = vsel %vm570, %v531, %v589
      %v645 = vsel %vm570, %v532, %v591
      %v646 = vsel %vm570, %v533, %v593
      %v647 = vsel %vm570, %v534, %v595
      %v648 = vsel %vm570, %v535, %v597
      %v649 = vsel %vm570, %v536, %v599
      %v650 = vsel %vm570, %v537, %v601
      %vm667 = vcmask 1046528
      %v668 = vrot.slane %v635, 1
      %v669 = vrot.slane %v572, 1
      %v670 = vsel %vm667, %v668, %v669
      %v671 = vsel %vm667, %v669, %v668
      %v672 = vrot.slane %v636, 1
      %v673 = vrot.slane %v574, 1
      %v674 = vsel %vm667, %v672, %v673
      %v675 = vsel %vm667, %v673, %v672
      %v676 = vrot.slane %v637, 1
      %v677 = vrot.slane %v576, 1
      %v678 = vsel %vm667, %v676, %v677
      %v679 = vsel %vm667, %v677, %v676
      %v680 = vrot.slane %v638, 1
      %v681 = vrot.slane %v578, 1
      %v682 = vsel %vm667, %v680, %v681
      %v683 = vsel %vm667, %v681, %v680
      %v684 = vrot.slane %v639, 1
      %v685 = vrot.slane %v580, 1
      %v686 = vsel %vm667, %v684, %v685
      %v687 = vsel %vm667, %v685, %v684
      %v688 = vrot.slane %v640, 1
      %v689 = vrot.slane %v582, 1
      %v690 = vsel %vm667, %v688, %v689
      %v691 = vsel %vm667, %v689, %v688
      %v692 = vrot.slane %v641, 1
      %v693 = vrot.slane %v584, 1
      %v694 = vsel %vm667, %v692, %v693
      %v695 = vsel %vm667, %v693, %v692
      %v696 = vrot.slane %v642, 1
      %v697 = vrot.slane %v586, 1
      %v698 = vsel %vm667, %v696, %v697
      %v699 = vsel %vm667, %v697, %v696
      %v700 = vrot.slane %v643, 1
      %v701 = vrot.slane %v588, 1
      %v702 = vsel %vm667, %v700, %v701
      %v703 = vsel %vm667, %v701, %v700
      %v704 = vrot.slane %v644, 1
      %v705 = vrot.slane %v590, 1
      %v706 = vsel %vm667, %v704, %v705
      %v707 = vsel %vm667, %v705, %v704
      %v708 = vrot.slane %v645, 1
      %v709 = vrot.slane %v592, 1
      %v710 = vsel %vm667, %v708, %v709
      %v711 = vsel %vm667, %v709, %v708
      %v712 = vrot.slane %v646, 1
      %v713 = vrot.slane %v594, 1
      %v714 = vsel %vm667, %v712, %v713
      %v715 = vsel %vm667, %v713, %v712
      %v716 = vrot.slane %v647, 1
      %v717 = vrot.slane %v596, 1
      %v718 = vsel %vm667, %v716, %v717
      %v719 = vsel %vm667, %v717, %v716
      %v720 = vrot.slane %v648, 1
      %v721 = vrot.slane %v598, 1
      %v722 = vsel %vm667, %v720, %v721
      %v723 = vsel %vm667, %v721, %v720
      %v724 = vrot.slane %v649, 1
      %v725 = vrot.slane %v600, 1
      %v726 = vsel %vm667, %v724, %v725
      %v727 = vsel %vm667, %v725, %v724
      %v728 = vrot.slane %v650, 1
      %v729 = vrot.slane %v602, 1
      %v730 = vsel %vm667, %v728, %v729
      %v731 = vsel %vm667, %v729, %v728
      %732 = vrot.lane.b32.xlu0 %v670, 4
      %v733 = vpop.permute.xlu0 %732
      %734 = vrot.lane.b32.xlu0 %v671, 4
      %v735 = vpop.permute.xlu0 %734
      %736 = vrot.lane.b32.xlu0 %v674, 4
      %v737 = vpop.permute.xlu0 %736
      %738 = vrot.lane.b32.xlu0 %v675, 4
      %v739 = vpop.permute.xlu0 %738
      %740 = vrot.lane.b32.xlu0 %v678, 4
      %v741 = vpop.permute.xlu0 %740
      %742 = vrot.lane.b32.xlu0 %v679, 4
      %v743 = vpop.permute.xlu0 %742
      %744 = vrot.lane.b32.xlu0 %v682, 4
      %v745 = vpop.permute.xlu0 %744
      %746 = vrot.lane.b32.xlu0 %v683, 4
      %v747 = vpop.permute.xlu0 %746
      %748 = vrot.lane.b32.xlu0 %v686, 4
      %v749 = vpop.permute.xlu0 %748
      %750 = vrot.lane.b32.xlu0 %v687, 4
      %v751 = vpop.permute.xlu0 %750
      %752 = vrot.lane.b32.xlu0 %v690, 4
      %v753 = vpop.permute.xlu0 %752
      %754 = vrot.lane.b32.xlu0 %v691, 4
      %v755 = vpop.permute.xlu0 %754
      %756 = vrot.lane.b32.xlu0 %v694, 4
      %v757 = vpop.permute.xlu0 %756
      %758 = vrot.lane.b32.xlu0 %v695, 4
      %v759 = vpop.permute.xlu0 %758
      %760 = vrot.lane.b32.xlu0 %v698, 4
      %v761 = vpop.permute.xlu0 %760
      %762 = vrot.lane.b32.xlu0 %v699, 4
      %v763 = vpop.permute.xlu0 %762
      %764 = vrot.lane.b32.xlu0 %v702, 4
      %v765 = vpop.permute.xlu0 %764
      %766 = vrot.lane.b32.xlu0 %v703, 4
      %v767 = vpop.permute.xlu0 %766
      %768 = vrot.lane.b32.xlu0 %v706, 4
      %v769 = vpop.permute.xlu0 %768
      %770 = vrot.lane.b32.xlu0 %v707, 4
      %v771 = vpop.permute.xlu0 %770
      %772 = vrot.lane.b32.xlu0 %v710, 4
      %v773 = vpop.permute.xlu0 %772
      %774 = vrot.lane.b32.xlu0 %v711, 4
      %v775 = vpop.permute.xlu0 %774
      %776 = vrot.lane.b32.xlu0 %v714, 4
      %v777 = vpop.permute.xlu0 %776
      %778 = vrot.lane.b32.xlu0 %v715, 4
      %v779 = vpop.permute.xlu0 %778
      %780 = vrot.lane.b32.xlu0 %v718, 4
      %v781 = vpop.permute.xlu0 %780
      %782 = vrot.lane.b32.xlu0 %v719, 4
      %v783 = vpop.permute.xlu0 %782
      %784 = vrot.lane.b32.xlu0 %v722, 4
      %v785 = vpop.permute.xlu0 %784
      %786 = vrot.lane.b32.xlu0 %v723, 4
      %v787 = vpop.permute.xlu0 %786
      %788 = vrot.lane.b32.xlu0 %v726, 4
      %v789 = vpop.permute.xlu0 %788
      %790 = vrot.lane.b32.xlu0 %v727, 4
      %v791 = vpop.permute.xlu0 %790
      %792 = vrot.lane.b32.xlu0 %v730, 4
      %v793 = vpop.permute.xlu0 %792
      %794 = vrot.lane.b32.xlu0 %v731, 4
      %v795 = vpop.permute.xlu0 %794
      %vm828 = vcmask 1045504
      %v829 = vrot.slane %v635, 2
      %v830 = vrot.slane %v572, 2
      %v831 = vsel %vm828, %v829, %v830
      %v832 = vsel %vm828, %v830, %v829
      %v833 = vrot.slane %v636, 2
      %v834 = vrot.slane %v574, 2
      %v835 = vsel %vm828, %v833, %v834
      %v836 = vsel %vm828, %v834, %v833
      %v837 = vrot.slane %v637, 2
      %v838 = vrot.slane %v576, 2
      %v839 = vsel %vm828, %v837, %v838
      %v840 = vsel %vm828, %v838, %v837
      %v841 = vrot.slane %v638, 2
      %v842 = vrot.slane %v578, 2
      %v843 = vsel %vm828, %v841, %v842
      %v844 = vsel %vm828, %v842, %v841
      %v845 = vrot.slane %v639, 2
      %v846 = vrot.slane %v580, 2
      %v847 = vsel %vm828, %v845, %v846
      %v848 = vsel %vm828, %v846, %v845
      %v849 = vrot.slane %v640, 2
      %v850 = vrot.slane %v582, 2
      %v851 = vsel %vm828, %v849, %v850
      %v852 = vsel %vm828, %v850, %v849
      %v853 = vrot.slane %v641, 2
      %v854 = vrot.slane %v584, 2
      %v855 = vsel %vm828, %v853, %v854
      %v856 = vsel %vm828, %v854, %v853
      %v857 = vrot.slane %v642, 2
      %v858 = vrot.slane %v586, 2
      %v859 = vsel %vm828, %v857, %v858
      %v860 = vsel %vm828, %v858, %v857
      %v861 = vrot.slane %v643, 2
      %v862 = vrot.slane %v588, 2
      %v863 = vsel %vm828, %v861, %v862
      %v864 = vsel %vm828, %v862, %v861
      %v865 = vrot.slane %v644, 2
      %v866 = vrot.slane %v590, 2
      %v867 = vsel %vm828, %v865, %v866
      %v868 = vsel %vm828, %v866, %v865
      %v869 = vrot.slane %v645, 2
      %v870 = vrot.slane %v592, 2
      %v871 = vsel %vm828, %v869, %v870
      %v872 = vsel %vm828, %v870, %v869
      %v873 = vrot.slane %v646, 2
      %v874 = vrot.slane %v594, 2
      %v875 = vsel %vm828, %v873, %v874
      %v876 = vsel %vm828, %v874, %v873
      %v877 = vrot.slane %v647, 2
      %v878 = vrot.slane %v596, 2
      %v879 = vsel %vm828, %v877, %v878
      %v880 = vsel %vm828, %v878, %v877
      %v881 = vrot.slane %v648, 2
      %v882 = vrot.slane %v598, 2
      %v883 = vsel %vm828, %v881, %v882
      %v884 = vsel %vm828, %v882, %v881
      %v885 = vrot.slane %v649, 2
      %v886 = vrot.slane %v600, 2
      %v887 = vsel %vm828, %v885, %v886
      %v888 = vsel %vm828, %v886, %v885
      %v889 = vrot.slane %v650, 2
      %v890 = vrot.slane %v602, 2
      %v891 = vsel %vm828, %v889, %v890
      %v892 = vsel %vm828, %v890, %v889
      %893 = vrot.lane.b32.xlu0 %v831, 8
      %v894 = vpop.permute.xlu0 %893
      %895 = vrot.lane.b32.xlu0 %v832, 8
      %v896 = vpop.permute.xlu0 %895
      %897 = vrot.lane.b32.xlu0 %v835, 8
      %v898 = vpop.permute.xlu0 %897
      %899 = vrot.lane.b32.xlu0 %v836, 8
      %v900 = vpop.permute.xlu0 %899
      %901 = vrot.lane.b32.xlu0 %v839, 8
      %v902 = vpop.permute.xlu0 %901
      %903 = vrot.lane.b32.xlu0 %v840, 8
      %v904 = vpop.permute.xlu0 %903
      %905 = vrot.lane.b32.xlu0 %v843, 8
      %v906 = vpop.permute.xlu0 %905
      %907 = vrot.lane.b32.xlu0 %v844, 8
      %v908 = vpop.permute.xlu0 %907
      %909 = vrot.lane.b32.xlu0 %v847, 8
      %v910 = vpop.permute.xlu0 %909
      %911 = vrot.lane.b32.xlu0 %v848, 8
      %v912 = vpop.permute.xlu0 %911
      %913 = vrot.lane.b32.xlu0 %v851, 8
      %v914 = vpop.permute.xlu0 %913
      %915 = vrot.lane.b32.xlu0 %v852, 8
      %v916 = vpop.permute.xlu0 %915
      %917 = vrot.lane.b32.xlu0 %v855, 8
      %v918 = vpop.permute.xlu0 %917
      %919 = vrot.lane.b32.xlu0 %v856, 8
      %v920 = vpop.permute.xlu0 %919
      %921 = vrot.lane.b32.xlu0 %v859, 8
      %v922 = vpop.permute.xlu0 %921
      %923 = vrot.lane.b32.xlu0 %v860, 8
      %v924 = vpop.permute.xlu0 %923
      %925 = vrot.lane.b32.xlu0 %v863, 8
      %v926 = vpop.permute.xlu0 %925
      %927 = vrot.lane.b32.xlu0 %v864, 8
      %v928 = vpop.permute.xlu0 %927
      %929 = vrot.lane.b32.xlu0 %v867, 8
      %v930 = vpop.permute.xlu0 %929
      %931 = vrot.lane.b32.xlu0 %v868, 8
      %v932 = vpop.permute.xlu0 %931
      %933 = vrot.lane.b32.xlu0 %v871, 8
      %v934 = vpop.permute.xlu0 %933
      %935 = vrot.lane.b32.xlu0 %v872, 8
      %v936 = vpop.permute.xlu0 %935
      %937 = vrot.lane.b32.xlu0 %v875, 8
      %v938 = vpop.permute.xlu0 %937
      %939 = vrot.lane.b32.xlu0 %v876, 8
      %v940 = vpop.permute.xlu0 %939
      %941 = vrot.lane.b32.xlu0 %v879, 8
      %v942 = vpop.permute.xlu0 %941
      %943 = vrot.lane.b32.xlu0 %v880, 8
      %v944 = vpop.permute.xlu0 %943
      %945 = vrot.lane.b32.xlu0 %v883, 8
      %v946 = vpop.permute.xlu0 %945
      %947 = vrot.lane.b32.xlu0 %v884, 8
      %v948 = vpop.permute.xlu0 %947
      %949 = vrot.lane.b32.xlu0 %v887, 8
      %v950 = vpop.permute.xlu0 %949
      %951 = vrot.lane.b32.xlu0 %v888, 8
      %v952 = vpop.permute.xlu0 %951
      %953 = vrot.lane.b32.xlu0 %v891, 8
      %v954 = vpop.permute.xlu0 %953
      %955 = vrot.lane.b32.xlu0 %v892, 8
      %v956 = vpop.permute.xlu0 %955
      %989 = vrot.lane.b32.xlu0 %v636, 12
      %v990 = vpop.permute.xlu0 %989
      %991 = vrot.lane.b32.xlu0 %v574, 12
      %v992 = vpop.permute.xlu0 %991
      %993 = vrot.lane.b32.xlu0 %v637, 12
      %v994 = vpop.permute.xlu0 %993
      %995 = vrot.lane.b32.xlu0 %v576, 12
      %v996 = vpop.permute.xlu0 %995
      %997 = vrot.lane.b32.xlu0 %v638, 12
      %v998 = vpop.permute.xlu0 %997
      %999 = vrot.lane.b32.xlu0 %v578, 12
      %v1000 = vpop.permute.xlu0 %999
      %1001 = vrot.lane.b32.xlu0 %v639, 12
      %v1002 = vpop.permute.xlu0 %1001
      %1003 = vrot.lane.b32.xlu0 %v580, 12
      %v1004 = vpop.permute.xlu0 %1003
      %1005 = vrot.lane.b32.xlu0 %v640, 12
      %v1006 = vpop.permute.xlu0 %1005
      %1007 = vrot.lane.b32.xlu0 %v582, 12
      %v1008 = vpop.permute.xlu0 %1007
      %1009 = vrot.lane.b32.xlu0 %v641, 12
      %v1010 = vpop.permute.xlu0 %1009
      %1011 = vrot.lane.b32.xlu0 %v584, 12
      %v1012 = vpop.permute.xlu0 %1011
      %1013 = vrot.lane.b32.xlu0 %v642, 12
      %v1014 = vpop.permute.xlu0 %1013
      %1015 = vrot.lane.b32.xlu0 %v586, 12
      %v1016 = vpop.permute.xlu0 %1015
      %1017 = vrot.lane.b32.xlu0 %v643, 12
      %v1018 = vpop.permute.xlu0 %1017
      %1019 = vrot.lane.b32.xlu0 %v588, 12
      %v1020 = vpop.permute.xlu0 %1019
      %1021 = vrot.lane.b32.xlu0 %v644, 12
      %v1022 = vpop.permute.xlu0 %1021
      %1023 = vrot.lane.b32.xlu0 %v590, 12
      %v1024 = vpop.permute.xlu0 %1023
      %1025 = vrot.lane.b32.xlu0 %v645, 12
      %v1026 = vpop.permute.xlu0 %1025
      %1027 = vrot.lane.b32.xlu0 %v592, 12
      %v1028 = vpop.permute.xlu0 %1027
      %1029 = vrot.lane.b32.xlu0 %v646, 12
      %v1030 = vpop.permute.xlu0 %1029
      %1031 = vrot.lane.b32.xlu0 %v594, 12
      %v1032 = vpop.permute.xlu0 %1031
      %1033 = vrot.lane.b32.xlu0 %v647, 12
      %v1034 = vpop.permute.xlu0 %1033
      %1035 = vrot.lane.b32.xlu0 %v596, 12
      %v1036 = vpop.permute.xlu0 %1035
      %1037 = vrot.lane.b32.xlu0 %v648, 12
      %v1038 = vpop.permute.xlu0 %1037
      %1039 = vrot.lane.b32.xlu0 %v598, 12
      %v1040 = vpop.permute.xlu0 %1039
      %1041 = vrot.lane.b32.xlu0 %v649, 12
      %v1042 = vpop.permute.xlu0 %1041
      %1043 = vrot.lane.b32.xlu0 %v600, 12
      %v1044 = vpop.permute.xlu0 %1043
      %1045 = vrot.lane.b32.xlu0 %v650, 12
      %v1046 = vpop.permute.xlu0 %1045
      %1047 = vrot.lane.b32.xlu0 %v602, 12
      %v1048 = vpop.permute.xlu0 %1047
      %1049 = vrot.lane.b32.xlu0 %v635, 12
      %v1050 = vpop.permute.xlu0 %1049
      %1051 = vrot.lane.b32.xlu0 %v572, 12
      %v1052 = vpop.permute.xlu0 %1051
      %1085 = vrot.lane.b32.xlu0 %v674, 16
      %v1086 = vpop.permute.xlu0 %1085
      %1087 = vrot.lane.b32.xlu0 %v675, 16
      %v1088 = vpop.permute.xlu0 %1087
      %1089 = vrot.lane.b32.xlu0 %v678, 16
      %v1090 = vpop.permute.xlu0 %1089
      %1091 = vrot.lane.b32.xlu0 %v679, 16
      %v1092 = vpop.permute.xlu0 %1091
      %1093 = vrot.lane.b32.xlu0 %v682, 16
      %v1094 = vpop.permute.xlu0 %1093
      %1095 = vrot.lane.b32.xlu0 %v683, 16
      %v1096 = vpop.permute.xlu0 %1095
      %1097 = vrot.lane.b32.xlu0 %v686, 16
      %v1098 = vpop.permute.xlu0 %1097
      %1099 = vrot.lane.b32.xlu0 %v687, 16
      %v1100 = vpop.permute.xlu0 %1099
      %1101 = vrot.lane.b32.xlu0 %v690, 16
      %v1102 = vpop.permute.xlu0 %1101
      %1103 = vrot.lane.b32.xlu0 %v691, 16
      %v1104 = vpop.permute.xlu0 %1103
      %1105 = vrot.lane.b32.xlu0 %v694, 16
      %v1106 = vpop.permute.xlu0 %1105
      %1107 = vrot.lane.b32.xlu0 %v695, 16
      %v1108 = vpop.permute.xlu0 %1107
      %1109 = vrot.lane.b32.xlu0 %v698, 16
      %v1110 = vpop.permute.xlu0 %1109
      %1111 = vrot.lane.b32.xlu0 %v699, 16
      %v1112 = vpop.permute.xlu0 %1111
      %1113 = vrot.lane.b32.xlu0 %v702, 16
      %v1114 = vpop.permute.xlu0 %1113
      %1115 = vrot.lane.b32.xlu0 %v703, 16
      %v1116 = vpop.permute.xlu0 %1115
      %1117 = vrot.lane.b32.xlu0 %v706, 16
      %v1118 = vpop.permute.xlu0 %1117
      %1119 = vrot.lane.b32.xlu0 %v707, 16
      %v1120 = vpop.permute.xlu0 %1119
      %1121 = vrot.lane.b32.xlu0 %v710, 16
      %v1122 = vpop.permute.xlu0 %1121
      %1123 = vrot.lane.b32.xlu0 %v711, 16
      %v1124 = vpop.permute.xlu0 %1123
      %1125 = vrot.lane.b32.xlu0 %v714, 16
      %v1126 = vpop.permute.xlu0 %1125
      %1127 = vrot.lane.b32.xlu0 %v715, 16
      %v1128 = vpop.permute.xlu0 %1127
      %1129 = vrot.lane.b32.xlu0 %v718, 16
      %v1130 = vpop.permute.xlu0 %1129
      %1131 = vrot.lane.b32.xlu0 %v719, 16
      %v1132 = vpop.permute.xlu0 %1131
      %1133 = vrot.lane.b32.xlu0 %v722, 16
      %v1134 = vpop.permute.xlu0 %1133
      %1135 = vrot.lane.b32.xlu0 %v723, 16
      %v1136 = vpop.permute.xlu0 %1135
      %1137 = vrot.lane.b32.xlu0 %v726, 16
      %v1138 = vpop.permute.xlu0 %1137
      %1139 = vrot.lane.b32.xlu0 %v727, 16
      %v1140 = vpop.permute.xlu0 %1139
      %1141 = vrot.lane.b32.xlu0 %v730, 16
      %v1142 = vpop.permute.xlu0 %1141
      %1143 = vrot.lane.b32.xlu0 %v731, 16
      %v1144 = vpop.permute.xlu0 %1143
      %1145 = vrot.lane.b32.xlu0 %v670, 16
      %v1146 = vpop.permute.xlu0 %1145
      %1147 = vrot.lane.b32.xlu0 %v671, 16
      %v1148 = vpop.permute.xlu0 %1147
      %1181 = vrot.lane.b32.xlu0 %v835, 20
      %v1182 = vpop.permute.xlu0 %1181
      %1183 = vrot.lane.b32.xlu0 %v836, 20
      %v1184 = vpop.permute.xlu0 %1183
      %1185 = vrot.lane.b32.xlu0 %v839, 20
      %v1186 = vpop.permute.xlu0 %1185
      %1187 = vrot.lane.b32.xlu0 %v840, 20
      %v1188 = vpop.permute.xlu0 %1187
      %1189 = vrot.lane.b32.xlu0 %v843, 20
      %v1190 = vpop.permute.xlu0 %1189
      %1191 = vrot.lane.b32.xlu0 %v844, 20
      %v1192 = vpop.permute.xlu0 %1191
      %1193 = vrot.lane.b32.xlu0 %v847, 20
      %v1194 = vpop.permute.xlu0 %1193
      %1195 = vrot.lane.b32.xlu0 %v848, 20
      %v1196 = vpop.permute.xlu0 %1195
      %1197 = vrot.lane.b32.xlu0 %v851, 20
      %v1198 = vpop.permute.xlu0 %1197
      %1199 = vrot.lane.b32.xlu0 %v852, 20
      %v1200 = vpop.permute.xlu0 %1199
      %1201 = vrot.lane.b32.xlu0 %v855, 20
      %v1202 = vpop.permute.xlu0 %1201
      %1203 = vrot.lane.b32.xlu0 %v856, 20
      %v1204 = vpop.permute.xlu0 %1203
      %1205 = vrot.lane.b32.xlu0 %v859, 20
      %v1206 = vpop.permute.xlu0 %1205
      %1207 = vrot.lane.b32.xlu0 %v860, 20
      %v1208 = vpop.permute.xlu0 %1207
      %1209 = vrot.lane.b32.xlu0 %v863, 20
      %v1210 = vpop.permute.xlu0 %1209
      %1211 = vrot.lane.b32.xlu0 %v864, 20
      %v1212 = vpop.permute.xlu0 %1211
      %1213 = vrot.lane.b32.xlu0 %v867, 20
      %v1214 = vpop.permute.xlu0 %1213
      %1215 = vrot.lane.b32.xlu0 %v868, 20
      %v1216 = vpop.permute.xlu0 %1215
      %1217 = vrot.lane.b32.xlu0 %v871, 20
      %v1218 = vpop.permute.xlu0 %1217
      %1219 = vrot.lane.b32.xlu0 %v872, 20
      %v1220 = vpop.permute.xlu0 %1219
      %1221 = vrot.lane.b32.xlu0 %v875, 20
      %v1222 = vpop.permute.xlu0 %1221
      %1223 = vrot.lane.b32.xlu0 %v876, 20
      %v1224 = vpop.permute.xlu0 %1223
      %1225 = vrot.lane.b32.xlu0 %v879, 20
      %v1226 = vpop.permute.xlu0 %1225
      %1227 = vrot.lane.b32.xlu0 %v880, 20
      %v1228 = vpop.permute.xlu0 %1227
      %1229 = vrot.lane.b32.xlu0 %v883, 20
      %v1230 = vpop.permute.xlu0 %1229
      %1231 = vrot.lane.b32.xlu0 %v884, 20
      %v1232 = vpop.permute.xlu0 %1231
      %1233 = vrot.lane.b32.xlu0 %v887, 20
      %v1234 = vpop.permute.xlu0 %1233
      %1235 = vrot.lane.b32.xlu0 %v888, 20
      %v1236 = vpop.permute.xlu0 %1235
      %1237 = vrot.lane.b32.xlu0 %v891, 20
      %v1238 = vpop.permute.xlu0 %1237
      %1239 = vrot.lane.b32.xlu0 %v892, 20
      %v1240 = vpop.permute.xlu0 %1239
      %1241 = vrot.lane.b32.xlu0 %v831, 20
      %v1242 = vpop.permute.xlu0 %1241
      %1243 = vrot.lane.b32.xlu0 %v832, 20
      %v1244 = vpop.permute.xlu0 %1243
      %1277 = vrot.lane.b32.xlu0 %v637, 24
      %v1278 = vpop.permute.xlu0 %1277
      %1279 = vrot.lane.b32.xlu0 %v576, 24
      %v1280 = vpop.permute.xlu0 %1279
      %1281 = vrot.lane.b32.xlu0 %v638, 24
      %v1282 = vpop.permute.xlu0 %1281
      %1283 = vrot.lane.b32.xlu0 %v578, 24
      %v1284 = vpop.permute.xlu0 %1283
      %1285 = vrot.lane.b32.xlu0 %v639, 24
      %v1286 = vpop.permute.xlu0 %1285
      %1287 = vrot.lane.b32.xlu0 %v580, 24
      %v1288 = vpop.permute.xlu0 %1287
      %1289 = vrot.lane.b32.xlu0 %v640, 24
      %v1290 = vpop.permute.xlu0 %1289
      %1291 = vrot.lane.b32.xlu0 %v582, 24
      %v1292 = vpop.permute.xlu0 %1291
      %1293 = vrot.lane.b32.xlu0 %v641, 24
      %v1294 = vpop.permute.xlu0 %1293
      %1295 = vrot.lane.b32.xlu0 %v584, 24
      %v1296 = vpop.permute.xlu0 %1295
      %1297 = vrot.lane.b32.xlu0 %v642, 24
      %v1298 = vpop.permute.xlu0 %1297
      %1299 = vrot.lane.b32.xlu0 %v586, 24
      %v1300 = vpop.permute.xlu0 %1299
      %1301 = vrot.lane.b32.xlu0 %v643, 24
      %v1302 = vpop.permute.xlu0 %1301
      %1303 = vrot.lane.b32.xlu0 %v588, 24
      %v1304 = vpop.permute.xlu0 %1303
      %1305 = vrot.lane.b32.xlu0 %v644, 24
      %v1306 = vpop.permute.xlu0 %1305
      %1307 = vrot.lane.b32.xlu0 %v590, 24
      %v1308 = vpop.permute.xlu0 %1307
      %1309 = vrot.lane.b32.xlu0 %v645, 24
      %v1310 = vpop.permute.xlu0 %1309
      %1311 = vrot.lane.b32.xlu0 %v592, 24
      %v1312 = vpop.permute.xlu0 %1311
      %1313 = vrot.lane.b32.xlu0 %v646, 24
      %v1314 = vpop.permute.xlu0 %1313
      %1315 = vrot.lane.b32.xlu0 %v594, 24
      %v1316 = vpop.permute.xlu0 %1315
      %1317 = vrot.lane.b32.xlu0 %v647, 24
      %v1318 = vpop.permute.xlu0 %1317
      %1319 = vrot.lane.b32.xlu0 %v596, 24
      %v1320 = vpop.permute.xlu0 %1319
      %1321 = vrot.lane.b32.xlu0 %v648, 24
      %v1322 = vpop.permute.xlu0 %1321
      %1323 = vrot.lane.b32.xlu0 %v598, 24
      %v1324 = vpop.permute.xlu0 %1323
      %1325 = vrot.lane.b32.xlu0 %v649, 24
      %v1326 = vpop.permute.xlu0 %1325
      %1327 = vrot.lane.b32.xlu0 %v600, 24
      %v1328 = vpop.permute.xlu0 %1327
      %1329 = vrot.lane.b32.xlu0 %v650, 24
      %v1330 = vpop.permute.xlu0 %1329
      %1331 = vrot.lane.b32.xlu0 %v602, 24
      %v1332 = vpop.permute.xlu0 %1331
      %1333 = vrot.lane.b32.xlu0 %v635, 24
      %v1334 = vpop.permute.xlu0 %1333
      %1335 = vrot.lane.b32.xlu0 %v572, 24
      %v1336 = vpop.permute.xlu0 %1335
      %1337 = vrot.lane.b32.xlu0 %v636, 24
      %v1338 = vpop.permute.xlu0 %1337
      %1339 = vrot.lane.b32.xlu0 %v574, 24
      %v1340 = vpop.permute.xlu0 %1339
      %1373 = vrot.lane.b32.xlu0 %v678, 28
      %v1374 = vpop.permute.xlu0 %1373
      %1375 = vrot.lane.b32.xlu0 %v679, 28
      %v1376 = vpop.permute.xlu0 %1375
      %1377 = vrot.lane.b32.xlu0 %v682, 28
      %v1378 = vpop.permute.xlu0 %1377
      %1379 = vrot.lane.b32.xlu0 %v683, 28
      %v1380 = vpop.permute.xlu0 %1379
      %1381 = vrot.lane.b32.xlu0 %v686, 28
      %v1382 = vpop.permute.xlu0 %1381
      %1383 = vrot.lane.b32.xlu0 %v687, 28
      %v1384 = vpop.permute.xlu0 %1383
      %1385 = vrot.lane.b32.xlu0 %v690, 28
      %v1386 = vpop.permute.xlu0 %1385
      %1387 = vrot.lane.b32.xlu0 %v691, 28
      %v1388 = vpop.permute.xlu0 %1387
      %1389 = vrot.lane.b32.xlu0 %v694, 28
      %v1390 = vpop.permute.xlu0 %1389
      %1391 = vrot.lane.b32.xlu0 %v695, 28
      %v1392 = vpop.permute.xlu0 %1391
      %1393 = vrot.lane.b32.xlu0 %v698, 28
      %v1394 = vpop.permute.xlu0 %1393
      %1395 = vrot.lane.b32.xlu0 %v699, 28
      %v1396 = vpop.permute.xlu0 %1395
      %1397 = vrot.lane.b32.xlu0 %v702, 28
      %v1398 = vpop.permute.xlu0 %1397
      %1399 = vrot.lane.b32.xlu0 %v703, 28
      %v1400 = vpop.permute.xlu0 %1399
      %1401 = vrot.lane.b32.xlu0 %v706, 28
      %v1402 = vpop.permute.xlu0 %1401
      %1403 = vrot.lane.b32.xlu0 %v707, 28
      %v1404 = vpop.permute.xlu0 %1403
      %1405 = vrot.lane.b32.xlu0 %v710, 28
      %v1406 = vpop.permute.xlu0 %1405
      %1407 = vrot.lane.b32.xlu0 %v711, 28
      %v1408 = vpop.permute.xlu0 %1407
      %1409 = vrot.lane.b32.xlu0 %v714, 28
      %v1410 = vpop.permute.xlu0 %1409
      %1411 = vrot.lane.b32.xlu0 %v715, 28
      %v1412 = vpop.permute.xlu0 %1411
      %1413 = vrot.lane.b32.xlu0 %v718, 28
      %v1414 = vpop.permute.xlu0 %1413
      %1415 = vrot.lane.b32.xlu0 %v719, 28
      %v1416 = vpop.permute.xlu0 %1415
      %1417 = vrot.lane.b32.xlu0 %v722, 28
      %v1418 = vpop.permute.xlu0 %1417
      %1419 = vrot.lane.b32.xlu0 %v723, 28
      %v1420 = vpop.permute.xlu0 %1419
      %1421 = vrot.lane.b32.xlu0 %v726, 28
      %v1422 = vpop.permute.xlu0 %1421
      %1423 = vrot.lane.b32.xlu0 %v727, 28
      %v1424 = vpop.permute.xlu0 %1423
      %1425 = vrot.lane.b32.xlu0 %v730, 28
      %v1426 = vpop.permute.xlu0 %1425
      %1427 = vrot.lane.b32.xlu0 %v731, 28
      %v1428 = vpop.permute.xlu0 %1427
      %1429 = vrot.lane.b32.xlu0 %v670, 28
      %v1430 = vpop.permute.xlu0 %1429
      %1431 = vrot.lane.b32.xlu0 %v671, 28
      %v1432 = vpop.permute.xlu0 %1431
      %1433 = vrot.lane.b32.xlu0 %v674, 28
      %v1434 = vpop.permute.xlu0 %1433
      %1435 = vrot.lane.b32.xlu0 %v675, 28
      %v1436 = vpop.permute.xlu0 %1435
      %1469 = vrot.lane.b32.xlu0 %v839, 32
      %v1470 = vpop.permute.xlu0 %1469
      %1471 = vrot.lane.b32.xlu0 %v840, 32
      %v1472 = vpop.permute.xlu0 %1471
      %1473 = vrot.lane.b32.xlu0 %v843, 32
      %v1474 = vpop.permute.xlu0 %1473
      %1475 = vrot.lane.b32.xlu0 %v844, 32
      %v1476 = vpop.permute.xlu0 %1475
      %1477 = vrot.lane.b32.xlu0 %v847, 32
      %v1478 = vpop.permute.xlu0 %1477
      %1479 = vrot.lane.b32.xlu0 %v848, 32
      %v1480 = vpop.permute.xlu0 %1479
      %1481 = vrot.lane.b32.xlu0 %v851, 32
      %v1482 = vpop.permute.xlu0 %1481
      %1483 = vrot.lane.b32.xlu0 %v852, 32
      %v1484 = vpop.permute.xlu0 %1483
      %1485 = vrot.lane.b32.xlu0 %v855, 32
      %v1486 = vpop.permute.xlu0 %1485
      %1487 = vrot.lane.b32.xlu0 %v856, 32
      %v1488 = vpop.permute.xlu0 %1487
      %1489 = vrot.lane.b32.xlu0 %v859, 32
      %v1490 = vpop.permute.xlu0 %1489
      %1491 = vrot.lane.b32.xlu0 %v860, 32
      %v1492 = vpop.permute.xlu0 %1491
      %1493 = vrot.lane.b32.xlu0 %v863, 32
      %v1494 = vpop.permute.xlu0 %1493
      %1495 = vrot.lane.b32.xlu0 %v864, 32
      %v1496 = vpop.permute.xlu0 %1495
      %1497 = vrot.lane.b32.xlu0 %v867, 32
      %v1498 = vpop.permute.xlu0 %1497
      %1499 = vrot.lane.b32.xlu0 %v868, 32
      %v1500 = vpop.permute.xlu0 %1499
      %1501 = vrot.lane.b32.xlu0 %v871, 32
      %v1502 = vpop.permute.xlu0 %1501
      %1503 = vrot.lane.b32.xlu0 %v872, 32
      %v1504 = vpop.permute.xlu0 %1503
      %1505 = vrot.lane.b32.xlu0 %v875, 32
      %v1506 = vpop.permute.xlu0 %1505
      %1507 = vrot.lane.b32.xlu0 %v876, 32
      %v1508 = vpop.permute.xlu0 %1507
      %1509 = vrot.lane.b32.xlu0 %v879, 32
      %v1510 = vpop.permute.xlu0 %1509
      %1511 = vrot.lane.b32.xlu0 %v880, 32
      %v1512 = vpop.permute.xlu0 %1511
      %1513 = vrot.lane.b32.xlu0 %v883, 32
      %v1514 = vpop.permute.xlu0 %1513
      %1515 = vrot.lane.b32.xlu0 %v884, 32
      %v1516 = vpop.permute.xlu0 %1515
      %1517 = vrot.lane.b32.xlu0 %v887, 32
      %v1518 = vpop.permute.xlu0 %1517
      %1519 = vrot.lane.b32.xlu0 %v888, 32
      %v1520 = vpop.permute.xlu0 %1519
      %1521 = vrot.lane.b32.xlu0 %v891, 32
      %v1522 = vpop.permute.xlu0 %1521
      %1523 = vrot.lane.b32.xlu0 %v892, 32
      %v1524 = vpop.permute.xlu0 %1523
      %1525 = vrot.lane.b32.xlu0 %v831, 32
      %v1526 = vpop.permute.xlu0 %1525
      %1527 = vrot.lane.b32.xlu0 %v832, 32
      %v1528 = vpop.permute.xlu0 %1527
      %1529 = vrot.lane.b32.xlu0 %v835, 32
      %v1530 = vpop.permute.xlu0 %1529
      %1531 = vrot.lane.b32.xlu0 %v836, 32
      %v1532 = vpop.permute.xlu0 %1531
      %vm1565 = vcmask 31744
      %v1566 = vsel %vm1565, %v635, %v733
      %v1567 = vsel %vm1565, %v572, %v735
      %v1568 = vsel %vm1565, %v636, %v737
      %v1569 = vsel %vm1565, %v574, %v739
      %v1570 = vsel %vm1565, %v637, %v741
      %v1571 = vsel %vm1565, %v576, %v743
      %v1572 = vsel %vm1565, %v638, %v745
      %v1573 = vsel %vm1565, %v578, %v747
      %v1574 = vsel %vm1565, %v639, %v749
      %v1575 = vsel %vm1565, %v580, %v751
      %v1576 = vsel %vm1565, %v640, %v753
      %v1577 = vsel %vm1565, %v582, %v755
      %v1578 = vsel %vm1565, %v641, %v757
      %v1579 = vsel %vm1565, %v584, %v759
      %v1580 = vsel %vm1565, %v642, %v761
      %v1581 = vsel %vm1565, %v586, %v763
      %v1582 = vsel %vm1565, %v643, %v765
      %v1583 = vsel %vm1565, %v588, %v767
      %v1584 = vsel %vm1565, %v644, %v769
      %v1585 = vsel %vm1565, %v590, %v771
      %v1586 = vsel %vm1565, %v645, %v773
      %v1587 = vsel %vm1565, %v592, %v775
      %v1588 = vsel %vm1565, %v646, %v777
      %v1589 = vsel %vm1565, %v594, %v779
      %v1590 = vsel %vm1565, %v647, %v781
      %v1591 = vsel %vm1565, %v596, %v783
      %v1592 = vsel %vm1565, %v648, %v785
      %v1593 = vsel %vm1565, %v598, %v787
      %v1594 = vsel %vm1565, %v649, %v789
      %v1595 = vsel %vm1565, %v600, %v791
      %v1596 = vsel %vm1565, %v650, %v793
      %v1597 = vsel %vm1565, %v602, %v795
      %vm1598 = vcmask 64512
      %v1599 = vsel %vm1598, %v1566, %v894
      %v1600 = vsel %vm1598, %v1567, %v896
      %v1601 = vsel %vm1598, %v1568, %v898
      %v1602 = vsel %vm1598, %v1569, %v900
      %v1603 = vsel %vm1598, %v1570, %v902
      %v1604 = vsel %vm1598, %v1571, %v904
      %v1605 = vsel %vm1598, %v1572, %v906
      %v1606 = vsel %vm1598, %v1573, %v908
      %v1607 = vsel %vm1598, %v1574, %v910
      %v1608 = vsel %vm1598, %v1575, %v912
      %v1609 = vsel %vm1598, %v1576, %v914
      %v1610 = vsel %vm1598, %v1577, %v916
      %v1611 = vsel %vm1598, %v1578, %v918
      %v1612 = vsel %vm1598, %v1579, %v920
      %v1613 = vsel %vm1598, %v1580, %v922
      %v1614 = vsel %vm1598, %v1581, %v924
      %v1615 = vsel %vm1598, %v1582, %v926
      %v1616 = vsel %vm1598, %v1583, %v928
      %v1617 = vsel %vm1598, %v1584, %v930
      %v1618 = vsel %vm1598, %v1585, %v932
      %v1619 = vsel %vm1598, %v1586, %v934
      %v1620 = vsel %vm1598, %v1587, %v936
      %v1621 = vsel %vm1598, %v1588, %v938
      %v1622 = vsel %vm1598, %v1589, %v940
      %v1623 = vsel %vm1598, %v1590, %v942
      %v1624 = vsel %vm1598, %v1591, %v944
      %v1625 = vsel %vm1598, %v1592, %v946
      %v1626 = vsel %vm1598, %v1593, %v948
      %v1627 = vsel %vm1598, %v1594, %v950
      %v1628 = vsel %vm1598, %v1595, %v952
      %v1629 = vsel %vm1598, %v1596, %v954
      %v1630 = vsel %vm1598, %v1597, %v956
      %vm1631 = vcmask 97280
      %v1632 = vsel %vm1631, %v1599, %v990
      %v1633 = vsel %vm1631, %v1600, %v992
      %v1634 = vsel %vm1631, %v1601, %v994
      %v1635 = vsel %vm1631, %v1602, %v996
      %v1636 = vsel %vm1631, %v1603, %v998
      %v1637 = vsel %vm1631, %v1604, %v1000
      %v1638 = vsel %vm1631, %v1605, %v1002
      %v1639 = vsel %vm1631, %v1606, %v1004
      %v1640 = vsel %vm1631, %v1607, %v1006
      %v1641 = vsel %vm1631, %v1608, %v1008
      %v1642 = vsel %vm1631, %v1609, %v1010
      %v1643 = vsel %vm1631, %v1610, %v1012
      %v1644 = vsel %vm1631, %v1611, %v1014
      %v1645 = vsel %vm1631, %v1612, %v1016
      %v1646 = vsel %vm1631, %v1613, %v1018
      %v1647 = vsel %vm1631, %v1614, %v1020
      %v1648 = vsel %vm1631, %v1615, %v1022
      %v1649 = vsel %vm1631, %v1616, %v1024
      %v1650 = vsel %vm1631, %v1617, %v1026
      %v1651 = vsel %vm1631, %v1618, %v1028
      %v1652 = vsel %vm1631, %v1619, %v1030
      %v1653 = vsel %vm1631, %v1620, %v1032
      %v1654 = vsel %vm1631, %v1621, %v1034
      %v1655 = vsel %vm1631, %v1622, %v1036
      %v1656 = vsel %vm1631, %v1623, %v1038
      %v1657 = vsel %vm1631, %v1624, %v1040
      %v1658 = vsel %vm1631, %v1625, %v1042
      %v1659 = vsel %vm1631, %v1626, %v1044
      %v1660 = vsel %vm1631, %v1627, %v1046
      %v1661 = vsel %vm1631, %v1628, %v1048
      %v1662 = vsel %vm1631, %v1629, %v1050
      %v1663 = vsel %vm1631, %v1630, %v1052
      %vm1664 = vcmask 130048
      %v1665 = vsel %vm1664, %v1632, %v1086
      %v1666 = vsel %vm1664, %v1633, %v1088
      %v1667 = vsel %vm1664, %v1634, %v1090
      %v1668 = vsel %vm1664, %v1635, %v1092
      %v1669 = vsel %vm1664, %v1636, %v1094
      %v1670 = vsel %vm1664, %v1637, %v1096
      %v1671 = vsel %vm1664, %v1638, %v1098
      %v1672 = vsel %vm1664, %v1639, %v1100
      %v1673 = vsel %vm1664, %v1640, %v1102
      %v1674 = vsel %vm1664, %v1641, %v1104
      %v1675 = vsel %vm1664, %v1642, %v1106
      %v1676 = vsel %vm1664, %v1643, %v1108
      %v1677 = vsel %vm1664, %v1644, %v1110
      %v1678 = vsel %vm1664, %v1645, %v1112
      %v1679 = vsel %vm1664, %v1646, %v1114
      %v1680 = vsel %vm1664, %v1647, %v1116
      %v1681 = vsel %vm1664, %v1648, %v1118
      %v1682 = vsel %vm1664, %v1649, %v1120
      %v1683 = vsel %vm1664, %v1650, %v1122
      %v1684 = vsel %vm1664, %v1651, %v1124
      %v1685 = vsel %vm1664, %v1652, %v1126
      %v1686 = vsel %vm1664, %v1653, %v1128
      %v1687 = vsel %vm1664, %v1654, %v1130
      %v1688 = vsel %vm1664, %v1655, %v1132
      %v1689 = vsel %vm1664, %v1656, %v1134
      %v1690 = vsel %vm1664, %v1657, %v1136
      %v1691 = vsel %vm1664, %v1658, %v1138
      %v1692 = vsel %vm1664, %v1659, %v1140
      %v1693 = vsel %vm1664, %v1660, %v1142
      %v1694 = vsel %vm1664, %v1661, %v1144
      %v1695 = vsel %vm1664, %v1662, %v1146
      %v1696 = vsel %vm1664, %v1663, %v1148
      %vm1697 = vcmask 162816
      %v1698 = vsel %vm1697, %v1665, %v1182
      %v1699 = vsel %vm1697, %v1666, %v1184
      %v1700 = vsel %vm1697, %v1667, %v1186
      %v1701 = vsel %vm1697, %v1668, %v1188
      %v1702 = vsel %vm1697, %v1669, %v1190
      %v1703 = vsel %vm1697, %v1670, %v1192
      %v1704 = vsel %vm1697, %v1671, %v1194
      %v1705 = vsel %vm1697, %v1672, %v1196
      %v1706 = vsel %vm1697, %v1673, %v1198
      %v1707 = vsel %vm1697, %v1674, %v1200
      %v1708 = vsel %vm1697, %v1675, %v1202
      %v1709 = vsel %vm1697, %v1676, %v1204
      %v1710 = vsel %vm1697, %v1677, %v1206
      %v1711 = vsel %vm1697, %v1678, %v1208
      %v1712 = vsel %vm1697, %v1679, %v1210
      %v1713 = vsel %vm1697, %v1680, %v1212
      %v1714 = vsel %vm1697, %v1681, %v1214
      %v1715 = vsel %vm1697, %v1682, %v1216
      %v1716 = vsel %vm1697, %v1683, %v1218
      %v1717 = vsel %vm1697, %v1684, %v1220
      %v1718 = vsel %vm1697, %v1685, %v1222
      %v1719 = vsel %vm1697, %v1686, %v1224
      %v1720 = vsel %vm1697, %v1687, %v1226
      %v1721 = vsel %vm1697, %v1688, %v1228
      %v1722 = vsel %vm1697, %v1689, %v1230
      %v1723 = vsel %vm1697, %v1690, %v1232
      %v1724 = vsel %vm1697, %v1691, %v1234
      %v1725 = vsel %vm1697, %v1692, %v1236
      %v1726 = vsel %vm1697, %v1693, %v1238
      %v1727 = vsel %vm1697, %v1694, %v1240
      %v1728 = vsel %vm1697, %v1695, %v1242
      %v1729 = vsel %vm1697, %v1696, %v1244
      %vm1730 = vcmask 195584
      %v1731 = vsel %vm1730, %v1698, %v1278
      %v1732 = vsel %vm1730, %v1699, %v1280
      %v1733 = vsel %vm1730, %v1700, %v1282
      %v1734 = vsel %vm1730, %v1701, %v1284
      %v1735 = vsel %vm1730, %v1702, %v1286
      %v1736 = vsel %vm1730, %v1703, %v1288
      %v1737 = vsel %vm1730, %v1704, %v1290
      %v1738 = vsel %vm1730, %v1705, %v1292
      %v1739 = vsel %vm1730, %v1706, %v1294
      %v1740 = vsel %vm1730, %v1707, %v1296
      %v1741 = vsel %vm1730, %v1708, %v1298
      %v1742 = vsel %vm1730, %v1709, %v1300
      %v1743 = vsel %vm1730, %v1710, %v1302
      %v1744 = vsel %vm1730, %v1711, %v1304
      %v1745 = vsel %vm1730, %v1712, %v1306
      %v1746 = vsel %vm1730, %v1713, %v1308
      %v1747 = vsel %vm1730, %v1714, %v1310
      %v1748 = vsel %vm1730, %v1715, %v1312
      %v1749 = vsel %vm1730, %v1716, %v1314
      %v1750 = vsel %vm1730, %v1717, %v1316
      %v1751 = vsel %vm1730, %v1718, %v1318
      %v1752 = vsel %vm1730, %v1719, %v1320
      %v1753 = vsel %vm1730, %v1720, %v1322
      %v1754 = vsel %vm1730, %v1721, %v1324
      %v1755 = vsel %vm1730, %v1722, %v1326
      %v1756 = vsel %vm1730, %v1723, %v1328
      %v1757 = vsel %vm1730, %v1724, %v1330
      %v1758 = vsel %vm1730, %v1725, %v1332
      %v1759 = vsel %vm1730, %v1726, %v1334
      %v1760 = vsel %vm1730, %v1727, %v1336
      %v1761 = vsel %vm1730, %v1728, %v1338
      %v1762 = vsel %vm1730, %v1729, %v1340
      %vm1763 = vcmask 228352
      %v1764 = vsel %vm1763, %v1731, %v1374
      %v1765 = vsel %vm1763, %v1732, %v1376
      %v1766 = vsel %vm1763, %v1733, %v1378
      %v1767 = vsel %vm1763, %v1734, %v1380
      %v1768 = vsel %vm1763, %v1735, %v1382
      %v1769 = vsel %vm1763, %v1736, %v1384
      %v1770 = vsel %vm1763, %v1737, %v1386
      %v1771 = vsel %vm1763, %v1738, %v1388
      %v1772 = vsel %vm1763, %v1739, %v1390
      %v1773 = vsel %vm1763, %v1740, %v1392
      %v1774 = vsel %vm1763, %v1741, %v1394
      %v1775 = vsel %vm1763, %v1742, %v1396
      %v1776 = vsel %vm1763, %v1743, %v1398
      %v1777 = vsel %vm1763, %v1744, %v1400
      %v1778 = vsel %vm1763, %v1745, %v1402
      %v1779 = vsel %vm1763, %v1746, %v1404
      %v1780 = vsel %vm1763, %v1747, %v1406
      %v1781 = vsel %vm1763, %v1748, %v1408
      %v1782 = vsel %vm1763, %v1749, %v1410
      %v1783 = vsel %vm1763, %v1750, %v1412
      %v1784 = vsel %vm1763, %v1751, %v1414
      %v1785 = vsel %vm1763, %v1752, %v1416
      %v1786 = vsel %vm1763, %v1753, %v1418
      %v1787 = vsel %vm1763, %v1754, %v1420
      %v1788 = vsel %vm1763, %v1755, %v1422
      %v1789 = vsel %vm1763, %v1756, %v1424
      %v1790 = vsel %vm1763, %v1757, %v1426
      %v1791 = vsel %vm1763, %v1758, %v1428
      %v1792 = vsel %vm1763, %v1759, %v1430
      %v1793 = vsel %vm1763, %v1760, %v1432
      %v1794 = vsel %vm1763, %v1761, %v1434
      %v1795 = vsel %vm1763, %v1762, %v1436
      %vm1796 = vcmask 261120
      %v1797 = vsel %vm1796, %v1764, %v1470
      %v1798 = vsel %vm1796, %v1765, %v1472
      %v1799 = vsel %vm1796, %v1766, %v1474
      %v1800 = vsel %vm1796, %v1767, %v1476
      %v1801 = vsel %vm1796, %v1768, %v1478
      %v1802 = vsel %vm1796, %v1769, %v1480
      %v1803 = vsel %vm1796, %v1770, %v1482
      %v1804 = vsel %vm1796, %v1771, %v1484
      %v1805 = vsel %vm1796, %v1772, %v1486
      %v1806 = vsel %vm1796, %v1773, %v1488
      %v1807 = vsel %vm1796, %v1774, %v1490
      %v1808 = vsel %vm1796, %v1775, %v1492
      %v1809 = vsel %vm1796, %v1776, %v1494
      %v1810 = vsel %vm1796, %v1777, %v1496
      %v1811 = vsel %vm1796, %v1778, %v1498
      %v1812 = vsel %vm1796, %v1779, %v1500
      %v1813 = vsel %vm1796, %v1780, %v1502
      %v1814 = vsel %vm1796, %v1781, %v1504
      %v1815 = vsel %vm1796, %v1782, %v1506
      %v1816 = vsel %vm1796, %v1783, %v1508
      %v1817 = vsel %vm1796, %v1784, %v1510
      %v1818 = vsel %vm1796, %v1785, %v1512
      %v1819 = vsel %vm1796, %v1786, %v1514
      %v1820 = vsel %vm1796, %v1787, %v1516
      %v1821 = vsel %vm1796, %v1788, %v1518
      %v1822 = vsel %vm1796, %v1789, %v1520
      %v1823 = vsel %vm1796, %v1790, %v1522
      %v1824 = vsel %vm1796, %v1791, %v1524
      %v1825 = vsel %vm1796, %v1792, %v1526
      %v1826 = vsel %vm1796, %v1793, %v1528
      %v1827 = vsel %vm1796, %v1794, %v1530
      %v1828 = vsel %vm1796, %v1795, %v1532
      %v1830 = vlaneseq
      %v1831 = vshrl.u32 %v1830, 7
      %v1832 = vsub.s32 0, %v1831
      %v1833 = vrot.slane %v505, %v1832
      %vm1835 = vcmask 293888
      %v1837 = vsel %vm1835, %v1797, 0
      %v1840 = vsel %vm1835, %v1798, 0
      %v1843 = vsel %vm1835, %v1799, 0
      %v1846 = vsel %vm1835, %v1800, 0
      %v1849 = vsel %vm1835, %v1801, 0
      %v1852 = vsel %vm1835, %v1802, 0
      %v1855 = vsel %vm1835, %v1803, 0
      %v1858 = vsel %vm1835, %v1804, 0
      %v1861 = vsel %vm1835, %v1805, 0
      %v1864 = vsel %vm1835, %v1806, 0
      %v1867 = vsel %vm1835, %v1807, 0
      %v1870 = vsel %vm1835, %v1808, 0
      %v1873 = vsel %vm1835, %v1809, 0
      %v1876 = vsel %vm1835, %v1810, 0
      %v1879 = vsel %vm1835, %v1811, 0
      %v1882 = vsel %vm1835, %v1812, 0
      %v1885 = vsel %vm1835, %v1813, 0
      %v1888 = vsel %vm1835, %v1814, 0
      %v1891 = vsel %vm1835, %v1815, 0
      %v1894 = vsel %vm1835, %v1816, 0
      %v1897 = vsel %vm1835, %v1817, 0
      %v1900 = vsel %vm1835, %v1818, 0
      %v1903 = vsel %vm1835, %v1819, 0
      %v1906 = vsel %vm1835, %v1820, 0
      %v1909 = vsel %vm1835, %v1821, 0
      %v1912 = vsel %vm1835, %v1822, 0
      %v1915 = vsel %vm1835, %v1823, 0
      %v1918 = vsel %vm1835, %v1824, 0
      %v1921 = vsel %vm1835, %v1825, 0
      %v1924 = vsel %vm1835, %v1826, 0
      %v1927 = vsel %vm1835, %v1827, 0
      %v1930 = vsel %vm1835, %v1828, 0
      %vm1932 = vcmask 1043456
      %v1934 = vsel %vm1932, %v504, 0
      %1936 = vmatprep.subr.mxu0 0.0
      %1937 = vmatpush1.msra.mxu0 0.0
      %1938 = vmatprep.subr.mxu0 0.0
      %1939 = vmatpush1.msra.mxu0 0.0
      %1940 = vmatprep.subr.mxu0 0.0
      %1941 = vmatpush1.msra.mxu0 0.0
      %1942 = vmatprep.subr.mxu0 0.0
      %1943 = vmatpush1.msra.mxu0 0.0
      %1944 = vmatprep.subr.mxu0 0.0
      %1945 = vmatpush1.msra.mxu0 0.0
      %1946 = vmatprep.subr.mxu0 0.0
      %1947 = vmatpush1.msra.mxu0 0.0
      %1948 = vmatprep.subr.mxu0 0.0
      %1949 = vmatpush1.msra.mxu0 0.0
      %1950 = vmatprep.subr.mxu0 0.0
      %1951 = vmatpush1.msra.mxu0 0.0
      %1952 = vmatprep.subr.mxu0 0.0
      %1953 = vmatpush1.msra.mxu0 0.0
      %1954 = vmatprep.subr.mxu0 0.0
      %1955 = vmatpush1.msra.mxu0 0.0
      %1956 = vmatprep.subr.mxu0 0.0
      %1957 = vmatpush1.msra.mxu0 0.0
      %1958 = vmatprep.subr.mxu0 0.0
      %1959 = vmatpush1.msra.mxu0 %v1934
      %1960 = vmatprep.subr.mxu0 0.0
      %1961 = vmatpush1.msra.mxu0 %v503
      %1962 = vmatprep.subr.mxu0 0.0
      %1963 = vmatpush1.msra.mxu0 %v502
      %1964 = vmatprep.subr.mxu0 0.0
      %1965 = vmatpush1.msra.mxu0 %v501
      %1966 = vmatprep.subr.mxu0 0.0
      %1967 = vmatpush1.msra.mxu0 %v500
      %1968 = vmatprep.subr.mxu0 0.0
      %1969 = vmatpush2.msra.mxu0 0.0
      %1970 = vmatprep.subr.mxu0 0.0
      %1971 = vmatpush2.msra.mxu0 0.0
      %1972 = vmatprep.subr.mxu0 0.0
      %1973 = vmatpush2.msra.mxu0 0.0
      %1974 = vmatprep.subr.mxu0 0.0
      %1975 = vmatpush2.msra.mxu0 0.0
      %1976 = vmatprep.subr.mxu0 0.0
      %1977 = vmatpush2.msra.mxu0 0.0
      %1978 = vmatprep.subr.mxu0 0.0
      %1979 = vmatpush2.msra.mxu0 0.0
      %1980 = vmatprep.subr.mxu0 0.0
      %1981 = vmatpush2.msra.mxu0 0.0
      %1982 = vmatprep.subr.mxu0 0.0
      %1983 = vmatpush2.msra.mxu0 0.0
      %1984 = vmatprep.subr.mxu0 0.0
      %1985 = vmatpush2.msra.mxu0 0.0
      %1986 = vmatprep.subr.mxu0 0.0
      %1987 = vmatpush2.msra.mxu0 0.0
      %1988 = vmatprep.subr.mxu0 0.0
      %1989 = vmatpush2.msra.mxu0 0.0
      %1990 = vmatprep.subr.mxu0 0.0
      %1991 = vmatpush2.msra.mxu0 0.0
      %1992 = vmatprep.subr.mxu0 0.0
      %1993 = vmatpush2.msra.mxu0 0.0
      %1994 = vmatprep.subr.mxu0 0.0
      %1995 = vmatpush2.msra.mxu0 0.0
      %1996 = vmatprep.subr.mxu0 0.0
      %1997 = vmatpush2.msra.mxu0 0.0
      %1998 = vmatprep.subr.mxu0 0.0
      %1999 = vmatpush2.msra.mxu0 0.0
      %2000 = vmatprep.mubr.f32.mxu0 0.0
      %2001 = vmatmul.mubr.f32.gmra.mxu0 %v1837
      %v2002 = vpop.f32.mrf.mxu0
      %v2003 = vadd.f32 %v1833, %v2002
      %v2004 = vpop.f32.mrf.mxu0
      %2005 = vmatprep.mubr.f32.mxu0 0.0
      %2006 = vmatmul.mubr.f32.gmra.mxu0 %v1840
      %v2007 = vpop.f32.mrf.mxu0
      %v2008 = vadd.f32 %v1833, %v2007
      %v2009 = vpop.f32.mrf.mxu0
      %2010 = vmatprep.mubr.f32.mxu0 0.0
      %2011 = vmatmul.mubr.f32.gmra.mxu0 %v1843
      %v2012 = vpop.f32.mrf.mxu0
      %v2013 = vadd.f32 %v1833, %v2012
      %v2014 = vpop.f32.mrf.mxu0
      %2015 = vmatprep.mubr.f32.mxu0 0.0
      %2016 = vmatmul.mubr.f32.gmra.mxu0 %v1846
      %v2017 = vpop.f32.mrf.mxu0
      %v2018 = vadd.f32 %v1833, %v2017
      %v2019 = vpop.f32.mrf.mxu0
      %2020 = vmatprep.mubr.f32.mxu0 0.0
      %2021 = vmatmul.mubr.f32.gmra.mxu0 %v1849
      %v2022 = vpop.f32.mrf.mxu0
      %v2023 = vadd.f32 %v1833, %v2022
      %v2024 = vpop.f32.mrf.mxu0
      %2025 = vmatprep.mubr.f32.mxu0 0.0
      %2026 = vmatmul.mubr.f32.gmra.mxu0 %v1852
      %v2027 = vpop.f32.mrf.mxu0
      %v2028 = vadd.f32 %v1833, %v2027
      %v2029 = vpop.f32.mrf.mxu0
      %2030 = vmatprep.mubr.f32.mxu0 0.0
      %2031 = vmatmul.mubr.f32.gmra.mxu0 %v1855
      %v2032 = vpop.f32.mrf.mxu0
      %v2033 = vadd.f32 %v1833, %v2032
      %v2034 = vpop.f32.mrf.mxu0
      %2035 = vmatprep.mubr.f32.mxu0 0.0
      %2036 = vmatmul.mubr.f32.gmra.mxu0 %v1858
      %v2037 = vpop.f32.mrf.mxu0
      %v2038 = vadd.f32 %v1833, %v2037
      %v2039 = vpop.f32.mrf.mxu0
      %2040 = vmatprep.mubr.f32.mxu0 0.0
      %2041 = vmatmul.mubr.f32.gmra.mxu0 %v1861
      %v2042 = vpop.f32.mrf.mxu0
      %v2043 = vadd.f32 %v1833, %v2042
      %v2044 = vpop.f32.mrf.mxu0
      %2045 = vmatprep.mubr.f32.mxu0 0.0
      %2046 = vmatmul.mubr.f32.gmra.mxu0 %v1864
      %v2047 = vpop.f32.mrf.mxu0
      %v2048 = vadd.f32 %v1833, %v2047
      %v2049 = vpop.f32.mrf.mxu0
      %2050 = vmatprep.mubr.f32.mxu0 0.0
      %2051 = vmatmul.mubr.f32.gmra.mxu0 %v1867
      %v2052 = vpop.f32.mrf.mxu0
      %v2053 = vadd.f32 %v1833, %v2052
      %v2054 = vpop.f32.mrf.mxu0
      %2055 = vmatprep.mubr.f32.mxu0 0.0
      %2056 = vmatmul.mubr.f32.gmra.mxu0 %v1870
      %v2057 = vpop.f32.mrf.mxu0
      %v2058 = vadd.f32 %v1833, %v2057
      %v2059 = vpop.f32.mrf.mxu0
      %2060 = vmatprep.mubr.f32.mxu0 0.0
      %2061 = vmatmul.mubr.f32.gmra.mxu0 %v1873
      %v2062 = vpop.f32.mrf.mxu0
      %v2063 = vadd.f32 %v1833, %v2062
      %v2064 = vpop.f32.mrf.mxu0
      %2065 = vmatprep.mubr.f32.mxu0 0.0
      %2066 = vmatmul.mubr.f32.gmra.mxu0 %v1876
      %v2067 = vpop.f32.mrf.mxu0
      %v2068 = vadd.f32 %v1833, %v2067
      %v2069 = vpop.f32.mrf.mxu0
      %2070 = vmatprep.mubr.f32.mxu0 0.0
      %2071 = vmatmul.mubr.f32.gmra.mxu0 %v1879
      %v2072 = vpop.f32.mrf.mxu0
      %v2073 = vadd.f32 %v1833, %v2072
      %v2074 = vpop.f32.mrf.mxu0
      %2075 = vmatprep.mubr.f32.mxu0 0.0
      %2076 = vmatmul.mubr.f32.gmra.mxu0 %v1882
      %v2077 = vpop.f32.mrf.mxu0
      %v2078 = vadd.f32 %v1833, %v2077
      %v2079 = vpop.f32.mrf.mxu0
      %2080 = vmatprep.mubr.f32.mxu0 0.0
      %2081 = vmatmul.mubr.f32.gmra.mxu0 %v1885
      %v2082 = vpop.f32.mrf.mxu0
      %v2083 = vadd.f32 %v1833, %v2082
      %v2084 = vpop.f32.mrf.mxu0
      %2085 = vmatprep.mubr.f32.mxu0 0.0
      %2086 = vmatmul.mubr.f32.gmra.mxu0 %v1888
      %v2087 = vpop.f32.mrf.mxu0
      %v2088 = vadd.f32 %v1833, %v2087
      %v2089 = vpop.f32.mrf.mxu0
      %2090 = vmatprep.mubr.f32.mxu0 0.0
      %2091 = vmatmul.mubr.f32.gmra.mxu0 %v1891
      %v2092 = vpop.f32.mrf.mxu0
      %v2093 = vadd.f32 %v1833, %v2092
      %v2094 = vpop.f32.mrf.mxu0
      %2095 = vmatprep.mubr.f32.mxu0 0.0
      %2096 = vmatmul.mubr.f32.gmra.mxu0 %v1894
      %v2097 = vpop.f32.mrf.mxu0
      %v2098 = vadd.f32 %v1833, %v2097
      %v2099 = vpop.f32.mrf.mxu0
      %2100 = vmatprep.mubr.f32.mxu0 0.0
      %2101 = vmatmul.mubr.f32.gmra.mxu0 %v1897
      %v2102 = vpop.f32.mrf.mxu0
      %v2103 = vadd.f32 %v1833, %v2102
      %v2104 = vpop.f32.mrf.mxu0
      %2105 = vmatprep.mubr.f32.mxu0 0.0
      %2106 = vmatmul.mubr.f32.gmra.mxu0 %v1900
      %v2107 = vpop.f32.mrf.mxu0
      %v2108 = vadd.f32 %v1833, %v2107
      %v2109 = vpop.f32.mrf.mxu0
      %2110 = vmatprep.mubr.f32.mxu0 0.0
      %2111 = vmatmul.mubr.f32.gmra.mxu0 %v1903
      %v2112 = vpop.f32.mrf.mxu0
      %v2113 = vadd.f32 %v1833, %v2112
      %v2114 = vpop.f32.mrf.mxu0
      %2115 = vmatprep.mubr.f32.mxu0 0.0
      %2116 = vmatmul.mubr.f32.gmra.mxu0 %v1906
      %v2117 = vpop.f32.mrf.mxu0
      %v2118 = vadd.f32 %v1833, %v2117
      %v2119 = vpop.f32.mrf.mxu0
      %2120 = vmatprep.mubr.f32.mxu0 0.0
      %2121 = vmatmul.mubr.f32.gmra.mxu0 %v1909
      %v2122 = vpop.f32.mrf.mxu0
      %v2123 = vadd.f32 %v1833, %v2122
      %v2124 = vpop.f32.mrf.mxu0
      %2125 = vmatprep.mubr.f32.mxu0 0.0
      %2126 = vmatmul.mubr.f32.gmra.mxu0 %v1912
      %v2127 = vpop.f32.mrf.mxu0
      %v2128 = vadd.f32 %v1833, %v2127
      %v2129 = vpop.f32.mrf.mxu0
      %2130 = vmatprep.mubr.f32.mxu0 0.0
      %2131 = vmatmul.mubr.f32.gmra.mxu0 %v1915
      %v2132 = vpop.f32.mrf.mxu0
      %v2133 = vadd.f32 %v1833, %v2132
      %v2134 = vpop.f32.mrf.mxu0
      %2135 = vmatprep.mubr.f32.mxu0 0.0
      %2136 = vmatmul.mubr.f32.gmra.mxu0 %v1918
      %v2137 = vpop.f32.mrf.mxu0
      %v2138 = vadd.f32 %v1833, %v2137
      %v2139 = vpop.f32.mrf.mxu0
      %2140 = vmatprep.mubr.f32.mxu0 0.0
      %2141 = vmatmul.mubr.f32.gmra.mxu0 %v1921
      %v2142 = vpop.f32.mrf.mxu0
      %v2143 = vadd.f32 %v1833, %v2142
      %v2144 = vpop.f32.mrf.mxu0
      %2145 = vmatprep.mubr.f32.mxu0 0.0
      %2146 = vmatmul.mubr.f32.gmra.mxu0 %v1924
      %v2147 = vpop.f32.mrf.mxu0
      %v2148 = vadd.f32 %v1833, %v2147
      %v2149 = vpop.f32.mrf.mxu0
      %2150 = vmatprep.mubr.f32.mxu0 0.0
      %2151 = vmatmul.mubr.f32.gmra.mxu0 %v1927
      %v2152 = vpop.f32.mrf.mxu0
      %v2153 = vadd.f32 %v1833, %v2152
      %v2154 = vpop.f32.mrf.mxu0
      %2155 = vmatprep.mubr.f32.mxu0 0.0
      %2156 = vmatmul.mubr.f32.gmra.mxu0 %v1930
      %v2157 = vpop.f32.mrf.mxu0
      %v2158 = vadd.f32 %v1833, %v2157
      %v2159 = vpop.f32.mrf.mxu0
      %2160 = vdwg.mxu0
      %v2161 = vmax.f32 %v2003, 0.0
      %v2162 = vmax.f32 %v2008, 0.0
      %v2163 = vmax.f32 %v2013, 0.0
      %v2164 = vmax.f32 %v2018, 0.0
      %v2165 = vmax.f32 %v2023, 0.0
      %v2166 = vmax.f32 %v2028, 0.0
      %v2167 = vmax.f32 %v2033, 0.0
      %v2168 = vmax.f32 %v2038, 0.0
      %v2169 = vmax.f32 %v2043, 0.0
      %v2170 = vmax.f32 %v2048, 0.0
      %v2171 = vmax.f32 %v2053, 0.0
      %v2172 = vmax.f32 %v2058, 0.0
      %v2173 = vmax.f32 %v2063, 0.0
      %v2174 = vmax.f32 %v2068, 0.0
      %v2175 = vmax.f32 %v2073, 0.0
      %v2176 = vmax.f32 %v2078, 0.0
      %v2177 = vmax.f32 %v2083, 0.0
      %v2178 = vmax.f32 %v2088, 0.0
      %v2179 = vmax.f32 %v2093, 0.0
      %v2180 = vmax.f32 %v2098, 0.0
      %v2181 = vmax.f32 %v2103, 0.0
      %v2182 = vmax.f32 %v2108, 0.0
      %v2183 = vmax.f32 %v2113, 0.0
      %v2184 = vmax.f32 %v2118, 0.0
      %v2185 = vmax.f32 %v2123, 0.0
      %v2186 = vmax.f32 %v2128, 0.0
      %v2187 = vmax.f32 %v2133, 0.0
      %v2188 = vmax.f32 %v2138, 0.0
      %v2189 = vmax.f32 %v2143, 0.0
      %v2190 = vmax.f32 %v2148, 0.0
      %v2191 = vmax.f32 %v2153, 0.0
      %v2192 = vmax.f32 %v2158, 0.0
      %v2193 = vld [vmem:[%s3] sm:$0xff]
      %v2194 = vld [vmem:[%s3 + $0x8] sm:$0xff]
      %v2195 = vld [vmem:[%s3 + $0x10] sm:$0xff]
      %v2196 = vld [vmem:[%s3 + $0x18] sm:$0xff]
      %v2197 = vld [vmem:[%s3 + $0x20] sm:$0xff]
      %v2198 = vld [vmem:[%s3 + $0x28] sm:$0xff]
      %v2199 = vld [vmem:[%s3 + $0x30] sm:$0xff]
      %v2200 = vld [vmem:[%s3 + $0x38] sm:$0xff]
      %v2201 = vld [vmem:[%s3 + $0x40] sm:$0xff]
      %v2202 = vld [vmem:[%s4] sm:$0x1]
      %v2219 = vrot.slane %v2192, 7
      %v2220 = vrot.slane %v2162, 7
      %v2221 = vrot.slane %v2164, 7
      %v2222 = vrot.slane %v2166, 7
      %v2223 = vrot.slane %v2168, 7
      %v2224 = vrot.slane %v2170, 7
      %v2225 = vrot.slane %v2172, 7
      %v2226 = vrot.slane %v2174, 7
      %v2227 = vrot.slane %v2176, 7
      %v2228 = vrot.slane %v2178, 7
      %v2229 = vrot.slane %v2180, 7
      %v2230 = vrot.slane %v2182, 7
      %v2231 = vrot.slane %v2184, 7
      %v2232 = vrot.slane %v2186, 7
      %v2233 = vrot.slane %v2188, 7
      %v2234 = vrot.slane %v2190, 7
      %v2267 = vrot.slane %v2191, 7
      %v2268 = vsel %vm570, %v2267, %v2219
      %v2269 = vrot.slane %v2161, 7
      %v2270 = vsel %vm570, %v2269, %v2220
      %v2271 = vrot.slane %v2163, 7
      %v2272 = vsel %vm570, %v2271, %v2221
      %v2273 = vrot.slane %v2165, 7
      %v2274 = vsel %vm570, %v2273, %v2222
      %v2275 = vrot.slane %v2167, 7
      %v2276 = vsel %vm570, %v2275, %v2223
      %v2277 = vrot.slane %v2169, 7
      %v2278 = vsel %vm570, %v2277, %v2224
      %v2279 = vrot.slane %v2171, 7
      %v2280 = vsel %vm570, %v2279, %v2225
      %v2281 = vrot.slane %v2173, 7
      %v2282 = vsel %vm570, %v2281, %v2226
      %v2283 = vrot.slane %v2175, 7
      %v2284 = vsel %vm570, %v2283, %v2227
      %v2285 = vrot.slane %v2177, 7
      %v2286 = vsel %vm570, %v2285, %v2228
      %v2287 = vrot.slane %v2179, 7
      %v2288 = vsel %vm570, %v2287, %v2229
      %v2289 = vrot.slane %v2181, 7
      %v2290 = vsel %vm570, %v2289, %v2230
      %v2291 = vrot.slane %v2183, 7
      %v2292 = vsel %vm570, %v2291, %v2231
      %v2293 = vrot.slane %v2185, 7
      %v2294 = vsel %vm570, %v2293, %v2232
      %v2295 = vrot.slane %v2187, 7
      %v2296 = vsel %vm570, %v2295, %v2233
      %v2297 = vrot.slane %v2189, 7
      %v2298 = vsel %vm570, %v2297, %v2234
      %v2331 = vsel %vm570, %v2219, %v2267
      %v2332 = vsel %vm570, %v2220, %v2269
      %v2333 = vsel %vm570, %v2221, %v2271
      %v2334 = vsel %vm570, %v2222, %v2273
      %v2335 = vsel %vm570, %v2223, %v2275
      %v2336 = vsel %vm570, %v2224, %v2277
      %v2337 = vsel %vm570, %v2225, %v2279
      %v2338 = vsel %vm570, %v2226, %v2281
      %v2339 = vsel %vm570, %v2227, %v2283
      %v2340 = vsel %vm570, %v2228, %v2285
      %v2341 = vsel %vm570, %v2229, %v2287
      %v2342 = vsel %vm570, %v2230, %v2289
      %v2343 = vsel %vm570, %v2231, %v2291
      %v2344 = vsel %vm570, %v2232, %v2293
      %v2345 = vsel %vm570, %v2233, %v2295
      %v2346 = vsel %vm570, %v2234, %v2297
      %v2363 = vrot.slane %v2331, 1
      %v2364 = vrot.slane %v2268, 1
      %v2365 = vsel %vm667, %v2363, %v2364
      %v2366 = vsel %vm667, %v2364, %v2363
      %v2367 = vrot.slane %v2332, 1
      %v2368 = vrot.slane %v2270, 1
      %v2369 = vsel %vm667, %v2367, %v2368
      %v2370 = vsel %vm667, %v2368, %v2367
      %v2371 = vrot.slane %v2333, 1
      %v2372 = vrot.slane %v2272, 1
      %v2373 = vsel %vm667, %v2371, %v2372
      %v2374 = vsel %vm667, %v2372, %v2371
      %v2375 = vrot.slane %v2334, 1
      %v2376 = vrot.slane %v2274, 1
      %v2377 = vsel %vm667, %v2375, %v2376
      %v2378 = vsel %vm667, %v2376, %v2375
      %v2379 = vrot.slane %v2335, 1
      %v2380 = vrot.slane %v2276, 1
      %v2381 = vsel %vm667, %v2379, %v2380
      %v2382 = vsel %vm667, %v2380, %v2379
      %v2383 = vrot.slane %v2336, 1
      %v2384 = vrot.slane %v2278, 1
      %v2385 = vsel %vm667, %v2383, %v2384
      %v2386 = vsel %vm667, %v2384, %v2383
      %v2387 = vrot.slane %v2337, 1
      %v2388 = vrot.slane %v2280, 1
      %v2389 = vsel %vm667, %v2387, %v2388
      %v2390 = vsel %vm667, %v2388, %v2387
      %v2391 = vrot.slane %v2338, 1
      %v2392 = vrot.slane %v2282, 1
      %v2393 = vsel %vm667, %v2391, %v2392
      %v2394 = vsel %vm667, %v2392, %v2391
      %v2395 = vrot.slane %v2339, 1
      %v2396 = vrot.slane %v2284, 1
      %v2397 = vsel %vm667, %v2395, %v2396
      %v2398 = vsel %vm667, %v2396, %v2395
      %v2399 = vrot.slane %v2340, 1
      %v2400 = vrot.slane %v2286, 1
      %v2401 = vsel %vm667, %v2399, %v2400
      %v2402 = vsel %vm667, %v2400, %v2399
      %v2403 = vrot.slane %v2341, 1
      %v2404 = vrot.slane %v2288, 1
      %v2405 = vsel %vm667, %v2403, %v2404
      %v2406 = vsel %vm667, %v2404, %v2403
      %v2407 = vrot.slane %v2342, 1
      %v2408 = vrot.slane %v2290, 1
      %v2409 = vsel %vm667, %v2407, %v2408
      %v2410 = vsel %vm667, %v2408, %v2407
      %v2411 = vrot.slane %v2343, 1
      %v2412 = vrot.slane %v2292, 1
      %v2413 = vsel %vm667, %v2411, %v2412
      %v2414 = vsel %vm667, %v2412, %v2411
      %v2415 = vrot.slane %v2344, 1
      %v2416 = vrot.slane %v2294, 1
      %v2417 = vsel %vm667, %v2415, %v2416
      %v2418 = vsel %vm667, %v2416, %v2415
      %v2419 = vrot.slane %v2345, 1
      %v2420 = vrot.slane %v2296, 1
      %v2421 = vsel %vm667, %v2419, %v2420
      %v2422 = vsel %vm667, %v2420, %v2419
      %v2423 = vrot.slane %v2346, 1
      %v2424 = vrot.slane %v2298, 1
      %v2425 = vsel %vm667, %v2423, %v2424
      %v2426 = vsel %vm667, %v2424, %v2423
      %2427 = vrot.lane.b32.xlu0 %v2365, 8
      %v2428 = vpop.permute.xlu0 %2427
      %2429 = vrot.lane.b32.xlu0 %v2366, 8
      %v2430 = vpop.permute.xlu0 %2429
      %2431 = vrot.lane.b32.xlu0 %v2369, 8
      %v2432 = vpop.permute.xlu0 %2431
      %2433 = vrot.lane.b32.xlu0 %v2370, 8
      %v2434 = vpop.permute.xlu0 %2433
      %2435 = vrot.lane.b32.xlu0 %v2373, 8
      %v2436 = vpop.permute.xlu0 %2435
      %2437 = vrot.lane.b32.xlu0 %v2374, 8
      %v2438 = vpop.permute.xlu0 %2437
      %2439 = vrot.lane.b32.xlu0 %v2377, 8
      %v2440 = vpop.permute.xlu0 %2439
      %2441 = vrot.lane.b32.xlu0 %v2378, 8
      %v2442 = vpop.permute.xlu0 %2441
      %2443 = vrot.lane.b32.xlu0 %v2381, 8
      %v2444 = vpop.permute.xlu0 %2443
      %2445 = vrot.lane.b32.xlu0 %v2382, 8
      %v2446 = vpop.permute.xlu0 %2445
      %2447 = vrot.lane.b32.xlu0 %v2385, 8
      %v2448 = vpop.permute.xlu0 %2447
      %2449 = vrot.lane.b32.xlu0 %v2386, 8
      %v2450 = vpop.permute.xlu0 %2449
      %2451 = vrot.lane.b32.xlu0 %v2389, 8
      %v2452 = vpop.permute.xlu0 %2451
      %2453 = vrot.lane.b32.xlu0 %v2390, 8
      %v2454 = vpop.permute.xlu0 %2453
      %2455 = vrot.lane.b32.xlu0 %v2393, 8
      %v2456 = vpop.permute.xlu0 %2455
      %2457 = vrot.lane.b32.xlu0 %v2394, 8
      %v2458 = vpop.permute.xlu0 %2457
      %2459 = vrot.lane.b32.xlu0 %v2397, 8
      %v2460 = vpop.permute.xlu0 %2459
      %2461 = vrot.lane.b32.xlu0 %v2398, 8
      %v2462 = vpop.permute.xlu0 %2461
      %2463 = vrot.lane.b32.xlu0 %v2401, 8
      %v2464 = vpop.permute.xlu0 %2463
      %2465 = vrot.lane.b32.xlu0 %v2402, 8
      %v2466 = vpop.permute.xlu0 %2465
      %2467 = vrot.lane.b32.xlu0 %v2405, 8
      %v2468 = vpop.permute.xlu0 %2467
      %2469 = vrot.lane.b32.xlu0 %v2406, 8
      %v2470 = vpop.permute.xlu0 %2469
      %2471 = vrot.lane.b32.xlu0 %v2409, 8
      %v2472 = vpop.permute.xlu0 %2471
      %2473 = vrot.lane.b32.xlu0 %v2410, 8
      %v2474 = vpop.permute.xlu0 %2473
      %2475 = vrot.lane.b32.xlu0 %v2413, 8
      %v2476 = vpop.permute.xlu0 %2475
      %2477 = vrot.lane.b32.xlu0 %v2414, 8
      %v2478 = vpop.permute.xlu0 %2477
      %2479 = vrot.lane.b32.xlu0 %v2417, 8
      %v2480 = vpop.permute.xlu0 %2479
      %2481 = vrot.lane.b32.xlu0 %v2418, 8
      %v2482 = vpop.permute.xlu0 %2481
      %2483 = vrot.lane.b32.xlu0 %v2421, 8
      %v2484 = vpop.permute.xlu0 %2483
      %2485 = vrot.lane.b32.xlu0 %v2422, 8
      %v2486 = vpop.permute.xlu0 %2485
      %2487 = vrot.lane.b32.xlu0 %v2425, 8
      %v2488 = vpop.permute.xlu0 %2487
      %2489 = vrot.lane.b32.xlu0 %v2426, 8
      %v2490 = vpop.permute.xlu0 %2489
      %v2523 = vrot.slane %v2331, 2
      %v2524 = vrot.slane %v2268, 2
      %v2525 = vsel %vm828, %v2523, %v2524
      %v2526 = vsel %vm828, %v2524, %v2523
      %v2527 = vrot.slane %v2332, 2
      %v2528 = vrot.slane %v2270, 2
      %v2529 = vsel %vm828, %v2527, %v2528
      %v2530 = vsel %vm828, %v2528, %v2527
      %v2531 = vrot.slane %v2333, 2
      %v2532 = vrot.slane %v2272, 2
      %v2533 = vsel %vm828, %v2531, %v2532
      %v2534 = vsel %vm828, %v2532, %v2531
      %v2535 = vrot.slane %v2334, 2
      %v2536 = vrot.slane %v2274, 2
      %v2537 = vsel %vm828, %v2535, %v2536
      %v2538 = vsel %vm828, %v2536, %v2535
      %v2539 = vrot.slane %v2335, 2
      %v2540 = vrot.slane %v2276, 2
      %v2541 = vsel %vm828, %v2539, %v2540
      %v2542 = vsel %vm828, %v2540, %v2539
      %v2543 = vrot.slane %v2336, 2
      %v2544 = vrot.slane %v2278, 2
      %v2545 = vsel %vm828, %v2543, %v2544
      %v2546 = vsel %vm828, %v2544, %v2543
      %v2547 = vrot.slane %v2337, 2
      %v2548 = vrot.slane %v2280, 2
      %v2549 = vsel %vm828, %v2547, %v2548
      %v2550 = vsel %vm828, %v2548, %v2547
      %v2551 = vrot.slane %v2338, 2
      %v2552 = vrot.slane %v2282, 2
      %v2553 = vsel %vm828, %v2551, %v2552
      %v2554 = vsel %vm828, %v2552, %v2551
      %v2555 = vrot.slane %v2339, 2
      %v2556 = vrot.slane %v2284, 2
      %v2557 = vsel %vm828, %v2555, %v2556
      %v2558 = vsel %vm828, %v2556, %v2555
      %v2559 = vrot.slane %v2340, 2
      %v2560 = vrot.slane %v2286, 2
      %v2561 = vsel %vm828, %v2559, %v2560
      %v2562 = vsel %vm828, %v2560, %v2559
      %v2563 = vrot.slane %v2341, 2
      %v2564 = vrot.slane %v2288, 2
      %v2565 = vsel %vm828, %v2563, %v2564
      %v2566 = vsel %vm828, %v2564, %v2563
      %v2567 = vrot.slane %v2342, 2
      %v2568 = vrot.slane %v2290, 2
      %v2569 = vsel %vm828, %v2567, %v2568
      %v2570 = vsel %vm828, %v2568, %v2567
      %v2571 = vrot.slane %v2343, 2
      %v2572 = vrot.slane %v2292, 2
      %v2573 = vsel %vm828, %v2571, %v2572
      %v2574 = vsel %vm828, %v2572, %v2571
      %v2575 = vrot.slane %v2344, 2
      %v2576 = vrot.slane %v2294, 2
      %v2577 = vsel %vm828, %v2575, %v2576
      %v2578 = vsel %vm828, %v2576, %v2575
      %v2579 = vrot.slane %v2345, 2
      %v2580 = vrot.slane %v2296, 2
      %v2581 = vsel %vm828, %v2579, %v2580
      %v2582 = vsel %vm828, %v2580, %v2579
      %v2583 = vrot.slane %v2346, 2
      %v2584 = vrot.slane %v2298, 2
      %v2585 = vsel %vm828, %v2583, %v2584
      %v2586 = vsel %vm828, %v2584, %v2583
      %2587 = vrot.lane.b32.xlu0 %v2525, 16
      %v2588 = vpop.permute.xlu0 %2587
      %2589 = vrot.lane.b32.xlu0 %v2526, 16
      %v2590 = vpop.permute.xlu0 %2589
      %2591 = vrot.lane.b32.xlu0 %v2529, 16
      %v2592 = vpop.permute.xlu0 %2591
      %2593 = vrot.lane.b32.xlu0 %v2530, 16
      %v2594 = vpop.permute.xlu0 %2593
      %2595 = vrot.lane.b32.xlu0 %v2533, 16
      %v2596 = vpop.permute.xlu0 %2595
      %2597 = vrot.lane.b32.xlu0 %v2534, 16
      %v2598 = vpop.permute.xlu0 %2597
      %2599 = vrot.lane.b32.xlu0 %v2537, 16
      %v2600 = vpop.permute.xlu0 %2599
      %2601 = vrot.lane.b32.xlu0 %v2538, 16
      %v2602 = vpop.permute.xlu0 %2601
      %2603 = vrot.lane.b32.xlu0 %v2541, 16
      %v2604 = vpop.permute.xlu0 %2603
      %2605 = vrot.lane.b32.xlu0 %v2542, 16
      %v2606 = vpop.permute.xlu0 %2605
      %2607 = vrot.lane.b32.xlu0 %v2545, 16
      %v2608 = vpop.permute.xlu0 %2607
      %2609 = vrot.lane.b32.xlu0 %v2546, 16
      %v2610 = vpop.permute.xlu0 %2609
      %2611 = vrot.lane.b32.xlu0 %v2549, 16
      %v2612 = vpop.permute.xlu0 %2611
      %2613 = vrot.lane.b32.xlu0 %v2550, 16
      %v2614 = vpop.permute.xlu0 %2613
      %2615 = vrot.lane.b32.xlu0 %v2553, 16
      %v2616 = vpop.permute.xlu0 %2615
      %2617 = vrot.lane.b32.xlu0 %v2554, 16
      %v2618 = vpop.permute.xlu0 %2617
      %2619 = vrot.lane.b32.xlu0 %v2557, 16
      %v2620 = vpop.permute.xlu0 %2619
      %2621 = vrot.lane.b32.xlu0 %v2558, 16
      %v2622 = vpop.permute.xlu0 %2621
      %2623 = vrot.lane.b32.xlu0 %v2561, 16
      %v2624 = vpop.permute.xlu0 %2623
      %2625 = vrot.lane.b32.xlu0 %v2562, 16
      %v2626 = vpop.permute.xlu0 %2625
      %2627 = vrot.lane.b32.xlu0 %v2565, 16
      %v2628 = vpop.permute.xlu0 %2627
      %2629 = vrot.lane.b32.xlu0 %v2566, 16
      %v2630 = vpop.permute.xlu0 %2629
      %2631 = vrot.lane.b32.xlu0 %v2569, 16
      %v2632 = vpop.permute.xlu0 %2631
      %2633 = vrot.lane.b32.xlu0 %v2570, 16
      %v2634 = vpop.permute.xlu0 %2633
      %2635 = vrot.lane.b32.xlu0 %v2573, 16
      %v2636 = vpop.permute.xlu0 %2635
      %2637 = vrot.lane.b32.xlu0 %v2574, 16
      %v2638 = vpop.permute.xlu0 %2637
      %2639 = vrot.lane.b32.xlu0 %v2577, 16
      %v2640 = vpop.permute.xlu0 %2639
      %2641 = vrot.lane.b32.xlu0 %v2578, 16
      %v2642 = vpop.permute.xlu0 %2641
      %2643 = vrot.lane.b32.xlu0 %v2581, 16
      %v2644 = vpop.permute.xlu0 %2643
      %2645 = vrot.lane.b32.xlu0 %v2582, 16
      %v2646 = vpop.permute.xlu0 %2645
      %2647 = vrot.lane.b32.xlu0 %v2585, 16
      %v2648 = vpop.permute.xlu0 %2647
      %2649 = vrot.lane.b32.xlu0 %v2586, 16
      %v2650 = vpop.permute.xlu0 %2649
      %2683 = vrot.lane.b32.xlu0 %v2332, 24
      %v2684 = vpop.permute.xlu0 %2683
      %2685 = vrot.lane.b32.xlu0 %v2270, 24
      %v2686 = vpop.permute.xlu0 %2685
      %2687 = vrot.lane.b32.xlu0 %v2333, 24
      %v2688 = vpop.permute.xlu0 %2687
      %2689 = vrot.lane.b32.xlu0 %v2272, 24
      %v2690 = vpop.permute.xlu0 %2689
      %2691 = vrot.lane.b32.xlu0 %v2334, 24
      %v2692 = vpop.permute.xlu0 %2691
      %2693 = vrot.lane.b32.xlu0 %v2274, 24
      %v2694 = vpop.permute.xlu0 %2693
      %2695 = vrot.lane.b32.xlu0 %v2335, 24
      %v2696 = vpop.permute.xlu0 %2695
      %2697 = vrot.lane.b32.xlu0 %v2276, 24
      %v2698 = vpop.permute.xlu0 %2697
      %2699 = vrot.lane.b32.xlu0 %v2336, 24
      %v2700 = vpop.permute.xlu0 %2699
      %2701 = vrot.lane.b32.xlu0 %v2278, 24
      %v2702 = vpop.permute.xlu0 %2701
      %2703 = vrot.lane.b32.xlu0 %v2337, 24
      %v2704 = vpop.permute.xlu0 %2703
      %2705 = vrot.lane.b32.xlu0 %v2280, 24
      %v2706 = vpop.permute.xlu0 %2705
      %2707 = vrot.lane.b32.xlu0 %v2338, 24
      %v2708 = vpop.permute.xlu0 %2707
      %2709 = vrot.lane.b32.xlu0 %v2282, 24
      %v2710 = vpop.permute.xlu0 %2709
      %2711 = vrot.lane.b32.xlu0 %v2339, 24
      %v2712 = vpop.permute.xlu0 %2711
      %2713 = vrot.lane.b32.xlu0 %v2284, 24
      %v2714 = vpop.permute.xlu0 %2713
      %2715 = vrot.lane.b32.xlu0 %v2340, 24
      %v2716 = vpop.permute.xlu0 %2715
      %2717 = vrot.lane.b32.xlu0 %v2286, 24
      %v2718 = vpop.permute.xlu0 %2717
      %2719 = vrot.lane.b32.xlu0 %v2341, 24
      %v2720 = vpop.permute.xlu0 %2719
      %2721 = vrot.lane.b32.xlu0 %v2288, 24
      %v2722 = vpop.permute.xlu0 %2721
      %2723 = vrot.lane.b32.xlu0 %v2342, 24
      %v2724 = vpop.permute.xlu0 %2723
      %2725 = vrot.lane.b32.xlu0 %v2290, 24
      %v2726 = vpop.permute.xlu0 %2725
      %2727 = vrot.lane.b32.xlu0 %v2343, 24
      %v2728 = vpop.permute.xlu0 %2727
      %2729 = vrot.lane.b32.xlu0 %v2292, 24
      %v2730 = vpop.permute.xlu0 %2729
      %2731 = vrot.lane.b32.xlu0 %v2344, 24
      %v2732 = vpop.permute.xlu0 %2731
      %2733 = vrot.lane.b32.xlu0 %v2294, 24
      %v2734 = vpop.permute.xlu0 %2733
      %2735 = vrot.lane.b32.xlu0 %v2345, 24
      %v2736 = vpop.permute.xlu0 %2735
      %2737 = vrot.lane.b32.xlu0 %v2296, 24
      %v2738 = vpop.permute.xlu0 %2737
      %2739 = vrot.lane.b32.xlu0 %v2346, 24
      %v2740 = vpop.permute.xlu0 %2739
      %2741 = vrot.lane.b32.xlu0 %v2298, 24
      %v2742 = vpop.permute.xlu0 %2741
      %2743 = vrot.lane.b32.xlu0 %v2331, 24
      %v2744 = vpop.permute.xlu0 %2743
      %2745 = vrot.lane.b32.xlu0 %v2268, 24
      %v2746 = vpop.permute.xlu0 %2745
      %2779 = vrot.lane.b32.xlu0 %v2369, 32
      %v2780 = vpop.permute.xlu0 %2779
      %2781 = vrot.lane.b32.xlu0 %v2370, 32
      %v2782 = vpop.permute.xlu0 %2781
      %2783 = vrot.lane.b32.xlu0 %v2373, 32
      %v2784 = vpop.permute.xlu0 %2783
      %2785 = vrot.lane.b32.xlu0 %v2374, 32
      %v2786 = vpop.permute.xlu0 %2785
      %2787 = vrot.lane.b32.xlu0 %v2377, 32
      %v2788 = vpop.permute.xlu0 %2787
      %2789 = vrot.lane.b32.xlu0 %v2378, 32
      %v2790 = vpop.permute.xlu0 %2789
      %2791 = vrot.lane.b32.xlu0 %v2381, 32
      %v2792 = vpop.permute.xlu0 %2791
      %2793 = vrot.lane.b32.xlu0 %v2382, 32
      %v2794 = vpop.permute.xlu0 %2793
      %2795 = vrot.lane.b32.xlu0 %v2385, 32
      %v2796 = vpop.permute.xlu0 %2795
      %2797 = vrot.lane.b32.xlu0 %v2386, 32
      %v2798 = vpop.permute.xlu0 %2797
      %2799 = vrot.lane.b32.xlu0 %v2389, 32
      %v2800 = vpop.permute.xlu0 %2799
      %2801 = vrot.lane.b32.xlu0 %v2390, 32
      %v2802 = vpop.permute.xlu0 %2801
      %2803 = vrot.lane.b32.xlu0 %v2393, 32
      %v2804 = vpop.permute.xlu0 %2803
      %2805 = vrot.lane.b32.xlu0 %v2394, 32
      %v2806 = vpop.permute.xlu0 %2805
      %2807 = vrot.lane.b32.xlu0 %v2397, 32
      %v2808 = vpop.permute.xlu0 %2807
      %2809 = vrot.lane.b32.xlu0 %v2398, 32
      %v2810 = vpop.permute.xlu0 %2809
      %2811 = vrot.lane.b32.xlu0 %v2401, 32
      %v2812 = vpop.permute.xlu0 %2811
      %2813 = vrot.lane.b32.xlu0 %v2402, 32
      %v2814 = vpop.permute.xlu0 %2813
      %2815 = vrot.lane.b32.xlu0 %v2405, 32
      %v2816 = vpop.permute.xlu0 %2815
      %2817 = vrot.lane.b32.xlu0 %v2406, 32
      %v2818 = vpop.permute.xlu0 %2817
      %2819 = vrot.lane.b32.xlu0 %v2409, 32
      %v2820 = vpop.permute.xlu0 %2819
      %2821 = vrot.lane.b32.xlu0 %v2410, 32
      %v2822 = vpop.permute.xlu0 %2821
      %2823 = vrot.lane.b32.xlu0 %v2413, 32
      %v2824 = vpop.permute.xlu0 %2823
      %2825 = vrot.lane.b32.xlu0 %v2414, 32
      %v2826 = vpop.permute.xlu0 %2825
      %2827 = vrot.lane.b32.xlu0 %v2417, 32
      %v2828 = vpop.permute.xlu0 %2827
      %2829 = vrot.lane.b32.xlu0 %v2418, 32
      %v2830 = vpop.permute.xlu0 %2829
      %2831 = vrot.lane.b32.xlu0 %v2421, 32
      %v2832 = vpop.permute.xlu0 %2831
      %2833 = vrot.lane.b32.xlu0 %v2422, 32
      %v2834 = vpop.permute.xlu0 %2833
      %2835 = vrot.lane.b32.xlu0 %v2425, 32
      %v2836 = vpop.permute.xlu0 %2835
      %2837 = vrot.lane.b32.xlu0 %v2426, 32
      %v2838 = vpop.permute.xlu0 %2837
      %2839 = vrot.lane.b32.xlu0 %v2365, 32
      %v2840 = vpop.permute.xlu0 %2839
      %2841 = vrot.lane.b32.xlu0 %v2366, 32
      %v2842 = vpop.permute.xlu0 %2841
      %2875 = vrot.lane.b32.xlu0 %v2529, 40
      %v2876 = vpop.permute.xlu0 %2875
      %2877 = vrot.lane.b32.xlu0 %v2530, 40
      %v2878 = vpop.permute.xlu0 %2877
      %2879 = vrot.lane.b32.xlu0 %v2533, 40
      %v2880 = vpop.permute.xlu0 %2879
      %2881 = vrot.lane.b32.xlu0 %v2534, 40
      %v2882 = vpop.permute.xlu0 %2881
      %2883 = vrot.lane.b32.xlu0 %v2537, 40
      %v2884 = vpop.permute.xlu0 %2883
      %2885 = vrot.lane.b32.xlu0 %v2538, 40
      %v2886 = vpop.permute.xlu0 %2885
      %2887 = vrot.lane.b32.xlu0 %v2541, 40
      %v2888 = vpop.permute.xlu0 %2887
      %2889 = vrot.lane.b32.xlu0 %v2542, 40
      %v2890 = vpop.permute.xlu0 %2889
      %2891 = vrot.lane.b32.xlu0 %v2545, 40
      %v2892 = vpop.permute.xlu0 %2891
      %2893 = vrot.lane.b32.xlu0 %v2546, 40
      %v2894 = vpop.permute.xlu0 %2893
      %2895 = vrot.lane.b32.xlu0 %v2549, 40
      %v2896 = vpop.permute.xlu0 %2895
      %2897 = vrot.lane.b32.xlu0 %v2550, 40
      %v2898 = vpop.permute.xlu0 %2897
      %2899 = vrot.lane.b32.xlu0 %v2553, 40
      %v2900 = vpop.permute.xlu0 %2899
      %2901 = vrot.lane.b32.xlu0 %v2554, 40
      %v2902 = vpop.permute.xlu0 %2901
      %2903 = vrot.lane.b32.xlu0 %v2557, 40
      %v2904 = vpop.permute.xlu0 %2903
      %2905 = vrot.lane.b32.xlu0 %v2558, 40
      %v2906 = vpop.permute.xlu0 %2905
      %2907 = vrot.lane.b32.xlu0 %v2561, 40
      %v2908 = vpop.permute.xlu0 %2907
      %2909 = vrot.lane.b32.xlu0 %v2562, 40
      %v2910 = vpop.permute.xlu0 %2909
      %2911 = vrot.lane.b32.xlu0 %v2565, 40
      %v2912 = vpop.permute.xlu0 %2911
      %2913 = vrot.lane.b32.xlu0 %v2566, 40
      %v2914 = vpop.permute.xlu0 %2913
      %2915 = vrot.lane.b32.xlu0 %v2569, 40
      %v2916 = vpop.permute.xlu0 %2915
      %2917 = vrot.lane.b32.xlu0 %v2570, 40
      %v2918 = vpop.permute.xlu0 %2917
      %2919 = vrot.lane.b32.xlu0 %v2573, 40
      %v2920 = vpop.permute.xlu0 %2919
      %2921 = vrot.lane.b32.xlu0 %v2574, 40
      %v2922 = vpop.permute.xlu0 %2921
      %2923 = vrot.lane.b32.xlu0 %v2577, 40
      %v2924 = vpop.permute.xlu0 %2923
      %2925 = vrot.lane.b32.xlu0 %v2578, 40
      %v2926 = vpop.permute.xlu0 %2925
      %2927 = vrot.lane.b32.xlu0 %v2581, 40
      %v2928 = vpop.permute.xlu0 %2927
      %2929 = vrot.lane.b32.xlu0 %v2582, 40
      %v2930 = vpop.permute.xlu0 %2929
      %2931 = vrot.lane.b32.xlu0 %v2585, 40
      %v2932 = vpop.permute.xlu0 %2931
      %2933 = vrot.lane.b32.xlu0 %v2586, 40
      %v2934 = vpop.permute.xlu0 %2933
      %2935 = vrot.lane.b32.xlu0 %v2525, 40
      %v2936 = vpop.permute.xlu0 %2935
      %2937 = vrot.lane.b32.xlu0 %v2526, 40
      %v2938 = vpop.permute.xlu0 %2937
      %2971 = vrot.lane.b32.xlu0 %v2333, 48
      %v2972 = vpop.permute.xlu0 %2971
      %2973 = vrot.lane.b32.xlu0 %v2272, 48
      %v2974 = vpop.permute.xlu0 %2973
      %2975 = vrot.lane.b32.xlu0 %v2334, 48
      %v2976 = vpop.permute.xlu0 %2975
      %2977 = vrot.lane.b32.xlu0 %v2274, 48
      %v2978 = vpop.permute.xlu0 %2977
      %2979 = vrot.lane.b32.xlu0 %v2335, 48
      %v2980 = vpop.permute.xlu0 %2979
      %2981 = vrot.lane.b32.xlu0 %v2276, 48
      %v2982 = vpop.permute.xlu0 %2981
      %2983 = vrot.lane.b32.xlu0 %v2336, 48
      %v2984 = vpop.permute.xlu0 %2983
      %2985 = vrot.lane.b32.xlu0 %v2278, 48
      %v2986 = vpop.permute.xlu0 %2985
      %2987 = vrot.lane.b32.xlu0 %v2337, 48
      %v2988 = vpop.permute.xlu0 %2987
      %2989 = vrot.lane.b32.xlu0 %v2280, 48
      %v2990 = vpop.permute.xlu0 %2989
      %2991 = vrot.lane.b32.xlu0 %v2338, 48
      %v2992 = vpop.permute.xlu0 %2991
      %2993 = vrot.lane.b32.xlu0 %v2282, 48
      %v2994 = vpop.permute.xlu0 %2993
      %2995 = vrot.lane.b32.xlu0 %v2339, 48
      %v2996 = vpop.permute.xlu0 %2995
      %2997 = vrot.lane.b32.xlu0 %v2284, 48
      %v2998 = vpop.permute.xlu0 %2997
      %2999 = vrot.lane.b32.xlu0 %v2340, 48
      %v3000 = vpop.permute.xlu0 %2999
      %3001 = vrot.lane.b32.xlu0 %v2286, 48
      %v3002 = vpop.permute.xlu0 %3001
      %3003 = vrot.lane.b32.xlu0 %v2341, 48
      %v3004 = vpop.permute.xlu0 %3003
      %3005 = vrot.lane.b32.xlu0 %v2288, 48
      %v3006 = vpop.permute.xlu0 %3005
      %3007 = vrot.lane.b32.xlu0 %v2342, 48
      %v3008 = vpop.permute.xlu0 %3007
      %3009 = vrot.lane.b32.xlu0 %v2290, 48
      %v3010 = vpop.permute.xlu0 %3009
      %3011 = vrot.lane.b32.xlu0 %v2343, 48
      %v3012 = vpop.permute.xlu0 %3011
      %3013 = vrot.lane.b32.xlu0 %v2292, 48
      %v3014 = vpop.permute.xlu0 %3013
      %3015 = vrot.lane.b32.xlu0 %v2344, 48
      %v3016 = vpop.permute.xlu0 %3015
      %3017 = vrot.lane.b32.xlu0 %v2294, 48
      %v3018 = vpop.permute.xlu0 %3017
      %3019 = vrot.lane.b32.xlu0 %v2345, 48
      %v3020 = vpop.permute.xlu0 %3019
      %3021 = vrot.lane.b32.xlu0 %v2296, 48
      %v3022 = vpop.permute.xlu0 %3021
      %3023 = vrot.lane.b32.xlu0 %v2346, 48
      %v3024 = vpop.permute.xlu0 %3023
      %3025 = vrot.lane.b32.xlu0 %v2298, 48
      %v3026 = vpop.permute.xlu0 %3025
      %3027 = vrot.lane.b32.xlu0 %v2331, 48
      %v3028 = vpop.permute.xlu0 %3027
      %3029 = vrot.lane.b32.xlu0 %v2268, 48
      %v3030 = vpop.permute.xlu0 %3029
      %3031 = vrot.lane.b32.xlu0 %v2332, 48
      %v3032 = vpop.permute.xlu0 %3031
      %3033 = vrot.lane.b32.xlu0 %v2270, 48
      %v3034 = vpop.permute.xlu0 %3033
      %3067 = vrot.lane.b32.xlu0 %v2373, 56
      %v3068 = vpop.permute.xlu0 %3067
      %3069 = vrot.lane.b32.xlu0 %v2374, 56
      %v3070 = vpop.permute.xlu0 %3069
      %3071 = vrot.lane.b32.xlu0 %v2377, 56
      %v3072 = vpop.permute.xlu0 %3071
      %3073 = vrot.lane.b32.xlu0 %v2378, 56
      %v3074 = vpop.permute.xlu0 %3073
      %3075 = vrot.lane.b32.xlu0 %v2381, 56
      %v3076 = vpop.permute.xlu0 %3075
      %3077 = vrot.lane.b32.xlu0 %v2382, 56
      %v3078 = vpop.permute.xlu0 %3077
      %3079 = vrot.lane.b32.xlu0 %v2385, 56
      %v3080 = vpop.permute.xlu0 %3079
      %3081 = vrot.lane.b32.xlu0 %v2386, 56
      %v3082 = vpop.permute.xlu0 %3081
      %3083 = vrot.lane.b32.xlu0 %v2389, 56
      %v3084 = vpop.permute.xlu0 %3083
      %3085 = vrot.lane.b32.xlu0 %v2390, 56
      %v3086 = vpop.permute.xlu0 %3085
      %3087 = vrot.lane.b32.xlu0 %v2393, 56
      %v3088 = vpop.permute.xlu0 %3087
      %3089 = vrot.lane.b32.xlu0 %v2394, 56
      %v3090 = vpop.permute.xlu0 %3089
      %3091 = vrot.lane.b32.xlu0 %v2397, 56
      %v3092 = vpop.permute.xlu0 %3091
      %3093 = vrot.lane.b32.xlu0 %v2398, 56
      %v3094 = vpop.permute.xlu0 %3093
      %3095 = vrot.lane.b32.xlu0 %v2401, 56
      %v3096 = vpop.permute.xlu0 %3095
      %3097 = vrot.lane.b32.xlu0 %v2402, 56
      %v3098 = vpop.permute.xlu0 %3097
      %3099 = vrot.lane.b32.xlu0 %v2405, 56
      %v3100 = vpop.permute.xlu0 %3099
      %3101 = vrot.lane.b32.xlu0 %v2406, 56
      %v3102 = vpop.permute.xlu0 %3101
      %3103 = vrot.lane.b32.xlu0 %v2409, 56
      %v3104 = vpop.permute.xlu0 %3103
      %3105 = vrot.lane.b32.xlu0 %v2410, 56
      %v3106 = vpop.permute.xlu0 %3105
      %3107 = vrot.lane.b32.xlu0 %v2413, 56
      %v3108 = vpop.permute.xlu0 %3107
      %3109 = vrot.lane.b32.xlu0 %v2414, 56
      %v3110 = vpop.permute.xlu0 %3109
      %3111 = vrot.lane.b32.xlu0 %v2417, 56
      %v3112 = vpop.permute.xlu0 %3111
      %3113 = vrot.lane.b32.xlu0 %v2418, 56
      %v3114 = vpop.permute.xlu0 %3113
      %3115 = vrot.lane.b32.xlu0 %v2421, 56
      %v3116 = vpop.permute.xlu0 %3115
      %3117 = vrot.lane.b32.xlu0 %v2422, 56
      %v3118 = vpop.permute.xlu0 %3117
      %3119 = vrot.lane.b32.xlu0 %v2425, 56
      %v3120 = vpop.permute.xlu0 %3119
      %3121 = vrot.lane.b32.xlu0 %v2426, 56
      %v3122 = vpop.permute.xlu0 %3121
      %3123 = vrot.lane.b32.xlu0 %v2365, 56
      %v3124 = vpop.permute.xlu0 %3123
      %3125 = vrot.lane.b32.xlu0 %v2366, 56
      %v3126 = vpop.permute.xlu0 %3125
      %3127 = vrot.lane.b32.xlu0 %v2369, 56
      %v3128 = vpop.permute.xlu0 %3127
      %3129 = vrot.lane.b32.xlu0 %v2370, 56
      %v3130 = vpop.permute.xlu0 %3129
      %3163 = vrot.lane.b32.xlu0 %v2533, 64
      %v3164 = vpop.permute.xlu0 %3163
      %3165 = vrot.lane.b32.xlu0 %v2534, 64
      %v3166 = vpop.permute.xlu0 %3165
      %3167 = vrot.lane.b32.xlu0 %v2537, 64
      %v3168 = vpop.permute.xlu0 %3167
      %3169 = vrot.lane.b32.xlu0 %v2538, 64
      %v3170 = vpop.permute.xlu0 %3169
      %3171 = vrot.lane.b32.xlu0 %v2541, 64
      %v3172 = vpop.permute.xlu0 %3171
      %3173 = vrot.lane.b32.xlu0 %v2542, 64
      %v3174 = vpop.permute.xlu0 %3173
      %3175 = vrot.lane.b32.xlu0 %v2545, 64
      %v3176 = vpop.permute.xlu0 %3175
      %3177 = vrot.lane.b32.xlu0 %v2546, 64
      %v3178 = vpop.permute.xlu0 %3177
      %3179 = vrot.lane.b32.xlu0 %v2549, 64
      %v3180 = vpop.permute.xlu0 %3179
      %3181 = vrot.lane.b32.xlu0 %v2550, 64
      %v3182 = vpop.permute.xlu0 %3181
      %3183 = vrot.lane.b32.xlu0 %v2553, 64
      %v3184 = vpop.permute.xlu0 %3183
      %3185 = vrot.lane.b32.xlu0 %v2554, 64
      %v3186 = vpop.permute.xlu0 %3185
      %3187 = vrot.lane.b32.xlu0 %v2557, 64
      %v3188 = vpop.permute.xlu0 %3187
      %3189 = vrot.lane.b32.xlu0 %v2558, 64
      %v3190 = vpop.permute.xlu0 %3189
      %3191 = vrot.lane.b32.xlu0 %v2561, 64
      %v3192 = vpop.permute.xlu0 %3191
      %3193 = vrot.lane.b32.xlu0 %v2562, 64
      %v3194 = vpop.permute.xlu0 %3193
      %3195 = vrot.lane.b32.xlu0 %v2565, 64
      %v3196 = vpop.permute.xlu0 %3195
      %3197 = vrot.lane.b32.xlu0 %v2566, 64
      %v3198 = vpop.permute.xlu0 %3197
      %3199 = vrot.lane.b32.xlu0 %v2569, 64
      %v3200 = vpop.permute.xlu0 %3199
      %3201 = vrot.lane.b32.xlu0 %v2570, 64
      %v3202 = vpop.permute.xlu0 %3201
      %3203 = vrot.lane.b32.xlu0 %v2573, 64
      %v3204 = vpop.permute.xlu0 %3203
      %3205 = vrot.lane.b32.xlu0 %v2574, 64
      %v3206 = vpop.permute.xlu0 %3205
      %3207 = vrot.lane.b32.xlu0 %v2577, 64
      %v3208 = vpop.permute.xlu0 %3207
      %3209 = vrot.lane.b32.xlu0 %v2578, 64
      %v3210 = vpop.permute.xlu0 %3209
      %3211 = vrot.lane.b32.xlu0 %v2581, 64
      %v3212 = vpop.permute.xlu0 %3211
      %3213 = vrot.lane.b32.xlu0 %v2582, 64
      %v3214 = vpop.permute.xlu0 %3213
      %3215 = vrot.lane.b32.xlu0 %v2585, 64
      %v3216 = vpop.permute.xlu0 %3215
      %3217 = vrot.lane.b32.xlu0 %v2586, 64
      %v3218 = vpop.permute.xlu0 %3217
      %3219 = vrot.lane.b32.xlu0 %v2525, 64
      %v3220 = vpop.permute.xlu0 %3219
      %3221 = vrot.lane.b32.xlu0 %v2526, 64
      %v3222 = vpop.permute.xlu0 %3221
      %3223 = vrot.lane.b32.xlu0 %v2529, 64
      %v3224 = vpop.permute.xlu0 %3223
      %3225 = vrot.lane.b32.xlu0 %v2530, 64
      %v3226 = vpop.permute.xlu0 %3225
      %v3259 = vsel %vm1598, %v2331, %v2428
      %v3260 = vsel %vm1598, %v2268, %v2430
      %v3261 = vsel %vm1598, %v2332, %v2432
      %v3262 = vsel %vm1598, %v2270, %v2434
      %v3263 = vsel %vm1598, %v2333, %v2436
      %v3264 = vsel %vm1598, %v2272, %v2438
      %v3265 = vsel %vm1598, %v2334, %v2440
      %v3266 = vsel %vm1598, %v2274, %v2442
      %v3267 = vsel %vm1598, %v2335, %v2444
      %v3268 = vsel %vm1598, %v2276, %v2446
      %v3269 = vsel %vm1598, %v2336, %v2448
      %v3270 = vsel %vm1598, %v2278, %v2450
      %v3271 = vsel %vm1598, %v2337, %v2452
      %v3272 = vsel %vm1598, %v2280, %v2454
      %v3273 = vsel %vm1598, %v2338, %v2456
      %v3274 = vsel %vm1598, %v2282, %v2458
      %v3275 = vsel %vm1598, %v2339, %v2460
      %v3276 = vsel %vm1598, %v2284, %v2462
      %v3277 = vsel %vm1598, %v2340, %v2464
      %v3278 = vsel %vm1598, %v2286, %v2466
      %v3279 = vsel %vm1598, %v2341, %v2468
      %v3280 = vsel %vm1598, %v2288, %v2470
      %v3281 = vsel %vm1598, %v2342, %v2472
      %v3282 = vsel %vm1598, %v2290, %v2474
      %v3283 = vsel %vm1598, %v2343, %v2476
      %v3284 = vsel %vm1598, %v2292, %v2478
      %v3285 = vsel %vm1598, %v2344, %v2480
      %v3286 = vsel %vm1598, %v2294, %v2482
      %v3287 = vsel %vm1598, %v2345, %v2484
      %v3288 = vsel %vm1598, %v2296, %v2486
      %v3289 = vsel %vm1598, %v2346, %v2488
      %v3290 = vsel %vm1598, %v2298, %v2490
      %v3291 = vsel %vm1664, %v3259, %v2588
      %v3292 = vsel %vm1664, %v3260, %v2590
      %v3293 = vsel %vm1664, %v3261, %v2592
      %v3294 = vsel %vm1664, %v3262, %v2594
      %v3295 = vsel %vm1664, %v3263, %v2596
      %v3296 = vsel %vm1664, %v3264, %v2598
      %v3297 = vsel %vm1664, %v3265, %v2600
      %v3298 = vsel %vm1664, %v3266, %v2602
      %v3299 = vsel %vm1664, %v3267, %v2604
      %v3300 = vsel %vm1664, %v3268, %v2606
      %v3301 = vsel %vm1664, %v3269, %v2608
      %v3302 = vsel %vm1664, %v3270, %v2610
      %v3303 = vsel %vm1664, %v3271, %v2612
      %v3304 = vsel %vm1664, %v3272, %v2614
      %v3305 = vsel %vm1664, %v3273, %v2616
      %v3306 = vsel %vm1664, %v3274, %v2618
      %v3307 = vsel %vm1664, %v3275, %v2620
      %v3308 = vsel %vm1664, %v3276, %v2622
      %v3309 = vsel %vm1664, %v3277, %v2624
      %v3310 = vsel %vm1664, %v3278, %v2626
      %v3311 = vsel %vm1664, %v3279, %v2628
      %v3312 = vsel %vm1664, %v3280, %v2630
      %v3313 = vsel %vm1664, %v3281, %v2632
      %v3314 = vsel %vm1664, %v3282, %v2634
      %v3315 = vsel %vm1664, %v3283, %v2636
      %v3316 = vsel %vm1664, %v3284, %v2638
      %v3317 = vsel %vm1664, %v3285, %v2640
      %v3318 = vsel %vm1664, %v3286, %v2642
      %v3319 = vsel %vm1664, %v3287, %v2644
      %v3320 = vsel %vm1664, %v3288, %v2646
      %v3321 = vsel %vm1664, %v3289, %v2648
      %v3322 = vsel %vm1664, %v3290, %v2650
      %v3323 = vsel %vm1730, %v3291, %v2684
      %v3324 = vsel %vm1730, %v3292, %v2686
      %v3325 = vsel %vm1730, %v3293, %v2688
      %v3326 = vsel %vm1730, %v3294, %v2690
      %v3327 = vsel %vm1730, %v3295, %v2692
      %v3328 = vsel %vm1730, %v3296, %v2694
      %v3329 = vsel %vm1730, %v3297, %v2696
      %v3330 = vsel %vm1730, %v3298, %v2698
      %v3331 = vsel %vm1730, %v3299, %v2700
      %v3332 = vsel %vm1730, %v3300, %v2702
      %v3333 = vsel %vm1730, %v3301, %v2704
      %v3334 = vsel %vm1730, %v3302, %v2706
      %v3335 = vsel %vm1730, %v3303, %v2708
      %v3336 = vsel %vm1730, %v3304, %v2710
      %v3337 = vsel %vm1730, %v3305, %v2712
      %v3338 = vsel %vm1730, %v3306, %v2714
      %v3339 = vsel %vm1730, %v3307, %v2716
      %v3340 = vsel %vm1730, %v3308, %v2718
      %v3341 = vsel %vm1730, %v3309, %v2720
      %v3342 = vsel %vm1730, %v3310, %v2722
      %v3343 = vsel %vm1730, %v3311, %v2724
      %v3344 = vsel %vm1730, %v3312, %v2726
      %v3345 = vsel %vm1730, %v3313, %v2728
      %v3346 = vsel %vm1730, %v3314, %v2730
      %v3347 = vsel %vm1730, %v3315, %v2732
      %v3348 = vsel %vm1730, %v3316, %v2734
      %v3349 = vsel %vm1730, %v3317, %v2736
      %v3350 = vsel %vm1730, %v3318, %v2738
      %v3351 = vsel %vm1730, %v3319, %v2740
      %v3352 = vsel %vm1730, %v3320, %v2742
      %v3353 = vsel %vm1730, %v3321, %v2744
      %v3354 = vsel %vm1730, %v3322, %v2746
      %v3355 = vsel %vm1796, %v3323, %v2780
      %v3356 = vsel %vm1796, %v3324, %v2782
      %v3357 = vsel %vm1796, %v3325, %v2784
      %v3358 = vsel %vm1796, %v3326, %v2786
      %v3359 = vsel %vm1796, %v3327, %v2788
      %v3360 = vsel %vm1796, %v3328, %v2790
      %v3361 = vsel %vm1796, %v3329, %v2792
      %v3362 = vsel %vm1796, %v3330, %v2794
      %v3363 = vsel %vm1796, %v3331, %v2796
      %v3364 = vsel %vm1796, %v3332, %v2798
      %v3365 = vsel %vm1796, %v3333, %v2800
      %v3366 = vsel %vm1796, %v3334, %v2802
      %v3367 = vsel %vm1796, %v3335, %v2804
      %v3368 = vsel %vm1796, %v3336, %v2806
      %v3369 = vsel %vm1796, %v3337, %v2808
      %v3370 = vsel %vm1796, %v3338, %v2810
      %v3371 = vsel %vm1796, %v3339, %v2812
      %v3372 = vsel %vm1796, %v3340, %v2814
      %v3373 = vsel %vm1796, %v3341, %v2816
      %v3374 = vsel %vm1796, %v3342, %v2818
      %v3375 = vsel %vm1796, %v3343, %v2820
      %v3376 = vsel %vm1796, %v3344, %v2822
      %v3377 = vsel %vm1796, %v3345, %v2824
      %v3378 = vsel %vm1796, %v3346, %v2826
      %v3379 = vsel %vm1796, %v3347, %v2828
      %v3380 = vsel %vm1796, %v3348, %v2830
      %v3381 = vsel %vm1796, %v3349, %v2832
      %v3382 = vsel %vm1796, %v3350, %v2834
      %v3383 = vsel %vm1796, %v3351, %v2836
      %v3384 = vsel %vm1796, %v3352, %v2838
      %v3385 = vsel %vm1796, %v3353, %v2840
      %v3386 = vsel %vm1796, %v3354, %v2842
      %vm3387 = vcmask 326656
      %v3388 = vsel %vm3387, %v3355, %v2876
      %v3389 = vsel %vm3387, %v3356, %v2878
      %v3390 = vsel %vm3387, %v3357, %v2880
      %v3391 = vsel %vm3387, %v3358, %v2882
      %v3392 = vsel %vm3387, %v3359, %v2884
      %v3393 = vsel %vm3387, %v3360, %v2886
      %v3394 = vsel %vm3387, %v3361, %v2888
      %v3395 = vsel %vm3387, %v3362, %v2890
      %v3396 = vsel %vm3387, %v3363, %v2892
      %v3397 = vsel %vm3387, %v3364, %v2894
      %v3398 = vsel %vm3387, %v3365, %v2896
      %v3399 = vsel %vm3387, %v3366, %v2898
      %v3400 = vsel %vm3387, %v3367, %v2900
      %v3401 = vsel %vm3387, %v3368, %v2902
      %v3402 = vsel %vm3387, %v3369, %v2904
      %v3403 = vsel %vm3387, %v3370, %v2906
      %v3404 = vsel %vm3387, %v3371, %v2908
      %v3405 = vsel %vm3387, %v3372, %v2910
      %v3406 = vsel %vm3387, %v3373, %v2912
      %v3407 = vsel %vm3387, %v3374, %v2914
      %v3408 = vsel %vm3387, %v3375, %v2916
      %v3409 = vsel %vm3387, %v3376, %v2918
      %v3410 = vsel %vm3387, %v3377, %v2920
      %v3411 = vsel %vm3387, %v3378, %v2922
      %v3412 = vsel %vm3387, %v3379, %v2924
      %v3413 = vsel %vm3387, %v3380, %v2926
      %v3414 = vsel %vm3387, %v3381, %v2928
      %v3415 = vsel %vm3387, %v3382, %v2930
      %v3416 = vsel %vm3387, %v3383, %v2932
      %v3417 = vsel %vm3387, %v3384, %v2934
      %v3418 = vsel %vm3387, %v3385, %v2936
      %v3419 = vsel %vm3387, %v3386, %v2938
      %vm3420 = vcmask 392192
      %v3421 = vsel %vm3420, %v3388, %v2972
      %v3422 = vsel %vm3420, %v3389, %v2974
      %v3423 = vsel %vm3420, %v3390, %v2976
      %v3424 = vsel %vm3420, %v3391, %v2978
      %v3425 = vsel %vm3420, %v3392, %v2980
      %v3426 = vsel %vm3420, %v3393, %v2982
      %v3427 = vsel %vm3420, %v3394, %v2984
      %v3428 = vsel %vm3420, %v3395, %v2986
      %v3429 = vsel %vm3420, %v3396, %v2988
      %v3430 = vsel %vm3420, %v3397, %v2990
      %v3431 = vsel %vm3420, %v3398, %v2992
      %v3432 = vsel %vm3420, %v3399, %v2994
      %v3433 = vsel %vm3420, %v3400, %v2996
      %v3434 = vsel %vm3420, %v3401, %v2998
      %v3435 = vsel %vm3420, %v3402, %v3000
      %v3436 = vsel %vm3420, %v3403, %v3002
      %v3437 = vsel %vm3420, %v3404, %v3004
      %v3438 = vsel %vm3420, %v3405, %v3006
      %v3439 = vsel %vm3420, %v3406, %v3008
      %v3440 = vsel %vm3420, %v3407, %v3010
      %v3441 = vsel %vm3420, %v3408, %v3012
      %v3442 = vsel %vm3420, %v3409, %v3014
      %v3443 = vsel %vm3420, %v3410, %v3016
      %v3444 = vsel %vm3420, %v3411, %v3018
      %v3445 = vsel %vm3420, %v3412, %v3020
      %v3446 = vsel %vm3420, %v3413, %v3022
      %v3447 = vsel %vm3420, %v3414, %v3024
      %v3448 = vsel %vm3420, %v3415, %v3026
      %v3449 = vsel %vm3420, %v3416, %v3028
      %v3450 = vsel %vm3420, %v3417, %v3030
      %v3451 = vsel %vm3420, %v3418, %v3032
      %v3452 = vsel %vm3420, %v3419, %v3034
      %vm3453 = vcmask 457728
      %v3454 = vsel %vm3453, %v3421, %v3068
      %v3455 = vsel %vm3453, %v3422, %v3070
      %v3456 = vsel %vm3453, %v3423, %v3072
      %v3457 = vsel %vm3453, %v3424, %v3074
      %v3458 = vsel %vm3453, %v3425, %v3076
      %v3459 = vsel %vm3453, %v3426, %v3078
      %v3460 = vsel %vm3453, %v3427, %v3080
      %v3461 = vsel %vm3453, %v3428, %v3082
      %v3462 = vsel %vm3453, %v3429, %v3084
      %v3463 = vsel %vm3453, %v3430, %v3086
      %v3464 = vsel %vm3453, %v3431, %v3088
      %v3465 = vsel %vm3453, %v3432, %v3090
      %v3466 = vsel %vm3453, %v3433, %v3092
      %v3467 = vsel %vm3453, %v3434, %v3094
      %v3468 = vsel %vm3453, %v3435, %v3096
      %v3469 = vsel %vm3453, %v3436, %v3098
      %v3470 = vsel %vm3453, %v3437, %v3100
      %v3471 = vsel %vm3453, %v3438, %v3102
      %v3472 = vsel %vm3453, %v3439, %v3104
      %v3473 = vsel %vm3453, %v3440, %v3106
      %v3474 = vsel %vm3453, %v3441, %v3108
      %v3475 = vsel %vm3453, %v3442, %v3110
      %v3476 = vsel %vm3453, %v3443, %v3112
      %v3477 = vsel %vm3453, %v3444, %v3114
      %v3478 = vsel %vm3453, %v3445, %v3116
      %v3479 = vsel %vm3453, %v3446, %v3118
      %v3480 = vsel %vm3453, %v3447, %v3120
      %v3481 = vsel %vm3453, %v3448, %v3122
      %v3482 = vsel %vm3453, %v3449, %v3124
      %v3483 = vsel %vm3453, %v3450, %v3126
      %v3484 = vsel %vm3453, %v3451, %v3128
      %v3485 = vsel %vm3453, %v3452, %v3130
      %vm3486 = vcmask 523264
      %v3487 = vsel %vm3486, %v3454, %v3164
      %v3488 = vsel %vm3486, %v3455, %v3166
      %v3489 = vsel %vm3486, %v3456, %v3168
      %v3490 = vsel %vm3486, %v3457, %v3170
      %v3491 = vsel %vm3486, %v3458, %v3172
      %v3492 = vsel %vm3486, %v3459, %v3174
      %v3493 = vsel %vm3486, %v3460, %v3176
      %v3494 = vsel %vm3486, %v3461, %v3178
      %v3495 = vsel %vm3486, %v3462, %v3180
      %v3496 = vsel %vm3486, %v3463, %v3182
      %v3497 = vsel %vm3486, %v3464, %v3184
      %v3498 = vsel %vm3486, %v3465, %v3186
      %v3499 = vsel %vm3486, %v3466, %v3188
      %v3500 = vsel %vm3486, %v3467, %v3190
      %v3501 = vsel %vm3486, %v3468, %v3192
      %v3502 = vsel %vm3486, %v3469, %v3194
      %v3503 = vsel %vm3486, %v3470, %v3196
      %v3504 = vsel %vm3486, %v3471, %v3198
      %v3505 = vsel %vm3486, %v3472, %v3200
      %v3506 = vsel %vm3486, %v3473, %v3202
      %v3507 = vsel %vm3486, %v3474, %v3204
      %v3508 = vsel %vm3486, %v3475, %v3206
      %v3509 = vsel %vm3486, %v3476, %v3208
      %v3510 = vsel %vm3486, %v3477, %v3210
      %v3511 = vsel %vm3486, %v3478, %v3212
      %v3512 = vsel %vm3486, %v3479, %v3214
      %v3513 = vsel %vm3486, %v3480, %v3216
      %v3514 = vsel %vm3486, %v3481, %v3218
      %v3515 = vsel %vm3486, %v3482, %v3220
      %v3516 = vsel %vm3486, %v3483, %v3222
      %v3517 = vsel %vm3486, %v3484, %v3224
      %v3518 = vsel %vm3486, %v3485, %v3226
      %v3520 = vlaneseq
      %v3521 = vshrl.u32 %v3520, 7
      %v3522 = vsub.s32 0, %v3521
      %v3523 = vrot.slane %v2202, %v3522
      %vm3525 = vcmask 588800
      %v3527 = vsel %vm3525, %v3487, 0
      %v3530 = vsel %vm3525, %v3488, 0
      %v3533 = vsel %vm3525, %v3489, 0
      %v3536 = vsel %vm3525, %v3490, 0
      %v3539 = vsel %vm3525, %v3491, 0
      %v3542 = vsel %vm3525, %v3492, 0
      %v3545 = vsel %vm3525, %v3493, 0
      %v3548 = vsel %vm3525, %v3494, 0
      %v3551 = vsel %vm3525, %v3495, 0
      %v3554 = vsel %vm3525, %v3496, 0
      %v3557 = vsel %vm3525, %v3497, 0
      %v3560 = vsel %vm3525, %v3498, 0
      %v3563 = vsel %vm3525, %v3499, 0
      %v3566 = vsel %vm3525, %v3500, 0
      %v3569 = vsel %vm3525, %v3501, 0
      %v3572 = vsel %vm3525, %v3502, 0
      %v3575 = vsel %vm3525, %v3503, 0
      %v3578 = vsel %vm3525, %v3504, 0
      %v3581 = vsel %vm3525, %v3505, 0
      %v3584 = vsel %vm3525, %v3506, 0
      %v3587 = vsel %vm3525, %v3507, 0
      %v3590 = vsel %vm3525, %v3508, 0
      %v3593 = vsel %vm3525, %v3509, 0
      %v3596 = vsel %vm3525, %v3510, 0
      %v3599 = vsel %vm3525, %v3511, 0
      %v3602 = vsel %vm3525, %v3512, 0
      %v3605 = vsel %vm3525, %v3513, 0
      %v3608 = vsel %vm3525, %v3514, 0
      %v3611 = vsel %vm3525, %v3515, 0
      %v3614 = vsel %vm3525, %v3516, 0
      %v3617 = vsel %vm3525, %v3517, 0
      %v3620 = vsel %vm3525, %v3518, 0
      %3622 = vmatprep.subr.mxu0 0.0
      %3623 = vmatpush1.msra.mxu0 0.0
      %3624 = vmatprep.subr.mxu0 0.0
      %3625 = vmatpush1.msra.mxu0 0.0
      %3626 = vmatprep.subr.mxu0 0.0
      %3627 = vmatpush1.msra.mxu0 0.0
      %3628 = vmatprep.subr.mxu0 0.0
      %3629 = vmatpush1.msra.mxu0 0.0
      %3630 = vmatprep.subr.mxu0 0.0
      %3631 = vmatpush1.msra.mxu0 0.0
      %3632 = vmatprep.subr.mxu0 0.0
      %3633 = vmatpush1.msra.mxu0 0.0
      %3634 = vmatprep.subr.mxu0 0.0
      %3635 = vmatpush1.msra.mxu0 0.0
      %3636 = vmatprep.subr.mxu0 0.0
      %3637 = vmatpush1.msra.mxu0 %v2201
      %3638 = vmatprep.subr.mxu0 0.0
      %3639 = vmatpush1.msra.mxu0 %v2200
      %3640 = vmatprep.subr.mxu0 0.0
      %3641 = vmatpush1.msra.mxu0 %v2199
      %3642 = vmatprep.subr.mxu0 0.0
      %3643 = vmatpush1.msra.mxu0 %v2198
      %3644 = vmatprep.subr.mxu0 0.0
      %3645 = vmatpush1.msra.mxu0 %v2197
      %3646 = vmatprep.subr.mxu0 0.0
      %3647 = vmatpush1.msra.mxu0 %v2196
      %3648 = vmatprep.subr.mxu0 0.0
      %3649 = vmatpush1.msra.mxu0 %v2195
      %3650 = vmatprep.subr.mxu0 0.0
      %3651 = vmatpush1.msra.mxu0 %v2194
      %3652 = vmatprep.subr.mxu0 0.0
      %3653 = vmatpush1.msra.mxu0 %v2193
      %3654 = vmatprep.subr.mxu0 0.0
      %3655 = vmatpush2.msra.mxu0 0.0
      %3656 = vmatprep.subr.mxu0 0.0
      %3657 = vmatpush2.msra.mxu0 0.0
      %3658 = vmatprep.subr.mxu0 0.0
      %3659 = vmatpush2.msra.mxu0 0.0
      %3660 = vmatprep.subr.mxu0 0.0
      %3661 = vmatpush2.msra.mxu0 0.0
      %3662 = vmatprep.subr.mxu0 0.0
      %3663 = vmatpush2.msra.mxu0 0.0
      %3664 = vmatprep.subr.mxu0 0.0
      %3665 = vmatpush2.msra.mxu0 0.0
      %3666 = vmatprep.subr.mxu0 0.0
      %3667 = vmatpush2.msra.mxu0 0.0
      %3668 = vmatprep.subr.mxu0 0.0
      %3669 = vmatpush2.msra.mxu0 0.0
      %3670 = vmatprep.subr.mxu0 0.0
      %3671 = vmatpush2.msra.mxu0 0.0
      %3672 = vmatprep.subr.mxu0 0.0
      %3673 = vmatpush2.msra.mxu0 0.0
      %3674 = vmatprep.subr.mxu0 0.0
      %3675 = vmatpush2.msra.mxu0 0.0
      %3676 = vmatprep.subr.mxu0 0.0
      %3677 = vmatpush2.msra.mxu0 0.0
      %3678 = vmatprep.subr.mxu0 0.0
      %3679 = vmatpush2.msra.mxu0 0.0
      %3680 = vmatprep.subr.mxu0 0.0
      %3681 = vmatpush2.msra.mxu0 0.0
      %3682 = vmatprep.subr.mxu0 0.0
      %3683 = vmatpush2.msra.mxu0 0.0
      %3684 = vmatprep.subr.mxu0 0.0
      %3685 = vmatpush2.msra.mxu0 0.0
      %3686 = vmatprep.mubr.f32.mxu0 0.0
      %3687 = vmatmul.mubr.f32.gmra.mxu0 %v3527
      %v3688 = vpop.f32.mrf.mxu0
      %v3689 = vadd.f32 %v3523, %v3688
      %v3690 = vpop.f32.mrf.mxu0
      %3691 = vmatprep.mubr.f32.mxu0 0.0
      %3692 = vmatmul.mubr.f32.gmra.mxu0 %v3530
      %v3693 = vpop.f32.mrf.mxu0
      %v3694 = vadd.f32 %v3523, %v3693
      %v3695 = vpop.f32.mrf.mxu0
      %3696 = vmatprep.mubr.f32.mxu0 0.0
      %3697 = vmatmul.mubr.f32.gmra.mxu0 %v3533
      %v3698 = vpop.f32.mrf.mxu0
      %v3699 = vadd.f32 %v3523, %v3698
      %v3700 = vpop.f32.mrf.mxu0
      %3701 = vmatprep.mubr.f32.mxu0 0.0
      %3702 = vmatmul.mubr.f32.gmra.mxu0 %v3536
      %v3703 = vpop.f32.mrf.mxu0
      %v3704 = vadd.f32 %v3523, %v3703
      %v3705 = vpop.f32.mrf.mxu0
      %3706 = vmatprep.mubr.f32.mxu0 0.0
      %3707 = vmatmul.mubr.f32.gmra.mxu0 %v3539
      %v3708 = vpop.f32.mrf.mxu0
      %v3709 = vadd.f32 %v3523, %v3708
      %v3710 = vpop.f32.mrf.mxu0
      %3711 = vmatprep.mubr.f32.mxu0 0.0
      %3712 = vmatmul.mubr.f32.gmra.mxu0 %v3542
      %v3713 = vpop.f32.mrf.mxu0
      %v3714 = vadd.f32 %v3523, %v3713
      %v3715 = vpop.f32.mrf.mxu0
      %3716 = vmatprep.mubr.f32.mxu0 0.0
      %3717 = vmatmul.mubr.f32.gmra.mxu0 %v3545
      %v3718 = vpop.f32.mrf.mxu0
      %v3719 = vadd.f32 %v3523, %v3718
      %v3720 = vpop.f32.mrf.mxu0
      %3721 = vmatprep.mubr.f32.mxu0 0.0
      %3722 = vmatmul.mubr.f32.gmra.mxu0 %v3548
      %v3723 = vpop.f32.mrf.mxu0
      %v3724 = vadd.f32 %v3523, %v3723
      %v3725 = vpop.f32.mrf.mxu0
      %3726 = vmatprep.mubr.f32.mxu0 0.0
      %3727 = vmatmul.mubr.f32.gmra.mxu0 %v3551
      %v3728 = vpop.f32.mrf.mxu0
      %v3729 = vadd.f32 %v3523, %v3728
      %v3730 = vpop.f32.mrf.mxu0
      %3731 = vmatprep.mubr.f32.mxu0 0.0
      %3732 = vmatmul.mubr.f32.gmra.mxu0 %v3554
      %v3733 = vpop.f32.mrf.mxu0
      %v3734 = vadd.f32 %v3523, %v3733
      %v3735 = vpop.f32.mrf.mxu0
      %3736 = vmatprep.mubr.f32.mxu0 0.0
      %3737 = vmatmul.mubr.f32.gmra.mxu0 %v3557
      %v3738 = vpop.f32.mrf.mxu0
      %v3739 = vadd.f32 %v3523, %v3738
      %v3740 = vpop.f32.mrf.mxu0
      %3741 = vmatprep.mubr.f32.mxu0 0.0
      %3742 = vmatmul.mubr.f32.gmra.mxu0 %v3560
      %v3743 = vpop.f32.mrf.mxu0
      %v3744 = vadd.f32 %v3523, %v3743
      %v3745 = vpop.f32.mrf.mxu0
      %3746 = vmatprep.mubr.f32.mxu0 0.0
      %3747 = vmatmul.mubr.f32.gmra.mxu0 %v3563
      %v3748 = vpop.f32.mrf.mxu0
      %v3749 = vadd.f32 %v3523, %v3748
      %v3750 = vpop.f32.mrf.mxu0
      %3751 = vmatprep.mubr.f32.mxu0 0.0
      %3752 = vmatmul.mubr.f32.gmra.mxu0 %v3566
      %v3753 = vpop.f32.mrf.mxu0
      %v3754 = vadd.f32 %v3523, %v3753
      %v3755 = vpop.f32.mrf.mxu0
      %3756 = vmatprep.mubr.f32.mxu0 0.0
      %3757 = vmatmul.mubr.f32.gmra.mxu0 %v3569
      %v3758 = vpop.f32.mrf.mxu0
      %v3759 = vadd.f32 %v3523, %v3758
      %v3760 = vpop.f32.mrf.mxu0
      %3761 = vmatprep.mubr.f32.mxu0 0.0
      %3762 = vmatmul.mubr.f32.gmra.mxu0 %v3572
      %v3763 = vpop.f32.mrf.mxu0
      %v3764 = vadd.f32 %v3523, %v3763
      %v3765 = vpop.f32.mrf.mxu0
      %3766 = vmatprep.mubr.f32.mxu0 0.0
      %3767 = vmatmul.mubr.f32.gmra.mxu0 %v3575
      %v3768 = vpop.f32.mrf.mxu0
      %v3769 = vadd.f32 %v3523, %v3768
      %v3770 = vpop.f32.mrf.mxu0
      %3771 = vmatprep.mubr.f32.mxu0 0.0
      %3772 = vmatmul.mubr.f32.gmra.mxu0 %v3578
      %v3773 = vpop.f32.mrf.mxu0
      %v3774 = vadd.f32 %v3523, %v3773
      %v3775 = vpop.f32.mrf.mxu0
      %3776 = vmatprep.mubr.f32.mxu0 0.0
      %3777 = vmatmul.mubr.f32.gmra.mxu0 %v3581
      %v3778 = vpop.f32.mrf.mxu0
      %v3779 = vadd.f32 %v3523, %v3778
      %v3780 = vpop.f32.mrf.mxu0
      %3781 = vmatprep.mubr.f32.mxu0 0.0
      %3782 = vmatmul.mubr.f32.gmra.mxu0 %v3584
      %v3783 = vpop.f32.mrf.mxu0
      %v3784 = vadd.f32 %v3523, %v3783
      %v3785 = vpop.f32.mrf.mxu0
      %3786 = vmatprep.mubr.f32.mxu0 0.0
      %3787 = vmatmul.mubr.f32.gmra.mxu0 %v3587
      %v3788 = vpop.f32.mrf.mxu0
      %v3789 = vadd.f32 %v3523, %v3788
      %v3790 = vpop.f32.mrf.mxu0
      %3791 = vmatprep.mubr.f32.mxu0 0.0
      %3792 = vmatmul.mubr.f32.gmra.mxu0 %v3590
      %v3793 = vpop.f32.mrf.mxu0
      %v3794 = vadd.f32 %v3523, %v3793
      %v3795 = vpop.f32.mrf.mxu0
      %3796 = vmatprep.mubr.f32.mxu0 0.0
      %3797 = vmatmul.mubr.f32.gmra.mxu0 %v3593
      %v3798 = vpop.f32.mrf.mxu0
      %v3799 = vadd.f32 %v3523, %v3798
      %v3800 = vpop.f32.mrf.mxu0
      %3801 = vmatprep.mubr.f32.mxu0 0.0
      %3802 = vmatmul.mubr.f32.gmra.mxu0 %v3596
      %v3803 = vpop.f32.mrf.mxu0
      %v3804 = vadd.f32 %v3523, %v3803
      %v3805 = vpop.f32.mrf.mxu0
      %3806 = vmatprep.mubr.f32.mxu0 0.0
      %3807 = vmatmul.mubr.f32.gmra.mxu0 %v3599
      %v3808 = vpop.f32.mrf.mxu0
      %v3809 = vadd.f32 %v3523, %v3808
      %v3810 = vpop.f32.mrf.mxu0
      %3811 = vmatprep.mubr.f32.mxu0 0.0
      %3812 = vmatmul.mubr.f32.gmra.mxu0 %v3602
      %v3813 = vpop.f32.mrf.mxu0
      %v3814 = vadd.f32 %v3523, %v3813
      %v3815 = vpop.f32.mrf.mxu0
      %3816 = vmatprep.mubr.f32.mxu0 0.0
      %3817 = vmatmul.mubr.f32.gmra.mxu0 %v3605
      %v3818 = vpop.f32.mrf.mxu0
      %v3819 = vadd.f32 %v3523, %v3818
      %v3820 = vpop.f32.mrf.mxu0
      %3821 = vmatprep.mubr.f32.mxu0 0.0
      %3822 = vmatmul.mubr.f32.gmra.mxu0 %v3608
      %v3823 = vpop.f32.mrf.mxu0
      %v3824 = vadd.f32 %v3523, %v3823
      %v3825 = vpop.f32.mrf.mxu0
      %3826 = vmatprep.mubr.f32.mxu0 0.0
      %3827 = vmatmul.mubr.f32.gmra.mxu0 %v3611
      %v3828 = vpop.f32.mrf.mxu0
      %v3829 = vadd.f32 %v3523, %v3828
      %v3830 = vpop.f32.mrf.mxu0
      %3831 = vmatprep.mubr.f32.mxu0 0.0
      %3832 = vmatmul.mubr.f32.gmra.mxu0 %v3614
      %v3833 = vpop.f32.mrf.mxu0
      %v3834 = vadd.f32 %v3523, %v3833
      %v3835 = vpop.f32.mrf.mxu0
      %3836 = vmatprep.mubr.f32.mxu0 0.0
      %3837 = vmatmul.mubr.f32.gmra.mxu0 %v3617
      %v3838 = vpop.f32.mrf.mxu0
      %v3839 = vadd.f32 %v3523, %v3838
      %v3840 = vpop.f32.mrf.mxu0
      %3841 = vmatprep.mubr.f32.mxu0 0.0
      %3842 = vmatmul.mubr.f32.gmra.mxu0 %v3620
      %v3843 = vpop.f32.mrf.mxu0
      %v3844 = vadd.f32 %v3523, %v3843
      %v3845 = vpop.f32.mrf.mxu0
      %3846 = vdwg.mxu0
      %v3847 = vmax.f32 %v3689, 0.0
      %v3848 = vmax.f32 %v3694, 0.0
      %v3849 = vmax.f32 %v3699, 0.0
      %v3850 = vmax.f32 %v3704, 0.0
      %v3851 = vmax.f32 %v3709, 0.0
      %v3852 = vmax.f32 %v3714, 0.0
      %v3853 = vmax.f32 %v3719, 0.0
      %v3854 = vmax.f32 %v3724, 0.0
      %v3855 = vmax.f32 %v3729, 0.0
      %v3856 = vmax.f32 %v3734, 0.0
      %v3857 = vmax.f32 %v3739, 0.0
      %v3858 = vmax.f32 %v3744, 0.0
      %v3859 = vmax.f32 %v3749, 0.0
      %v3860 = vmax.f32 %v3754, 0.0
      %v3861 = vmax.f32 %v3759, 0.0
      %v3862 = vmax.f32 %v3764, 0.0
      %v3863 = vmax.f32 %v3769, 0.0
      %v3864 = vmax.f32 %v3774, 0.0
      %v3865 = vmax.f32 %v3779, 0.0
      %v3866 = vmax.f32 %v3784, 0.0
      %v3867 = vmax.f32 %v3789, 0.0
      %v3868 = vmax.f32 %v3794, 0.0
      %v3869 = vmax.f32 %v3799, 0.0
      %v3870 = vmax.f32 %v3804, 0.0
      %v3871 = vmax.f32 %v3809, 0.0
      %v3872 = vmax.f32 %v3814, 0.0
      %v3873 = vmax.f32 %v3819, 0.0
      %v3874 = vmax.f32 %v3824, 0.0
      %v3875 = vmax.f32 %v3829, 0.0
      %v3876 = vmax.f32 %v3834, 0.0
      %v3877 = vmax.f32 %v3839, 0.0
      %v3878 = vmax.f32 %v3844, 0.0
      %v3879 = vld [vmem:[%s5] sm:$0xff]
      %v3880 = vld [vmem:[%s5 + $0x8] sm:$0xff]
      %v3881 = vld [vmem:[%s5 + $0x10] sm:$0xff]
      %v3882 = vld [vmem:[%s5 + $0x18] sm:$0xff]
      %v3883 = vld [vmem:[%s5 + $0x20] sm:$0xff]
      %v3884 = vld [vmem:[%s5 + $0x28] sm:$0xff]
      %v3885 = vld [vmem:[%s5 + $0x30] sm:$0xff]
      %v3886 = vld [vmem:[%s5 + $0x38] sm:$0xff]
      %v3887 = vld [vmem:[%s5 + $0x40] sm:$0xff]
      %v3904 = vrot.slane %v3878, 7
      %v3905 = vrot.slane %v3848, 7
      %v3906 = vrot.slane %v3850, 7
      %v3907 = vrot.slane %v3852, 7
      %v3908 = vrot.slane %v3854, 7
      %v3909 = vrot.slane %v3856, 7
      %v3910 = vrot.slane %v3858, 7
      %v3911 = vrot.slane %v3860, 7
      %v3912 = vrot.slane %v3862, 7
      %v3913 = vrot.slane %v3864, 7
      %v3914 = vrot.slane %v3866, 7
      %v3915 = vrot.slane %v3868, 7
      %v3916 = vrot.slane %v3870, 7
      %v3917 = vrot.slane %v3872, 7
      %v3918 = vrot.slane %v3874, 7
      %v3919 = vrot.slane %v3876, 7
      %v3952 = vrot.slane %v3877, 7
      %v3953 = vsel %vm570, %v3952, %v3904
      %v3954 = vrot.slane %v3847, 7
      %v3955 = vsel %vm570, %v3954, %v3905
      %v3956 = vrot.slane %v3849, 7
      %v3957 = vsel %vm570, %v3956, %v3906
      %v3958 = vrot.slane %v3851, 7
      %v3959 = vsel %vm570, %v3958, %v3907
      %v3960 = vrot.slane %v3853, 7
      %v3961 = vsel %vm570, %v3960, %v3908
      %v3962 = vrot.slane %v3855, 7
      %v3963 = vsel %vm570, %v3962, %v3909
      %v3964 = vrot.slane %v3857, 7
      %v3965 = vsel %vm570, %v3964, %v3910
      %v3966 = vrot.slane %v3859, 7
      %v3967 = vsel %vm570, %v3966, %v3911
      %v3968 = vrot.slane %v3861, 7
      %v3969 = vsel %vm570, %v3968, %v3912
      %v3970 = vrot.slane %v3863, 7
      %v3971 = vsel %vm570, %v3970, %v3913
      %v3972 = vrot.slane %v3865, 7
      %v3973 = vsel %vm570, %v3972, %v3914
      %v3974 = vrot.slane %v3867, 7
      %v3975 = vsel %vm570, %v3974, %v3915
      %v3976 = vrot.slane %v3869, 7
      %v3977 = vsel %vm570, %v3976, %v3916
      %v3978 = vrot.slane %v3871, 7
      %v3979 = vsel %vm570, %v3978, %v3917
      %v3980 = vrot.slane %v3873, 7
      %v3981 = vsel %vm570, %v3980, %v3918
      %v3982 = vrot.slane %v3875, 7
      %v3983 = vsel %vm570, %v3982, %v3919
      %v4016 = vsel %vm570, %v3904, %v3952
      %v4017 = vsel %vm570, %v3905, %v3954
      %v4018 = vsel %vm570, %v3906, %v3956
      %v4019 = vsel %vm570, %v3907, %v3958
      %v4020 = vsel %vm570, %v3908, %v3960
      %v4021 = vsel %vm570, %v3909, %v3962
      %v4022 = vsel %vm570, %v3910, %v3964
      %v4023 = vsel %vm570, %v3911, %v3966
      %v4024 = vsel %vm570, %v3912, %v3968
      %v4025 = vsel %vm570, %v3913, %v3970
      %v4026 = vsel %vm570, %v3914, %v3972
      %v4027 = vsel %vm570, %v3915, %v3974
      %v4028 = vsel %vm570, %v3916, %v3976
      %v4029 = vsel %vm570, %v3917, %v3978
      %v4030 = vsel %vm570, %v3918, %v3980
      %v4031 = vsel %vm570, %v3919, %v3982
      %v4048 = vrot.slane %v4016, 1
      %v4049 = vrot.slane %v3953, 1
      %v4050 = vsel %vm667, %v4048, %v4049
      %v4051 = vsel %vm667, %v4049, %v4048
      %v4052 = vrot.slane %v4017, 1
      %v4053 = vrot.slane %v3955, 1
      %v4054 = vsel %vm667, %v4052, %v4053
      %v4055 = vsel %vm667, %v4053, %v4052
      %v4056 = vrot.slane %v4018, 1
      %v4057 = vrot.slane %v3957, 1
      %v4058 = vsel %vm667, %v4056, %v4057
      %v4059 = vsel %vm667, %v4057, %v4056
      %v4060 = vrot.slane %v4019, 1
      %v4061 = vrot.slane %v3959, 1
      %v4062 = vsel %vm667, %v4060, %v4061
      %v4063 = vsel %vm667, %v4061, %v4060
      %v4064 = vrot.slane %v4020, 1
      %v4065 = vrot.slane %v3961, 1
      %v4066 = vsel %vm667, %v4064, %v4065
      %v4067 = vsel %vm667, %v4065, %v4064
      %v4068 = vrot.slane %v4021, 1
      %v4069 = vrot.slane %v3963, 1
      %v4070 = vsel %vm667, %v4068, %v4069
      %v4071 = vsel %vm667, %v4069, %v4068
      %v4072 = vrot.slane %v4022, 1
      %v4073 = vrot.slane %v3965, 1
      %v4074 = vsel %vm667, %v4072, %v4073
      %v4075 = vsel %vm667, %v4073, %v4072
      %v4076 = vrot.slane %v4023, 1
      %v4077 = vrot.slane %v3967, 1
      %v4078 = vsel %vm667, %v4076, %v4077
      %v4079 = vsel %vm667, %v4077, %v4076
      %v4080 = vrot.slane %v4024, 1
      %v4081 = vrot.slane %v3969, 1
      %v4082 = vsel %vm667, %v4080, %v4081
      %v4083 = vsel %vm667, %v4081, %v4080
      %v4084 = vrot.slane %v4025, 1
      %v4085 = vrot.slane %v3971, 1
      %v4086 = vsel %vm667, %v4084, %v4085
      %v4087 = vsel %vm667, %v4085, %v4084
      %v4088 = vrot.slane %v4026, 1
      %v4089 = vrot.slane %v3973, 1
      %v4090 = vsel %vm667, %v4088, %v4089
      %v4091 = vsel %vm667, %v4089, %v4088
      %v4092 = vrot.slane %v4027, 1
      %v4093 = vrot.slane %v3975, 1
      %v4094 = vsel %vm667, %v4092, %v4093
      %v4095 = vsel %vm667, %v4093, %v4092
      %v4096 = vrot.slane %v4028, 1
      %v4097 = vrot.slane %v3977, 1
      %v4098 = vsel %vm667, %v4096, %v4097
      %v4099 = vsel %vm667, %v4097, %v4096
      %v4100 = vrot.slane %v4029, 1
      %v4101 = vrot.slane %v3979, 1
      %v4102 = vsel %vm667, %v4100, %v4101
      %v4103 = vsel %vm667, %v4101, %v4100
      %v4104 = vrot.slane %v4030, 1
      %v4105 = vrot.slane %v3981, 1
      %v4106 = vsel %vm667, %v4104, %v4105
      %v4107 = vsel %vm667, %v4105, %v4104
      %v4108 = vrot.slane %v4031, 1
      %v4109 = vrot.slane %v3983, 1
      %v4110 = vsel %vm667, %v4108, %v4109
      %v4111 = vsel %vm667, %v4109, %v4108
      %4112 = vrot.lane.b32.xlu0 %v4050, 8
      %v4113 = vpop.permute.xlu0 %4112
      %4114 = vrot.lane.b32.xlu0 %v4051, 8
      %v4115 = vpop.permute.xlu0 %4114
      %4116 = vrot.lane.b32.xlu0 %v4054, 8
      %v4117 = vpop.permute.xlu0 %4116
      %4118 = vrot.lane.b32.xlu0 %v4055, 8
      %v4119 = vpop.permute.xlu0 %4118
      %4120 = vrot.lane.b32.xlu0 %v4058, 8
      %v4121 = vpop.permute.xlu0 %4120
      %4122 = vrot.lane.b32.xlu0 %v4059, 8
      %v4123 = vpop.permute.xlu0 %4122
      %4124 = vrot.lane.b32.xlu0 %v4062, 8
      %v4125 = vpop.permute.xlu0 %4124
      %4126 = vrot.lane.b32.xlu0 %v4063, 8
      %v4127 = vpop.permute.xlu0 %4126
      %4128 = vrot.lane.b32.xlu0 %v4066, 8
      %v4129 = vpop.permute.xlu0 %4128
      %4130 = vrot.lane.b32.xlu0 %v4067, 8
      %v4131 = vpop.permute.xlu0 %4130
      %4132 = vrot.lane.b32.xlu0 %v4070, 8
      %v4133 = vpop.permute.xlu0 %4132
      %4134 = vrot.lane.b32.xlu0 %v4071, 8
      %v4135 = vpop.permute.xlu0 %4134
      %4136 = vrot.lane.b32.xlu0 %v4074, 8
      %v4137 = vpop.permute.xlu0 %4136
      %4138 = vrot.lane.b32.xlu0 %v4075, 8
      %v4139 = vpop.permute.xlu0 %4138
      %4140 = vrot.lane.b32.xlu0 %v4078, 8
      %v4141 = vpop.permute.xlu0 %4140
      %4142 = vrot.lane.b32.xlu0 %v4079, 8
      %v4143 = vpop.permute.xlu0 %4142
      %4144 = vrot.lane.b32.xlu0 %v4082, 8
      %v4145 = vpop.permute.xlu0 %4144
      %4146 = vrot.lane.b32.xlu0 %v4083, 8
      %v4147 = vpop.permute.xlu0 %4146
      %4148 = vrot.lane.b32.xlu0 %v4086, 8
      %v4149 = vpop.permute.xlu0 %4148
      %4150 = vrot.lane.b32.xlu0 %v4087, 8
      %v4151 = vpop.permute.xlu0 %4150
      %4152 = vrot.lane.b32.xlu0 %v4090, 8
      %v4153 = vpop.permute.xlu0 %4152
      %4154 = vrot.lane.b32.xlu0 %v4091, 8
      %v4155 = vpop.permute.xlu0 %4154
      %4156 = vrot.lane.b32.xlu0 %v4094, 8
      %v4157 = vpop.permute.xlu0 %4156
      %4158 = vrot.lane.b32.xlu0 %v4095, 8
      %v4159 = vpop.permute.xlu0 %4158
      %4160 = vrot.lane.b32.xlu0 %v4098, 8
      %v4161 = vpop.permute.xlu0 %4160
      %4162 = vrot.lane.b32.xlu0 %v4099, 8
      %v4163 = vpop.permute.xlu0 %4162
      %4164 = vrot.lane.b32.xlu0 %v4102, 8
      %v4165 = vpop.permute.xlu0 %4164
      %4166 = vrot.lane.b32.xlu0 %v4103, 8
      %v4167 = vpop.permute.xlu0 %4166
      %4168 = vrot.lane.b32.xlu0 %v4106, 8
      %v4169 = vpop.permute.xlu0 %4168
      %4170 = vrot.lane.b32.xlu0 %v4107, 8
      %v4171 = vpop.permute.xlu0 %4170
      %4172 = vrot.lane.b32.xlu0 %v4110, 8
      %v4173 = vpop.permute.xlu0 %4172
      %4174 = vrot.lane.b32.xlu0 %v4111, 8
      %v4175 = vpop.permute.xlu0 %4174
      %v4208 = vrot.slane %v4016, 2
      %v4209 = vrot.slane %v3953, 2
      %v4210 = vsel %vm828, %v4208, %v4209
      %v4211 = vsel %vm828, %v4209, %v4208
      %v4212 = vrot.slane %v4017, 2
      %v4213 = vrot.slane %v3955, 2
      %v4214 = vsel %vm828, %v4212, %v4213
      %v4215 = vsel %vm828, %v4213, %v4212
      %v4216 = vrot.slane %v4018, 2
      %v4217 = vrot.slane %v3957, 2
      %v4218 = vsel %vm828, %v4216, %v4217
      %v4219 = vsel %vm828, %v4217, %v4216
      %v4220 = vrot.slane %v4019, 2
      %v4221 = vrot.slane %v3959, 2
      %v4222 = vsel %vm828, %v4220, %v4221
      %v4223 = vsel %vm828, %v4221, %v4220
      %v4224 = vrot.slane %v4020, 2
      %v4225 = vrot.slane %v3961, 2
      %v4226 = vsel %vm828, %v4224, %v4225
      %v4227 = vsel %vm828, %v4225, %v4224
      %v4228 = vrot.slane %v4021, 2
      %v4229 = vrot.slane %v3963, 2
      %v4230 = vsel %vm828, %v4228, %v4229
      %v4231 = vsel %vm828, %v4229, %v4228
      %v4232 = vrot.slane %v4022, 2
      %v4233 = vrot.slane %v3965, 2
      %v4234 = vsel %vm828, %v4232, %v4233
      %v4235 = vsel %vm828, %v4233, %v4232
      %v4236 = vrot.slane %v4023, 2
      %v4237 = vrot.slane %v3967, 2
      %v4238 = vsel %vm828, %v4236, %v4237
      %v4239 = vsel %vm828, %v4237, %v4236
      %v4240 = vrot.slane %v4024, 2
      %v4241 = vrot.slane %v3969, 2
      %v4242 = vsel %vm828, %v4240, %v4241
      %v4243 = vsel %vm828, %v4241, %v4240
      %v4244 = vrot.slane %v4025, 2
      %v4245 = vrot.slane %v3971, 2
      %v4246 = vsel %vm828, %v4244, %v4245
      %v4247 = vsel %vm828, %v4245, %v4244
      %v4248 = vrot.slane %v4026, 2
      %v4249 = vrot.slane %v3973, 2
      %v4250 = vsel %vm828, %v4248, %v4249
      %v4251 = vsel %vm828, %v4249, %v4248
      %v4252 = vrot.slane %v4027, 2
      %v4253 = vrot.slane %v3975, 2
      %v4254 = vsel %vm828, %v4252, %v4253
      %v4255 = vsel %vm828, %v4253, %v4252
      %v4256 = vrot.slane %v4028, 2
      %v4257 = vrot.slane %v3977, 2
      %v4258 = vsel %vm828, %v4256, %v4257
      %v4259 = vsel %vm828, %v4257, %v4256
      %v4260 = vrot.slane %v4029, 2
      %v4261 = vrot.slane %v3979, 2
      %v4262 = vsel %vm828, %v4260, %v4261
      %v4263 = vsel %vm828, %v4261, %v4260
      %v4264 = vrot.slane %v4030, 2
      %v4265 = vrot.slane %v3981, 2
      %v4266 = vsel %vm828, %v4264, %v4265
      %v4267 = vsel %vm828, %v4265, %v4264
      %v4268 = vrot.slane %v4031, 2
      %v4269 = vrot.slane %v3983, 2
      %v4270 = vsel %vm828, %v4268, %v4269
      %v4271 = vsel %vm828, %v4269, %v4268
      %4272 = vrot.lane.b32.xlu0 %v4210, 16
      %v4273 = vpop.permute.xlu0 %4272
      %4274 = vrot.lane.b32.xlu0 %v4211, 16
      %v4275 = vpop.permute.xlu0 %4274
      %4276 = vrot.lane.b32.xlu0 %v4214, 16
      %v4277 = vpop.permute.xlu0 %4276
      %4278 = vrot.lane.b32.xlu0 %v4215, 16
      %v4279 = vpop.permute.xlu0 %4278
      %4280 = vrot.lane.b32.xlu0 %v4218, 16
      %v4281 = vpop.permute.xlu0 %4280
      %4282 = vrot.lane.b32.xlu0 %v4219, 16
      %v4283 = vpop.permute.xlu0 %4282
      %4284 = vrot.lane.b32.xlu0 %v4222, 16
      %v4285 = vpop.permute.xlu0 %4284
      %4286 = vrot.lane.b32.xlu0 %v4223, 16
      %v4287 = vpop.permute.xlu0 %4286
      %4288 = vrot.lane.b32.xlu0 %v4226, 16
      %v4289 = vpop.permute.xlu0 %4288
      %4290 = vrot.lane.b32.xlu0 %v4227, 16
      %v4291 = vpop.permute.xlu0 %4290
      %4292 = vrot.lane.b32.xlu0 %v4230, 16
      %v4293 = vpop.permute.xlu0 %4292
      %4294 = vrot.lane.b32.xlu0 %v4231, 16
      %v4295 = vpop.permute.xlu0 %4294
      %4296 = vrot.lane.b32.xlu0 %v4234, 16
      %v4297 = vpop.permute.xlu0 %4296
      %4298 = vrot.lane.b32.xlu0 %v4235, 16
      %v4299 = vpop.permute.xlu0 %4298
      %4300 = vrot.lane.b32.xlu0 %v4238, 16
      %v4301 = vpop.permute.xlu0 %4300
      %4302 = vrot.lane.b32.xlu0 %v4239, 16
      %v4303 = vpop.permute.xlu0 %4302
      %4304 = vrot.lane.b32.xlu0 %v4242, 16
      %v4305 = vpop.permute.xlu0 %4304
      %4306 = vrot.lane.b32.xlu0 %v4243, 16
      %v4307 = vpop.permute.xlu0 %4306
      %4308 = vrot.lane.b32.xlu0 %v4246, 16
      %v4309 = vpop.permute.xlu0 %4308
      %4310 = vrot.lane.b32.xlu0 %v4247, 16
      %v4311 = vpop.permute.xlu0 %4310
      %4312 = vrot.lane.b32.xlu0 %v4250, 16
      %v4313 = vpop.permute.xlu0 %4312
      %4314 = vrot.lane.b32.xlu0 %v4251, 16
      %v4315 = vpop.permute.xlu0 %4314
      %4316 = vrot.lane.b32.xlu0 %v4254, 16
      %v4317 = vpop.permute.xlu0 %4316
      %4318 = vrot.lane.b32.xlu0 %v4255, 16
      %v4319 = vpop.permute.xlu0 %4318
      %4320 = vrot.lane.b32.xlu0 %v4258, 16
      %v4321 = vpop.permute.xlu0 %4320
      %4322 = vrot.lane.b32.xlu0 %v4259, 16
      %v4323 = vpop.permute.xlu0 %4322
      %4324 = vrot.lane.b32.xlu0 %v4262, 16
      %v4325 = vpop.permute.xlu0 %4324
      %4326 = vrot.lane.b32.xlu0 %v4263, 16
      %v4327 = vpop.permute.xlu0 %4326
      %4328 = vrot.lane.b32.xlu0 %v4266, 16
      %v4329 = vpop.permute.xlu0 %4328
      %4330 = vrot.lane.b32.xlu0 %v4267, 16
      %v4331 = vpop.permute.xlu0 %4330
      %4332 = vrot.lane.b32.xlu0 %v4270, 16
      %v4333 = vpop.permute.xlu0 %4332
      %4334 = vrot.lane.b32.xlu0 %v4271, 16
      %v4335 = vpop.permute.xlu0 %4334
      %4368 = vrot.lane.b32.xlu0 %v4017, 24
      %v4369 = vpop.permute.xlu0 %4368
      %4370 = vrot.lane.b32.xlu0 %v3955, 24
      %v4371 = vpop.permute.xlu0 %4370
      %4372 = vrot.lane.b32.xlu0 %v4018, 24
      %v4373 = vpop.permute.xlu0 %4372
      %4374 = vrot.lane.b32.xlu0 %v3957, 24
      %v4375 = vpop.permute.xlu0 %4374
      %4376 = vrot.lane.b32.xlu0 %v4019, 24
      %v4377 = vpop.permute.xlu0 %4376
      %4378 = vrot.lane.b32.xlu0 %v3959, 24
      %v4379 = vpop.permute.xlu0 %4378
      %4380 = vrot.lane.b32.xlu0 %v4020, 24
      %v4381 = vpop.permute.xlu0 %4380
      %4382 = vrot.lane.b32.xlu0 %v3961, 24
      %v4383 = vpop.permute.xlu0 %4382
      %4384 = vrot.lane.b32.xlu0 %v4021, 24
      %v4385 = vpop.permute.xlu0 %4384
      %4386 = vrot.lane.b32.xlu0 %v3963, 24
      %v4387 = vpop.permute.xlu0 %4386
      %4388 = vrot.lane.b32.xlu0 %v4022, 24
      %v4389 = vpop.permute.xlu0 %4388
      %4390 = vrot.lane.b32.xlu0 %v3965, 24
      %v4391 = vpop.permute.xlu0 %4390
      %4392 = vrot.lane.b32.xlu0 %v4023, 24
      %v4393 = vpop.permute.xlu0 %4392
      %4394 = vrot.lane.b32.xlu0 %v3967, 24
      %v4395 = vpop.permute.xlu0 %4394
      %4396 = vrot.lane.b32.xlu0 %v4024, 24
      %v4397 = vpop.permute.xlu0 %4396
      %4398 = vrot.lane.b32.xlu0 %v3969, 24
      %v4399 = vpop.permute.xlu0 %4398
      %4400 = vrot.lane.b32.xlu0 %v4025, 24
      %v4401 = vpop.permute.xlu0 %4400
      %4402 = vrot.lane.b32.xlu0 %v3971, 24
      %v4403 = vpop.permute.xlu0 %4402
      %4404 = vrot.lane.b32.xlu0 %v4026, 24
      %v4405 = vpop.permute.xlu0 %4404
      %4406 = vrot.lane.b32.xlu0 %v3973, 24
      %v4407 = vpop.permute.xlu0 %4406
      %4408 = vrot.lane.b32.xlu0 %v4027, 24
      %v4409 = vpop.permute.xlu0 %4408
      %4410 = vrot.lane.b32.xlu0 %v3975, 24
      %v4411 = vpop.permute.xlu0 %4410
      %4412 = vrot.lane.b32.xlu0 %v4028, 24
      %v4413 = vpop.permute.xlu0 %4412
      %4414 = vrot.lane.b32.xlu0 %v3977, 24
      %v4415 = vpop.permute.xlu0 %4414
      %4416 = vrot.lane.b32.xlu0 %v4029, 24
      %v4417 = vpop.permute.xlu0 %4416
      %4418 = vrot.lane.b32.xlu0 %v3979, 24
      %v4419 = vpop.permute.xlu0 %4418
      %4420 = vrot.lane.b32.xlu0 %v4030, 24
      %v4421 = vpop.permute.xlu0 %4420
      %4422 = vrot.lane.b32.xlu0 %v3981, 24
      %v4423 = vpop.permute.xlu0 %4422
      %4424 = vrot.lane.b32.xlu0 %v4031, 24
      %v4425 = vpop.permute.xlu0 %4424
      %4426 = vrot.lane.b32.xlu0 %v3983, 24
      %v4427 = vpop.permute.xlu0 %4426
      %4428 = vrot.lane.b32.xlu0 %v4016, 24
      %v4429 = vpop.permute.xlu0 %4428
      %4430 = vrot.lane.b32.xlu0 %v3953, 24
      %v4431 = vpop.permute.xlu0 %4430
      %4464 = vrot.lane.b32.xlu0 %v4054, 32
      %v4465 = vpop.permute.xlu0 %4464
      %4466 = vrot.lane.b32.xlu0 %v4055, 32
      %v4467 = vpop.permute.xlu0 %4466
      %4468 = vrot.lane.b32.xlu0 %v4058, 32
      %v4469 = vpop.permute.xlu0 %4468
      %4470 = vrot.lane.b32.xlu0 %v4059, 32
      %v4471 = vpop.permute.xlu0 %4470
      %4472 = vrot.lane.b32.xlu0 %v4062, 32
      %v4473 = vpop.permute.xlu0 %4472
      %4474 = vrot.lane.b32.xlu0 %v4063, 32
      %v4475 = vpop.permute.xlu0 %4474
      %4476 = vrot.lane.b32.xlu0 %v4066, 32
      %v4477 = vpop.permute.xlu0 %4476
      %4478 = vrot.lane.b32.xlu0 %v4067, 32
      %v4479 = vpop.permute.xlu0 %4478
      %4480 = vrot.lane.b32.xlu0 %v4070, 32
      %v4481 = vpop.permute.xlu0 %4480
      %4482 = vrot.lane.b32.xlu0 %v4071, 32
      %v4483 = vpop.permute.xlu0 %4482
      %4484 = vrot.lane.b32.xlu0 %v4074, 32
      %v4485 = vpop.permute.xlu0 %4484
      %4486 = vrot.lane.b32.xlu0 %v4075, 32
      %v4487 = vpop.permute.xlu0 %4486
      %4488 = vrot.lane.b32.xlu0 %v4078, 32
      %v4489 = vpop.permute.xlu0 %4488
      %4490 = vrot.lane.b32.xlu0 %v4079, 32
      %v4491 = vpop.permute.xlu0 %4490
      %4492 = vrot.lane.b32.xlu0 %v4082, 32
      %v4493 = vpop.permute.xlu0 %4492
      %4494 = vrot.lane.b32.xlu0 %v4083, 32
      %v4495 = vpop.permute.xlu0 %4494
      %4496 = vrot.lane.b32.xlu0 %v4086, 32
      %v4497 = vpop.permute.xlu0 %4496
      %4498 = vrot.lane.b32.xlu0 %v4087, 32
      %v4499 = vpop.permute.xlu0 %4498
      %4500 = vrot.lane.b32.xlu0 %v4090, 32
      %v4501 = vpop.permute.xlu0 %4500
      %4502 = vrot.lane.b32.xlu0 %v4091, 32
      %v4503 = vpop.permute.xlu0 %4502
      %4504 = vrot.lane.b32.xlu0 %v4094, 32
      %v4505 = vpop.permute.xlu0 %4504
      %4506 = vrot.lane.b32.xlu0 %v4095, 32
      %v4507 = vpop.permute.xlu0 %4506
      %4508 = vrot.lane.b32.xlu0 %v4098, 32
      %v4509 = vpop.permute.xlu0 %4508
      %4510 = vrot.lane.b32.xlu0 %v4099, 32
      %v4511 = vpop.permute.xlu0 %4510
      %4512 = vrot.lane.b32.xlu0 %v4102, 32
      %v4513 = vpop.permute.xlu0 %4512
      %4514 = vrot.lane.b32.xlu0 %v4103, 32
      %v4515 = vpop.permute.xlu0 %4514
      %4516 = vrot.lane.b32.xlu0 %v4106, 32
      %v4517 = vpop.permute.xlu0 %4516
      %4518 = vrot.lane.b32.xlu0 %v4107, 32
      %v4519 = vpop.permute.xlu0 %4518
      %4520 = vrot.lane.b32.xlu0 %v4110, 32
      %v4521 = vpop.permute.xlu0 %4520
      %4522 = vrot.lane.b32.xlu0 %v4111, 32
      %v4523 = vpop.permute.xlu0 %4522
      %4524 = vrot.lane.b32.xlu0 %v4050, 32
      %v4525 = vpop.permute.xlu0 %4524
      %4526 = vrot.lane.b32.xlu0 %v4051, 32
      %v4527 = vpop.permute.xlu0 %4526
      %4560 = vrot.lane.b32.xlu0 %v4214, 40
      %v4561 = vpop.permute.xlu0 %4560
      %4562 = vrot.lane.b32.xlu0 %v4215, 40
      %v4563 = vpop.permute.xlu0 %4562
      %4564 = vrot.lane.b32.xlu0 %v4218, 40
      %v4565 = vpop.permute.xlu0 %4564
      %4566 = vrot.lane.b32.xlu0 %v4219, 40
      %v4567 = vpop.permute.xlu0 %4566
      %4568 = vrot.lane.b32.xlu0 %v4222, 40
      %v4569 = vpop.permute.xlu0 %4568
      %4570 = vrot.lane.b32.xlu0 %v4223, 40
      %v4571 = vpop.permute.xlu0 %4570
      %4572 = vrot.lane.b32.xlu0 %v4226, 40
      %v4573 = vpop.permute.xlu0 %4572
      %4574 = vrot.lane.b32.xlu0 %v4227, 40
      %v4575 = vpop.permute.xlu0 %4574
      %4576 = vrot.lane.b32.xlu0 %v4230, 40
      %v4577 = vpop.permute.xlu0 %4576
      %4578 = vrot.lane.b32.xlu0 %v4231, 40
      %v4579 = vpop.permute.xlu0 %4578
      %4580 = vrot.lane.b32.xlu0 %v4234, 40
      %v4581 = vpop.permute.xlu0 %4580
      %4582 = vrot.lane.b32.xlu0 %v4235, 40
      %v4583 = vpop.permute.xlu0 %4582
      %4584 = vrot.lane.b32.xlu0 %v4238, 40
      %v4585 = vpop.permute.xlu0 %4584
      %4586 = vrot.lane.b32.xlu0 %v4239, 40
      %v4587 = vpop.permute.xlu0 %4586
      %4588 = vrot.lane.b32.xlu0 %v4242, 40
      %v4589 = vpop.permute.xlu0 %4588
      %4590 = vrot.lane.b32.xlu0 %v4243, 40
      %v4591 = vpop.permute.xlu0 %4590
      %4592 = vrot.lane.b32.xlu0 %v4246, 40
      %v4593 = vpop.permute.xlu0 %4592
      %4594 = vrot.lane.b32.xlu0 %v4247, 40
      %v4595 = vpop.permute.xlu0 %4594
      %4596 = vrot.lane.b32.xlu0 %v4250, 40
      %v4597 = vpop.permute.xlu0 %4596
      %4598 = vrot.lane.b32.xlu0 %v4251, 40
      %v4599 = vpop.permute.xlu0 %4598
      %4600 = vrot.lane.b32.xlu0 %v4254, 40
      %v4601 = vpop.permute.xlu0 %4600
      %4602 = vrot.lane.b32.xlu0 %v4255, 40
      %v4603 = vpop.permute.xlu0 %4602
      %4604 = vrot.lane.b32.xlu0 %v4258, 40
      %v4605 = vpop.permute.xlu0 %4604
      %4606 = vrot.lane.b32.xlu0 %v4259, 40
      %v4607 = vpop.permute.xlu0 %4606
      %4608 = vrot.lane.b32.xlu0 %v4262, 40
      %v4609 = vpop.permute.xlu0 %4608
      %4610 = vrot.lane.b32.xlu0 %v4263, 40
      %v4611 = vpop.permute.xlu0 %4610
      %4612 = vrot.lane.b32.xlu0 %v4266, 40
      %v4613 = vpop.permute.xlu0 %4612
      %4614 = vrot.lane.b32.xlu0 %v4267, 40
      %v4615 = vpop.permute.xlu0 %4614
      %4616 = vrot.lane.b32.xlu0 %v4270, 40
      %v4617 = vpop.permute.xlu0 %4616
      %4618 = vrot.lane.b32.xlu0 %v4271, 40
      %v4619 = vpop.permute.xlu0 %4618
      %4620 = vrot.lane.b32.xlu0 %v4210, 40
      %v4621 = vpop.permute.xlu0 %4620
      %4622 = vrot.lane.b32.xlu0 %v4211, 40
      %v4623 = vpop.permute.xlu0 %4622
      %4656 = vrot.lane.b32.xlu0 %v4018, 48
      %v4657 = vpop.permute.xlu0 %4656
      %4658 = vrot.lane.b32.xlu0 %v3957, 48
      %v4659 = vpop.permute.xlu0 %4658
      %4660 = vrot.lane.b32.xlu0 %v4019, 48
      %v4661 = vpop.permute.xlu0 %4660
      %4662 = vrot.lane.b32.xlu0 %v3959, 48
      %v4663 = vpop.permute.xlu0 %4662
      %4664 = vrot.lane.b32.xlu0 %v4020, 48
      %v4665 = vpop.permute.xlu0 %4664
      %4666 = vrot.lane.b32.xlu0 %v3961, 48
      %v4667 = vpop.permute.xlu0 %4666
      %4668 = vrot.lane.b32.xlu0 %v4021, 48
      %v4669 = vpop.permute.xlu0 %4668
      %4670 = vrot.lane.b32.xlu0 %v3963, 48
      %v4671 = vpop.permute.xlu0 %4670
      %4672 = vrot.lane.b32.xlu0 %v4022, 48
      %v4673 = vpop.permute.xlu0 %4672
      %4674 = vrot.lane.b32.xlu0 %v3965, 48
      %v4675 = vpop.permute.xlu0 %4674
      %4676 = vrot.lane.b32.xlu0 %v4023, 48
      %v4677 = vpop.permute.xlu0 %4676
      %4678 = vrot.lane.b32.xlu0 %v3967, 48
      %v4679 = vpop.permute.xlu0 %4678
      %4680 = vrot.lane.b32.xlu0 %v4024, 48
      %v4681 = vpop.permute.xlu0 %4680
      %4682 = vrot.lane.b32.xlu0 %v3969, 48
      %v4683 = vpop.permute.xlu0 %4682
      %4684 = vrot.lane.b32.xlu0 %v4025, 48
      %v4685 = vpop.permute.xlu0 %4684
      %4686 = vrot.lane.b32.xlu0 %v3971, 48
      %v4687 = vpop.permute.xlu0 %4686
      %4688 = vrot.lane.b32.xlu0 %v4026, 48
      %v4689 = vpop.permute.xlu0 %4688
      %4690 = vrot.lane.b32.xlu0 %v3973, 48
      %v4691 = vpop.permute.xlu0 %4690
      %4692 = vrot.lane.b32.xlu0 %v4027, 48
      %v4693 = vpop.permute.xlu0 %4692
      %4694 = vrot.lane.b32.xlu0 %v3975, 48
      %v4695 = vpop.permute.xlu0 %4694
      %4696 = vrot.lane.b32.xlu0 %v4028, 48
      %v4697 = vpop.permute.xlu0 %4696
      %4698 = vrot.lane.b32.xlu0 %v3977, 48
      %v4699 = vpop.permute.xlu0 %4698
      %4700 = vrot.lane.b32.xlu0 %v4029, 48
      %v4701 = vpop.permute.xlu0 %4700
      %4702 = vrot.lane.b32.xlu0 %v3979, 48
      %v4703 = vpop.permute.xlu0 %4702
      %4704 = vrot.lane.b32.xlu0 %v4030, 48
      %v4705 = vpop.permute.xlu0 %4704
      %4706 = vrot.lane.b32.xlu0 %v3981, 48
      %v4707 = vpop.permute.xlu0 %4706
      %4708 = vrot.lane.b32.xlu0 %v4031, 48
      %v4709 = vpop.permute.xlu0 %4708
      %4710 = vrot.lane.b32.xlu0 %v3983, 48
      %v4711 = vpop.permute.xlu0 %4710
      %4712 = vrot.lane.b32.xlu0 %v4016, 48
      %v4713 = vpop.permute.xlu0 %4712
      %4714 = vrot.lane.b32.xlu0 %v3953, 48
      %v4715 = vpop.permute.xlu0 %4714
      %4716 = vrot.lane.b32.xlu0 %v4017, 48
      %v4717 = vpop.permute.xlu0 %4716
      %4718 = vrot.lane.b32.xlu0 %v3955, 48
      %v4719 = vpop.permute.xlu0 %4718
      %4752 = vrot.lane.b32.xlu0 %v4058, 56
      %v4753 = vpop.permute.xlu0 %4752
      %4754 = vrot.lane.b32.xlu0 %v4059, 56
      %v4755 = vpop.permute.xlu0 %4754
      %4756 = vrot.lane.b32.xlu0 %v4062, 56
      %v4757 = vpop.permute.xlu0 %4756
      %4758 = vrot.lane.b32.xlu0 %v4063, 56
      %v4759 = vpop.permute.xlu0 %4758
      %4760 = vrot.lane.b32.xlu0 %v4066, 56
      %v4761 = vpop.permute.xlu0 %4760
      %4762 = vrot.lane.b32.xlu0 %v4067, 56
      %v4763 = vpop.permute.xlu0 %4762
      %4764 = vrot.lane.b32.xlu0 %v4070, 56
      %v4765 = vpop.permute.xlu0 %4764
      %4766 = vrot.lane.b32.xlu0 %v4071, 56
      %v4767 = vpop.permute.xlu0 %4766
      %4768 = vrot.lane.b32.xlu0 %v4074, 56
      %v4769 = vpop.permute.xlu0 %4768
      %4770 = vrot.lane.b32.xlu0 %v4075, 56
      %v4771 = vpop.permute.xlu0 %4770
      %4772 = vrot.lane.b32.xlu0 %v4078, 56
      %v4773 = vpop.permute.xlu0 %4772
      %4774 = vrot.lane.b32.xlu0 %v4079, 56
      %v4775 = vpop.permute.xlu0 %4774
      %4776 = vrot.lane.b32.xlu0 %v4082, 56
      %v4777 = vpop.permute.xlu0 %4776
      %4778 = vrot.lane.b32.xlu0 %v4083, 56
      %v4779 = vpop.permute.xlu0 %4778
      %4780 = vrot.lane.b32.xlu0 %v4086, 56
      %v4781 = vpop.permute.xlu0 %4780
      %4782 = vrot.lane.b32.xlu0 %v4087, 56
      %v4783 = vpop.permute.xlu0 %4782
      %4784 = vrot.lane.b32.xlu0 %v4090, 56
      %v4785 = vpop.permute.xlu0 %4784
      %4786 = vrot.lane.b32.xlu0 %v4091, 56
      %v4787 = vpop.permute.xlu0 %4786
      %4788 = vrot.lane.b32.xlu0 %v4094, 56
      %v4789 = vpop.permute.xlu0 %4788
      %4790 = vrot.lane.b32.xlu0 %v4095, 56
      %v4791 = vpop.permute.xlu0 %4790
      %4792 = vrot.lane.b32.xlu0 %v4098, 56
      %v4793 = vpop.permute.xlu0 %4792
      %4794 = vrot.lane.b32.xlu0 %v4099, 56
      %v4795 = vpop.permute.xlu0 %4794
      %4796 = vrot.lane.b32.xlu0 %v4102, 56
      %v4797 = vpop.permute.xlu0 %4796
      %4798 = vrot.lane.b32.xlu0 %v4103, 56
      %v4799 = vpop.permute.xlu0 %4798
      %4800 = vrot.lane.b32.xlu0 %v4106, 56
      %v4801 = vpop.permute.xlu0 %4800
      %4802 = vrot.lane.b32.xlu0 %v4107, 56
      %v4803 = vpop.permute.xlu0 %4802
      %4804 = vrot.lane.b32.xlu0 %v4110, 56
      %v4805 = vpop.permute.xlu0 %4804
      %4806 = vrot.lane.b32.xlu0 %v4111, 56
      %v4807 = vpop.permute.xlu0 %4806
      %4808 = vrot.lane.b32.xlu0 %v4050, 56
      %v4809 = vpop.permute.xlu0 %4808
      %4810 = vrot.lane.b32.xlu0 %v4051, 56
      %v4811 = vpop.permute.xlu0 %4810
      %4812 = vrot.lane.b32.xlu0 %v4054, 56
      %v4813 = vpop.permute.xlu0 %4812
      %4814 = vrot.lane.b32.xlu0 %v4055, 56
      %v4815 = vpop.permute.xlu0 %4814
      %4848 = vrot.lane.b32.xlu0 %v4218, 64
      %v4849 = vpop.permute.xlu0 %4848
      %4850 = vrot.lane.b32.xlu0 %v4219, 64
      %v4851 = vpop.permute.xlu0 %4850
      %4852 = vrot.lane.b32.xlu0 %v4222, 64
      %v4853 = vpop.permute.xlu0 %4852
      %4854 = vrot.lane.b32.xlu0 %v4223, 64
      %v4855 = vpop.permute.xlu0 %4854
      %4856 = vrot.lane.b32.xlu0 %v4226, 64
      %v4857 = vpop.permute.xlu0 %4856
      %4858 = vrot.lane.b32.xlu0 %v4227, 64
      %v4859 = vpop.permute.xlu0 %4858
      %4860 = vrot.lane.b32.xlu0 %v4230, 64
      %v4861 = vpop.permute.xlu0 %4860
      %4862 = vrot.lane.b32.xlu0 %v4231, 64
      %v4863 = vpop.permute.xlu0 %4862
      %4864 = vrot.lane.b32.xlu0 %v4234, 64
      %v4865 = vpop.permute.xlu0 %4864
      %4866 = vrot.lane.b32.xlu0 %v4235, 64
      %v4867 = vpop.permute.xlu0 %4866
      %4868 = vrot.lane.b32.xlu0 %v4238, 64
      %v4869 = vpop.permute.xlu0 %4868
      %4870 = vrot.lane.b32.xlu0 %v4239, 64
      %v4871 = vpop.permute.xlu0 %4870
      %4872 = vrot.lane.b32.xlu0 %v4242, 64
      %v4873 = vpop.permute.xlu0 %4872
      %4874 = vrot.lane.b32.xlu0 %v4243, 64
      %v4875 = vpop.permute.xlu0 %4874
      %4876 = vrot.lane.b32.xlu0 %v4246, 64
      %v4877 = vpop.permute.xlu0 %4876
      %4878 = vrot.lane.b32.xlu0 %v4247, 64
      %v4879 = vpop.permute.xlu0 %4878
      %4880 = vrot.lane.b32.xlu0 %v4250, 64
      %v4881 = vpop.permute.xlu0 %4880
      %4882 = vrot.lane.b32.xlu0 %v4251, 64
      %v4883 = vpop.permute.xlu0 %4882
      %4884 = vrot.lane.b32.xlu0 %v4254, 64
      %v4885 = vpop.permute.xlu0 %4884
      %4886 = vrot.lane.b32.xlu0 %v4255, 64
      %v4887 = vpop.permute.xlu0 %4886
      %4888 = vrot.lane.b32.xlu0 %v4258, 64
      %v4889 = vpop.permute.xlu0 %4888
      %4890 = vrot.lane.b32.xlu0 %v4259, 64
      %v4891 = vpop.permute.xlu0 %4890
      %4892 = vrot.lane.b32.xlu0 %v4262, 64
      %v4893 = vpop.permute.xlu0 %4892
      %4894 = vrot.lane.b32.xlu0 %v4263, 64
      %v4895 = vpop.permute.xlu0 %4894
      %4896 = vrot.lane.b32.xlu0 %v4266, 64
      %v4897 = vpop.permute.xlu0 %4896
      %4898 = vrot.lane.b32.xlu0 %v4267, 64
      %v4899 = vpop.permute.xlu0 %4898
      %4900 = vrot.lane.b32.xlu0 %v4270, 64
      %v4901 = vpop.permute.xlu0 %4900
      %4902 = vrot.lane.b32.xlu0 %v4271, 64
      %v4903 = vpop.permute.xlu0 %4902
      %4904 = vrot.lane.b32.xlu0 %v4210, 64
      %v4905 = vpop.permute.xlu0 %4904
      %4906 = vrot.lane.b32.xlu0 %v4211, 64
      %v4907 = vpop.permute.xlu0 %4906
      %4908 = vrot.lane.b32.xlu0 %v4214, 64
      %v4909 = vpop.permute.xlu0 %4908
      %4910 = vrot.lane.b32.xlu0 %v4215, 64
      %v4911 = vpop.permute.xlu0 %4910
      %v4944 = vsel %vm1598, %v4016, %v4113
      %v4945 = vsel %vm1598, %v3953, %v4115
      %v4946 = vsel %vm1598, %v4017, %v4117
      %v4947 = vsel %vm1598, %v3955, %v4119
      %v4948 = vsel %vm1598, %v4018, %v4121
      %v4949 = vsel %vm1598, %v3957, %v4123
      %v4950 = vsel %vm1598, %v4019, %v4125
      %v4951 = vsel %vm1598, %v3959, %v4127
      %v4952 = vsel %vm1598, %v4020, %v4129
      %v4953 = vsel %vm1598, %v3961, %v4131
      %v4954 = vsel %vm1598, %v4021, %v4133
      %v4955 = vsel %vm1598, %v3963, %v4135
      %v4956 = vsel %vm1598, %v4022, %v4137
      %v4957 = vsel %vm1598, %v3965, %v4139
      %v4958 = vsel %vm1598, %v4023, %v4141
      %v4959 = vsel %vm1598, %v3967, %v4143
      %v4960 = vsel %vm1598, %v4024, %v4145
      %v4961 = vsel %vm1598, %v3969, %v4147
      %v4962 = vsel %vm1598, %v4025, %v4149
      %v4963 = vsel %vm1598, %v3971, %v4151
      %v4964 = vsel %vm1598, %v4026, %v4153
      %v4965 = vsel %vm1598, %v3973, %v4155
      %v4966 = vsel %vm1598, %v4027, %v4157
      %v4967 = vsel %vm1598, %v3975, %v4159
      %v4968 = vsel %vm1598, %v4028, %v4161
      %v4969 = vsel %vm1598, %v3977, %v4163
      %v4970 = vsel %vm1598, %v4029, %v4165
      %v4971 = vsel %vm1598, %v3979, %v4167
      %v4972 = vsel %vm1598, %v4030, %v4169
      %v4973 = vsel %vm1598, %v3981, %v4171
      %v4974 = vsel %vm1598, %v4031, %v4173
      %v4975 = vsel %vm1598, %v3983, %v4175
      %v4976 = vsel %vm1664, %v4944, %v4273
      %v4977 = vsel %vm1664, %v4945, %v4275
      %v4978 = vsel %vm1664, %v4946, %v4277
      %v4979 = vsel %vm1664, %v4947, %v4279
      %v4980 = vsel %vm1664, %v4948, %v4281
      %v4981 = vsel %vm1664, %v4949, %v4283
      %v4982 = vsel %vm1664, %v4950, %v4285
      %v4983 = vsel %vm1664, %v4951, %v4287
      %v4984 = vsel %vm1664, %v4952, %v4289
      %v4985 = vsel %vm1664, %v4953, %v4291
      %v4986 = vsel %vm1664, %v4954, %v4293
      %v4987 = vsel %vm1664, %v4955, %v4295
      %v4988 = vsel %vm1664, %v4956, %v4297
      %v4989 = vsel %vm1664, %v4957, %v4299
      %v4990 = vsel %vm1664, %v4958, %v4301
      %v4991 = vsel %vm1664, %v4959, %v4303
      %v4992 = vsel %vm1664, %v4960, %v4305
      %v4993 = vsel %vm1664, %v4961, %v4307
      %v4994 = vsel %vm1664, %v4962, %v4309
      %v4995 = vsel %vm1664, %v4963, %v4311
      %v4996 = vsel %vm1664, %v4964, %v4313
      %v4997 = vsel %vm1664, %v4965, %v4315
      %v4998 = vsel %vm1664, %v4966, %v4317
      %v4999 = vsel %vm1664, %v4967, %v4319
      %v5000 = vsel %vm1664, %v4968, %v4321
      %v5001 = vsel %vm1664, %v4969, %v4323
      %v5002 = vsel %vm1664, %v4970, %v4325
      %v5003 = vsel %vm1664, %v4971, %v4327
      %v5004 = vsel %vm1664, %v4972, %v4329
      %v5005 = vsel %vm1664, %v4973, %v4331
      %v5006 = vsel %vm1664, %v4974, %v4333
      %v5007 = vsel %vm1664, %v4975, %v4335
      %v5008 = vsel %vm1730, %v4976, %v4369
      %v5009 = vsel %vm1730, %v4977, %v4371
      %v5010 = vsel %vm1730, %v4978, %v4373
      %v5011 = vsel %vm1730, %v4979, %v4375
      %v5012 = vsel %vm1730, %v4980, %v4377
      %v5013 = vsel %vm1730, %v4981, %v4379
      %v5014 = vsel %vm1730, %v4982, %v4381
      %v5015 = vsel %vm1730, %v4983, %v4383
      %v5016 = vsel %vm1730, %v4984, %v4385
      %v5017 = vsel %vm1730, %v4985, %v4387
      %v5018 = vsel %vm1730, %v4986, %v4389
      %v5019 = vsel %vm1730, %v4987, %v4391
      %v5020 = vsel %vm1730, %v4988, %v4393
      %v5021 = vsel %vm1730, %v4989, %v4395
      %v5022 = vsel %vm1730, %v4990, %v4397
      %v5023 = vsel %vm1730, %v4991, %v4399
      %v5024 = vsel %vm1730, %v4992, %v4401
      %v5025 = vsel %vm1730, %v4993, %v4403
      %v5026 = vsel %vm1730, %v4994, %v4405
      %v5027 = vsel %vm1730, %v4995, %v4407
      %v5028 = vsel %vm1730, %v4996, %v4409
      %v5029 = vsel %vm1730, %v4997, %v4411
      %v5030 = vsel %vm1730, %v4998, %v4413
      %v5031 = vsel %vm1730, %v4999, %v4415
      %v5032 = vsel %vm1730, %v5000, %v4417
      %v5033 = vsel %vm1730, %v5001, %v4419
      %v5034 = vsel %vm1730, %v5002, %v4421
      %v5035 = vsel %vm1730, %v5003, %v4423
      %v5036 = vsel %vm1730, %v5004, %v4425
      %v5037 = vsel %vm1730, %v5005, %v4427
      %v5038 = vsel %vm1730, %v5006, %v4429
      %v5039 = vsel %vm1730, %v5007, %v4431
      %v5040 = vsel %vm1796, %v5008, %v4465
      %v5041 = vsel %vm1796, %v5009, %v4467
      %v5042 = vsel %vm1796, %v5010, %v4469
      %v5043 = vsel %vm1796, %v5011, %v4471
      %v5044 = vsel %vm1796, %v5012, %v4473
      %v5045 = vsel %vm1796, %v5013, %v4475
      %v5046 = vsel %vm1796, %v5014, %v4477
      %v5047 = vsel %vm1796, %v5015, %v4479
      %v5048 = vsel %vm1796, %v5016, %v4481
      %v5049 = vsel %vm1796, %v5017, %v4483
      %v5050 = vsel %vm1796, %v5018, %v4485
      %v5051 = vsel %vm1796, %v5019, %v4487
      %v5052 = vsel %vm1796, %v5020, %v4489
      %v5053 = vsel %vm1796, %v5021, %v4491
      %v5054 = vsel %vm1796, %v5022, %v4493
      %v5055 = vsel %vm1796, %v5023, %v4495
      %v5056 = vsel %vm1796, %v5024, %v4497
      %v5057 = vsel %vm1796, %v5025, %v4499
      %v5058 = vsel %vm1796, %v5026, %v4501
      %v5059 = vsel %vm1796, %v5027, %v4503
      %v5060 = vsel %vm1796, %v5028, %v4505
      %v5061 = vsel %vm1796, %v5029, %v4507
      %v5062 = vsel %vm1796, %v5030, %v4509
      %v5063 = vsel %vm1796, %v5031, %v4511
      %v5064 = vsel %vm1796, %v5032, %v4513
      %v5065 = vsel %vm1796, %v5033, %v4515
      %v5066 = vsel %vm1796, %v5034, %v4517
      %v5067 = vsel %vm1796, %v5035, %v4519
      %v5068 = vsel %vm1796, %v5036, %v4521
      %v5069 = vsel %vm1796, %v5037, %v4523
      %v5070 = vsel %vm1796, %v5038, %v4525
      %v5071 = vsel %vm1796, %v5039, %v4527
      %v5072 = vsel %vm3387, %v5040, %v4561
      %v5073 = vsel %vm3387, %v5041, %v4563
      %v5074 = vsel %vm3387, %v5042, %v4565
      %v5075 = vsel %vm3387, %v5043, %v4567
      %v5076 = vsel %vm3387, %v5044, %v4569
      %v5077 = vsel %vm3387, %v5045, %v4571
      %v5078 = vsel %vm3387, %v5046, %v4573
      %v5079 = vsel %vm3387, %v5047, %v4575
      %v5080 = vsel %vm3387, %v5048, %v4577
      %v5081 = vsel %vm3387, %v5049, %v4579
      %v5082 = vsel %vm3387, %v5050, %v4581
      %v5083 = vsel %vm3387, %v5051, %v4583
      %v5084 = vsel %vm3387, %v5052, %v4585
      %v5085 = vsel %vm3387, %v5053, %v4587
      %v5086 = vsel %vm3387, %v5054, %v4589
      %v5087 = vsel %vm3387, %v5055, %v4591
      %v5088 = vsel %vm3387, %v5056, %v4593
      %v5089 = vsel %vm3387, %v5057, %v4595
      %v5090 = vsel %vm3387, %v5058, %v4597
      %v5091 = vsel %vm3387, %v5059, %v4599
      %v5092 = vsel %vm3387, %v5060, %v4601
      %v5093 = vsel %vm3387, %v5061, %v4603
      %v5094 = vsel %vm3387, %v5062, %v4605
      %v5095 = vsel %vm3387, %v5063, %v4607
      %v5096 = vsel %vm3387, %v5064, %v4609
      %v5097 = vsel %vm3387, %v5065, %v4611
      %v5098 = vsel %vm3387, %v5066, %v4613
      %v5099 = vsel %vm3387, %v5067, %v4615
      %v5100 = vsel %vm3387, %v5068, %v4617
      %v5101 = vsel %vm3387, %v5069, %v4619
      %v5102 = vsel %vm3387, %v5070, %v4621
      %v5103 = vsel %vm3387, %v5071, %v4623
      %v5104 = vsel %vm3420, %v5072, %v4657
      %v5105 = vsel %vm3420, %v5073, %v4659
      %v5106 = vsel %vm3420, %v5074, %v4661
      %v5107 = vsel %vm3420, %v5075, %v4663
      %v5108 = vsel %vm3420, %v5076, %v4665
      %v5109 = vsel %vm3420, %v5077, %v4667
      %v5110 = vsel %vm3420, %v5078, %v4669
      %v5111 = vsel %vm3420, %v5079, %v4671
      %v5112 = vsel %vm3420, %v5080, %v4673
      %v5113 = vsel %vm3420, %v5081, %v4675
      %v5114 = vsel %vm3420, %v5082, %v4677
      %v5115 = vsel %vm3420, %v5083, %v4679
      %v5116 = vsel %vm3420, %v5084, %v4681
      %v5117 = vsel %vm3420, %v5085, %v4683
      %v5118 = vsel %vm3420, %v5086, %v4685
      %v5119 = vsel %vm3420, %v5087, %v4687
      %v5120 = vsel %vm3420, %v5088, %v4689
      %v5121 = vsel %vm3420, %v5089, %v4691
      %v5122 = vsel %vm3420, %v5090, %v4693
      %v5123 = vsel %vm3420, %v5091, %v4695
      %v5124 = vsel %vm3420, %v5092, %v4697
      %v5125 = vsel %vm3420, %v5093, %v4699
      %v5126 = vsel %vm3420, %v5094, %v4701
      %v5127 = vsel %vm3420, %v5095, %v4703
      %v5128 = vsel %vm3420, %v5096, %v4705
      %v5129 = vsel %vm3420, %v5097, %v4707
      %v5130 = vsel %vm3420, %v5098, %v4709
      %v5131 = vsel %vm3420, %v5099, %v4711
      %v5132 = vsel %vm3420, %v5100, %v4713
      %v5133 = vsel %vm3420, %v5101, %v4715
      %v5134 = vsel %vm3420, %v5102, %v4717
      %v5135 = vsel %vm3420, %v5103, %v4719
      %v5136 = vsel %vm3453, %v5104, %v4753
      %v5137 = vsel %vm3453, %v5105, %v4755
      %v5138 = vsel %vm3453, %v5106, %v4757
      %v5139 = vsel %vm3453, %v5107, %v4759
      %v5140 = vsel %vm3453, %v5108, %v4761
      %v5141 = vsel %vm3453, %v5109, %v4763
      %v5142 = vsel %vm3453, %v5110, %v4765
      %v5143 = vsel %vm3453, %v5111, %v4767
      %v5144 = vsel %vm3453, %v5112, %v4769
      %v5145 = vsel %vm3453, %v5113, %v4771
      %v5146 = vsel %vm3453, %v5114, %v4773
      %v5147 = vsel %vm3453, %v5115, %v4775
      %v5148 = vsel %vm3453, %v5116, %v4777
      %v5149 = vsel %vm3453, %v5117, %v4779
      %v5150 = vsel %vm3453, %v5118, %v4781
      %v5151 = vsel %vm3453, %v5119, %v4783
      %v5152 = vsel %vm3453, %v5120, %v4785
      %v5153 = vsel %vm3453, %v5121, %v4787
      %v5154 = vsel %vm3453, %v5122, %v4789
      %v5155 = vsel %vm3453, %v5123, %v4791
      %v5156 = vsel %vm3453, %v5124, %v4793
      %v5157 = vsel %vm3453, %v5125, %v4795
      %v5158 = vsel %vm3453, %v5126, %v4797
      %v5159 = vsel %vm3453, %v5127, %v4799
      %v5160 = vsel %vm3453, %v5128, %v4801
      %v5161 = vsel %vm3453, %v5129, %v4803
      %v5162 = vsel %vm3453, %v5130, %v4805
      %v5163 = vsel %vm3453, %v5131, %v4807
      %v5164 = vsel %vm3453, %v5132, %v4809
      %v5165 = vsel %vm3453, %v5133, %v4811
      %v5166 = vsel %vm3453, %v5134, %v4813
      %v5167 = vsel %vm3453, %v5135, %v4815
      %v5168 = vsel %vm3486, %v5136, %v4849
      %v5169 = vsel %vm3486, %v5137, %v4851
      %v5170 = vsel %vm3486, %v5138, %v4853
      %v5171 = vsel %vm3486, %v5139, %v4855
      %v5172 = vsel %vm3486, %v5140, %v4857
      %v5173 = vsel %vm3486, %v5141, %v4859
      %v5174 = vsel %vm3486, %v5142, %v4861
      %v5175 = vsel %vm3486, %v5143, %v4863
      %v5176 = vsel %vm3486, %v5144, %v4865
      %v5177 = vsel %vm3486, %v5145, %v4867
      %v5178 = vsel %vm3486, %v5146, %v4869
      %v5179 = vsel %vm3486, %v5147, %v4871
      %v5180 = vsel %vm3486, %v5148, %v4873
      %v5181 = vsel %vm3486, %v5149, %v4875
      %v5182 = vsel %vm3486, %v5150, %v4877
      %v5183 = vsel %vm3486, %v5151, %v4879
      %v5184 = vsel %vm3486, %v5152, %v4881
      %v5185 = vsel %vm3486, %v5153, %v4883
      %v5186 = vsel %vm3486, %v5154, %v4885
      %v5187 = vsel %vm3486, %v5155, %v4887
      %v5188 = vsel %vm3486, %v5156, %v4889
      %v5189 = vsel %vm3486, %v5157, %v4891
      %v5190 = vsel %vm3486, %v5158, %v4893
      %v5191 = vsel %vm3486, %v5159, %v4895
      %v5192 = vsel %vm3486, %v5160, %v4897
      %v5193 = vsel %vm3486, %v5161, %v4899
      %v5194 = vsel %vm3486, %v5162, %v4901
      %v5195 = vsel %vm3486, %v5163, %v4903
      %v5196 = vsel %vm3486, %v5164, %v4905
      %v5197 = vsel %vm3486, %v5165, %v4907
      %v5198 = vsel %vm3486, %v5166, %v4909
      %v5199 = vsel %vm3486, %v5167, %v4911
      %v5201 = vsel %vm3525, %v5168, 0
      %v5204 = vsel %vm3525, %v5169, 0
      %v5207 = vsel %vm3525, %v5170, 0
      %v5210 = vsel %vm3525, %v5171, 0
      %v5213 = vsel %vm3525, %v5172, 0
      %v5216 = vsel %vm3525, %v5173, 0
      %v5219 = vsel %vm3525, %v5174, 0
      %v5222 = vsel %vm3525, %v5175, 0
      %v5225 = vsel %vm3525, %v5176, 0
      %v5228 = vsel %vm3525, %v5177, 0
      %v5231 = vsel %vm3525, %v5178, 0
      %v5234 = vsel %vm3525, %v5179, 0
      %v5237 = vsel %vm3525, %v5180, 0
      %v5240 = vsel %vm3525, %v5181, 0
      %v5243 = vsel %vm3525, %v5182, 0
      %v5246 = vsel %vm3525, %v5183, 0
      %v5249 = vsel %vm3525, %v5184, 0
      %v5252 = vsel %vm3525, %v5185, 0
      %v5255 = vsel %vm3525, %v5186, 0
      %v5258 = vsel %vm3525, %v5187, 0
      %v5261 = vsel %vm3525, %v5188, 0
      %v5264 = vsel %vm3525, %v5189, 0
      %v5267 = vsel %vm3525, %v5190, 0
      %v5270 = vsel %vm3525, %v5191, 0
      %v5273 = vsel %vm3525, %v5192, 0
      %v5276 = vsel %vm3525, %v5193, 0
      %v5279 = vsel %vm3525, %v5194, 0
      %v5282 = vsel %vm3525, %v5195, 0
      %v5285 = vsel %vm3525, %v5196, 0
      %v5288 = vsel %vm3525, %v5197, 0
      %v5291 = vsel %vm3525, %v5198, 0
      %v5294 = vsel %vm3525, %v5199, 0
      %5296 = vmatprep.subr.mxu0 0.0
      %5297 = vmatpush1.msra.mxu0 0.0
      %5298 = vmatprep.subr.mxu0 0.0
      %5299 = vmatpush1.msra.mxu0 0.0
      %5300 = vmatprep.subr.mxu0 0.0
      %5301 = vmatpush1.msra.mxu0 0.0
      %5302 = vmatprep.subr.mxu0 0.0
      %5303 = vmatpush1.msra.mxu0 0.0
      %5304 = vmatprep.subr.mxu0 0.0
      %5305 = vmatpush1.msra.mxu0 0.0
      %5306 = vmatprep.subr.mxu0 0.0
      %5307 = vmatpush1.msra.mxu0 0.0
      %5308 = vmatprep.subr.mxu0 0.0
      %5309 = vmatpush1.msra.mxu0 0.0
      %5310 = vmatprep.subr.mxu0 0.0
      %5311 = vmatpush1.msra.mxu0 %v3887
      %5312 = vmatprep.subr.mxu0 0.0
      %5313 = vmatpush1.msra.mxu0 %v3886
      %5314 = vmatprep.subr.mxu0 0.0
      %5315 = vmatpush1.msra.mxu0 %v3885
      %5316 = vmatprep.subr.mxu0 0.0
      %5317 = vmatpush1.msra.mxu0 %v3884
      %5318 = vmatprep.subr.mxu0 0.0
      %5319 = vmatpush1.msra.mxu0 %v3883
      %5320 = vmatprep.subr.mxu0 0.0
      %5321 = vmatpush1.msra.mxu0 %v3882
      %5322 = vmatprep.subr.mxu0 0.0
      %5323 = vmatpush1.msra.mxu0 %v3881
      %5324 = vmatprep.subr.mxu0 0.0
      %5325 = vmatpush1.msra.mxu0 %v3880
      %5326 = vmatprep.subr.mxu0 0.0
      %5327 = vmatpush1.msra.mxu0 %v3879
      %5328 = vmatprep.subr.mxu0 0.0
      %5329 = vmatpush2.msra.mxu0 0.0
      %5330 = vmatprep.subr.mxu0 0.0
      %5331 = vmatpush2.msra.mxu0 0.0
      %5332 = vmatprep.subr.mxu0 0.0
      %5333 = vmatpush2.msra.mxu0 0.0
      %5334 = vmatprep.subr.mxu0 0.0
      %5335 = vmatpush2.msra.mxu0 0.0
      %5336 = vmatprep.subr.mxu0 0.0
      %5337 = vmatpush2.msra.mxu0 0.0
      %5338 = vmatprep.subr.mxu0 0.0
      %5339 = vmatpush2.msra.mxu0 0.0
      %5340 = vmatprep.subr.mxu0 0.0
      %5341 = vmatpush2.msra.mxu0 0.0
      %5342 = vmatprep.subr.mxu0 0.0
      %5343 = vmatpush2.msra.mxu0 0.0
      %5344 = vmatprep.subr.mxu0 0.0
      %5345 = vmatpush2.msra.mxu0 0.0
      %5346 = vmatprep.subr.mxu0 0.0
      %5347 = vmatpush2.msra.mxu0 0.0
      %5348 = vmatprep.subr.mxu0 0.0
      %5349 = vmatpush2.msra.mxu0 0.0
      %5350 = vmatprep.subr.mxu0 0.0
      %5351 = vmatpush2.msra.mxu0 0.0
      %5352 = vmatprep.subr.mxu0 0.0
      %5353 = vmatpush2.msra.mxu0 0.0
      %5354 = vmatprep.subr.mxu0 0.0
      %5355 = vmatpush2.msra.mxu0 0.0
      %5356 = vmatprep.subr.mxu0 0.0
      %5357 = vmatpush2.msra.mxu0 0.0
      %5358 = vmatprep.subr.mxu0 0.0
      %5359 = vmatpush2.msra.mxu0 0.0
      %5360 = vmatprep.mubr.f32.mxu0 0.0
      %5361 = vmatmul.mubr.f32.gmra.mxu0 %v5201
      %v5362 = vpop.f32.mrf.mxu0
      %v5363 = vadd.f32 0.0, %v5362
      %v5364 = vpop.f32.mrf.mxu0
      %5365 = vmatprep.mubr.f32.mxu0 0.0
      %5366 = vmatmul.mubr.f32.gmra.mxu0 %v5204
      %v5367 = vpop.f32.mrf.mxu0
      %v5368 = vadd.f32 0.0, %v5367
      %v5369 = vpop.f32.mrf.mxu0
      %5370 = vmatprep.mubr.f32.mxu0 0.0
      %5371 = vmatmul.mubr.f32.gmra.mxu0 %v5207
      %v5372 = vpop.f32.mrf.mxu0
      %v5373 = vadd.f32 0.0, %v5372
      %v5374 = vpop.f32.mrf.mxu0
      %5375 = vmatprep.mubr.f32.mxu0 0.0
      %5376 = vmatmul.mubr.f32.gmra.mxu0 %v5210
      %v5377 = vpop.f32.mrf.mxu0
      %v5378 = vadd.f32 0.0, %v5377
      %v5379 = vpop.f32.mrf.mxu0
      %5380 = vmatprep.mubr.f32.mxu0 0.0
      %5381 = vmatmul.mubr.f32.gmra.mxu0 %v5213
      %v5382 = vpop.f32.mrf.mxu0
      %v5383 = vadd.f32 0.0, %v5382
      %v5384 = vpop.f32.mrf.mxu0
      %5385 = vmatprep.mubr.f32.mxu0 0.0
      %5386 = vmatmul.mubr.f32.gmra.mxu0 %v5216
      %v5387 = vpop.f32.mrf.mxu0
      %v5388 = vadd.f32 0.0, %v5387
      %v5389 = vpop.f32.mrf.mxu0
      %5390 = vmatprep.mubr.f32.mxu0 0.0
      %5391 = vmatmul.mubr.f32.gmra.mxu0 %v5219
      %v5392 = vpop.f32.mrf.mxu0
      %v5393 = vadd.f32 0.0, %v5392
      %v5394 = vpop.f32.mrf.mxu0
      %5395 = vmatprep.mubr.f32.mxu0 0.0
      %5396 = vmatmul.mubr.f32.gmra.mxu0 %v5222
      %v5397 = vpop.f32.mrf.mxu0
      %v5398 = vadd.f32 0.0, %v5397
      %v5399 = vpop.f32.mrf.mxu0
      %5400 = vmatprep.mubr.f32.mxu0 0.0
      %5401 = vmatmul.mubr.f32.gmra.mxu0 %v5225
      %v5402 = vpop.f32.mrf.mxu0
      %v5403 = vadd.f32 0.0, %v5402
      %v5404 = vpop.f32.mrf.mxu0
      %5405 = vmatprep.mubr.f32.mxu0 0.0
      %5406 = vmatmul.mubr.f32.gmra.mxu0 %v5228
      %v5407 = vpop.f32.mrf.mxu0
      %v5408 = vadd.f32 0.0, %v5407
      %v5409 = vpop.f32.mrf.mxu0
      %5410 = vmatprep.mubr.f32.mxu0 0.0
      %5411 = vmatmul.mubr.f32.gmra.mxu0 %v5231
      %v5412 = vpop.f32.mrf.mxu0
      %v5413 = vadd.f32 0.0, %v5412
      %v5414 = vpop.f32.mrf.mxu0
      %5415 = vmatprep.mubr.f32.mxu0 0.0
      %5416 = vmatmul.mubr.f32.gmra.mxu0 %v5234
      %v5417 = vpop.f32.mrf.mxu0
      %v5418 = vadd.f32 0.0, %v5417
      %v5419 = vpop.f32.mrf.mxu0
      %5420 = vmatprep.mubr.f32.mxu0 0.0
      %5421 = vmatmul.mubr.f32.gmra.mxu0 %v5237
      %v5422 = vpop.f32.mrf.mxu0
      %v5423 = vadd.f32 0.0, %v5422
      %v5424 = vpop.f32.mrf.mxu0
      %5425 = vmatprep.mubr.f32.mxu0 0.0
      %5426 = vmatmul.mubr.f32.gmra.mxu0 %v5240
      %v5427 = vpop.f32.mrf.mxu0
      %v5428 = vadd.f32 0.0, %v5427
      %v5429 = vpop.f32.mrf.mxu0
      %5430 = vmatprep.mubr.f32.mxu0 0.0
      %5431 = vmatmul.mubr.f32.gmra.mxu0 %v5243
      %v5432 = vpop.f32.mrf.mxu0
      %v5433 = vadd.f32 0.0, %v5432
      %v5434 = vpop.f32.mrf.mxu0
      %5435 = vmatprep.mubr.f32.mxu0 0.0
      %5436 = vmatmul.mubr.f32.gmra.mxu0 %v5246
      %v5437 = vpop.f32.mrf.mxu0
      %v5438 = vadd.f32 0.0, %v5437
      %v5439 = vpop.f32.mrf.mxu0
      %5440 = vmatprep.mubr.f32.mxu0 0.0
      %5441 = vmatmul.mubr.f32.gmra.mxu0 %v5249
      %v5442 = vpop.f32.mrf.mxu0
      %v5443 = vadd.f32 0.0, %v5442
      %v5444 = vpop.f32.mrf.mxu0
      %5445 = vmatprep.mubr.f32.mxu0 0.0
      %5446 = vmatmul.mubr.f32.gmra.mxu0 %v5252
      %v5447 = vpop.f32.mrf.mxu0
      %v5448 = vadd.f32 0.0, %v5447
      %v5449 = vpop.f32.mrf.mxu0
      %5450 = vmatprep.mubr.f32.mxu0 0.0
      %5451 = vmatmul.mubr.f32.gmra.mxu0 %v5255
      %v5452 = vpop.f32.mrf.mxu0
      %v5453 = vadd.f32 0.0, %v5452
      %v5454 = vpop.f32.mrf.mxu0
      %5455 = vmatprep.mubr.f32.mxu0 0.0
      %5456 = vmatmul.mubr.f32.gmra.mxu0 %v5258
      %v5457 = vpop.f32.mrf.mxu0
      %v5458 = vadd.f32 0.0, %v5457
      %v5459 = vpop.f32.mrf.mxu0
      %5460 = vmatprep.mubr.f32.mxu0 0.0
      %5461 = vmatmul.mubr.f32.gmra.mxu0 %v5261
      %v5462 = vpop.f32.mrf.mxu0
      %v5463 = vadd.f32 0.0, %v5462
      %v5464 = vpop.f32.mrf.mxu0
      %5465 = vmatprep.mubr.f32.mxu0 0.0
      %5466 = vmatmul.mubr.f32.gmra.mxu0 %v5264
      %v5467 = vpop.f32.mrf.mxu0
      %v5468 = vadd.f32 0.0, %v5467
      %v5469 = vpop.f32.mrf.mxu0
      %5470 = vmatprep.mubr.f32.mxu0 0.0
      %5471 = vmatmul.mubr.f32.gmra.mxu0 %v5267
      %v5472 = vpop.f32.mrf.mxu0
      %v5473 = vadd.f32 0.0, %v5472
      %v5474 = vpop.f32.mrf.mxu0
      %5475 = vmatprep.mubr.f32.mxu0 0.0
      %5476 = vmatmul.mubr.f32.gmra.mxu0 %v5270
      %v5477 = vpop.f32.mrf.mxu0
      %v5478 = vadd.f32 0.0, %v5477
      %v5479 = vpop.f32.mrf.mxu0
      %5480 = vmatprep.mubr.f32.mxu0 0.0
      %5481 = vmatmul.mubr.f32.gmra.mxu0 %v5273
      %v5482 = vpop.f32.mrf.mxu0
      %v5483 = vadd.f32 0.0, %v5482
      %v5484 = vpop.f32.mrf.mxu0
      %5485 = vmatprep.mubr.f32.mxu0 0.0
      %5486 = vmatmul.mubr.f32.gmra.mxu0 %v5276
      %v5487 = vpop.f32.mrf.mxu0
      %v5488 = vadd.f32 0.0, %v5487
      %v5489 = vpop.f32.mrf.mxu0
      %5490 = vmatprep.mubr.f32.mxu0 0.0
      %5491 = vmatmul.mubr.f32.gmra.mxu0 %v5279
      %v5492 = vpop.f32.mrf.mxu0
      %v5493 = vadd.f32 0.0, %v5492
      %v5494 = vpop.f32.mrf.mxu0
      %5495 = vmatprep.mubr.f32.mxu0 0.0
      %5496 = vmatmul.mubr.f32.gmra.mxu0 %v5282
      %v5497 = vpop.f32.mrf.mxu0
      %v5498 = vadd.f32 0.0, %v5497
      %v5499 = vpop.f32.mrf.mxu0
      %5500 = vmatprep.mubr.f32.mxu0 0.0
      %5501 = vmatmul.mubr.f32.gmra.mxu0 %v5285
      %v5502 = vpop.f32.mrf.mxu0
      %v5503 = vadd.f32 0.0, %v5502
      %v5504 = vpop.f32.mrf.mxu0
      %5505 = vmatprep.mubr.f32.mxu0 0.0
      %5506 = vmatmul.mubr.f32.gmra.mxu0 %v5288
      %v5507 = vpop.f32.mrf.mxu0
      %v5508 = vadd.f32 0.0, %v5507
      %v5509 = vpop.f32.mrf.mxu0
      %5510 = vmatprep.mubr.f32.mxu0 0.0
      %5511 = vmatmul.mubr.f32.gmra.mxu0 %v5291
      %v5512 = vpop.f32.mrf.mxu0
      %v5513 = vadd.f32 0.0, %v5512
      %v5514 = vpop.f32.mrf.mxu0
      %5515 = vmatprep.mubr.f32.mxu0 0.0
      %5516 = vmatmul.mubr.f32.gmra.mxu0 %v5294
      %v5517 = vpop.f32.mrf.mxu0
      %v5518 = vadd.f32 0.0, %v5517
      %v5519 = vpop.f32.mrf.mxu0
      %5520 = vdwg.mxu0
      %v5521 = vadd.f32 %v5363, %v2161
      %v5522 = vadd.f32 %v5368, %v2162
      %v5523 = vadd.f32 %v5373, %v2163
      %v5524 = vadd.f32 %v5378, %v2164
      %v5525 = vadd.f32 %v5383, %v2165
      %v5526 = vadd.f32 %v5388, %v2166
      %v5527 = vadd.f32 %v5393, %v2167
      %v5528 = vadd.f32 %v5398, %v2168
      %v5529 = vadd.f32 %v5403, %v2169
      %v5530 = vadd.f32 %v5408, %v2170
      %v5531 = vadd.f32 %v5413, %v2171
      %v5532 = vadd.f32 %v5418, %v2172
      %v5533 = vadd.f32 %v5423, %v2173
      %v5534 = vadd.f32 %v5428, %v2174
      %v5535 = vadd.f32 %v5433, %v2175
      %v5536 = vadd.f32 %v5438, %v2176
      %v5537 = vadd.f32 %v5443, %v2177
      %v5538 = vadd.f32 %v5448, %v2178
      %v5539 = vadd.f32 %v5453, %v2179
      %v5540 = vadd.f32 %v5458, %v2180
      %v5541 = vadd.f32 %v5463, %v2181
      %v5542 = vadd.f32 %v5468, %v2182
      %v5543 = vadd.f32 %v5473, %v2183
      %v5544 = vadd.f32 %v5478, %v2184
      %v5545 = vadd.f32 %v5483, %v2185
      %v5546 = vadd.f32 %v5488, %v2186
      %v5547 = vadd.f32 %v5493, %v2187
      %v5548 = vadd.f32 %v5498, %v2188
      %v5549 = vadd.f32 %v5503, %v2189
      %v5550 = vadd.f32 %v5508, %v2190
      %v5551 = vadd.f32 %v5513, %v2191
      %v5552 = vadd.f32 %v5518, %v2192
      %v5553 = vld [vmem:[%s6] sm:$0x1]
      %v5554 = vld [vmem:[%s7] sm:$0x1]
      %v5556 = vlaneseq
      %v5557 = vshrl.u32 %v5556, 7
      %v5558 = vsub.s32 0, %v5557
      %v5559 = vrot.slane %v5553, %v5558
      %v5561 = vmul.f32 %v5521, %v5559
      %v5562 = vmul.f32 %v5522, %v5559
      %v5563 = vmul.f32 %v5523, %v5559
      %v5564 = vmul.f32 %v5524, %v5559
      %v5565 = vmul.f32 %v5525, %v5559
      %v5566 = vmul.f32 %v5526, %v5559
      %v5567 = vmul.f32 %v5527, %v5559
      %v5568 = vmul.f32 %v5528, %v5559
      %v5569 = vmul.f32 %v5529, %v5559
      %v5570 = vmul.f32 %v5530, %v5559
      %v5571 = vmul.f32 %v5531, %v5559
      %v5572 = vmul.f32 %v5532, %v5559
      %v5573 = vmul.f32 %v5533, %v5559
      %v5574 = vmul.f32 %v5534, %v5559
      %v5575 = vmul.f32 %v5535, %v5559
      %v5576 = vmul.f32 %v5536, %v5559
      %v5577 = vmul.f32 %v5537, %v5559
      %v5578 = vmul.f32 %v5538, %v5559
      %v5579 = vmul.f32 %v5539, %v5559
      %v5580 = vmul.f32 %v5540, %v5559
      %v5581 = vmul.f32 %v5541, %v5559
      %v5582 = vmul.f32 %v5542, %v5559
      %v5583 = vmul.f32 %v5543, %v5559
      %v5584 = vmul.f32 %v5544, %v5559
      %v5585 = vmul.f32 %v5545, %v5559
      %v5586 = vmul.f32 %v5546, %v5559
      %v5587 = vmul.f32 %v5547, %v5559
      %v5588 = vmul.f32 %v5548, %v5559
      %v5589 = vmul.f32 %v5549, %v5559
      %v5590 = vmul.f32 %v5550, %v5559
      %v5591 = vmul.f32 %v5551, %v5559
      %v5592 = vmul.f32 %v5552, %v5559
      %v5594 = vlaneseq
      %v5595 = vshrl.u32 %v5594, 7
      %v5596 = vsub.s32 0, %v5595
      %v5597 = vrot.slane %v5554, %v5596
      %v5599 = vadd.f32 %v5561, %v5597
      %v5600 = vadd.f32 %v5562, %v5597
      %v5601 = vadd.f32 %v5563, %v5597
      %v5602 = vadd.f32 %v5564, %v5597
      %v5603 = vadd.f32 %v5565, %v5597
      %v5604 = vadd.f32 %v5566, %v5597
      %v5605 = vadd.f32 %v5567, %v5597
      %v5606 = vadd.f32 %v5568, %v5597
      %v5607 = vadd.f32 %v5569, %v5597
      %v5608 = vadd.f32 %v5570, %v5597
      %v5609 = vadd.f32 %v5571, %v5597
      %v5610 = vadd.f32 %v5572, %v5597
      %v5611 = vadd.f32 %v5573, %v5597
      %v5612 = vadd.f32 %v5574, %v5597
      %v5613 = vadd.f32 %v5575, %v5597
      %v5614 = vadd.f32 %v5576, %v5597
      %v5615 = vadd.f32 %v5577, %v5597
      %v5616 = vadd.f32 %v5578, %v5597
      %v5617 = vadd.f32 %v5579, %v5597
      %v5618 = vadd.f32 %v5580, %v5597
      %v5619 = vadd.f32 %v5581, %v5597
      %v5620 = vadd.f32 %v5582, %v5597
      %v5621 = vadd.f32 %v5583, %v5597
      %v5622 = vadd.f32 %v5584, %v5597
      %v5623 = vadd.f32 %v5585, %v5597
      %v5624 = vadd.f32 %v5586, %v5597
      %v5625 = vadd.f32 %v5587, %v5597
      %v5626 = vadd.f32 %v5588, %v5597
      %v5627 = vadd.f32 %v5589, %v5597
      %v5628 = vadd.f32 %v5590, %v5597
      %v5629 = vadd.f32 %v5591, %v5597
      %v5630 = vadd.f32 %v5592, %v5597
      %v5631 = vmax.f32 %v5599, 0.0
      %v5632 = vmax.f32 %v5600, 0.0
      %v5633 = vmax.f32 %v5601, 0.0
      %v5634 = vmax.f32 %v5602, 0.0
      %v5635 = vmax.f32 %v5603, 0.0
      %v5636 = vmax.f32 %v5604, 0.0
      %v5637 = vmax.f32 %v5605, 0.0
      %v5638 = vmax.f32 %v5606, 0.0
      %v5639 = vmax.f32 %v5607, 0.0
      %v5640 = vmax.f32 %v5608, 0.0
      %v5641 = vmax.f32 %v5609, 0.0
      %v5642 = vmax.f32 %v5610, 0.0
      %v5643 = vmax.f32 %v5611, 0.0
      %v5644 = vmax.f32 %v5612, 0.0
      %v5645 = vmax.f32 %v5613, 0.0
      %v5646 = vmax.f32 %v5614, 0.0
      %v5647 = vmax.f32 %v5615, 0.0
      %v5648 = vmax.f32 %v5616, 0.0
      %v5649 = vmax.f32 %v5617, 0.0
      %v5650 = vmax.f32 %v5618, 0.0
      %v5651 = vmax.f32 %v5619, 0.0
      %v5652 = vmax.f32 %v5620, 0.0
      %v5653 = vmax.f32 %v5621, 0.0
      %v5654 = vmax.f32 %v5622, 0.0
      %v5655 = vmax.f32 %v5623, 0.0
      %v5656 = vmax.f32 %v5624, 0.0
      %v5657 = vmax.f32 %v5625, 0.0
      %v5658 = vmax.f32 %v5626, 0.0
      %v5659 = vmax.f32 %v5627, 0.0
      %v5660 = vmax.f32 %v5628, 0.0
      %v5661 = vmax.f32 %v5629, 0.0
      %v5662 = vmax.f32 %v5630, 0.0
      %v5663 = vld [vmem:[%s8] sm:$0xff]
      %v5664 = vld [vmem:[%s8 + $0x8] sm:$0xff]
      %v5665 = vld [vmem:[%s8 + $0x10] sm:$0xff]
      %v5666 = vld [vmem:[%s8 + $0x18] sm:$0xff]
      %v5667 = vld [vmem:[%s8 + $0x20] sm:$0xff]
      %v5668 = vld [vmem:[%s8 + $0x28] sm:$0xff]
      %v5669 = vld [vmem:[%s8 + $0x30] sm:$0xff]
      %v5670 = vld [vmem:[%s8 + $0x38] sm:$0xff]
      %v5671 = vld [vmem:[%s8 + $0x40] sm:$0xff]
      %v5672 = vld [vmem:[%s9] sm:$0x1]
      %v5689 = vrot.slane %v5662, 7
      %v5690 = vrot.slane %v5632, 7
      %v5691 = vrot.slane %v5634, 7
      %v5692 = vrot.slane %v5636, 7
      %v5693 = vrot.slane %v5638, 7
      %v5694 = vrot.slane %v5640, 7
      %v5695 = vrot.slane %v5642, 7
      %v5696 = vrot.slane %v5644, 7
      %v5697 = vrot.slane %v5646, 7
      %v5698 = vrot.slane %v5648, 7
      %v5699 = vrot.slane %v5650, 7
      %v5700 = vrot.slane %v5652, 7
      %v5701 = vrot.slane %v5654, 7
      %v5702 = vrot.slane %v5656, 7
      %v5703 = vrot.slane %v5658, 7
      %v5704 = vrot.slane %v5660, 7
      %v5737 = vrot.slane %v5661, 7
      %v5738 = vsel %vm570, %v5737, %v5689
      %v5739 = vrot.slane %v5631, 7
      %v5740 = vsel %vm570, %v5739, %v5690
      %v5741 = vrot.slane %v5633, 7
      %v5742 = vsel %vm570, %v5741, %v5691
      %v5743 = vrot.slane %v5635, 7
      %v5744 = vsel %vm570, %v5743, %v5692
      %v5745 = vrot.slane %v5637, 7
      %v5746 = vsel %vm570, %v5745, %v5693
      %v5747 = vrot.slane %v5639, 7
      %v5748 = vsel %vm570, %v5747, %v5694
      %v5749 = vrot.slane %v5641, 7
      %v5750 = vsel %vm570, %v5749, %v5695
      %v5751 = vrot.slane %v5643, 7
      %v5752 = vsel %vm570, %v5751, %v5696
      %v5753 = vrot.slane %v5645, 7
      %v5754 = vsel %vm570, %v5753, %v5697
      %v5755 = vrot.slane %v5647, 7
      %v5756 = vsel %vm570, %v5755, %v5698
      %v5757 = vrot.slane %v5649, 7
      %v5758 = vsel %vm570, %v5757, %v5699
      %v5759 = vrot.slane %v5651, 7
      %v5760 = vsel %vm570, %v5759, %v5700
      %v5761 = vrot.slane %v5653, 7
      %v5762 = vsel %vm570, %v5761, %v5701
      %v5763 = vrot.slane %v5655, 7
      %v5764 = vsel %vm570, %v5763, %v5702
      %v5765 = vrot.slane %v5657, 7
      %v5766 = vsel %vm570, %v5765, %v5703
      %v5767 = vrot.slane %v5659, 7
      %v5768 = vsel %vm570, %v5767, %v5704
      %v5801 = vsel %vm570, %v5689, %v5737
      %v5802 = vsel %vm570, %v5690, %v5739
      %v5803 = vsel %vm570, %v5691, %v5741
      %v5804 = vsel %vm570, %v5692, %v5743
      %v5805 = vsel %vm570, %v5693, %v5745
      %v5806 = vsel %vm570, %v5694, %v5747
      %v5807 = vsel %vm570, %v5695, %v5749
      %v5808 = vsel %vm570, %v5696, %v5751
      %v5809 = vsel %vm570, %v5697, %v5753
      %v5810 = vsel %vm570, %v5698, %v5755
      %v5811 = vsel %vm570, %v5699, %v5757
      %v5812 = vsel %vm570, %v5700, %v5759
      %v5813 = vsel %vm570, %v5701, %v5761
      %v5814 = vsel %vm570, %v5702, %v5763
      %v5815 = vsel %vm570, %v5703, %v5765
      %v5816 = vsel %vm570, %v5704, %v5767
      %v5833 = vrot.slane %v5801, 1
      %v5834 = vrot.slane %v5738, 1
      %v5835 = vsel %vm667, %v5833, %v5834
      %v5836 = vsel %vm667, %v5834, %v5833
      %v5837 = vrot.slane %v5802, 1
      %v5838 = vrot.slane %v5740, 1
      %v5839 = vsel %vm667, %v5837, %v5838
      %v5840 = vsel %vm667, %v5838, %v5837
      %v5841 = vrot.slane %v5803, 1
      %v5842 = vrot.slane %v5742, 1
      %v5843 = vsel %vm667, %v5841, %v5842
      %v5844 = vsel %vm667, %v5842, %v5841
      %v5845 = vrot.slane %v5804, 1
      %v5846 = vrot.slane %v5744, 1
      %v5847 = vsel %vm667, %v5845, %v5846
      %v5848 = vsel %vm667, %v5846, %v5845
      %v5849 = vrot.slane %v5805, 1
      %v5850 = vrot.slane %v5746, 1
      %v5851 = vsel %vm667, %v5849, %v5850
      %v5852 = vsel %vm667, %v5850, %v5849
      %v5853 = vrot.slane %v5806, 1
      %v5854 = vrot.slane %v5748, 1
      %v5855 = vsel %vm667, %v5853, %v5854
      %v5856 = vsel %vm667, %v5854, %v5853
      %v5857 = vrot.slane %v5807, 1
      %v5858 = vrot.slane %v5750, 1
      %v5859 = vsel %vm667, %v5857, %v5858
      %v5860 = vsel %vm667, %v5858, %v5857
      %v5861 = vrot.slane %v5808, 1
      %v5862 = vrot.slane %v5752, 1
      %v5863 = vsel %vm667, %v5861, %v5862
      %v5864 = vsel %vm667, %v5862, %v5861
      %v5865 = vrot.slane %v5809, 1
      %v5866 = vrot.slane %v5754, 1
      %v5867 = vsel %vm667, %v5865, %v5866
      %v5868 = vsel %vm667, %v5866, %v5865
      %v5869 = vrot.slane %v5810, 1
      %v5870 = vrot.slane %v5756, 1
      %v5871 = vsel %vm667, %v5869, %v5870
      %v5872 = vsel %vm667, %v5870, %v5869
      %v5873 = vrot.slane %v5811, 1
      %v5874 = vrot.slane %v5758, 1
      %v5875 = vsel %vm667, %v5873, %v5874
      %v5876 = vsel %vm667, %v5874, %v5873
      %v5877 = vrot.slane %v5812, 1
      %v5878 = vrot.slane %v5760, 1
      %v5879 = vsel %vm667, %v5877, %v5878
      %v5880 = vsel %vm667, %v5878, %v5877
      %v5881 = vrot.slane %v5813, 1
      %v5882 = vrot.slane %v5762, 1
      %v5883 = vsel %vm667, %v5881, %v5882
      %v5884 = vsel %vm667, %v5882, %v5881
      %v5885 = vrot.slane %v5814, 1
      %v5886 = vrot.slane %v5764, 1
      %v5887 = vsel %vm667, %v5885, %v5886
      %v5888 = vsel %vm667, %v5886, %v5885
      %v5889 = vrot.slane %v5815, 1
      %v5890 = vrot.slane %v5766, 1
      %v5891 = vsel %vm667, %v5889, %v5890
      %v5892 = vsel %vm667, %v5890, %v5889
      %v5893 = vrot.slane %v5816, 1
      %v5894 = vrot.slane %v5768, 1
      %v5895 = vsel %vm667, %v5893, %v5894
      %v5896 = vsel %vm667, %v5894, %v5893
      %5897 = vrot.lane.b32.xlu0 %v5835, 8
      %v5898 = vpop.permute.xlu0 %5897
      %5899 = vrot.lane.b32.xlu0 %v5836, 8
      %v5900 = vpop.permute.xlu0 %5899
      %5901 = vrot.lane.b32.xlu0 %v5839, 8
      %v5902 = vpop.permute.xlu0 %5901
      %5903 = vrot.lane.b32.xlu0 %v5840, 8
      %v5904 = vpop.permute.xlu0 %5903
      %5905 = vrot.lane.b32.xlu0 %v5843, 8
      %v5906 = vpop.permute.xlu0 %5905
      %5907 = vrot.lane.b32.xlu0 %v5844, 8
      %v5908 = vpop.permute.xlu0 %5907
      %5909 = vrot.lane.b32.xlu0 %v5847, 8
      %v5910 = vpop.permute.xlu0 %5909
      %5911 = vrot.lane.b32.xlu0 %v5848, 8
      %v5912 = vpop.permute.xlu0 %5911
      %5913 = vrot.lane.b32.xlu0 %v5851, 8
      %v5914 = vpop.permute.xlu0 %5913
      %5915 = vrot.lane.b32.xlu0 %v5852, 8
      %v5916 = vpop.permute.xlu0 %5915
      %5917 = vrot.lane.b32.xlu0 %v5855, 8
      %v5918 = vpop.permute.xlu0 %5917
      %5919 = vrot.lane.b32.xlu0 %v5856, 8
      %v5920 = vpop.permute.xlu0 %5919
      %5921 = vrot.lane.b32.xlu0 %v5859, 8
      %v5922 = vpop.permute.xlu0 %5921
      %5923 = vrot.lane.b32.xlu0 %v5860, 8
      %v5924 = vpop.permute.xlu0 %5923
      %5925 = vrot.lane.b32.xlu0 %v5863, 8
      %v5926 = vpop.permute.xlu0 %5925
      %5927 = vrot.lane.b32.xlu0 %v5864, 8
      %v5928 = vpop.permute.xlu0 %5927
      %5929 = vrot.lane.b32.xlu0 %v5867, 8
      %v5930 = vpop.permute.xlu0 %5929
      %5931 = vrot.lane.b32.xlu0 %v5868, 8
      %v5932 = vpop.permute.xlu0 %5931
      %5933 = vrot.lane.b32.xlu0 %v5871, 8
      %v5934 = vpop.permute.xlu0 %5933
      %5935 = vrot.lane.b32.xlu0 %v5872, 8
      %v5936 = vpop.permute.xlu0 %5935
      %5937 = vrot.lane.b32.xlu0 %v5875, 8
      %v5938 = vpop.permute.xlu0 %5937
      %5939 = vrot.lane.b32.xlu0 %v5876, 8
      %v5940 = vpop.permute.xlu0 %5939
      %5941 = vrot.lane.b32.xlu0 %v5879, 8
      %v5942 = vpop.permute.xlu0 %5941
      %5943 = vrot.lane.b32.xlu0 %v5880, 8
      %v5944 = vpop.permute.xlu0 %5943
      %5945 = vrot.lane.b32.xlu0 %v5883, 8
      %v5946 = vpop.permute.xlu0 %5945
      %5947 = vrot.lane.b32.xlu0 %v5884, 8
      %v5948 = vpop.permute.xlu0 %5947
      %5949 = vrot.lane.b32.xlu0 %v5887, 8
      %v5950 = vpop.permute.xlu0 %5949
      %5951 = vrot.lane.b32.xlu0 %v5888, 8
      %v5952 = vpop.permute.xlu0 %5951
      %5953 = vrot.lane.b32.xlu0 %v5891, 8
      %v5954 = vpop.permute.xlu0 %5953
      %5955 = vrot.lane.b32.xlu0 %v5892, 8
      %v5956 = vpop.permute.xlu0 %5955
      %5957 = vrot.lane.b32.xlu0 %v5895, 8
      %v5958 = vpop.permute.xlu0 %5957
      %5959 = vrot.lane.b32.xlu0 %v5896, 8
      %v5960 = vpop.permute.xlu0 %5959
      %v5993 = vrot.slane %v5801, 2
      %v5994 = vrot.slane %v5738, 2
      %v5995 = vsel %vm828, %v5993, %v5994
      %v5996 = vsel %vm828, %v5994, %v5993
      %v5997 = vrot.slane %v5802, 2
      %v5998 = vrot.slane %v5740, 2
      %v5999 = vsel %vm828, %v5997, %v5998
      %v6000 = vsel %vm828, %v5998, %v5997
      %v6001 = vrot.slane %v5803, 2
      %v6002 = vrot.slane %v5742, 2
      %v6003 = vsel %vm828, %v6001, %v6002
      %v6004 = vsel %vm828, %v6002, %v6001
      %v6005 = vrot.slane %v5804, 2
      %v6006 = vrot.slane %v5744, 2
      %v6007 = vsel %vm828, %v6005, %v6006
      %v6008 = vsel %vm828, %v6006, %v6005
      %v6009 = vrot.slane %v5805, 2
      %v6010 = vrot.slane %v5746, 2
      %v6011 = vsel %vm828, %v6009, %v6010
      %v6012 = vsel %vm828, %v6010, %v6009
      %v6013 = vrot.slane %v5806, 2
      %v6014 = vrot.slane %v5748, 2
      %v6015 = vsel %vm828, %v6013, %v6014
      %v6016 = vsel %vm828, %v6014, %v6013
      %v6017 = vrot.slane %v5807, 2
      %v6018 = vrot.slane %v5750, 2
      %v6019 = vsel %vm828, %v6017, %v6018
      %v6020 = vsel %vm828, %v6018, %v6017
      %v6021 = vrot.slane %v5808, 2
      %v6022 = vrot.slane %v5752, 2
      %v6023 = vsel %vm828, %v6021, %v6022
      %v6024 = vsel %vm828, %v6022, %v6021
      %v6025 = vrot.slane %v5809, 2
      %v6026 = vrot.slane %v5754, 2
      %v6027 = vsel %vm828, %v6025, %v6026
      %v6028 = vsel %vm828, %v6026, %v6025
      %v6029 = vrot.slane %v5810, 2
      %v6030 = vrot.slane %v5756, 2
      %v6031 = vsel %vm828, %v6029, %v6030
      %v6032 = vsel %vm828, %v6030, %v6029
      %v6033 = vrot.slane %v5811, 2
      %v6034 = vrot.slane %v5758, 2
      %v6035 = vsel %vm828, %v6033, %v6034
      %v6036 = vsel %vm828, %v6034, %v6033
      %v6037 = vrot.slane %v5812, 2
      %v6038 = vrot.slane %v5760, 2
      %v6039 = vsel %vm828, %v6037, %v6038
      %v6040 = vsel %vm828, %v6038, %v6037
      %v6041 = vrot.slane %v5813, 2
      %v6042 = vrot.slane %v5762, 2
      %v6043 = vsel %vm828, %v6041, %v6042
      %v6044 = vsel %vm828, %v6042, %v6041
      %v6045 = vrot.slane %v5814, 2
      %v6046 = vrot.slane %v5764, 2
      %v6047 = vsel %vm828, %v6045, %v6046
      %v6048 = vsel %vm828, %v6046, %v6045
      %v6049 = vrot.slane %v5815, 2
      %v6050 = vrot.slane %v5766, 2
      %v6051 = vsel %vm828, %v6049, %v6050
      %v6052 = vsel %vm828, %v6050, %v6049
      %v6053 = vrot.slane %v5816, 2
      %v6054 = vrot.slane %v5768, 2
      %v6055 = vsel %vm828, %v6053, %v6054
      %v6056 = vsel %vm828, %v6054, %v6053
      %6057 = vrot.lane.b32.xlu0 %v5995, 16
      %v6058 = vpop.permute.xlu0 %6057
      %6059 = vrot.lane.b32.xlu0 %v5996, 16
      %v6060 = vpop.permute.xlu0 %6059
      %6061 = vrot.lane.b32.xlu0 %v5999, 16
      %v6062 = vpop.permute.xlu0 %6061
      %6063 = vrot.lane.b32.xlu0 %v6000, 16
      %v6064 = vpop.permute.xlu0 %6063
      %6065 = vrot.lane.b32.xlu0 %v6003, 16
      %v6066 = vpop.permute.xlu0 %6065
      %6067 = vrot.lane.b32.xlu0 %v6004, 16
      %v6068 = vpop.permute.xlu0 %6067
      %6069 = vrot.lane.b32.xlu0 %v6007, 16
      %v6070 = vpop.permute.xlu0 %6069
      %6071 = vrot.lane.b32.xlu0 %v6008, 16
      %v6072 = vpop.permute.xlu0 %6071
      %6073 = vrot.lane.b32.xlu0 %v6011, 16
      %v6074 = vpop.permute.xlu0 %6073
      %6075 = vrot.lane.b32.xlu0 %v6012, 16
      %v6076 = vpop.permute.xlu0 %6075
      %6077 = vrot.lane.b32.xlu0 %v6015, 16
      %v6078 = vpop.permute.xlu0 %6077
      %6079 = vrot.lane.b32.xlu0 %v6016, 16
      %v6080 = vpop.permute.xlu0 %6079
      %6081 = vrot.lane.b32.xlu0 %v6019, 16
      %v6082 = vpop.permute.xlu0 %6081
      %6083 = vrot.lane.b32.xlu0 %v6020, 16
      %v6084 = vpop.permute.xlu0 %6083
      %6085 = vrot.lane.b32.xlu0 %v6023, 16
      %v6086 = vpop.permute.xlu0 %6085
      %6087 = vrot.lane.b32.xlu0 %v6024, 16
      %v6088 = vpop.permute.xlu0 %6087
      %6089 = vrot.lane.b32.xlu0 %v6027, 16
      %v6090 = vpop.permute.xlu0 %6089
      %6091 = vrot.lane.b32.xlu0 %v6028, 16
      %v6092 = vpop.permute.xlu0 %6091
      %6093 = vrot.lane.b32.xlu0 %v6031, 16
      %v6094 = vpop.permute.xlu0 %6093
      %6095 = vrot.lane.b32.xlu0 %v6032, 16
      %v6096 = vpop.permute.xlu0 %6095
      %6097 = vrot.lane.b32.xlu0 %v6035, 16
      %v6098 = vpop.permute.xlu0 %6097
      %6099 = vrot.lane.b32.xlu0 %v6036, 16
      %v6100 = vpop.permute.xlu0 %6099
      %6101 = vrot.lane.b32.xlu0 %v6039, 16
      %v6102 = vpop.permute.xlu0 %6101
      %6103 = vrot.lane.b32.xlu0 %v6040, 16
      %v6104 = vpop.permute.xlu0 %6103
      %6105 = vrot.lane.b32.xlu0 %v6043, 16
      %v6106 = vpop.permute.xlu0 %6105
      %6107 = vrot.lane.b32.xlu0 %v6044, 16
      %v6108 = vpop.permute.xlu0 %6107
      %6109 = vrot.lane.b32.xlu0 %v6047, 16
      %v6110 = vpop.permute.xlu0 %6109
      %6111 = vrot.lane.b32.xlu0 %v6048, 16
      %v6112 = vpop.permute.xlu0 %6111
      %6113 = vrot.lane.b32.xlu0 %v6051, 16
      %v6114 = vpop.permute.xlu0 %6113
      %6115 = vrot.lane.b32.xlu0 %v6052, 16
      %v6116 = vpop.permute.xlu0 %6115
      %6117 = vrot.lane.b32.xlu0 %v6055, 16
      %v6118 = vpop.permute.xlu0 %6117
      %6119 = vrot.lane.b32.xlu0 %v6056, 16
      %v6120 = vpop.permute.xlu0 %6119
      %6153 = vrot.lane.b32.xlu0 %v5802, 24
      %v6154 = vpop.permute.xlu0 %6153
      %6155 = vrot.lane.b32.xlu0 %v5740, 24
      %v6156 = vpop.permute.xlu0 %6155
      %6157 = vrot.lane.b32.xlu0 %v5803, 24
      %v6158 = vpop.permute.xlu0 %6157
      %6159 = vrot.lane.b32.xlu0 %v5742, 24
      %v6160 = vpop.permute.xlu0 %6159
      %6161 = vrot.lane.b32.xlu0 %v5804, 24
      %v6162 = vpop.permute.xlu0 %6161
      %6163 = vrot.lane.b32.xlu0 %v5744, 24
      %v6164 = vpop.permute.xlu0 %6163
      %6165 = vrot.lane.b32.xlu0 %v5805, 24
      %v6166 = vpop.permute.xlu0 %6165
      %6167 = vrot.lane.b32.xlu0 %v5746, 24
      %v6168 = vpop.permute.xlu0 %6167
      %6169 = vrot.lane.b32.xlu0 %v5806, 24
      %v6170 = vpop.permute.xlu0 %6169
      %6171 = vrot.lane.b32.xlu0 %v5748, 24
      %v6172 = vpop.permute.xlu0 %6171
      %6173 = vrot.lane.b32.xlu0 %v5807, 24
      %v6174 = vpop.permute.xlu0 %6173
      %6175 = vrot.lane.b32.xlu0 %v5750, 24
      %v6176 = vpop.permute.xlu0 %6175
      %6177 = vrot.lane.b32.xlu0 %v5808, 24
      %v6178 = vpop.permute.xlu0 %6177
      %6179 = vrot.lane.b32.xlu0 %v5752, 24
      %v6180 = vpop.permute.xlu0 %6179
      %6181 = vrot.lane.b32.xlu0 %v5809, 24
      %v6182 = vpop.permute.xlu0 %6181
      %6183 = vrot.lane.b32.xlu0 %v5754, 24
      %v6184 = vpop.permute.xlu0 %6183
      %6185 = vrot.lane.b32.xlu0 %v5810, 24
      %v6186 = vpop.permute.xlu0 %6185
      %6187 = vrot.lane.b32.xlu0 %v5756, 24
      %v6188 = vpop.permute.xlu0 %6187
      %6189 = vrot.lane.b32.xlu0 %v5811, 24
      %v6190 = vpop.permute.xlu0 %6189
      %6191 = vrot.lane.b32.xlu0 %v5758, 24
      %v6192 = vpop.permute.xlu0 %6191
      %6193 = vrot.lane.b32.xlu0 %v5812, 24
      %v6194 = vpop.permute.xlu0 %6193
      %6195 = vrot.lane.b32.xlu0 %v5760, 24
      %v6196 = vpop.permute.xlu0 %6195
      %6197 = vrot.lane.b32.xlu0 %v5813, 24
      %v6198 = vpop.permute.xlu0 %6197
      %6199 = vrot.lane.b32.xlu0 %v5762, 24
      %v6200 = vpop.permute.xlu0 %6199
      %6201 = vrot.lane.b32.xlu0 %v5814, 24
      %v6202 = vpop.permute.xlu0 %6201
      %6203 = vrot.lane.b32.xlu0 %v5764, 24
      %v6204 = vpop.permute.xlu0 %6203
      %6205 = vrot.lane.b32.xlu0 %v5815, 24
      %v6206 = vpop.permute.xlu0 %6205
      %6207 = vrot.lane.b32.xlu0 %v5766, 24
      %v6208 = vpop.permute.xlu0 %6207
      %6209 = vrot.lane.b32.xlu0 %v5816, 24
      %v6210 = vpop.permute.xlu0 %6209
      %6211 = vrot.lane.b32.xlu0 %v5768, 24
      %v6212 = vpop.permute.xlu0 %6211
      %6213 = vrot.lane.b32.xlu0 %v5801, 24
      %v6214 = vpop.permute.xlu0 %6213
      %6215 = vrot.lane.b32.xlu0 %v5738, 24
      %v6216 = vpop.permute.xlu0 %6215
      %6249 = vrot.lane.b32.xlu0 %v5839, 32
      %v6250 = vpop.permute.xlu0 %6249
      %6251 = vrot.lane.b32.xlu0 %v5840, 32
      %v6252 = vpop.permute.xlu0 %6251
      %6253 = vrot.lane.b32.xlu0 %v5843, 32
      %v6254 = vpop.permute.xlu0 %6253
      %6255 = vrot.lane.b32.xlu0 %v5844, 32
      %v6256 = vpop.permute.xlu0 %6255
      %6257 = vrot.lane.b32.xlu0 %v5847, 32
      %v6258 = vpop.permute.xlu0 %6257
      %6259 = vrot.lane.b32.xlu0 %v5848, 32
      %v6260 = vpop.permute.xlu0 %6259
      %6261 = vrot.lane.b32.xlu0 %v5851, 32
      %v6262 = vpop.permute.xlu0 %6261
      %6263 = vrot.lane.b32.xlu0 %v5852, 32
      %v6264 = vpop.permute.xlu0 %6263
      %6265 = vrot.lane.b32.xlu0 %v5855, 32
      %v6266 = vpop.permute.xlu0 %6265
      %6267 = vrot.lane.b32.xlu0 %v5856, 32
      %v6268 = vpop.permute.xlu0 %6267
      %6269 = vrot.lane.b32.xlu0 %v5859, 32
      %v6270 = vpop.permute.xlu0 %6269
      %6271 = vrot.lane.b32.xlu0 %v5860, 32
      %v6272 = vpop.permute.xlu0 %6271
      %6273 = vrot.lane.b32.xlu0 %v5863, 32
      %v6274 = vpop.permute.xlu0 %6273
      %6275 = vrot.lane.b32.xlu0 %v5864, 32
      %v6276 = vpop.permute.xlu0 %6275
      %6277 = vrot.lane.b32.xlu0 %v5867, 32
      %v6278 = vpop.permute.xlu0 %6277
      %6279 = vrot.lane.b32.xlu0 %v5868, 32
      %v6280 = vpop.permute.xlu0 %6279
      %6281 = vrot.lane.b32.xlu0 %v5871, 32
      %v6282 = vpop.permute.xlu0 %6281
      %6283 = vrot.lane.b32.xlu0 %v5872, 32
      %v6284 = vpop.permute.xlu0 %6283
      %6285 = vrot.lane.b32.xlu0 %v5875, 32
      %v6286 = vpop.permute.xlu0 %6285
      %6287 = vrot.lane.b32.xlu0 %v5876, 32
      %v6288 = vpop.permute.xlu0 %6287
      %6289 = vrot.lane.b32.xlu0 %v5879, 32
      %v6290 = vpop.permute.xlu0 %6289
      %6291 = vrot.lane.b32.xlu0 %v5880, 32
      %v6292 = vpop.permute.xlu0 %6291
      %6293 = vrot.lane.b32.xlu0 %v5883, 32
      %v6294 = vpop.permute.xlu0 %6293
      %6295 = vrot.lane.b32.xlu0 %v5884, 32
      %v6296 = vpop.permute.xlu0 %6295
      %6297 = vrot.lane.b32.xlu0 %v5887, 32
      %v6298 = vpop.permute.xlu0 %6297
      %6299 = vrot.lane.b32.xlu0 %v5888, 32
      %v6300 = vpop.permute.xlu0 %6299
      %6301 = vrot.lane.b32.xlu0 %v5891, 32
      %v6302 = vpop.permute.xlu0 %6301
      %6303 = vrot.lane.b32.xlu0 %v5892, 32
      %v6304 = vpop.permute.xlu0 %6303
      %6305 = vrot.lane.b32.xlu0 %v5895, 32
      %v6306 = vpop.permute.xlu0 %6305
      %6307 = vrot.lane.b32.xlu0 %v5896, 32
      %v6308 = vpop.permute.xlu0 %6307
      %6309 = vrot.lane.b32.xlu0 %v5835, 32
      %v6310 = vpop.permute.xlu0 %6309
      %6311 = vrot.lane.b32.xlu0 %v5836, 32
      %v6312 = vpop.permute.xlu0 %6311
      %6345 = vrot.lane.b32.xlu0 %v5999, 40
      %v6346 = vpop.permute.xlu0 %6345
      %6347 = vrot.lane.b32.xlu0 %v6000, 40
      %v6348 = vpop.permute.xlu0 %6347
      %6349 = vrot.lane.b32.xlu0 %v6003, 40
      %v6350 = vpop.permute.xlu0 %6349
      %6351 = vrot.lane.b32.xlu0 %v6004, 40
      %v6352 = vpop.permute.xlu0 %6351
      %6353 = vrot.lane.b32.xlu0 %v6007, 40
      %v6354 = vpop.permute.xlu0 %6353
      %6355 = vrot.lane.b32.xlu0 %v6008, 40
      %v6356 = vpop.permute.xlu0 %6355
      %6357 = vrot.lane.b32.xlu0 %v6011, 40
      %v6358 = vpop.permute.xlu0 %6357
      %6359 = vrot.lane.b32.xlu0 %v6012, 40
      %v6360 = vpop.permute.xlu0 %6359
      %6361 = vrot.lane.b32.xlu0 %v6015, 40
      %v6362 = vpop.permute.xlu0 %6361
      %6363 = vrot.lane.b32.xlu0 %v6016, 40
      %v6364 = vpop.permute.xlu0 %6363
      %6365 = vrot.lane.b32.xlu0 %v6019, 40
      %v6366 = vpop.permute.xlu0 %6365
      %6367 = vrot.lane.b32.xlu0 %v6020, 40
      %v6368 = vpop.permute.xlu0 %6367
      %6369 = vrot.lane.b32.xlu0 %v6023, 40
      %v6370 = vpop.permute.xlu0 %6369
      %6371 = vrot.lane.b32.xlu0 %v6024, 40
      %v6372 = vpop.permute.xlu0 %6371
      %6373 = vrot.lane.b32.xlu0 %v6027, 40
      %v6374 = vpop.permute.xlu0 %6373
      %6375 = vrot.lane.b32.xlu0 %v6028, 40
      %v6376 = vpop.permute.xlu0 %6375
      %6377 = vrot.lane.b32.xlu0 %v6031, 40
      %v6378 = vpop.permute.xlu0 %6377
      %6379 = vrot.lane.b32.xlu0 %v6032, 40
      %v6380 = vpop.permute.xlu0 %6379
      %6381 = vrot.lane.b32.xlu0 %v6035, 40
      %v6382 = vpop.permute.xlu0 %6381
      %6383 = vrot.lane.b32.xlu0 %v6036, 40
      %v6384 = vpop.permute.xlu0 %6383
      %6385 = vrot.lane.b32.xlu0 %v6039, 40
      %v6386 = vpop.permute.xlu0 %6385
      %6387 = vrot.lane.b32.xlu0 %v6040, 40
      %v6388 = vpop.permute.xlu0 %6387
      %6389 = vrot.lane.b32.xlu0 %v6043, 40
      %v6390 = vpop.permute.xlu0 %6389
      %6391 = vrot.lane.b32.xlu0 %v6044, 40
      %v6392 = vpop.permute.xlu0 %6391
      %6393 = vrot.lane.b32.xlu0 %v6047, 40
      %v6394 = vpop.permute.xlu0 %6393
      %6395 = vrot.lane.b32.xlu0 %v6048, 40
      %v6396 = vpop.permute.xlu0 %6395
      %6397 = vrot.lane.b32.xlu0 %v6051, 40
      %v6398 = vpop.permute.xlu0 %6397
      %6399 = vrot.lane.b32.xlu0 %v6052, 40
      %v6400 = vpop.permute.xlu0 %6399
      %6401 = vrot.lane.b32.xlu0 %v6055, 40
      %v6402 = vpop.permute.xlu0 %6401
      %6403 = vrot.lane.b32.xlu0 %v6056, 40
      %v6404 = vpop.permute.xlu0 %6403
      %6405 = vrot.lane.b32.xlu0 %v5995, 40
      %v6406 = vpop.permute.xlu0 %6405
      %6407 = vrot.lane.b32.xlu0 %v5996, 40
      %v6408 = vpop.permute.xlu0 %6407
      %6441 = vrot.lane.b32.xlu0 %v5803, 48
      %v6442 = vpop.permute.xlu0 %6441
      %6443 = vrot.lane.b32.xlu0 %v5742, 48
      %v6444 = vpop.permute.xlu0 %6443
      %6445 = vrot.lane.b32.xlu0 %v5804, 48
      %v6446 = vpop.permute.xlu0 %6445
      %6447 = vrot.lane.b32.xlu0 %v5744, 48
      %v6448 = vpop.permute.xlu0 %6447
      %6449 = vrot.lane.b32.xlu0 %v5805, 48
      %v6450 = vpop.permute.xlu0 %6449
      %6451 = vrot.lane.b32.xlu0 %v5746, 48
      %v6452 = vpop.permute.xlu0 %6451
      %6453 = vrot.lane.b32.xlu0 %v5806, 48
      %v6454 = vpop.permute.xlu0 %6453
      %6455 = vrot.lane.b32.xlu0 %v5748, 48
      %v6456 = vpop.permute.xlu0 %6455
      %6457 = vrot.lane.b32.xlu0 %v5807, 48
      %v6458 = vpop.permute.xlu0 %6457
      %6459 = vrot.lane.b32.xlu0 %v5750, 48
      %v6460 = vpop.permute.xlu0 %6459
      %6461 = vrot.lane.b32.xlu0 %v5808, 48
      %v6462 = vpop.permute.xlu0 %6461
      %6463 = vrot.lane.b32.xlu0 %v5752, 48
      %v6464 = vpop.permute.xlu0 %6463
      %6465 = vrot.lane.b32.xlu0 %v5809, 48
      %v6466 = vpop.permute.xlu0 %6465
      %6467 = vrot.lane.b32.xlu0 %v5754, 48
      %v6468 = vpop.permute.xlu0 %6467
      %6469 = vrot.lane.b32.xlu0 %v5810, 48
      %v6470 = vpop.permute.xlu0 %6469
      %6471 = vrot.lane.b32.xlu0 %v5756, 48
      %v6472 = vpop.permute.xlu0 %6471
      %6473 = vrot.lane.b32.xlu0 %v5811, 48
      %v6474 = vpop.permute.xlu0 %6473
      %6475 = vrot.lane.b32.xlu0 %v5758, 48
      %v6476 = vpop.permute.xlu0 %6475
      %6477 = vrot.lane.b32.xlu0 %v5812, 48
      %v6478 = vpop.permute.xlu0 %6477
      %6479 = vrot.lane.b32.xlu0 %v5760, 48
      %v6480 = vpop.permute.xlu0 %6479
      %6481 = vrot.lane.b32.xlu0 %v5813, 48
      %v6482 = vpop.permute.xlu0 %6481
      %6483 = vrot.lane.b32.xlu0 %v5762, 48
      %v6484 = vpop.permute.xlu0 %6483
      %6485 = vrot.lane.b32.xlu0 %v5814, 48
      %v6486 = vpop.permute.xlu0 %6485
      %6487 = vrot.lane.b32.xlu0 %v5764, 48
      %v6488 = vpop.permute.xlu0 %6487
      %6489 = vrot.lane.b32.xlu0 %v5815, 48
      %v6490 = vpop.permute.xlu0 %6489
      %6491 = vrot.lane.b32.xlu0 %v5766, 48
      %v6492 = vpop.permute.xlu0 %6491
      %6493 = vrot.lane.b32.xlu0 %v5816, 48
      %v6494 = vpop.permute.xlu0 %6493
      %6495 = vrot.lane.b32.xlu0 %v5768, 48
      %v6496 = vpop.permute.xlu0 %6495
      %6497 = vrot.lane.b32.xlu0 %v5801, 48
      %v6498 = vpop.permute.xlu0 %6497
      %6499 = vrot.lane.b32.xlu0 %v5738, 48
      %v6500 = vpop.permute.xlu0 %6499
      %6501 = vrot.lane.b32.xlu0 %v5802, 48
      %v6502 = vpop.permute.xlu0 %6501
      %6503 = vrot.lane.b32.xlu0 %v5740, 48
      %v6504 = vpop.permute.xlu0 %6503
      %6537 = vrot.lane.b32.xlu0 %v5843, 56
      %v6538 = vpop.permute.xlu0 %6537
      %6539 = vrot.lane.b32.xlu0 %v5844, 56
      %v6540 = vpop.permute.xlu0 %6539
      %6541 = vrot.lane.b32.xlu0 %v5847, 56
      %v6542 = vpop.permute.xlu0 %6541
      %6543 = vrot.lane.b32.xlu0 %v5848, 56
      %v6544 = vpop.permute.xlu0 %6543
      %6545 = vrot.lane.b32.xlu0 %v5851, 56
      %v6546 = vpop.permute.xlu0 %6545
      %6547 = vrot.lane.b32.xlu0 %v5852, 56
      %v6548 = vpop.permute.xlu0 %6547
      %6549 = vrot.lane.b32.xlu0 %v5855, 56
      %v6550 = vpop.permute.xlu0 %6549
      %6551 = vrot.lane.b32.xlu0 %v5856, 56
      %v6552 = vpop.permute.xlu0 %6551
      %6553 = vrot.lane.b32.xlu0 %v5859, 56
      %v6554 = vpop.permute.xlu0 %6553
      %6555 = vrot.lane.b32.xlu0 %v5860, 56
      %v6556 = vpop.permute.xlu0 %6555
      %6557 = vrot.lane.b32.xlu0 %v5863, 56
      %v6558 = vpop.permute.xlu0 %6557
      %6559 = vrot.lane.b32.xlu0 %v5864, 56
      %v6560 = vpop.permute.xlu0 %6559
      %6561 = vrot.lane.b32.xlu0 %v5867, 56
      %v6562 = vpop.permute.xlu0 %6561
      %6563 = vrot.lane.b32.xlu0 %v5868, 56
      %v6564 = vpop.permute.xlu0 %6563
      %6565 = vrot.lane.b32.xlu0 %v5871, 56
      %v6566 = vpop.permute.xlu0 %6565
      %6567 = vrot.lane.b32.xlu0 %v5872, 56
      %v6568 = vpop.permute.xlu0 %6567
      %6569 = vrot.lane.b32.xlu0 %v5875, 56
      %v6570 = vpop.permute.xlu0 %6569
      %6571 = vrot.lane.b32.xlu0 %v5876, 56
      %v6572 = vpop.permute.xlu0 %6571
      %6573 = vrot.lane.b32.xlu0 %v5879, 56
      %v6574 = vpop.permute.xlu0 %6573
      %6575 = vrot.lane.b32.xlu0 %v5880, 56
      %v6576 = vpop.permute.xlu0 %6575
      %6577 = vrot.lane.b32.xlu0 %v5883, 56
      %v6578 = vpop.permute.xlu0 %6577
      %6579 = vrot.lane.b32.xlu0 %v5884, 56
      %v6580 = vpop.permute.xlu0 %6579
      %6581 = vrot.lane.b32.xlu0 %v5887, 56
      %v6582 = vpop.permute.xlu0 %6581
      %6583 = vrot.lane.b32.xlu0 %v5888, 56
      %v6584 = vpop.permute.xlu0 %6583
      %6585 = vrot.lane.b32.xlu0 %v5891, 56
      %v6586 = vpop.permute.xlu0 %6585
      %6587 = vrot.lane.b32.xlu0 %v5892, 56
      %v6588 = vpop.permute.xlu0 %6587
      %6589 = vrot.lane.b32.xlu0 %v5895, 56
      %v6590 = vpop.permute.xlu0 %6589
      %6591 = vrot.lane.b32.xlu0 %v5896, 56
      %v6592 = vpop.permute.xlu0 %6591
      %6593 = vrot.lane.b32.xlu0 %v5835, 56
      %v6594 = vpop.permute.xlu0 %6593
      %6595 = vrot.lane.b32.xlu0 %v5836, 56
      %v6596 = vpop.permute.xlu0 %6595
      %6597 = vrot.lane.b32.xlu0 %v5839, 56
      %v6598 = vpop.permute.xlu0 %6597
      %6599 = vrot.lane.b32.xlu0 %v5840, 56
      %v6600 = vpop.permute.xlu0 %6599
      %6633 = vrot.lane.b32.xlu0 %v6003, 64
      %v6634 = vpop.permute.xlu0 %6633
      %6635 = vrot.lane.b32.xlu0 %v6004, 64
      %v6636 = vpop.permute.xlu0 %6635
      %6637 = vrot.lane.b32.xlu0 %v6007, 64
      %v6638 = vpop.permute.xlu0 %6637
      %6639 = vrot.lane.b32.xlu0 %v6008, 64
      %v6640 = vpop.permute.xlu0 %6639
      %6641 = vrot.lane.b32.xlu0 %v6011, 64
      %v6642 = vpop.permute.xlu0 %6641
      %6643 = vrot.lane.b32.xlu0 %v6012, 64
      %v6644 = vpop.permute.xlu0 %6643
      %6645 = vrot.lane.b32.xlu0 %v6015, 64
      %v6646 = vpop.permute.xlu0 %6645
      %6647 = vrot.lane.b32.xlu0 %v6016, 64
      %v6648 = vpop.permute.xlu0 %6647
      %6649 = vrot.lane.b32.xlu0 %v6019, 64
      %v6650 = vpop.permute.xlu0 %6649
      %6651 = vrot.lane.b32.xlu0 %v6020, 64
      %v6652 = vpop.permute.xlu0 %6651
      %6653 = vrot.lane.b32.xlu0 %v6023, 64
      %v6654 = vpop.permute.xlu0 %6653
      %6655 = vrot.lane.b32.xlu0 %v6024, 64
      %v6656 = vpop.permute.xlu0 %6655
      %6657 = vrot.lane.b32.xlu0 %v6027, 64
      %v6658 = vpop.permute.xlu0 %6657
      %6659 = vrot.lane.b32.xlu0 %v6028, 64
      %v6660 = vpop.permute.xlu0 %6659
      %6661 = vrot.lane.b32.xlu0 %v6031, 64
      %v6662 = vpop.permute.xlu0 %6661
      %6663 = vrot.lane.b32.xlu0 %v6032, 64
      %v6664 = vpop.permute.xlu0 %6663
      %6665 = vrot.lane.b32.xlu0 %v6035, 64
      %v6666 = vpop.permute.xlu0 %6665
      %6667 = vrot.lane.b32.xlu0 %v6036, 64
      %v6668 = vpop.permute.xlu0 %6667
      %6669 = vrot.lane.b32.xlu0 %v6039, 64
      %v6670 = vpop.permute.xlu0 %6669
      %6671 = vrot.lane.b32.xlu0 %v6040, 64
      %v6672 = vpop.permute.xlu0 %6671
      %6673 = vrot.lane.b32.xlu0 %v6043, 64
      %v6674 = vpop.permute.xlu0 %6673
      %6675 = vrot.lane.b32.xlu0 %v6044, 64
      %v6676 = vpop.permute.xlu0 %6675
      %6677 = vrot.lane.b32.xlu0 %v6047, 64
      %v6678 = vpop.permute.xlu0 %6677
      %6679 = vrot.lane.b32.xlu0 %v6048, 64
      %v6680 = vpop.permute.xlu0 %6679
      %6681 = vrot.lane.b32.xlu0 %v6051, 64
      %v6682 = vpop.permute.xlu0 %6681
      %6683 = vrot.lane.b32.xlu0 %v6052, 64
      %v6684 = vpop.permute.xlu0 %6683
      %6685 = vrot.lane.b32.xlu0 %v6055, 64
      %v6686 = vpop.permute.xlu0 %6685
      %6687 = vrot.lane.b32.xlu0 %v6056, 64
      %v6688 = vpop.permute.xlu0 %6687
      %6689 = vrot.lane.b32.xlu0 %v5995, 64
      %v6690 = vpop.permute.xlu0 %6689
      %6691 = vrot.lane.b32.xlu0 %v5996, 64
      %v6692 = vpop.permute.xlu0 %6691
      %6693 = vrot.lane.b32.xlu0 %v5999, 64
      %v6694 = vpop.permute.xlu0 %6693
      %6695 = vrot.lane.b32.xlu0 %v6000, 64
      %v6696 = vpop.permute.xlu0 %6695
      %v6729 = vsel %vm1598, %v5801, %v5898
      %v6730 = vsel %vm1598, %v5738, %v5900
      %v6731 = vsel %vm1598, %v5802, %v5902
      %v6732 = vsel %vm1598, %v5740, %v5904
      %v6733 = vsel %vm1598, %v5803, %v5906
      %v6734 = vsel %vm1598, %v5742, %v5908
      %v6735 = vsel %vm1598, %v5804, %v5910
      %v6736 = vsel %vm1598, %v5744, %v5912
      %v6737 = vsel %vm1598, %v5805, %v5914
      %v6738 = vsel %vm1598, %v5746, %v5916
      %v6739 = vsel %vm1598, %v5806, %v5918
      %v6740 = vsel %vm1598, %v5748, %v5920
      %v6741 = vsel %vm1598, %v5807, %v5922
      %v6742 = vsel %vm1598, %v5750, %v5924
      %v6743 = vsel %vm1598, %v5808, %v5926
      %v6744 = vsel %vm1598, %v5752, %v5928
      %v6745 = vsel %vm1598, %v5809, %v5930
      %v6746 = vsel %vm1598, %v5754, %v5932
      %v6747 = vsel %vm1598, %v5810, %v5934
      %v6748 = vsel %vm1598, %v5756, %v5936
      %v6749 = vsel %vm1598, %v5811, %v5938
      %v6750 = vsel %vm1598, %v5758, %v5940
      %v6751 = vsel %vm1598, %v5812, %v5942
      %v6752 = vsel %vm1598, %v5760, %v5944
      %v6753 = vsel %vm1598, %v5813, %v5946
      %v6754 = vsel %vm1598, %v5762, %v5948
      %v6755 = vsel %vm1598, %v5814, %v5950
      %v6756 = vsel %vm1598, %v5764, %v5952
      %v6757 = vsel %vm1598, %v5815, %v5954
      %v6758 = vsel %vm1598, %v5766, %v5956
      %v6759 = vsel %vm1598, %v5816, %v5958
      %v6760 = vsel %vm1598, %v5768, %v5960
      %v6761 = vsel %vm1664, %v6729, %v6058
      %v6762 = vsel %vm1664, %v6730, %v6060
      %v6763 = vsel %vm1664, %v6731, %v6062
      %v6764 = vsel %vm1664, %v6732, %v6064
      %v6765 = vsel %vm1664, %v6733, %v6066
      %v6766 = vsel %vm1664, %v6734, %v6068
      %v6767 = vsel %vm1664, %v6735, %v6070
      %v6768 = vsel %vm1664, %v6736, %v6072
      %v6769 = vsel %vm1664, %v6737, %v6074
      %v6770 = vsel %vm1664, %v6738, %v6076
      %v6771 = vsel %vm1664, %v6739, %v6078
      %v6772 = vsel %vm1664, %v6740, %v6080
      %v6773 = vsel %vm1664, %v6741, %v6082
      %v6774 = vsel %vm1664, %v6742, %v6084
      %v6775 = vsel %vm1664, %v6743, %v6086
      %v6776 = vsel %vm1664, %v6744, %v6088
      %v6777 = vsel %vm1664, %v6745, %v6090
      %v6778 = vsel %vm1664, %v6746, %v6092
      %v6779 = vsel %vm1664, %v6747, %v6094
      %v6780 = vsel %vm1664, %v6748, %v6096
      %v6781 = vsel %vm1664, %v6749, %v6098
      %v6782 = vsel %vm1664, %v6750, %v6100
      %v6783 = vsel %vm1664, %v6751, %v6102
      %v6784 = vsel %vm1664, %v6752, %v6104
      %v6785 = vsel %vm1664, %v6753, %v6106
      %v6786 = vsel %vm1664, %v6754, %v6108
      %v6787 = vsel %vm1664, %v6755, %v6110
      %v6788 = vsel %vm1664, %v6756, %v6112
      %v6789 = vsel %vm1664, %v6757, %v6114
      %v6790 = vsel %vm1664, %v6758, %v6116
      %v6791 = vsel %vm1664, %v6759, %v6118
      %v6792 = vsel %vm1664, %v6760, %v6120
      %v6793 = vsel %vm1730, %v6761, %v6154
      %v6794 = vsel %vm1730, %v6762, %v6156
      %v6795 = vsel %vm1730, %v6763, %v6158
      %v6796 = vsel %vm1730, %v6764, %v6160
      %v6797 = vsel %vm1730, %v6765, %v6162
      %v6798 = vsel %vm1730, %v6766, %v6164
      %v6799 = vsel %vm1730, %v6767, %v6166
      %v6800 = vsel %vm1730, %v6768, %v6168
      %v6801 = vsel %vm1730, %v6769, %v6170
      %v6802 = vsel %vm1730, %v6770, %v6172
      %v6803 = vsel %vm1730, %v6771, %v6174
      %v6804 = vsel %vm1730, %v6772, %v6176
      %v6805 = vsel %vm1730, %v6773, %v6178
      %v6806 = vsel %vm1730, %v6774, %v6180
      %v6807 = vsel %vm1730, %v6775, %v6182
      %v6808 = vsel %vm1730, %v6776, %v6184
      %v6809 = vsel %vm1730, %v6777, %v6186
      %v6810 = vsel %vm1730, %v6778, %v6188
      %v6811 = vsel %vm1730, %v6779, %v6190
      %v6812 = vsel %vm1730, %v6780, %v6192
      %v6813 = vsel %vm1730, %v6781, %v6194
      %v6814 = vsel %vm1730, %v6782, %v6196
      %v6815 = vsel %vm1730, %v6783, %v6198
      %v6816 = vsel %vm1730, %v6784, %v6200
      %v6817 = vsel %vm1730, %v6785, %v6202
      %v6818 = vsel %vm1730, %v6786, %v6204
      %v6819 = vsel %vm1730, %v6787, %v6206
      %v6820 = vsel %vm1730, %v6788, %v6208
      %v6821 = vsel %vm1730, %v6789, %v6210
      %v6822 = vsel %vm1730, %v6790, %v6212
      %v6823 = vsel %vm1730, %v6791, %v6214
      %v6824 = vsel %vm1730, %v6792, %v6216
      %v6825 = vsel %vm1796, %v6793, %v6250
      %v6826 = vsel %vm1796, %v6794, %v6252
      %v6827 = vsel %vm1796, %v6795, %v6254
      %v6828 = vsel %vm1796, %v6796, %v6256
      %v6829 = vsel %vm1796, %v6797, %v6258
      %v6830 = vsel %vm1796, %v6798, %v6260
      %v6831 = vsel %vm1796, %v6799, %v6262
      %v6832 = vsel %vm1796, %v6800, %v6264
      %v6833 = vsel %vm1796, %v6801, %v6266
      %v6834 = vsel %vm1796, %v6802, %v6268
      %v6835 = vsel %vm1796, %v6803, %v6270
      %v6836 = vsel %vm1796, %v6804, %v6272
      %v6837 = vsel %vm1796, %v6805, %v6274
      %v6838 = vsel %vm1796, %v6806, %v6276
      %v6839 = vsel %vm1796, %v6807, %v6278
      %v6840 = vsel %vm1796, %v6808, %v6280
      %v6841 = vsel %vm1796, %v6809, %v6282
      %v6842 = vsel %vm1796, %v6810, %v6284
      %v6843 = vsel %vm1796, %v6811, %v6286
      %v6844 = vsel %vm1796, %v6812, %v6288
      %v6845 = vsel %vm1796, %v6813, %v6290
      %v6846 = vsel %vm1796, %v6814, %v6292
      %v6847 = vsel %vm1796, %v6815, %v6294
      %v6848 = vsel %vm1796, %v6816, %v6296
      %v6849 = vsel %vm1796, %v6817, %v6298
      %v6850 = vsel %vm1796, %v6818, %v6300
      %v6851 = vsel %vm1796, %v6819, %v6302
      %v6852 = vsel %vm1796, %v6820, %v6304
      %v6853 = vsel %vm1796, %v6821, %v6306
      %v6854 = vsel %vm1796, %v6822, %v6308
      %v6855 = vsel %vm1796, %v6823, %v6310
      %v6856 = vsel %vm1796, %v6824, %v6312
      %v6857 = vsel %vm3387, %v6825, %v6346
      %v6858 = vsel %vm3387, %v6826, %v6348
      %v6859 = vsel %vm3387, %v6827, %v6350
      %v6860 = vsel %vm3387, %v6828, %v6352
      %v6861 = vsel %vm3387, %v6829, %v6354
      %v6862 = vsel %vm3387, %v6830, %v6356
      %v6863 = vsel %vm3387, %v6831, %v6358
      %v6864 = vsel %vm3387, %v6832, %v6360
      %v6865 = vsel %vm3387, %v6833, %v6362
      %v6866 = vsel %vm3387, %v6834, %v6364
      %v6867 = vsel %vm3387, %v6835, %v6366
      %v6868 = vsel %vm3387, %v6836, %v6368
      %v6869 = vsel %vm3387, %v6837, %v6370
      %v6870 = vsel %vm3387, %v6838, %v6372
      %v6871 = vsel %vm3387, %v6839, %v6374
      %v6872 = vsel %vm3387, %v6840, %v6376
      %v6873 = vsel %vm3387, %v6841, %v6378
      %v6874 = vsel %vm3387, %v6842, %v6380
      %v6875 = vsel %vm3387, %v6843, %v6382
      %v6876 = vsel %vm3387, %v6844, %v6384
      %v6877 = vsel %vm3387, %v6845, %v6386
      %v6878 = vsel %vm3387, %v6846, %v6388
      %v6879 = vsel %vm3387, %v6847, %v6390
      %v6880 = vsel %vm3387, %v6848, %v6392
      %v6881 = vsel %vm3387, %v6849, %v6394
      %v6882 = vsel %vm3387, %v6850, %v6396
      %v6883 = vsel %vm3387, %v6851, %v6398
      %v6884 = vsel %vm3387, %v6852, %v6400
      %v6885 = vsel %vm3387, %v6853, %v6402
      %v6886 = vsel %vm3387, %v6854, %v6404
      %v6887 = vsel %vm3387, %v6855, %v6406
      %v6888 = vsel %vm3387, %v6856, %v6408
      %v6889 = vsel %vm3420, %v6857, %v6442
      %v6890 = vsel %vm3420, %v6858, %v6444
      %v6891 = vsel %vm3420, %v6859, %v6446
      %v6892 = vsel %vm3420, %v6860, %v6448
      %v6893 = vsel %vm3420, %v6861, %v6450
      %v6894 = vsel %vm3420, %v6862, %v6452
      %v6895 = vsel %vm3420, %v6863, %v6454
      %v6896 = vsel %vm3420, %v6864, %v6456
      %v6897 = vsel %vm3420, %v6865, %v6458
      %v6898 = vsel %vm3420, %v6866, %v6460
      %v6899 = vsel %vm3420, %v6867, %v6462
      %v6900 = vsel %vm3420, %v6868, %v6464
      %v6901 = vsel %vm3420, %v6869, %v6466
      %v6902 = vsel %vm3420, %v6870, %v6468
      %v6903 = vsel %vm3420, %v6871, %v6470
      %v6904 = vsel %vm3420, %v6872, %v6472
      %v6905 = vsel %vm3420, %v6873, %v6474
      %v6906 = vsel %vm3420, %v6874, %v6476
      %v6907 = vsel %vm3420, %v6875, %v6478
      %v6908 = vsel %vm3420, %v6876, %v6480
      %v6909 = vsel %vm3420, %v6877, %v6482
      %v6910 = vsel %vm3420, %v6878, %v6484
      %v6911 = vsel %vm3420, %v6879, %v6486
      %v6912 = vsel %vm3420, %v6880, %v6488
      %v6913 = vsel %vm3420, %v6881, %v6490
      %v6914 = vsel %vm3420, %v6882, %v6492
      %v6915 = vsel %vm3420, %v6883, %v6494
      %v6916 = vsel %vm3420, %v6884, %v6496
      %v6917 = vsel %vm3420, %v6885, %v6498
      %v6918 = vsel %vm3420, %v6886, %v6500
      %v6919 = vsel %vm3420, %v6887, %v6502
      %v6920 = vsel %vm3420, %v6888, %v6504
      %v6921 = vsel %vm3453, %v6889, %v6538
      %v6922 = vsel %vm3453, %v6890, %v6540
      %v6923 = vsel %vm3453, %v6891, %v6542
      %v6924 = vsel %vm3453, %v6892, %v6544
      %v6925 = vsel %vm3453, %v6893, %v6546
      %v6926 = vsel %vm3453, %v6894, %v6548
      %v6927 = vsel %vm3453, %v6895, %v6550
      %v6928 = vsel %vm3453, %v6896, %v6552
      %v6929 = vsel %vm3453, %v6897, %v6554
      %v6930 = vsel %vm3453, %v6898, %v6556
      %v6931 = vsel %vm3453, %v6899, %v6558
      %v6932 = vsel %vm3453, %v6900, %v6560
      %v6933 = vsel %vm3453, %v6901, %v6562
      %v6934 = vsel %vm3453, %v6902, %v6564
      %v6935 = vsel %vm3453, %v6903, %v6566
      %v6936 = vsel %vm3453, %v6904, %v6568
      %v6937 = vsel %vm3453, %v6905, %v6570
      %v6938 = vsel %vm3453, %v6906, %v6572
      %v6939 = vsel %vm3453, %v6907, %v6574
      %v6940 = vsel %vm3453, %v6908, %v6576
      %v6941 = vsel %vm3453, %v6909, %v6578
      %v6942 = vsel %vm3453, %v6910, %v6580
      %v6943 = vsel %vm3453, %v6911, %v6582
      %v6944 = vsel %vm3453, %v6912, %v6584
      %v6945 = vsel %vm3453, %v6913, %v6586
      %v6946 = vsel %vm3453, %v6914, %v6588
      %v6947 = vsel %vm3453, %v6915, %v6590
      %v6948 = vsel %vm3453, %v6916, %v6592
      %v6949 = vsel %vm3453, %v6917, %v6594
      %v6950 = vsel %vm3453, %v6918, %v6596
      %v6951 = vsel %vm3453, %v6919, %v6598
      %v6952 = vsel %vm3453, %v6920, %v6600
      %v6953 = vsel %vm3486, %v6921, %v6634
      %v6954 = vsel %vm3486, %v6922, %v6636
      %v6955 = vsel %vm3486, %v6923, %v6638
      %v6956 = vsel %vm3486, %v6924, %v6640
      %v6957 = vsel %vm3486, %v6925, %v6642
      %v6958 = vsel %vm3486, %v6926, %v6644
      %v6959 = vsel %vm3486, %v6927, %v6646
      %v6960 = vsel %vm3486, %v6928, %v6648
      %v6961 = vsel %vm3486, %v6929, %v6650
      %v6962 = vsel %vm3486, %v6930, %v6652
      %v6963 = vsel %vm3486, %v6931, %v6654
      %v6964 = vsel %vm3486, %v6932, %v6656
      %v6965 = vsel %vm3486, %v6933, %v6658
      %v6966 = vsel %vm3486, %v6934, %v6660
      %v6967 = vsel %vm3486, %v6935, %v6662
      %v6968 = vsel %vm3486, %v6936, %v6664
      %v6969 = vsel %vm3486, %v6937, %v6666
      %v6970 = vsel %vm3486, %v6938, %v6668
      %v6971 = vsel %vm3486, %v6939, %v6670
      %v6972 = vsel %vm3486, %v6940, %v6672
      %v6973 = vsel %vm3486, %v6941, %v6674
      %v6974 = vsel %vm3486, %v6942, %v6676
      %v6975 = vsel %vm3486, %v6943, %v6678
      %v6976 = vsel %vm3486, %v6944, %v6680
      %v6977 = vsel %vm3486, %v6945, %v6682
      %v6978 = vsel %vm3486, %v6946, %v6684
      %v6979 = vsel %vm3486, %v6947, %v6686
      %v6980 = vsel %vm3486, %v6948, %v6688
      %v6981 = vsel %vm3486, %v6949, %v6690
      %v6982 = vsel %vm3486, %v6950, %v6692
      %v6983 = vsel %vm3486, %v6951, %v6694
      %v6984 = vsel %vm3486, %v6952, %v6696
      %v6986 = vlaneseq
      %v6987 = vshrl.u32 %v6986, 7
      %v6988 = vsub.s32 0, %v6987
      %v6989 = vrot.slane %v5672, %v6988
      %v6992 = vsel %vm3525, %v6953, 0
      %v6995 = vsel %vm3525, %v6954, 0
      %v6998 = vsel %vm3525, %v6955, 0
      %v7001 = vsel %vm3525, %v6956, 0
      %v7004 = vsel %vm3525, %v6957, 0
      %v7007 = vsel %vm3525, %v6958, 0
      %v7010 = vsel %vm3525, %v6959, 0
      %v7013 = vsel %vm3525, %v6960, 0
      %v7016 = vsel %vm3525, %v6961, 0
      %v7019 = vsel %vm3525, %v6962, 0
      %v7022 = vsel %vm3525, %v6963, 0
      %v7025 = vsel %vm3525, %v6964, 0
      %v7028 = vsel %vm3525, %v6965, 0
      %v7031 = vsel %vm3525, %v6966, 0
      %v7034 = vsel %vm3525, %v6967, 0
      %v7037 = vsel %vm3525, %v6968, 0
      %v7040 = vsel %vm3525, %v6969, 0
      %v7043 = vsel %vm3525, %v6970, 0
      %v7046 = vsel %vm3525, %v6971, 0
      %v7049 = vsel %vm3525, %v6972, 0
      %v7052 = vsel %vm3525, %v6973, 0
      %v7055 = vsel %vm3525, %v6974, 0
      %v7058 = vsel %vm3525, %v6975, 0
      %v7061 = vsel %vm3525, %v6976, 0
      %v7064 = vsel %vm3525, %v6977, 0
      %v7067 = vsel %vm3525, %v6978, 0
      %v7070 = vsel %vm3525, %v6979, 0
      %v7073 = vsel %vm3525, %v6980, 0
      %v7076 = vsel %vm3525, %v6981, 0
      %v7079 = vsel %vm3525, %v6982, 0
      %v7082 = vsel %vm3525, %v6983, 0
      %v7085 = vsel %vm3525, %v6984, 0
      %7087 = vmatprep.subr.mxu0 0.0
      %7088 = vmatpush1.msra.mxu0 0.0
      %7089 = vmatprep.subr.mxu0 0.0
      %7090 = vmatpush1.msra.mxu0 0.0
      %7091 = vmatprep.subr.mxu0 0.0
      %7092 = vmatpush1.msra.mxu0 0.0
      %7093 = vmatprep.subr.mxu0 0.0
      %7094 = vmatpush1.msra.mxu0 0.0
      %7095 = vmatprep.subr.mxu0 0.0
      %7096 = vmatpush1.msra.mxu0 0.0
      %7097 = vmatprep.subr.mxu0 0.0
      %7098 = vmatpush1.msra.mxu0 0.0
      %7099 = vmatprep.subr.mxu0 0.0
      %7100 = vmatpush1.msra.mxu0 0.0
      %7101 = vmatprep.subr.mxu0 0.0
      %7102 = vmatpush1.msra.mxu0 %v5671
      %7103 = vmatprep.subr.mxu0 0.0
      %7104 = vmatpush1.msra.mxu0 %v5670
      %7105 = vmatprep.subr.mxu0 0.0
      %7106 = vmatpush1.msra.mxu0 %v5669
      %7107 = vmatprep.subr.mxu0 0.0
      %7108 = vmatpush1.msra.mxu0 %v5668
      %7109 = vmatprep.subr.mxu0 0.0
      %7110 = vmatpush1.msra.mxu0 %v5667
      %7111 = vmatprep.subr.mxu0 0.0
      %7112 = vmatpush1.msra.mxu0 %v5666
      %7113 = vmatprep.subr.mxu0 0.0
      %7114 = vmatpush1.msra.mxu0 %v5665
      %7115 = vmatprep.subr.mxu0 0.0
      %7116 = vmatpush1.msra.mxu0 %v5664
      %7117 = vmatprep.subr.mxu0 0.0
      %7118 = vmatpush1.msra.mxu0 %v5663
      %7119 = vmatprep.subr.mxu0 0.0
      %7120 = vmatpush2.msra.mxu0 0.0
      %7121 = vmatprep.subr.mxu0 0.0
      %7122 = vmatpush2.msra.mxu0 0.0
      %7123 = vmatprep.subr.mxu0 0.0
      %7124 = vmatpush2.msra.mxu0 0.0
      %7125 = vmatprep.subr.mxu0 0.0
      %7126 = vmatpush2.msra.mxu0 0.0
      %7127 = vmatprep.subr.mxu0 0.0
      %7128 = vmatpush2.msra.mxu0 0.0
      %7129 = vmatprep.subr.mxu0 0.0
      %7130 = vmatpush2.msra.mxu0 0.0
      %7131 = vmatprep.subr.mxu0 0.0
      %7132 = vmatpush2.msra.mxu0 0.0
      %7133 = vmatprep.subr.mxu0 0.0
      %7134 = vmatpush2.msra.mxu0 0.0
      %7135 = vmatprep.subr.mxu0 0.0
      %7136 = vmatpush2.msra.mxu0 0.0
      %7137 = vmatprep.subr.mxu0 0.0
      %7138 = vmatpush2.msra.mxu0 0.0
      %7139 = vmatprep.subr.mxu0 0.0
      %7140 = vmatpush2.msra.mxu0 0.0
      %7141 = vmatprep.subr.mxu0 0.0
      %7142 = vmatpush2.msra.mxu0 0.0
      %7143 = vmatprep.subr.mxu0 0.0
      %7144 = vmatpush2.msra.mxu0 0.0
      %7145 = vmatprep.subr.mxu0 0.0
      %7146 = vmatpush2.msra.mxu0 0.0
      %7147 = vmatprep.subr.mxu0 0.0
      %7148 = vmatpush2.msra.mxu0 0.0
      %7149 = vmatprep.subr.mxu0 0.0
      %7150 = vmatpush2.msra.mxu0 0.0
      %7151 = vmatprep.mubr.f32.mxu0 0.0
      %7152 = vmatmul.mubr.f32.gmra.mxu0 %v6992
      %v7153 = vpop.f32.mrf.mxu0
      %v7154 = vadd.f32 %v6989, %v7153
      %v7155 = vpop.f32.mrf.mxu0
      %7156 = vmatprep.mubr.f32.mxu0 0.0
      %7157 = vmatmul.mubr.f32.gmra.mxu0 %v6995
      %v7158 = vpop.f32.mrf.mxu0
      %v7159 = vadd.f32 %v6989, %v7158
      %v7160 = vpop.f32.mrf.mxu0
      %7161 = vmatprep.mubr.f32.mxu0 0.0
      %7162 = vmatmul.mubr.f32.gmra.mxu0 %v6998
      %v7163 = vpop.f32.mrf.mxu0
      %v7164 = vadd.f32 %v6989, %v7163
      %v7165 = vpop.f32.mrf.mxu0
      %7166 = vmatprep.mubr.f32.mxu0 0.0
      %7167 = vmatmul.mubr.f32.gmra.mxu0 %v7001
      %v7168 = vpop.f32.mrf.mxu0
      %v7169 = vadd.f32 %v6989, %v7168
      %v7170 = vpop.f32.mrf.mxu0
      %7171 = vmatprep.mubr.f32.mxu0 0.0
      %7172 = vmatmul.mubr.f32.gmra.mxu0 %v7004
      %v7173 = vpop.f32.mrf.mxu0
      %v7174 = vadd.f32 %v6989, %v7173
      %v7175 = vpop.f32.mrf.mxu0
      %7176 = vmatprep.mubr.f32.mxu0 0.0
      %7177 = vmatmul.mubr.f32.gmra.mxu0 %v7007
      %v7178 = vpop.f32.mrf.mxu0
      %v7179 = vadd.f32 %v6989, %v7178
      %v7180 = vpop.f32.mrf.mxu0
      %7181 = vmatprep.mubr.f32.mxu0 0.0
      %7182 = vmatmul.mubr.f32.gmra.mxu0 %v7010
      %v7183 = vpop.f32.mrf.mxu0
      %v7184 = vadd.f32 %v6989, %v7183
      %v7185 = vpop.f32.mrf.mxu0
      %7186 = vmatprep.mubr.f32.mxu0 0.0
      %7187 = vmatmul.mubr.f32.gmra.mxu0 %v7013
      %v7188 = vpop.f32.mrf.mxu0
      %v7189 = vadd.f32 %v6989, %v7188
      %v7190 = vpop.f32.mrf.mxu0
      %7191 = vmatprep.mubr.f32.mxu0 0.0
      %7192 = vmatmul.mubr.f32.gmra.mxu0 %v7016
      %v7193 = vpop.f32.mrf.mxu0
      %v7194 = vadd.f32 %v6989, %v7193
      %v7195 = vpop.f32.mrf.mxu0
      %7196 = vmatprep.mubr.f32.mxu0 0.0
      %7197 = vmatmul.mubr.f32.gmra.mxu0 %v7019
      %v7198 = vpop.f32.mrf.mxu0
      %v7199 = vadd.f32 %v6989, %v7198
      %v7200 = vpop.f32.mrf.mxu0
      %7201 = vmatprep.mubr.f32.mxu0 0.0
      %7202 = vmatmul.mubr.f32.gmra.mxu0 %v7022
      %v7203 = vpop.f32.mrf.mxu0
      %v7204 = vadd.f32 %v6989, %v7203
      %v7205 = vpop.f32.mrf.mxu0
      %7206 = vmatprep.mubr.f32.mxu0 0.0
      %7207 = vmatmul.mubr.f32.gmra.mxu0 %v7025
      %v7208 = vpop.f32.mrf.mxu0
      %v7209 = vadd.f32 %v6989, %v7208
      %v7210 = vpop.f32.mrf.mxu0
      %7211 = vmatprep.mubr.f32.mxu0 0.0
      %7212 = vmatmul.mubr.f32.gmra.mxu0 %v7028
      %v7213 = vpop.f32.mrf.mxu0
      %v7214 = vadd.f32 %v6989, %v7213
      %v7215 = vpop.f32.mrf.mxu0
      %7216 = vmatprep.mubr.f32.mxu0 0.0
      %7217 = vmatmul.mubr.f32.gmra.mxu0 %v7031
      %v7218 = vpop.f32.mrf.mxu0
      %v7219 = vadd.f32 %v6989, %v7218
      %v7220 = vpop.f32.mrf.mxu0
      %7221 = vmatprep.mubr.f32.mxu0 0.0
      %7222 = vmatmul.mubr.f32.gmra.mxu0 %v7034
      %v7223 = vpop.f32.mrf.mxu0
      %v7224 = vadd.f32 %v6989, %v7223
      %v7225 = vpop.f32.mrf.mxu0
      %7226 = vmatprep.mubr.f32.mxu0 0.0
      %7227 = vmatmul.mubr.f32.gmra.mxu0 %v7037
      %v7228 = vpop.f32.mrf.mxu0
      %v7229 = vadd.f32 %v6989, %v7228
      %v7230 = vpop.f32.mrf.mxu0
      %7231 = vmatprep.mubr.f32.mxu0 0.0
      %7232 = vmatmul.mubr.f32.gmra.mxu0 %v7040
      %v7233 = vpop.f32.mrf.mxu0
      %v7234 = vadd.f32 %v6989, %v7233
      %v7235 = vpop.f32.mrf.mxu0
      %7236 = vmatprep.mubr.f32.mxu0 0.0
      %7237 = vmatmul.mubr.f32.gmra.mxu0 %v7043
      %v7238 = vpop.f32.mrf.mxu0
      %v7239 = vadd.f32 %v6989, %v7238
      %v7240 = vpop.f32.mrf.mxu0
      %7241 = vmatprep.mubr.f32.mxu0 0.0
      %7242 = vmatmul.mubr.f32.gmra.mxu0 %v7046
      %v7243 = vpop.f32.mrf.mxu0
      %v7244 = vadd.f32 %v6989, %v7243
      %v7245 = vpop.f32.mrf.mxu0
      %7246 = vmatprep.mubr.f32.mxu0 0.0
      %7247 = vmatmul.mubr.f32.gmra.mxu0 %v7049
      %v7248 = vpop.f32.mrf.mxu0
      %v7249 = vadd.f32 %v6989, %v7248
      %v7250 = vpop.f32.mrf.mxu0
      %7251 = vmatprep.mubr.f32.mxu0 0.0
      %7252 = vmatmul.mubr.f32.gmra.mxu0 %v7052
      %v7253 = vpop.f32.mrf.mxu0
      %v7254 = vadd.f32 %v6989, %v7253
      %v7255 = vpop.f32.mrf.mxu0
      %7256 = vmatprep.mubr.f32.mxu0 0.0
      %7257 = vmatmul.mubr.f32.gmra.mxu0 %v7055
      %v7258 = vpop.f32.mrf.mxu0
      %v7259 = vadd.f32 %v6989, %v7258
      %v7260 = vpop.f32.mrf.mxu0
      %7261 = vmatprep.mubr.f32.mxu0 0.0
      %7262 = vmatmul.mubr.f32.gmra.mxu0 %v7058
      %v7263 = vpop.f32.mrf.mxu0
      %v7264 = vadd.f32 %v6989, %v7263
      %v7265 = vpop.f32.mrf.mxu0
      %7266 = vmatprep.mubr.f32.mxu0 0.0
      %7267 = vmatmul.mubr.f32.gmra.mxu0 %v7061
      %v7268 = vpop.f32.mrf.mxu0
      %v7269 = vadd.f32 %v6989, %v7268
      %v7270 = vpop.f32.mrf.mxu0
      %7271 = vmatprep.mubr.f32.mxu0 0.0
      %7272 = vmatmul.mubr.f32.gmra.mxu0 %v7064
      %v7273 = vpop.f32.mrf.mxu0
      %v7274 = vadd.f32 %v6989, %v7273
      %v7275 = vpop.f32.mrf.mxu0
      %7276 = vmatprep.mubr.f32.mxu0 0.0
      %7277 = vmatmul.mubr.f32.gmra.mxu0 %v7067
      %v7278 = vpop.f32.mrf.mxu0
      %v7279 = vadd.f32 %v6989, %v7278
      %v7280 = vpop.f32.mrf.mxu0
      %7281 = vmatprep.mubr.f32.mxu0 0.0
      %7282 = vmatmul.mubr.f32.gmra.mxu0 %v7070
      %v7283 = vpop.f32.mrf.mxu0
      %v7284 = vadd.f32 %v6989, %v7283
      %v7285 = vpop.f32.mrf.mxu0
      %7286 = vmatprep.mubr.f32.mxu0 0.0
      %7287 = vmatmul.mubr.f32.gmra.mxu0 %v7073
      %v7288 = vpop.f32.mrf.mxu0
      %v7289 = vadd.f32 %v6989, %v7288
      %v7290 = vpop.f32.mrf.mxu0
      %7291 = vmatprep.mubr.f32.mxu0 0.0
      %7292 = vmatmul.mubr.f32.gmra.mxu0 %v7076
      %v7293 = vpop.f32.mrf.mxu0
      %v7294 = vadd.f32 %v6989, %v7293
      %v7295 = vpop.f32.mrf.mxu0
      %7296 = vmatprep.mubr.f32.mxu0 0.0
      %7297 = vmatmul.mubr.f32.gmra.mxu0 %v7079
      %v7298 = vpop.f32.mrf.mxu0
      %v7299 = vadd.f32 %v6989, %v7298
      %v7300 = vpop.f32.mrf.mxu0
      %7301 = vmatprep.mubr.f32.mxu0 0.0
      %7302 = vmatmul.mubr.f32.gmra.mxu0 %v7082
      %v7303 = vpop.f32.mrf.mxu0
      %v7304 = vadd.f32 %v6989, %v7303
      %v7305 = vpop.f32.mrf.mxu0
      %7306 = vmatprep.mubr.f32.mxu0 0.0
      %7307 = vmatmul.mubr.f32.gmra.mxu0 %v7085
      %v7308 = vpop.f32.mrf.mxu0
      %v7309 = vadd.f32 %v6989, %v7308
      %v7310 = vpop.f32.mrf.mxu0
      %7311 = vdwg.mxu0
      %v7312 = vmax.f32 %v7154, 0.0
      %v7313 = vmax.f32 %v7159, 0.0
      %v7314 = vmax.f32 %v7164, 0.0
      %v7315 = vmax.f32 %v7169, 0.0
      %v7316 = vmax.f32 %v7174, 0.0
      %v7317 = vmax.f32 %v7179, 0.0
      %v7318 = vmax.f32 %v7184, 0.0
      %v7319 = vmax.f32 %v7189, 0.0
      %v7320 = vmax.f32 %v7194, 0.0
      %v7321 = vmax.f32 %v7199, 0.0
      %v7322 = vmax.f32 %v7204, 0.0
      %v7323 = vmax.f32 %v7209, 0.0
      %v7324 = vmax.f32 %v7214, 0.0
      %v7325 = vmax.f32 %v7219, 0.0
      %v7326 = vmax.f32 %v7224, 0.0
      %v7327 = vmax.f32 %v7229, 0.0
      %v7328 = vmax.f32 %v7234, 0.0
      %v7329 = vmax.f32 %v7239, 0.0
      %v7330 = vmax.f32 %v7244, 0.0
      %v7331 = vmax.f32 %v7249, 0.0
      %v7332 = vmax.f32 %v7254, 0.0
      %v7333 = vmax.f32 %v7259, 0.0
      %v7334 = vmax.f32 %v7264, 0.0
      %v7335 = vmax.f32 %v7269, 0.0
      %v7336 = vmax.f32 %v7274, 0.0
      %v7337 = vmax.f32 %v7279, 0.0
      %v7338 = vmax.f32 %v7284, 0.0
      %v7339 = vmax.f32 %v7289, 0.0
      %v7340 = vmax.f32 %v7294, 0.0
      %v7341 = vmax.f32 %v7299, 0.0
      %v7342 = vmax.f32 %v7304, 0.0
      %v7343 = vmax.f32 %v7309, 0.0
      %v7344 = vld [vmem:[%s10] sm:$0xff]
      %v7345 = vld [vmem:[%s10 + $0x8] sm:$0xff]
      %v7346 = vld [vmem:[%s10 + $0x10] sm:$0xff]
      %v7347 = vld [vmem:[%s10 + $0x18] sm:$0xff]
      %v7348 = vld [vmem:[%s10 + $0x20] sm:$0xff]
      %v7349 = vld [vmem:[%s10 + $0x28] sm:$0xff]
      %v7350 = vld [vmem:[%s10 + $0x30] sm:$0xff]
      %v7351 = vld [vmem:[%s10 + $0x38] sm:$0xff]
      %v7352 = vld [vmem:[%s10 + $0x40] sm:$0xff]
      %v7353 = vld [vmem:[%s10 + $0x48] sm:$0xff]
      %v7354 = vld [vmem:[%s10 + $0x50] sm:$0xff]
      %v7355 = vld [vmem:[%s10 + $0x58] sm:$0xff]
      %v7356 = vld [vmem:[%s10 + $0x60] sm:$0xff]
      %v7357 = vld [vmem:[%s10 + $0x68] sm:$0xff]
      %v7358 = vld [vmem:[%s10 + $0x70] sm:$0xff]
      %v7359 = vld [vmem:[%s10 + $0x78] sm:$0xff]
      %v7360 = vld [vmem:[%s10 + $0x80] sm:$0xff]
      %v7361 = vld [vmem:[%s10 + $0x88] sm:$0xff]
      %v7378 = vrot.slane %v7343, 7
      %v7379 = vrot.slane %v7313, 7
      %v7380 = vrot.slane %v7315, 7
      %v7381 = vrot.slane %v7317, 7
      %v7382 = vrot.slane %v7319, 7
      %v7383 = vrot.slane %v7321, 7
      %v7384 = vrot.slane %v7323, 7
      %v7385 = vrot.slane %v7325, 7
      %v7386 = vrot.slane %v7327, 7
      %v7387 = vrot.slane %v7329, 7
      %v7388 = vrot.slane %v7331, 7
      %v7389 = vrot.slane %v7333, 7
      %v7390 = vrot.slane %v7335, 7
      %v7391 = vrot.slane %v7337, 7
      %v7392 = vrot.slane %v7339, 7
      %v7393 = vrot.slane %v7341, 7
      %v7426 = vrot.slane %v7342, 7
      %v7427 = vsel %vm570, %v7426, %v7378
      %v7428 = vrot.slane %v7312, 7
      %v7429 = vsel %vm570, %v7428, %v7379
      %v7430 = vrot.slane %v7314, 7
      %v7431 = vsel %vm570, %v7430, %v7380
      %v7432 = vrot.slane %v7316, 7
      %v7433 = vsel %vm570, %v7432, %v7381
      %v7434 = vrot.slane %v7318, 7
      %v7435 = vsel %vm570, %v7434, %v7382
      %v7436 = vrot.slane %v7320, 7
      %v7437 = vsel %vm570, %v7436, %v7383
      %v7438 = vrot.slane %v7322, 7
      %v7439 = vsel %vm570, %v7438, %v7384
      %v7440 = vrot.slane %v7324, 7
      %v7441 = vsel %vm570, %v7440, %v7385
      %v7442 = vrot.slane %v7326, 7
      %v7443 = vsel %vm570, %v7442, %v7386
      %v7444 = vrot.slane %v7328, 7
      %v7445 = vsel %vm570, %v7444, %v7387
      %v7446 = vrot.slane %v7330, 7
      %v7447 = vsel %vm570, %v7446, %v7388
      %v7448 = vrot.slane %v7332, 7
      %v7449 = vsel %vm570, %v7448, %v7389
      %v7450 = vrot.slane %v7334, 7
      %v7451 = vsel %vm570, %v7450, %v7390
      %v7452 = vrot.slane %v7336, 7
      %v7453 = vsel %vm570, %v7452, %v7391
      %v7454 = vrot.slane %v7338, 7
      %v7455 = vsel %vm570, %v7454, %v7392
      %v7456 = vrot.slane %v7340, 7
      %v7457 = vsel %vm570, %v7456, %v7393
      %v7490 = vsel %vm570, %v7378, %v7426
      %v7491 = vsel %vm570, %v7379, %v7428
      %v7492 = vsel %vm570, %v7380, %v7430
      %v7493 = vsel %vm570, %v7381, %v7432
      %v7494 = vsel %vm570, %v7382, %v7434
      %v7495 = vsel %vm570, %v7383, %v7436
      %v7496 = vsel %vm570, %v7384, %v7438
      %v7497 = vsel %vm570, %v7385, %v7440
      %v7498 = vsel %vm570, %v7386, %v7442
      %v7499 = vsel %vm570, %v7387, %v7444
      %v7500 = vsel %vm570, %v7388, %v7446
      %v7501 = vsel %vm570, %v7389, %v7448
      %v7502 = vsel %vm570, %v7390, %v7450
      %v7503 = vsel %vm570, %v7391, %v7452
      %v7504 = vsel %vm570, %v7392, %v7454
      %v7505 = vsel %vm570, %v7393, %v7456
      %v7522 = vrot.slane %v7490, 1
      %v7523 = vrot.slane %v7427, 1
      %v7524 = vsel %vm667, %v7522, %v7523
      %v7525 = vsel %vm667, %v7523, %v7522
      %v7526 = vrot.slane %v7491, 1
      %v7527 = vrot.slane %v7429, 1
      %v7528 = vsel %vm667, %v7526, %v7527
      %v7529 = vsel %vm667, %v7527, %v7526
      %v7530 = vrot.slane %v7492, 1
      %v7531 = vrot.slane %v7431, 1
      %v7532 = vsel %vm667, %v7530, %v7531
      %v7533 = vsel %vm667, %v7531, %v7530
      %v7534 = vrot.slane %v7493, 1
      %v7535 = vrot.slane %v7433, 1
      %v7536 = vsel %vm667, %v7534, %v7535
      %v7537 = vsel %vm667, %v7535, %v7534
      %v7538 = vrot.slane %v7494, 1
      %v7539 = vrot.slane %v7435, 1
      %v7540 = vsel %vm667, %v7538, %v7539
      %v7541 = vsel %vm667, %v7539, %v7538
      %v7542 = vrot.slane %v7495, 1
      %v7543 = vrot.slane %v7437, 1
      %v7544 = vsel %vm667, %v7542, %v7543
      %v7545 = vsel %vm667, %v7543, %v7542
      %v7546 = vrot.slane %v7496, 1
      %v7547 = vrot.slane %v7439, 1
      %v7548 = vsel %vm667, %v7546, %v7547
      %v7549 = vsel %vm667, %v7547, %v7546
      %v7550 = vrot.slane %v7497, 1
      %v7551 = vrot.slane %v7441, 1
      %v7552 = vsel %vm667, %v7550, %v7551
      %v7553 = vsel %vm667, %v7551, %v7550
      %v7554 = vrot.slane %v7498, 1
      %v7555 = vrot.slane %v7443, 1
      %v7556 = vsel %vm667, %v7554, %v7555
      %v7557 = vsel %vm667, %v7555, %v7554
      %v7558 = vrot.slane %v7499, 1
      %v7559 = vrot.slane %v7445, 1
      %v7560 = vsel %vm667, %v7558, %v7559
      %v7561 = vsel %vm667, %v7559, %v7558
      %v7562 = vrot.slane %v7500, 1
      %v7563 = vrot.slane %v7447, 1
      %v7564 = vsel %vm667, %v7562, %v7563
      %v7565 = vsel %vm667, %v7563, %v7562
      %v7566 = vrot.slane %v7501, 1
      %v7567 = vrot.slane %v7449, 1
      %v7568 = vsel %vm667, %v7566, %v7567
      %v7569 = vsel %vm667, %v7567, %v7566
      %v7570 = vrot.slane %v7502, 1
      %v7571 = vrot.slane %v7451, 1
      %v7572 = vsel %vm667, %v7570, %v7571
      %v7573 = vsel %vm667, %v7571, %v7570
      %v7574 = vrot.slane %v7503, 1
      %v7575 = vrot.slane %v7453, 1
      %v7576 = vsel %vm667, %v7574, %v7575
      %v7577 = vsel %vm667, %v7575, %v7574
      %v7578 = vrot.slane %v7504, 1
      %v7579 = vrot.slane %v7455, 1
      %v7580 = vsel %vm667, %v7578, %v7579
      %v7581 = vsel %vm667, %v7579, %v7578
      %v7582 = vrot.slane %v7505, 1
      %v7583 = vrot.slane %v7457, 1
      %v7584 = vsel %vm667, %v7582, %v7583
      %v7585 = vsel %vm667, %v7583, %v7582
      %7586 = vrot.lane.b32.xlu0 %v7524, 16
      %v7587 = vpop.permute.xlu0 %7586
      %7588 = vrot.lane.b32.xlu0 %v7525, 16
      %v7589 = vpop.permute.xlu0 %7588
      %7590 = vrot.lane.b32.xlu0 %v7528, 16
      %v7591 = vpop.permute.xlu0 %7590
      %7592 = vrot.lane.b32.xlu0 %v7529, 16
      %v7593 = vpop.permute.xlu0 %7592
      %7594 = vrot.lane.b32.xlu0 %v7532, 16
      %v7595 = vpop.permute.xlu0 %7594
      %7596 = vrot.lane.b32.xlu0 %v7533, 16
      %v7597 = vpop.permute.xlu0 %7596
      %7598 = vrot.lane.b32.xlu0 %v7536, 16
      %v7599 = vpop.permute.xlu0 %7598
      %7600 = vrot.lane.b32.xlu0 %v7537, 16
      %v7601 = vpop.permute.xlu0 %7600
      %7602 = vrot.lane.b32.xlu0 %v7540, 16
      %v7603 = vpop.permute.xlu0 %7602
      %7604 = vrot.lane.b32.xlu0 %v7541, 16
      %v7605 = vpop.permute.xlu0 %7604
      %7606 = vrot.lane.b32.xlu0 %v7544, 16
      %v7607 = vpop.permute.xlu0 %7606
      %7608 = vrot.lane.b32.xlu0 %v7545, 16
      %v7609 = vpop.permute.xlu0 %7608
      %7610 = vrot.lane.b32.xlu0 %v7548, 16
      %v7611 = vpop.permute.xlu0 %7610
      %7612 = vrot.lane.b32.xlu0 %v7549, 16
      %v7613 = vpop.permute.xlu0 %7612
      %7614 = vrot.lane.b32.xlu0 %v7552, 16
      %v7615 = vpop.permute.xlu0 %7614
      %7616 = vrot.lane.b32.xlu0 %v7553, 16
      %v7617 = vpop.permute.xlu0 %7616
      %7618 = vrot.lane.b32.xlu0 %v7556, 16
      %v7619 = vpop.permute.xlu0 %7618
      %7620 = vrot.lane.b32.xlu0 %v7557, 16
      %v7621 = vpop.permute.xlu0 %7620
      %7622 = vrot.lane.b32.xlu0 %v7560, 16
      %v7623 = vpop.permute.xlu0 %7622
      %7624 = vrot.lane.b32.xlu0 %v7561, 16
      %v7625 = vpop.permute.xlu0 %7624
      %7626 = vrot.lane.b32.xlu0 %v7564, 16
      %v7627 = vpop.permute.xlu0 %7626
      %7628 = vrot.lane.b32.xlu0 %v7565, 16
      %v7629 = vpop.permute.xlu0 %7628
      %7630 = vrot.lane.b32.xlu0 %v7568, 16
      %v7631 = vpop.permute.xlu0 %7630
      %7632 = vrot.lane.b32.xlu0 %v7569, 16
      %v7633 = vpop.permute.xlu0 %7632
      %7634 = vrot.lane.b32.xlu0 %v7572, 16
      %v7635 = vpop.permute.xlu0 %7634
      %7636 = vrot.lane.b32.xlu0 %v7573, 16
      %v7637 = vpop.permute.xlu0 %7636
      %7638 = vrot.lane.b32.xlu0 %v7576, 16
      %v7639 = vpop.permute.xlu0 %7638
      %7640 = vrot.lane.b32.xlu0 %v7577, 16
      %v7641 = vpop.permute.xlu0 %7640
      %7642 = vrot.lane.b32.xlu0 %v7580, 16
      %v7643 = vpop.permute.xlu0 %7642
      %7644 = vrot.lane.b32.xlu0 %v7581, 16
      %v7645 = vpop.permute.xlu0 %7644
      %7646 = vrot.lane.b32.xlu0 %v7584, 16
      %v7647 = vpop.permute.xlu0 %7646
      %7648 = vrot.lane.b32.xlu0 %v7585, 16
      %v7649 = vpop.permute.xlu0 %7648
      %v7682 = vrot.slane %v7490, 2
      %v7683 = vrot.slane %v7427, 2
      %v7684 = vsel %vm828, %v7682, %v7683
      %v7685 = vsel %vm828, %v7683, %v7682
      %v7686 = vrot.slane %v7491, 2
      %v7687 = vrot.slane %v7429, 2
      %v7688 = vsel %vm828, %v7686, %v7687
      %v7689 = vsel %vm828, %v7687, %v7686
      %v7690 = vrot.slane %v7492, 2
      %v7691 = vrot.slane %v7431, 2
      %v7692 = vsel %vm828, %v7690, %v7691
      %v7693 = vsel %vm828, %v7691, %v7690
      %v7694 = vrot.slane %v7493, 2
      %v7695 = vrot.slane %v7433, 2
      %v7696 = vsel %vm828, %v7694, %v7695
      %v7697 = vsel %vm828, %v7695, %v7694
      %v7698 = vrot.slane %v7494, 2
      %v7699 = vrot.slane %v7435, 2
      %v7700 = vsel %vm828, %v7698, %v7699
      %v7701 = vsel %vm828, %v7699, %v7698
      %v7702 = vrot.slane %v7495, 2
      %v7703 = vrot.slane %v7437, 2
      %v7704 = vsel %vm828, %v7702, %v7703
      %v7705 = vsel %vm828, %v7703, %v7702
      %v7706 = vrot.slane %v7496, 2
      %v7707 = vrot.slane %v7439, 2
      %v7708 = vsel %vm828, %v7706, %v7707
      %v7709 = vsel %vm828, %v7707, %v7706
      %v7710 = vrot.slane %v7497, 2
      %v7711 = vrot.slane %v7441, 2
      %v7712 = vsel %vm828, %v7710, %v7711
      %v7713 = vsel %vm828, %v7711, %v7710
      %v7714 = vrot.slane %v7498, 2
      %v7715 = vrot.slane %v7443, 2
      %v7716 = vsel %vm828, %v7714, %v7715
      %v7717 = vsel %vm828, %v7715, %v7714
      %v7718 = vrot.slane %v7499, 2
      %v7719 = vrot.slane %v7445, 2
      %v7720 = vsel %vm828, %v7718, %v7719
      %v7721 = vsel %vm828, %v7719, %v7718
      %v7722 = vrot.slane %v7500, 2
      %v7723 = vrot.slane %v7447, 2
      %v7724 = vsel %vm828, %v7722, %v7723
      %v7725 = vsel %vm828, %v7723, %v7722
      %v7726 = vrot.slane %v7501, 2
      %v7727 = vrot.slane %v7449, 2
      %v7728 = vsel %vm828, %v7726, %v7727
      %v7729 = vsel %vm828, %v7727, %v7726
      %v7730 = vrot.slane %v7502, 2
      %v7731 = vrot.slane %v7451, 2
      %v7732 = vsel %vm828, %v7730, %v7731
      %v7733 = vsel %vm828, %v7731, %v7730
      %v7734 = vrot.slane %v7503, 2
      %v7735 = vrot.slane %v7453, 2
      %v7736 = vsel %vm828, %v7734, %v7735
      %v7737 = vsel %vm828, %v7735, %v7734
      %v7738 = vrot.slane %v7504, 2
      %v7739 = vrot.slane %v7455, 2
      %v7740 = vsel %vm828, %v7738, %v7739
      %v7741 = vsel %vm828, %v7739, %v7738
      %v7742 = vrot.slane %v7505, 2
      %v7743 = vrot.slane %v7457, 2
      %v7744 = vsel %vm828, %v7742, %v7743
      %v7745 = vsel %vm828, %v7743, %v7742
      %7746 = vrot.lane.b32.xlu0 %v7684, 32
      %v7747 = vpop.permute.xlu0 %7746
      %7748 = vrot.lane.b32.xlu0 %v7685, 32
      %v7749 = vpop.permute.xlu0 %7748
      %7750 = vrot.lane.b32.xlu0 %v7688, 32
      %v7751 = vpop.permute.xlu0 %7750
      %7752 = vrot.lane.b32.xlu0 %v7689, 32
      %v7753 = vpop.permute.xlu0 %7752
      %7754 = vrot.lane.b32.xlu0 %v7692, 32
      %v7755 = vpop.permute.xlu0 %7754
      %7756 = vrot.lane.b32.xlu0 %v7693, 32
      %v7757 = vpop.permute.xlu0 %7756
      %7758 = vrot.lane.b32.xlu0 %v7696, 32
      %v7759 = vpop.permute.xlu0 %7758
      %7760 = vrot.lane.b32.xlu0 %v7697, 32
      %v7761 = vpop.permute.xlu0 %7760
      %7762 = vrot.lane.b32.xlu0 %v7700, 32
      %v7763 = vpop.permute.xlu0 %7762
      %7764 = vrot.lane.b32.xlu0 %v7701, 32
      %v7765 = vpop.permute.xlu0 %7764
      %7766 = vrot.lane.b32.xlu0 %v7704, 32
      %v7767 = vpop.permute.xlu0 %7766
      %7768 = vrot.lane.b32.xlu0 %v7705, 32
      %v7769 = vpop.permute.xlu0 %7768
      %7770 = vrot.lane.b32.xlu0 %v7708, 32
      %v7771 = vpop.permute.xlu0 %7770
      %7772 = vrot.lane.b32.xlu0 %v7709, 32
      %v7773 = vpop.permute.xlu0 %7772
      %7774 = vrot.lane.b32.xlu0 %v7712, 32
      %v7775 = vpop.permute.xlu0 %7774
      %7776 = vrot.lane.b32.xlu0 %v7713, 32
      %v7777 = vpop.permute.xlu0 %7776
      %7778 = vrot.lane.b32.xlu0 %v7716, 32
      %v7779 = vpop.permute.xlu0 %7778
      %7780 = vrot.lane.b32.xlu0 %v7717, 32
      %v7781 = vpop.permute.xlu0 %7780
      %7782 = vrot.lane.b32.xlu0 %v7720, 32
      %v7783 = vpop.permute.xlu0 %7782
      %7784 = vrot.lane.b32.xlu0 %v7721, 32
      %v7785 = vpop.permute.xlu0 %7784
      %7786 = vrot.lane.b32.xlu0 %v7724, 32
      %v7787 = vpop.permute.xlu0 %7786
      %7788 = vrot.lane.b32.xlu0 %v7725, 32
      %v7789 = vpop.permute.xlu0 %7788
      %7790 = vrot.lane.b32.xlu0 %v7728, 32
      %v7791 = vpop.permute.xlu0 %7790
      %7792 = vrot.lane.b32.xlu0 %v7729, 32
      %v7793 = vpop.permute.xlu0 %7792
      %7794 = vrot.lane.b32.xlu0 %v7732, 32
      %v7795 = vpop.permute.xlu0 %7794
      %7796 = vrot.lane.b32.xlu0 %v7733, 32
      %v7797 = vpop.permute.xlu0 %7796
      %7798 = vrot.lane.b32.xlu0 %v7736, 32
      %v7799 = vpop.permute.xlu0 %7798
      %7800 = vrot.lane.b32.xlu0 %v7737, 32
      %v7801 = vpop.permute.xlu0 %7800
      %7802 = vrot.lane.b32.xlu0 %v7740, 32
      %v7803 = vpop.permute.xlu0 %7802
      %7804 = vrot.lane.b32.xlu0 %v7741, 32
      %v7805 = vpop.permute.xlu0 %7804
      %7806 = vrot.lane.b32.xlu0 %v7744, 32
      %v7807 = vpop.permute.xlu0 %7806
      %7808 = vrot.lane.b32.xlu0 %v7745, 32
      %v7809 = vpop.permute.xlu0 %7808
      %7842 = vrot.lane.b32.xlu0 %v7491, 48
      %v7843 = vpop.permute.xlu0 %7842
      %7844 = vrot.lane.b32.xlu0 %v7429, 48
      %v7845 = vpop.permute.xlu0 %7844
      %7846 = vrot.lane.b32.xlu0 %v7492, 48
      %v7847 = vpop.permute.xlu0 %7846
      %7848 = vrot.lane.b32.xlu0 %v7431, 48
      %v7849 = vpop.permute.xlu0 %7848
      %7850 = vrot.lane.b32.xlu0 %v7493, 48
      %v7851 = vpop.permute.xlu0 %7850
      %7852 = vrot.lane.b32.xlu0 %v7433, 48
      %v7853 = vpop.permute.xlu0 %7852
      %7854 = vrot.lane.b32.xlu0 %v7494, 48
      %v7855 = vpop.permute.xlu0 %7854
      %7856 = vrot.lane.b32.xlu0 %v7435, 48
      %v7857 = vpop.permute.xlu0 %7856
      %7858 = vrot.lane.b32.xlu0 %v7495, 48
      %v7859 = vpop.permute.xlu0 %7858
      %7860 = vrot.lane.b32.xlu0 %v7437, 48
      %v7861 = vpop.permute.xlu0 %7860
      %7862 = vrot.lane.b32.xlu0 %v7496, 48
      %v7863 = vpop.permute.xlu0 %7862
      %7864 = vrot.lane.b32.xlu0 %v7439, 48
      %v7865 = vpop.permute.xlu0 %7864
      %7866 = vrot.lane.b32.xlu0 %v7497, 48
      %v7867 = vpop.permute.xlu0 %7866
      %7868 = vrot.lane.b32.xlu0 %v7441, 48
      %v7869 = vpop.permute.xlu0 %7868
      %7870 = vrot.lane.b32.xlu0 %v7498, 48
      %v7871 = vpop.permute.xlu0 %7870
      %7872 = vrot.lane.b32.xlu0 %v7443, 48
      %v7873 = vpop.permute.xlu0 %7872
      %7874 = vrot.lane.b32.xlu0 %v7499, 48
      %v7875 = vpop.permute.xlu0 %7874
      %7876 = vrot.lane.b32.xlu0 %v7445, 48
      %v7877 = vpop.permute.xlu0 %7876
      %7878 = vrot.lane.b32.xlu0 %v7500, 48
      %v7879 = vpop.permute.xlu0 %7878
      %7880 = vrot.lane.b32.xlu0 %v7447, 48
      %v7881 = vpop.permute.xlu0 %7880
      %7882 = vrot.lane.b32.xlu0 %v7501, 48
      %v7883 = vpop.permute.xlu0 %7882
      %7884 = vrot.lane.b32.xlu0 %v7449, 48
      %v7885 = vpop.permute.xlu0 %7884
      %7886 = vrot.lane.b32.xlu0 %v7502, 48
      %v7887 = vpop.permute.xlu0 %7886
      %7888 = vrot.lane.b32.xlu0 %v7451, 48
      %v7889 = vpop.permute.xlu0 %7888
      %7890 = vrot.lane.b32.xlu0 %v7503, 48
      %v7891 = vpop.permute.xlu0 %7890
      %7892 = vrot.lane.b32.xlu0 %v7453, 48
      %v7893 = vpop.permute.xlu0 %7892
      %7894 = vrot.lane.b32.xlu0 %v7504, 48
      %v7895 = vpop.permute.xlu0 %7894
      %7896 = vrot.lane.b32.xlu0 %v7455, 48
      %v7897 = vpop.permute.xlu0 %7896
      %7898 = vrot.lane.b32.xlu0 %v7505, 48
      %v7899 = vpop.permute.xlu0 %7898
      %7900 = vrot.lane.b32.xlu0 %v7457, 48
      %v7901 = vpop.permute.xlu0 %7900
      %7902 = vrot.lane.b32.xlu0 %v7490, 48
      %v7903 = vpop.permute.xlu0 %7902
      %7904 = vrot.lane.b32.xlu0 %v7427, 48
      %v7905 = vpop.permute.xlu0 %7904
      %7938 = vrot.lane.b32.xlu0 %v7528, 64
      %v7939 = vpop.permute.xlu0 %7938
      %7940 = vrot.lane.b32.xlu0 %v7529, 64
      %v7941 = vpop.permute.xlu0 %7940
      %7942 = vrot.lane.b32.xlu0 %v7532, 64
      %v7943 = vpop.permute.xlu0 %7942
      %7944 = vrot.lane.b32.xlu0 %v7533, 64
      %v7945 = vpop.permute.xlu0 %7944
      %7946 = vrot.lane.b32.xlu0 %v7536, 64
      %v7947 = vpop.permute.xlu0 %7946
      %7948 = vrot.lane.b32.xlu0 %v7537, 64
      %v7949 = vpop.permute.xlu0 %7948
      %7950 = vrot.lane.b32.xlu0 %v7540, 64
      %v7951 = vpop.permute.xlu0 %7950
      %7952 = vrot.lane.b32.xlu0 %v7541, 64
      %v7953 = vpop.permute.xlu0 %7952
      %7954 = vrot.lane.b32.xlu0 %v7544, 64
      %v7955 = vpop.permute.xlu0 %7954
      %7956 = vrot.lane.b32.xlu0 %v7545, 64
      %v7957 = vpop.permute.xlu0 %7956
      %7958 = vrot.lane.b32.xlu0 %v7548, 64
      %v7959 = vpop.permute.xlu0 %7958
      %7960 = vrot.lane.b32.xlu0 %v7549, 64
      %v7961 = vpop.permute.xlu0 %7960
      %7962 = vrot.lane.b32.xlu0 %v7552, 64
      %v7963 = vpop.permute.xlu0 %7962
      %7964 = vrot.lane.b32.xlu0 %v7553, 64
      %v7965 = vpop.permute.xlu0 %7964
      %7966 = vrot.lane.b32.xlu0 %v7556, 64
      %v7967 = vpop.permute.xlu0 %7966
      %7968 = vrot.lane.b32.xlu0 %v7557, 64
      %v7969 = vpop.permute.xlu0 %7968
      %7970 = vrot.lane.b32.xlu0 %v7560, 64
      %v7971 = vpop.permute.xlu0 %7970
      %7972 = vrot.lane.b32.xlu0 %v7561, 64
      %v7973 = vpop.permute.xlu0 %7972
      %7974 = vrot.lane.b32.xlu0 %v7564, 64
      %v7975 = vpop.permute.xlu0 %7974
      %7976 = vrot.lane.b32.xlu0 %v7565, 64
      %v7977 = vpop.permute.xlu0 %7976
      %7978 = vrot.lane.b32.xlu0 %v7568, 64
      %v7979 = vpop.permute.xlu0 %7978
      %7980 = vrot.lane.b32.xlu0 %v7569, 64
      %v7981 = vpop.permute.xlu0 %7980
      %7982 = vrot.lane.b32.xlu0 %v7572, 64
      %v7983 = vpop.permute.xlu0 %7982
      %7984 = vrot.lane.b32.xlu0 %v7573, 64
      %v7985 = vpop.permute.xlu0 %7984
      %7986 = vrot.lane.b32.xlu0 %v7576, 64
      %v7987 = vpop.permute.xlu0 %7986
      %7988 = vrot.lane.b32.xlu0 %v7577, 64
      %v7989 = vpop.permute.xlu0 %7988
      %7990 = vrot.lane.b32.xlu0 %v7580, 64
      %v7991 = vpop.permute.xlu0 %7990
      %7992 = vrot.lane.b32.xlu0 %v7581, 64
      %v7993 = vpop.permute.xlu0 %7992
      %7994 = vrot.lane.b32.xlu0 %v7584, 64
      %v7995 = vpop.permute.xlu0 %7994
      %7996 = vrot.lane.b32.xlu0 %v7585, 64
      %v7997 = vpop.permute.xlu0 %7996
      %7998 = vrot.lane.b32.xlu0 %v7524, 64
      %v7999 = vpop.permute.xlu0 %7998
      %8000 = vrot.lane.b32.xlu0 %v7525, 64
      %v8001 = vpop.permute.xlu0 %8000
      %8034 = vrot.lane.b32.xlu0 %v7688, 80
      %v8035 = vpop.permute.xlu0 %8034
      %8036 = vrot.lane.b32.xlu0 %v7689, 80
      %v8037 = vpop.permute.xlu0 %8036
      %8038 = vrot.lane.b32.xlu0 %v7692, 80
      %v8039 = vpop.permute.xlu0 %8038
      %8040 = vrot.lane.b32.xlu0 %v7693, 80
      %v8041 = vpop.permute.xlu0 %8040
      %8042 = vrot.lane.b32.xlu0 %v7696, 80
      %v8043 = vpop.permute.xlu0 %8042
      %8044 = vrot.lane.b32.xlu0 %v7697, 80
      %v8045 = vpop.permute.xlu0 %8044
      %8046 = vrot.lane.b32.xlu0 %v7700, 80
      %v8047 = vpop.permute.xlu0 %8046
      %8048 = vrot.lane.b32.xlu0 %v7701, 80
      %v8049 = vpop.permute.xlu0 %8048
      %8050 = vrot.lane.b32.xlu0 %v7704, 80
      %v8051 = vpop.permute.xlu0 %8050
      %8052 = vrot.lane.b32.xlu0 %v7705, 80
      %v8053 = vpop.permute.xlu0 %8052
      %8054 = vrot.lane.b32.xlu0 %v7708, 80
      %v8055 = vpop.permute.xlu0 %8054
      %8056 = vrot.lane.b32.xlu0 %v7709, 80
      %v8057 = vpop.permute.xlu0 %8056
      %8058 = vrot.lane.b32.xlu0 %v7712, 80
      %v8059 = vpop.permute.xlu0 %8058
      %8060 = vrot.lane.b32.xlu0 %v7713, 80
      %v8061 = vpop.permute.xlu0 %8060
      %8062 = vrot.lane.b32.xlu0 %v7716, 80
      %v8063 = vpop.permute.xlu0 %8062
      %8064 = vrot.lane.b32.xlu0 %v7717, 80
      %v8065 = vpop.permute.xlu0 %8064
      %8066 = vrot.lane.b32.xlu0 %v7720, 80
      %v8067 = vpop.permute.xlu0 %8066
      %8068 = vrot.lane.b32.xlu0 %v7721, 80
      %v8069 = vpop.permute.xlu0 %8068
      %8070 = vrot.lane.b32.xlu0 %v7724, 80
      %v8071 = vpop.permute.xlu0 %8070
      %8072 = vrot.lane.b32.xlu0 %v7725, 80
      %v8073 = vpop.permute.xlu0 %8072
      %8074 = vrot.lane.b32.xlu0 %v7728, 80
      %v8075 = vpop.permute.xlu0 %8074
      %8076 = vrot.lane.b32.xlu0 %v7729, 80
      %v8077 = vpop.permute.xlu0 %8076
      %8078 = vrot.lane.b32.xlu0 %v7732, 80
      %v8079 = vpop.permute.xlu0 %8078
      %8080 = vrot.lane.b32.xlu0 %v7733, 80
      %v8081 = vpop.permute.xlu0 %8080
      %8082 = vrot.lane.b32.xlu0 %v7736, 80
      %v8083 = vpop.permute.xlu0 %8082
      %8084 = vrot.lane.b32.xlu0 %v7737, 80
      %v8085 = vpop.permute.xlu0 %8084
      %8086 = vrot.lane.b32.xlu0 %v7740, 80
      %v8087 = vpop.permute.xlu0 %8086
      %8088 = vrot.lane.b32.xlu0 %v7741, 80
      %v8089 = vpop.permute.xlu0 %8088
      %8090 = vrot.lane.b32.xlu0 %v7744, 80
      %v8091 = vpop.permute.xlu0 %8090
      %8092 = vrot.lane.b32.xlu0 %v7745, 80
      %v8093 = vpop.permute.xlu0 %8092
      %8094 = vrot.lane.b32.xlu0 %v7684, 80
      %v8095 = vpop.permute.xlu0 %8094
      %8096 = vrot.lane.b32.xlu0 %v7685, 80
      %v8097 = vpop.permute.xlu0 %8096
      %8130 = vrot.lane.b32.xlu0 %v7492, 96
      %v8131 = vpop.permute.xlu0 %8130
      %8132 = vrot.lane.b32.xlu0 %v7431, 96
      %v8133 = vpop.permute.xlu0 %8132
      %8134 = vrot.lane.b32.xlu0 %v7493, 96
      %v8135 = vpop.permute.xlu0 %8134
      %8136 = vrot.lane.b32.xlu0 %v7433, 96
      %v8137 = vpop.permute.xlu0 %8136
      %8138 = vrot.lane.b32.xlu0 %v7494, 96
      %v8139 = vpop.permute.xlu0 %8138
      %8140 = vrot.lane.b32.xlu0 %v7435, 96
      %v8141 = vpop.permute.xlu0 %8140
      %8142 = vrot.lane.b32.xlu0 %v7495, 96
      %v8143 = vpop.permute.xlu0 %8142
      %8144 = vrot.lane.b32.xlu0 %v7437, 96
      %v8145 = vpop.permute.xlu0 %8144
      %8146 = vrot.lane.b32.xlu0 %v7496, 96
      %v8147 = vpop.permute.xlu0 %8146
      %8148 = vrot.lane.b32.xlu0 %v7439, 96
      %v8149 = vpop.permute.xlu0 %8148
      %8150 = vrot.lane.b32.xlu0 %v7497, 96
      %v8151 = vpop.permute.xlu0 %8150
      %8152 = vrot.lane.b32.xlu0 %v7441, 96
      %v8153 = vpop.permute.xlu0 %8152
      %8154 = vrot.lane.b32.xlu0 %v7498, 96
      %v8155 = vpop.permute.xlu0 %8154
      %8156 = vrot.lane.b32.xlu0 %v7443, 96
      %v8157 = vpop.permute.xlu0 %8156
      %8158 = vrot.lane.b32.xlu0 %v7499, 96
      %v8159 = vpop.permute.xlu0 %8158
      %8160 = vrot.lane.b32.xlu0 %v7445, 96
      %v8161 = vpop.permute.xlu0 %8160
      %8162 = vrot.lane.b32.xlu0 %v7500, 96
      %v8163 = vpop.permute.xlu0 %8162
      %8164 = vrot.lane.b32.xlu0 %v7447, 96
      %v8165 = vpop.permute.xlu0 %8164
      %8166 = vrot.lane.b32.xlu0 %v7501, 96
      %v8167 = vpop.permute.xlu0 %8166
      %8168 = vrot.lane.b32.xlu0 %v7449, 96
      %v8169 = vpop.permute.xlu0 %8168
      %8170 = vrot.lane.b32.xlu0 %v7502, 96
      %v8171 = vpop.permute.xlu0 %8170
      %8172 = vrot.lane.b32.xlu0 %v7451, 96
      %v8173 = vpop.permute.xlu0 %8172
      %8174 = vrot.lane.b32.xlu0 %v7503, 96
      %v8175 = vpop.permute.xlu0 %8174
      %8176 = vrot.lane.b32.xlu0 %v7453, 96
      %v8177 = vpop.permute.xlu0 %8176
      %8178 = vrot.lane.b32.xlu0 %v7504, 96
      %v8179 = vpop.permute.xlu0 %8178
      %8180 = vrot.lane.b32.xlu0 %v7455, 96
      %v8181 = vpop.permute.xlu0 %8180
      %8182 = vrot.lane.b32.xlu0 %v7505, 96
      %v8183 = vpop.permute.xlu0 %8182
      %8184 = vrot.lane.b32.xlu0 %v7457, 96
      %v8185 = vpop.permute.xlu0 %8184
      %8186 = vrot.lane.b32.xlu0 %v7490, 96
      %v8187 = vpop.permute.xlu0 %8186
      %8188 = vrot.lane.b32.xlu0 %v7427, 96
      %v8189 = vpop.permute.xlu0 %8188
      %8190 = vrot.lane.b32.xlu0 %v7491, 96
      %v8191 = vpop.permute.xlu0 %8190
      %8192 = vrot.lane.b32.xlu0 %v7429, 96
      %v8193 = vpop.permute.xlu0 %8192
      %8226 = vrot.lane.b32.xlu0 %v7532, 112
      %v8227 = vpop.permute.xlu0 %8226
      %8228 = vrot.lane.b32.xlu0 %v7533, 112
      %v8229 = vpop.permute.xlu0 %8228
      %8230 = vrot.lane.b32.xlu0 %v7536, 112
      %v8231 = vpop.permute.xlu0 %8230
      %8232 = vrot.lane.b32.xlu0 %v7537, 112
      %v8233 = vpop.permute.xlu0 %8232
      %8234 = vrot.lane.b32.xlu0 %v7540, 112
      %v8235 = vpop.permute.xlu0 %8234
      %8236 = vrot.lane.b32.xlu0 %v7541, 112
      %v8237 = vpop.permute.xlu0 %8236
      %8238 = vrot.lane.b32.xlu0 %v7544, 112
      %v8239 = vpop.permute.xlu0 %8238
      %8240 = vrot.lane.b32.xlu0 %v7545, 112
      %v8241 = vpop.permute.xlu0 %8240
      %8242 = vrot.lane.b32.xlu0 %v7548, 112
      %v8243 = vpop.permute.xlu0 %8242
      %8244 = vrot.lane.b32.xlu0 %v7549, 112
      %v8245 = vpop.permute.xlu0 %8244
      %8246 = vrot.lane.b32.xlu0 %v7552, 112
      %v8247 = vpop.permute.xlu0 %8246
      %8248 = vrot.lane.b32.xlu0 %v7553, 112
      %v8249 = vpop.permute.xlu0 %8248
      %8250 = vrot.lane.b32.xlu0 %v7556, 112
      %v8251 = vpop.permute.xlu0 %8250
      %8252 = vrot.lane.b32.xlu0 %v7557, 112
      %v8253 = vpop.permute.xlu0 %8252
      %8254 = vrot.lane.b32.xlu0 %v7560, 112
      %v8255 = vpop.permute.xlu0 %8254
      %8256 = vrot.lane.b32.xlu0 %v7561, 112
      %v8257 = vpop.permute.xlu0 %8256
      %8258 = vrot.lane.b32.xlu0 %v7564, 112
      %v8259 = vpop.permute.xlu0 %8258
      %8260 = vrot.lane.b32.xlu0 %v7565, 112
      %v8261 = vpop.permute.xlu0 %8260
      %8262 = vrot.lane.b32.xlu0 %v7568, 112
      %v8263 = vpop.permute.xlu0 %8262
      %8264 = vrot.lane.b32.xlu0 %v7569, 112
      %v8265 = vpop.permute.xlu0 %8264
      %8266 = vrot.lane.b32.xlu0 %v7572, 112
      %v8267 = vpop.permute.xlu0 %8266
      %8268 = vrot.lane.b32.xlu0 %v7573, 112
      %v8269 = vpop.permute.xlu0 %8268
      %8270 = vrot.lane.b32.xlu0 %v7576, 112
      %v8271 = vpop.permute.xlu0 %8270
      %8272 = vrot.lane.b32.xlu0 %v7577, 112
      %v8273 = vpop.permute.xlu0 %8272
      %8274 = vrot.lane.b32.xlu0 %v7580, 112
      %v8275 = vpop.permute.xlu0 %8274
      %8276 = vrot.lane.b32.xlu0 %v7581, 112
      %v8277 = vpop.permute.xlu0 %8276
      %8278 = vrot.lane.b32.xlu0 %v7584, 112
      %v8279 = vpop.permute.xlu0 %8278
      %8280 = vrot.lane.b32.xlu0 %v7585, 112
      %v8281 = vpop.permute.xlu0 %8280
      %8282 = vrot.lane.b32.xlu0 %v7524, 112
      %v8283 = vpop.permute.xlu0 %8282
      %8284 = vrot.lane.b32.xlu0 %v7525, 112
      %v8285 = vpop.permute.xlu0 %8284
      %8286 = vrot.lane.b32.xlu0 %v7528, 112
      %v8287 = vpop.permute.xlu0 %8286
      %8288 = vrot.lane.b32.xlu0 %v7529, 112
      %v8289 = vpop.permute.xlu0 %8288
      %v8322 = vsel %vm1664, %v7490, %v7587
      %v8323 = vsel %vm1664, %v7427, %v7589
      %v8324 = vsel %vm1664, %v7491, %v7591
      %v8325 = vsel %vm1664, %v7429, %v7593
      %v8326 = vsel %vm1664, %v7492, %v7595
      %v8327 = vsel %vm1664, %v7431, %v7597
      %v8328 = vsel %vm1664, %v7493, %v7599
      %v8329 = vsel %vm1664, %v7433, %v7601
      %v8330 = vsel %vm1664, %v7494, %v7603
      %v8331 = vsel %vm1664, %v7435, %v7605
      %v8332 = vsel %vm1664, %v7495, %v7607
      %v8333 = vsel %vm1664, %v7437, %v7609
      %v8334 = vsel %vm1664, %v7496, %v7611
      %v8335 = vsel %vm1664, %v7439, %v7613
      %v8336 = vsel %vm1664, %v7497, %v7615
      %v8337 = vsel %vm1664, %v7441, %v7617
      %v8338 = vsel %vm1664, %v7498, %v7619
      %v8339 = vsel %vm1664, %v7443, %v7621
      %v8340 = vsel %vm1664, %v7499, %v7623
      %v8341 = vsel %vm1664, %v7445, %v7625
      %v8342 = vsel %vm1664, %v7500, %v7627
      %v8343 = vsel %vm1664, %v7447, %v7629
      %v8344 = vsel %vm1664, %v7501, %v7631
      %v8345 = vsel %vm1664, %v7449, %v7633
      %v8346 = vsel %vm1664, %v7502, %v7635
      %v8347 = vsel %vm1664, %v7451, %v7637
      %v8348 = vsel %vm1664, %v7503, %v7639
      %v8349 = vsel %vm1664, %v7453, %v7641
      %v8350 = vsel %vm1664, %v7504, %v7643
      %v8351 = vsel %vm1664, %v7455, %v7645
      %v8352 = vsel %vm1664, %v7505, %v7647
      %v8353 = vsel %vm1664, %v7457, %v7649
      %v8354 = vsel %vm1796, %v8322, %v7747
      %v8355 = vsel %vm1796, %v8323, %v7749
      %v8356 = vsel %vm1796, %v8324, %v7751
      %v8357 = vsel %vm1796, %v8325, %v7753
      %v8358 = vsel %vm1796, %v8326, %v7755
      %v8359 = vsel %vm1796, %v8327, %v7757
      %v8360 = vsel %vm1796, %v8328, %v7759
      %v8361 = vsel %vm1796, %v8329, %v7761
      %v8362 = vsel %vm1796, %v8330, %v7763
      %v8363 = vsel %vm1796, %v8331, %v7765
      %v8364 = vsel %vm1796, %v8332, %v7767
      %v8365 = vsel %vm1796, %v8333, %v7769
      %v8366 = vsel %vm1796, %v8334, %v7771
      %v8367 = vsel %vm1796, %v8335, %v7773
      %v8368 = vsel %vm1796, %v8336, %v7775
      %v8369 = vsel %vm1796, %v8337, %v7777
      %v8370 = vsel %vm1796, %v8338, %v7779
      %v8371 = vsel %vm1796, %v8339, %v7781
      %v8372 = vsel %vm1796, %v8340, %v7783
      %v8373 = vsel %vm1796, %v8341, %v7785
      %v8374 = vsel %vm1796, %v8342, %v7787
      %v8375 = vsel %vm1796, %v8343, %v7789
      %v8376 = vsel %vm1796, %v8344, %v7791
      %v8377 = vsel %vm1796, %v8345, %v7793
      %v8378 = vsel %vm1796, %v8346, %v7795
      %v8379 = vsel %vm1796, %v8347, %v7797
      %v8380 = vsel %vm1796, %v8348, %v7799
      %v8381 = vsel %vm1796, %v8349, %v7801
      %v8382 = vsel %vm1796, %v8350, %v7803
      %v8383 = vsel %vm1796, %v8351, %v7805
      %v8384 = vsel %vm1796, %v8352, %v7807
      %v8385 = vsel %vm1796, %v8353, %v7809
      %v8386 = vsel %vm3420, %v8354, %v7843
      %v8387 = vsel %vm3420, %v8355, %v7845
      %v8388 = vsel %vm3420, %v8356, %v7847
      %v8389 = vsel %vm3420, %v8357, %v7849
      %v8390 = vsel %vm3420, %v8358, %v7851
      %v8391 = vsel %vm3420, %v8359, %v7853
      %v8392 = vsel %vm3420, %v8360, %v7855
      %v8393 = vsel %vm3420, %v8361, %v7857
      %v8394 = vsel %vm3420, %v8362, %v7859
      %v8395 = vsel %vm3420, %v8363, %v7861
      %v8396 = vsel %vm3420, %v8364, %v7863
      %v8397 = vsel %vm3420, %v8365, %v7865
      %v8398 = vsel %vm3420, %v8366, %v7867
      %v8399 = vsel %vm3420, %v8367, %v7869
      %v8400 = vsel %vm3420, %v8368, %v7871
      %v8401 = vsel %vm3420, %v8369, %v7873
      %v8402 = vsel %vm3420, %v8370, %v7875
      %v8403 = vsel %vm3420, %v8371, %v7877
      %v8404 = vsel %vm3420, %v8372, %v7879
      %v8405 = vsel %vm3420, %v8373, %v7881
      %v8406 = vsel %vm3420, %v8374, %v7883
      %v8407 = vsel %vm3420, %v8375, %v7885
      %v8408 = vsel %vm3420, %v8376, %v7887
      %v8409 = vsel %vm3420, %v8377, %v7889
      %v8410 = vsel %vm3420, %v8378, %v7891
      %v8411 = vsel %vm3420, %v8379, %v7893
      %v8412 = vsel %vm3420, %v8380, %v7895
      %v8413 = vsel %vm3420, %v8381, %v7897
      %v8414 = vsel %vm3420, %v8382, %v7899
      %v8415 = vsel %vm3420, %v8383, %v7901
      %v8416 = vsel %vm3420, %v8384, %v7903
      %v8417 = vsel %vm3420, %v8385, %v7905
      %v8418 = vsel %vm3486, %v8386, %v7939
      %v8419 = vsel %vm3486, %v8387, %v7941
      %v8420 = vsel %vm3486, %v8388, %v7943
      %v8421 = vsel %vm3486, %v8389, %v7945
      %v8422 = vsel %vm3486, %v8390, %v7947
      %v8423 = vsel %vm3486, %v8391, %v7949
      %v8424 = vsel %vm3486, %v8392, %v7951
      %v8425 = vsel %vm3486, %v8393, %v7953
      %v8426 = vsel %vm3486, %v8394, %v7955
      %v8427 = vsel %vm3486, %v8395, %v7957
      %v8428 = vsel %vm3486, %v8396, %v7959
      %v8429 = vsel %vm3486, %v8397, %v7961
      %v8430 = vsel %vm3486, %v8398, %v7963
      %v8431 = vsel %vm3486, %v8399, %v7965
      %v8432 = vsel %vm3486, %v8400, %v7967
      %v8433 = vsel %vm3486, %v8401, %v7969
      %v8434 = vsel %vm3486, %v8402, %v7971
      %v8435 = vsel %vm3486, %v8403, %v7973
      %v8436 = vsel %vm3486, %v8404, %v7975
      %v8437 = vsel %vm3486, %v8405, %v7977
      %v8438 = vsel %vm3486, %v8406, %v7979
      %v8439 = vsel %vm3486, %v8407, %v7981
      %v8440 = vsel %vm3486, %v8408, %v7983
      %v8441 = vsel %vm3486, %v8409, %v7985
      %v8442 = vsel %vm3486, %v8410, %v7987
      %v8443 = vsel %vm3486, %v8411, %v7989
      %v8444 = vsel %vm3486, %v8412, %v7991
      %v8445 = vsel %vm3486, %v8413, %v7993
      %v8446 = vsel %vm3486, %v8414, %v7995
      %v8447 = vsel %vm3486, %v8415, %v7997
      %v8448 = vsel %vm3486, %v8416, %v7999
      %v8449 = vsel %vm3486, %v8417, %v8001
      %vm8450 = vcmask 654336
      %v8451 = vsel %vm8450, %v8418, %v8035
      %v8452 = vsel %vm8450, %v8419, %v8037
      %v8453 = vsel %vm8450, %v8420, %v8039
      %v8454 = vsel %vm8450, %v8421, %v8041
      %v8455 = vsel %vm8450, %v8422, %v8043
      %v8456 = vsel %vm8450, %v8423, %v8045
      %v8457 = vsel %vm8450, %v8424, %v8047
      %v8458 = vsel %vm8450, %v8425, %v8049
      %v8459 = vsel %vm8450, %v8426, %v8051
      %v8460 = vsel %vm8450, %v8427, %v8053
      %v8461 = vsel %vm8450, %v8428, %v8055
      %v8462 = vsel %vm8450, %v8429, %v8057
      %v8463 = vsel %vm8450, %v8430, %v8059
      %v8464 = vsel %vm8450, %v8431, %v8061
      %v8465 = vsel %vm8450, %v8432, %v8063
      %v8466 = vsel %vm8450, %v8433, %v8065
      %v8467 = vsel %vm8450, %v8434, %v8067
      %v8468 = vsel %vm8450, %v8435, %v8069
      %v8469 = vsel %vm8450, %v8436, %v8071
      %v8470 = vsel %vm8450, %v8437, %v8073
      %v8471 = vsel %vm8450, %v8438, %v8075
      %v8472 = vsel %vm8450, %v8439, %v8077
      %v8473 = vsel %vm8450, %v8440, %v8079
      %v8474 = vsel %vm8450, %v8441, %v8081
      %v8475 = vsel %vm8450, %v8442, %v8083
      %v8476 = vsel %vm8450, %v8443, %v8085
      %v8477 = vsel %vm8450, %v8444, %v8087
      %v8478 = vsel %vm8450, %v8445, %v8089
      %v8479 = vsel %vm8450, %v8446, %v8091
      %v8480 = vsel %vm8450, %v8447, %v8093
      %v8481 = vsel %vm8450, %v8448, %v8095
      %v8482 = vsel %vm8450, %v8449, %v8097
      %vm8483 = vcmask 785408
      %v8484 = vsel %vm8483, %v8451, %v8131
      %v8485 = vsel %vm8483, %v8452, %v8133
      %v8486 = vsel %vm8483, %v8453, %v8135
      %v8487 = vsel %vm8483, %v8454, %v8137
      %v8488 = vsel %vm8483, %v8455, %v8139
      %v8489 = vsel %vm8483, %v8456, %v8141
      %v8490 = vsel %vm8483, %v8457, %v8143
      %v8491 = vsel %vm8483, %v8458, %v8145
      %v8492 = vsel %vm8483, %v8459, %v8147
      %v8493 = vsel %vm8483, %v8460, %v8149
      %v8494 = vsel %vm8483, %v8461, %v8151
      %v8495 = vsel %vm8483, %v8462, %v8153
      %v8496 = vsel %vm8483, %v8463, %v8155
      %v8497 = vsel %vm8483, %v8464, %v8157
      %v8498 = vsel %vm8483, %v8465, %v8159
      %v8499 = vsel %vm8483, %v8466, %v8161
      %v8500 = vsel %vm8483, %v8467, %v8163
      %v8501 = vsel %vm8483, %v8468, %v8165
      %v8502 = vsel %vm8483, %v8469, %v8167
      %v8503 = vsel %vm8483, %v8470, %v8169
      %v8504 = vsel %vm8483, %v8471, %v8171
      %v8505 = vsel %vm8483, %v8472, %v8173
      %v8506 = vsel %vm8483, %v8473, %v8175
      %v8507 = vsel %vm8483, %v8474, %v8177
      %v8508 = vsel %vm8483, %v8475, %v8179
      %v8509 = vsel %vm8483, %v8476, %v8181
      %v8510 = vsel %vm8483, %v8477, %v8183
      %v8511 = vsel %vm8483, %v8478, %v8185
      %v8512 = vsel %vm8483, %v8479, %v8187
      %v8513 = vsel %vm8483, %v8480, %v8189
      %v8514 = vsel %vm8483, %v8481, %v8191
      %v8515 = vsel %vm8483, %v8482, %v8193
      %vm8516 = vcmask 916480
      %v8517 = vsel %vm8516, %v8484, %v8227
      %v8518 = vsel %vm8516, %v8485, %v8229
      %v8519 = vsel %vm8516, %v8486, %v8231
      %v8520 = vsel %vm8516, %v8487, %v8233
      %v8521 = vsel %vm8516, %v8488, %v8235
      %v8522 = vsel %vm8516, %v8489, %v8237
      %v8523 = vsel %vm8516, %v8490, %v8239
      %v8524 = vsel %vm8516, %v8491, %v8241
      %v8525 = vsel %vm8516, %v8492, %v8243
      %v8526 = vsel %vm8516, %v8493, %v8245
      %v8527 = vsel %vm8516, %v8494, %v8247
      %v8528 = vsel %vm8516, %v8495, %v8249
      %v8529 = vsel %vm8516, %v8496, %v8251
      %v8530 = vsel %vm8516, %v8497, %v8253
      %v8531 = vsel %vm8516, %v8498, %v8255
      %v8532 = vsel %vm8516, %v8499, %v8257
      %v8533 = vsel %vm8516, %v8500, %v8259
      %v8534 = vsel %vm8516, %v8501, %v8261
      %v8535 = vsel %vm8516, %v8502, %v8263
      %v8536 = vsel %vm8516, %v8503, %v8265
      %v8537 = vsel %vm8516, %v8504, %v8267
      %v8538 = vsel %vm8516, %v8505, %v8269
      %v8539 = vsel %vm8516, %v8506, %v8271
      %v8540 = vsel %vm8516, %v8507, %v8273
      %v8541 = vsel %vm8516, %v8508, %v8275
      %v8542 = vsel %vm8516, %v8509, %v8277
      %v8543 = vsel %vm8516, %v8510, %v8279
      %v8544 = vsel %vm8516, %v8511, %v8281
      %v8545 = vsel %vm8516, %v8512, %v8283
      %v8546 = vsel %vm8516, %v8513, %v8285
      %v8547 = vsel %vm8516, %v8514, %v8287
      %v8548 = vsel %vm8516, %v8515, %v8289
      %v8549 = vsel %vm1664, %v7692, 0
      %v8551 = vsel %vm1664, %v7693, 0
      %v8553 = vsel %vm1664, %v7696, 0
      %v8555 = vsel %vm1664, %v7697, 0
      %v8557 = vsel %vm1664, %v7700, 0
      %v8559 = vsel %vm1664, %v7701, 0
      %v8561 = vsel %vm1664, %v7704, 0
      %v8563 = vsel %vm1664, %v7705, 0
      %v8565 = vsel %vm1664, %v7708, 0
      %v8567 = vsel %vm1664, %v7709, 0
      %v8569 = vsel %vm1664, %v7712, 0
      %v8571 = vsel %vm1664, %v7713, 0
      %v8573 = vsel %vm1664, %v7716, 0
      %v8575 = vsel %vm1664, %v7717, 0
      %v8577 = vsel %vm1664, %v7720, 0
      %v8579 = vsel %vm1664, %v7721, 0
      %v8581 = vsel %vm1664, %v7724, 0
      %v8583 = vsel %vm1664, %v7725, 0
      %v8585 = vsel %vm1664, %v7728, 0
      %v8587 = vsel %vm1664, %v7729, 0
      %v8589 = vsel %vm1664, %v7732, 0
      %v8591 = vsel %vm1664, %v7733, 0
      %v8593 = vsel %vm1664, %v7736, 0
      %v8595 = vsel %vm1664, %v7737, 0
      %v8597 = vsel %vm1664, %v7740, 0
      %v8599 = vsel %vm1664, %v7741, 0
      %v8601 = vsel %vm1664, %v7744, 0
      %v8603 = vsel %vm1664, %v7745, 0
      %v8605 = vsel %vm1664, %v7684, 0
      %v8607 = vsel %vm1664, %v7685, 0
      %v8609 = vsel %vm1664, %v7688, 0
      %v8611 = vsel %vm1664, %v7689, 0
      %8613 = vmatprep.subr.mxu0 0.0
      %8614 = vmatpush1.msra.mxu0 %v7359
      %8615 = vmatprep.subr.mxu0 0.0
      %8616 = vmatpush1.msra.mxu0 %v7358
      %8617 = vmatprep.subr.mxu0 0.0
      %8618 = vmatpush1.msra.mxu0 %v7357
      %8619 = vmatprep.subr.mxu0 0.0
      %8620 = vmatpush1.msra.mxu0 %v7356
      %8621 = vmatprep.subr.mxu0 0.0
      %8622 = vmatpush1.msra.mxu0 %v7355
      %8623 = vmatprep.subr.mxu0 0.0
      %8624 = vmatpush1.msra.mxu0 %v7354
      %8625 = vmatprep.subr.mxu0 0.0
      %8626 = vmatpush1.msra.mxu0 %v7353
      %8627 = vmatprep.subr.mxu0 0.0
      %8628 = vmatpush1.msra.mxu0 %v7352
      %8629 = vmatprep.subr.mxu0 0.0
      %8630 = vmatpush1.msra.mxu0 %v7351
      %8631 = vmatprep.subr.mxu0 0.0
      %8632 = vmatpush1.msra.mxu0 %v7350
      %8633 = vmatprep.subr.mxu0 0.0
      %8634 = vmatpush1.msra.mxu0 %v7349
      %8635 = vmatprep.subr.mxu0 0.0
      %8636 = vmatpush1.msra.mxu0 %v7348
      %8637 = vmatprep.subr.mxu0 0.0
      %8638 = vmatpush1.msra.mxu0 %v7347
      %8639 = vmatprep.subr.mxu0 0.0
      %8640 = vmatpush1.msra.mxu0 %v7346
      %8641 = vmatprep.subr.mxu0 0.0
      %8642 = vmatpush1.msra.mxu0 %v7345
      %8643 = vmatprep.subr.mxu0 0.0
      %8644 = vmatpush1.msra.mxu0 %v7344
      %8645 = vmatprep.subr.mxu0 0.0
      %8646 = vmatpush2.msra.mxu0 0.0
      %8647 = vmatprep.subr.mxu0 0.0
      %8648 = vmatpush2.msra.mxu0 0.0
      %8649 = vmatprep.subr.mxu0 0.0
      %8650 = vmatpush2.msra.mxu0 0.0
      %8651 = vmatprep.subr.mxu0 0.0
      %8652 = vmatpush2.msra.mxu0 0.0
      %8653 = vmatprep.subr.mxu0 0.0
      %8654 = vmatpush2.msra.mxu0 0.0
      %8655 = vmatprep.subr.mxu0 0.0
      %8656 = vmatpush2.msra.mxu0 0.0
      %8657 = vmatprep.subr.mxu0 0.0
      %8658 = vmatpush2.msra.mxu0 0.0
      %8659 = vmatprep.subr.mxu0 0.0
      %8660 = vmatpush2.msra.mxu0 0.0
      %8661 = vmatprep.subr.mxu0 0.0
      %8662 = vmatpush2.msra.mxu0 0.0
      %8663 = vmatprep.subr.mxu0 0.0
      %8664 = vmatpush2.msra.mxu0 0.0
      %8665 = vmatprep.subr.mxu0 0.0
      %8666 = vmatpush2.msra.mxu0 0.0
      %8667 = vmatprep.subr.mxu0 0.0
      %8668 = vmatpush2.msra.mxu0 0.0
      %8669 = vmatprep.subr.mxu0 0.0
      %8670 = vmatpush2.msra.mxu0 0.0
      %8671 = vmatprep.subr.mxu0 0.0
      %8672 = vmatpush2.msra.mxu0 0.0
      %8673 = vmatprep.subr.mxu0 0.0
      %8674 = vmatpush2.msra.mxu0 %v7361
      %8675 = vmatprep.subr.mxu0 0.0
      %8676 = vmatpush2.msra.mxu0 %v7360
      %8677 = vmatprep.mubr.f32.mxu0 %v8549
      %8678 = vmatmul.mubr.f32.gmra.mxu0 %v8517
      %v8679 = vpop.f32.mrf.mxu0
      %v8680 = vadd.f32 0.0, %v8679
      %v8681 = vpop.f32.mrf.mxu0
      %8682 = vmatprep.mubr.f32.mxu0 %v8551
      %8683 = vmatmul.mubr.f32.gmra.mxu0 %v8518
      %v8684 = vpop.f32.mrf.mxu0
      %v8685 = vadd.f32 0.0, %v8684
      %v8686 = vpop.f32.mrf.mxu0
      %8687 = vmatprep.mubr.f32.mxu0 %v8553
      %8688 = vmatmul.mubr.f32.gmra.mxu0 %v8519
      %v8689 = vpop.f32.mrf.mxu0
      %v8690 = vadd.f32 0.0, %v8689
      %v8691 = vpop.f32.mrf.mxu0
      %8692 = vmatprep.mubr.f32.mxu0 %v8555
      %8693 = vmatmul.mubr.f32.gmra.mxu0 %v8520
      %v8694 = vpop.f32.mrf.mxu0
      %v8695 = vadd.f32 0.0, %v8694
      %v8696 = vpop.f32.mrf.mxu0
      %8697 = vmatprep.mubr.f32.mxu0 %v8557
      %8698 = vmatmul.mubr.f32.gmra.mxu0 %v8521
      %v8699 = vpop.f32.mrf.mxu0
      %v8700 = vadd.f32 0.0, %v8699
      %v8701 = vpop.f32.mrf.mxu0
      %8702 = vmatprep.mubr.f32.mxu0 %v8559
      %8703 = vmatmul.mubr.f32.gmra.mxu0 %v8522
      %v8704 = vpop.f32.mrf.mxu0
      %v8705 = vadd.f32 0.0, %v8704
      %v8706 = vpop.f32.mrf.mxu0
      %8707 = vmatprep.mubr.f32.mxu0 %v8561
      %8708 = vmatmul.mubr.f32.gmra.mxu0 %v8523
      %v8709 = vpop.f32.mrf.mxu0
      %v8710 = vadd.f32 0.0, %v8709
      %v8711 = vpop.f32.mrf.mxu0
      %8712 = vmatprep.mubr.f32.mxu0 %v8563
      %8713 = vmatmul.mubr.f32.gmra.mxu0 %v8524
      %v8714 = vpop.f32.mrf.mxu0
      %v8715 = vadd.f32 0.0, %v8714
      %v8716 = vpop.f32.mrf.mxu0
      %8717 = vmatprep.mubr.f32.mxu0 %v8565
      %8718 = vmatmul.mubr.f32.gmra.mxu0 %v8525
      %v8719 = vpop.f32.mrf.mxu0
      %v8720 = vadd.f32 0.0, %v8719
      %v8721 = vpop.f32.mrf.mxu0
      %8722 = vmatprep.mubr.f32.mxu0 %v8567
      %8723 = vmatmul.mubr.f32.gmra.mxu0 %v8526
      %v8724 = vpop.f32.mrf.mxu0
      %v8725 = vadd.f32 0.0, %v8724
      %v8726 = vpop.f32.mrf.mxu0
      %8727 = vmatprep.mubr.f32.mxu0 %v8569
      %8728 = vmatmul.mubr.f32.gmra.mxu0 %v8527
      %v8729 = vpop.f32.mrf.mxu0
      %v8730 = vadd.f32 0.0, %v8729
      %v8731 = vpop.f32.mrf.mxu0
      %8732 = vmatprep.mubr.f32.mxu0 %v8571
      %8733 = vmatmul.mubr.f32.gmra.mxu0 %v8528
      %v8734 = vpop.f32.mrf.mxu0
      %v8735 = vadd.f32 0.0, %v8734
      %v8736 = vpop.f32.mrf.mxu0
      %8737 = vmatprep.mubr.f32.mxu0 %v8573
      %8738 = vmatmul.mubr.f32.gmra.mxu0 %v8529
      %v8739 = vpop.f32.mrf.mxu0
      %v8740 = vadd.f32 0.0, %v8739
      %v8741 = vpop.f32.mrf.mxu0
      %8742 = vmatprep.mubr.f32.mxu0 %v8575
      %8743 = vmatmul.mubr.f32.gmra.mxu0 %v8530
      %v8744 = vpop.f32.mrf.mxu0
      %v8745 = vadd.f32 0.0, %v8744
      %v8746 = vpop.f32.mrf.mxu0
      %8747 = vmatprep.mubr.f32.mxu0 %v8577
      %8748 = vmatmul.mubr.f32.gmra.mxu0 %v8531
      %v8749 = vpop.f32.mrf.mxu0
      %v8750 = vadd.f32 0.0, %v8749
      %v8751 = vpop.f32.mrf.mxu0
      %8752 = vmatprep.mubr.f32.mxu0 %v8579
      %8753 = vmatmul.mubr.f32.gmra.mxu0 %v8532
      %v8754 = vpop.f32.mrf.mxu0
      %v8755 = vadd.f32 0.0, %v8754
      %v8756 = vpop.f32.mrf.mxu0
      %8757 = vmatprep.mubr.f32.mxu0 %v8581
      %8758 = vmatmul.mubr.f32.gmra.mxu0 %v8533
      %v8759 = vpop.f32.mrf.mxu0
      %v8760 = vadd.f32 0.0, %v8759
      %v8761 = vpop.f32.mrf.mxu0
      %8762 = vmatprep.mubr.f32.mxu0 %v8583
      %8763 = vmatmul.mubr.f32.gmra.mxu0 %v8534
      %v8764 = vpop.f32.mrf.mxu0
      %v8765 = vadd.f32 0.0, %v8764
      %v8766 = vpop.f32.mrf.mxu0
      %8767 = vmatprep.mubr.f32.mxu0 %v8585
      %8768 = vmatmul.mubr.f32.gmra.mxu0 %v8535
      %v8769 = vpop.f32.mrf.mxu0
      %v8770 = vadd.f32 0.0, %v8769
      %v8771 = vpop.f32.mrf.mxu0
      %8772 = vmatprep.mubr.f32.mxu0 %v8587
      %8773 = vmatmul.mubr.f32.gmra.mxu0 %v8536
      %v8774 = vpop.f32.mrf.mxu0
      %v8775 = vadd.f32 0.0, %v8774
      %v8776 = vpop.f32.mrf.mxu0
      %8777 = vmatprep.mubr.f32.mxu0 %v8589
      %8778 = vmatmul.mubr.f32.gmra.mxu0 %v8537
      %v8779 = vpop.f32.mrf.mxu0
      %v8780 = vadd.f32 0.0, %v8779
      %v8781 = vpop.f32.mrf.mxu0
      %8782 = vmatprep.mubr.f32.mxu0 %v8591
      %8783 = vmatmul.mubr.f32.gmra.mxu0 %v8538
      %v8784 = vpop.f32.mrf.mxu0
      %v8785 = vadd.f32 0.0, %v8784
      %v8786 = vpop.f32.mrf.mxu0
      %8787 = vmatprep.mubr.f32.mxu0 %v8593
      %8788 = vmatmul.mubr.f32.gmra.mxu0 %v8539
      %v8789 = vpop.f32.mrf.mxu0
      %v8790 = vadd.f32 0.0, %v8789
      %v8791 = vpop.f32.mrf.mxu0
      %8792 = vmatprep.mubr.f32.mxu0 %v8595
      %8793 = vmatmul.mubr.f32.gmra.mxu0 %v8540
      %v8794 = vpop.f32.mrf.mxu0
      %v8795 = vadd.f32 0.0, %v8794
      %v8796 = vpop.f32.mrf.mxu0
      %8797 = vmatprep.mubr.f32.mxu0 %v8597
      %8798 = vmatmul.mubr.f32.gmra.mxu0 %v8541
      %v8799 = vpop.f32.mrf.mxu0
      %v8800 = vadd.f32 0.0, %v8799
      %v8801 = vpop.f32.mrf.mxu0
      %8802 = vmatprep.mubr.f32.mxu0 %v8599
      %8803 = vmatmul.mubr.f32.gmra.mxu0 %v8542
      %v8804 = vpop.f32.mrf.mxu0
      %v8805 = vadd.f32 0.0, %v8804
      %v8806 = vpop.f32.mrf.mxu0
      %8807 = vmatprep.mubr.f32.mxu0 %v8601
      %8808 = vmatmul.mubr.f32.gmra.mxu0 %v8543
      %v8809 = vpop.f32.mrf.mxu0
      %v8810 = vadd.f32 0.0, %v8809
      %v8811 = vpop.f32.mrf.mxu0
      %8812 = vmatprep.mubr.f32.mxu0 %v8603
      %8813 = vmatmul.mubr.f32.gmra.mxu0 %v8544
      %v8814 = vpop.f32.mrf.mxu0
      %v8815 = vadd.f32 0.0, %v8814
      %v8816 = vpop.f32.mrf.mxu0
      %8817 = vmatprep.mubr.f32.mxu0 %v8605
      %8818 = vmatmul.mubr.f32.gmra.mxu0 %v8545
      %v8819 = vpop.f32.mrf.mxu0
      %v8820 = vadd.f32 0.0, %v8819
      %v8821 = vpop.f32.mrf.mxu0
      %8822 = vmatprep.mubr.f32.mxu0 %v8607
      %8823 = vmatmul.mubr.f32.gmra.mxu0 %v8546
      %v8824 = vpop.f32.mrf.mxu0
      %v8825 = vadd.f32 0.0, %v8824
      %v8826 = vpop.f32.mrf.mxu0
      %8827 = vmatprep.mubr.f32.mxu0 %v8609
      %8828 = vmatmul.mubr.f32.gmra.mxu0 %v8547
      %v8829 = vpop.f32.mrf.mxu0
      %v8830 = vadd.f32 0.0, %v8829
      %v8831 = vpop.f32.mrf.mxu0
      %8832 = vmatprep.mubr.f32.mxu0 %v8611
      %8833 = vmatmul.mubr.f32.gmra.mxu0 %v8548
      %v8834 = vpop.f32.mrf.mxu0
      %v8835 = vadd.f32 0.0, %v8834
      %v8836 = vpop.f32.mrf.mxu0
      %8837 = vdwg.mxu0
      %8870 = vrot.lane.b32.xlu0 %v5521, 4
      %v8871 = vpop.permute.xlu0 %8870
      %8872 = vrot.lane.b32.xlu0 %v5522, 4
      %v8873 = vpop.permute.xlu0 %8872
      %8874 = vrot.lane.b32.xlu0 %v5523, 4
      %v8875 = vpop.permute.xlu0 %8874
      %8876 = vrot.lane.b32.xlu0 %v5524, 4
      %v8877 = vpop.permute.xlu0 %8876
      %8878 = vrot.lane.b32.xlu0 %v5525, 4
      %v8879 = vpop.permute.xlu0 %8878
      %8880 = vrot.lane.b32.xlu0 %v5526, 4
      %v8881 = vpop.permute.xlu0 %8880
      %8882 = vrot.lane.b32.xlu0 %v5527, 4
      %v8883 = vpop.permute.xlu0 %8882
      %8884 = vrot.lane.b32.xlu0 %v5528, 4
      %v8885 = vpop.permute.xlu0 %8884
      %8886 = vrot.lane.b32.xlu0 %v5529, 4
      %v8887 = vpop.permute.xlu0 %8886
      %8888 = vrot.lane.b32.xlu0 %v5530, 4
      %v8889 = vpop.permute.xlu0 %8888
      %8890 = vrot.lane.b32.xlu0 %v5531, 4
      %v8891 = vpop.permute.xlu0 %8890
      %8892 = vrot.lane.b32.xlu0 %v5532, 4
      %v8893 = vpop.permute.xlu0 %8892
      %8894 = vrot.lane.b32.xlu0 %v5533, 4
      %v8895 = vpop.permute.xlu0 %8894
      %8896 = vrot.lane.b32.xlu0 %v5534, 4
      %v8897 = vpop.permute.xlu0 %8896
      %8898 = vrot.lane.b32.xlu0 %v5535, 4
      %v8899 = vpop.permute.xlu0 %8898
      %8900 = vrot.lane.b32.xlu0 %v5536, 4
      %v8901 = vpop.permute.xlu0 %8900
      %8902 = vrot.lane.b32.xlu0 %v5537, 4
      %v8903 = vpop.permute.xlu0 %8902
      %8904 = vrot.lane.b32.xlu0 %v5538, 4
      %v8905 = vpop.permute.xlu0 %8904
      %8906 = vrot.lane.b32.xlu0 %v5539, 4
      %v8907 = vpop.permute.xlu0 %8906
      %8908 = vrot.lane.b32.xlu0 %v5540, 4
      %v8909 = vpop.permute.xlu0 %8908
      %8910 = vrot.lane.b32.xlu0 %v5541, 4
      %v8911 = vpop.permute.xlu0 %8910
      %8912 = vrot.lane.b32.xlu0 %v5542, 4
      %v8913 = vpop.permute.xlu0 %8912
      %8914 = vrot.lane.b32.xlu0 %v5543, 4
      %v8915 = vpop.permute.xlu0 %8914
      %8916 = vrot.lane.b32.xlu0 %v5544, 4
      %v8917 = vpop.permute.xlu0 %8916
      %8918 = vrot.lane.b32.xlu0 %v5545, 4
      %v8919 = vpop.permute.xlu0 %8918
      %8920 = vrot.lane.b32.xlu0 %v5546, 4
      %v8921 = vpop.permute.xlu0 %8920
      %8922 = vrot.lane.b32.xlu0 %v5547, 4
      %v8923 = vpop.permute.xlu0 %8922
      %8924 = vrot.lane.b32.xlu0 %v5548, 4
      %v8925 = vpop.permute.xlu0 %8924
      %8926 = vrot.lane.b32.xlu0 %v5549, 4
      %v8927 = vpop.permute.xlu0 %8926
      %8928 = vrot.lane.b32.xlu0 %v5550, 4
      %v8929 = vpop.permute.xlu0 %8928
      %8930 = vrot.lane.b32.xlu0 %v5551, 4
      %v8931 = vpop.permute.xlu0 %8930
      %8932 = vrot.lane.b32.xlu0 %v5552, 4
      %v8933 = vpop.permute.xlu0 %8932
      %v8966 = vsel %vm1565, 0.0, %v8871
      %v8967 = vsel %vm1565, 0.0, %v8873
      %v8968 = vsel %vm1565, 0.0, %v8875
      %v8969 = vsel %vm1565, 0.0, %v8877
      %v8970 = vsel %vm1565, 0.0, %v8879
      %v8971 = vsel %vm1565, 0.0, %v8881
      %v8972 = vsel %vm1565, 0.0, %v8883
      %v8973 = vsel %vm1565, 0.0, %v8885
      %v8974 = vsel %vm1565, 0.0, %v8887
      %v8975 = vsel %vm1565, 0.0, %v8889
      %v8976 = vsel %vm1565, 0.0, %v8891
      %v8977 = vsel %vm1565, 0.0, %v8893
      %v8978 = vsel %vm1565, 0.0, %v8895
      %v8979 = vsel %vm1565, 0.0, %v8897
      %v8980 = vsel %vm1565, 0.0, %v8899
      %v8981 = vsel %vm1565, 0.0, %v8901
      %v8982 = vsel %vm1565, 0.0, %v8903
      %v8983 = vsel %vm1565, 0.0, %v8905
      %v8984 = vsel %vm1565, 0.0, %v8907
      %v8985 = vsel %vm1565, 0.0, %v8909
      %v8986 = vsel %vm1565, 0.0, %v8911
      %v8987 = vsel %vm1565, 0.0, %v8913
      %v8988 = vsel %vm1565, 0.0, %v8915
      %v8989 = vsel %vm1565, 0.0, %v8917
      %v8990 = vsel %vm1565, 0.0, %v8919
      %v8991 = vsel %vm1565, 0.0, %v8921
      %v8992 = vsel %vm1565, 0.0, %v8923
      %v8993 = vsel %vm1565, 0.0, %v8925
      %v8994 = vsel %vm1565, 0.0, %v8927
      %v8995 = vsel %vm1565, 0.0, %v8929
      %v8996 = vsel %vm1565, 0.0, %v8931
      %v8997 = vsel %vm1565, 0.0, %v8933
      %v8998 = vsel %vm1631, %v8966, 0.0
      %v8999 = vsel %vm1631, %v8967, 0.0
      %v9000 = vsel %vm1631, %v8968, 0.0
      %v9001 = vsel %vm1631, %v8969, 0.0
      %v9002 = vsel %vm1631, %v8970, 0.0
      %v9003 = vsel %vm1631, %v8971, 0.0
      %v9004 = vsel %vm1631, %v8972, 0.0
      %v9005 = vsel %vm1631, %v8973, 0.0
      %v9006 = vsel %vm1631, %v8974, 0.0
      %v9007 = vsel %vm1631, %v8975, 0.0
      %v9008 = vsel %vm1631, %v8976, 0.0
      %v9009 = vsel %vm1631, %v8977, 0.0
      %v9010 = vsel %vm1631, %v8978, 0.0
      %v9011 = vsel %vm1631, %v8979, 0.0
      %v9012 = vsel %vm1631, %v8980, 0.0
      %v9013 = vsel %vm1631, %v8981, 0.0
      %v9014 = vsel %vm1631, %v8982, 0.0
      %v9015 = vsel %vm1631, %v8983, 0.0
      %v9016 = vsel %vm1631, %v8984, 0.0
      %v9017 = vsel %vm1631, %v8985, 0.0
      %v9018 = vsel %vm1631, %v8986, 0.0
      %v9019 = vsel %vm1631, %v8987, 0.0
      %v9020 = vsel %vm1631, %v8988, 0.0
      %v9021 = vsel %vm1631, %v8989, 0.0
      %v9022 = vsel %vm1631, %v8990, 0.0
      %v9023 = vsel %vm1631, %v8991, 0.0
      %v9024 = vsel %vm1631, %v8992, 0.0
      %v9025 = vsel %vm1631, %v8993, 0.0
      %v9026 = vsel %vm1631, %v8994, 0.0
      %v9027 = vsel %vm1631, %v8995, 0.0
      %v9028 = vsel %vm1631, %v8996, 0.0
      %v9029 = vsel %vm1631, %v8997, 0.0
      %v9030 = vadd.f32 %v8680, %v8998
      %v9031 = vadd.f32 %v8685, %v8999
      %v9032 = vadd.f32 %v8690, %v9000
      %v9033 = vadd.f32 %v8695, %v9001
      %v9034 = vadd.f32 %v8700, %v9002
      %v9035 = vadd.f32 %v8705, %v9003
      %v9036 = vadd.f32 %v8710, %v9004
      %v9037 = vadd.f32 %v8715, %v9005
      %v9038 = vadd.f32 %v8720, %v9006
      %v9039 = vadd.f32 %v8725, %v9007
      %v9040 = vadd.f32 %v8730, %v9008
      %v9041 = vadd.f32 %v8735, %v9009
      %v9042 = vadd.f32 %v8740, %v9010
      %v9043 = vadd.f32 %v8745, %v9011
      %v9044 = vadd.f32 %v8750, %v9012
      %v9045 = vadd.f32 %v8755, %v9013
      %v9046 = vadd.f32 %v8760, %v9014
      %v9047 = vadd.f32 %v8765, %v9015
      %v9048 = vadd.f32 %v8770, %v9016
      %v9049 = vadd.f32 %v8775, %v9017
      %v9050 = vadd.f32 %v8780, %v9018
      %v9051 = vadd.f32 %v8785, %v9019
      %v9052 = vadd.f32 %v8790, %v9020
      %v9053 = vadd.f32 %v8795, %v9021
      %v9054 = vadd.f32 %v8800, %v9022
      %v9055 = vadd.f32 %v8805, %v9023
      %v9056 = vadd.f32 %v8810, %v9024
      %v9057 = vadd.f32 %v8815, %v9025
      %v9058 = vadd.f32 %v8820, %v9026
      %v9059 = vadd.f32 %v8825, %v9027
      %v9060 = vadd.f32 %v8830, %v9028
      %v9061 = vadd.f32 %v8835, %v9029
      %v9062 = vld [vmem:[%s11] sm:$0x1]
      %v9063 = vld [vmem:[%s12] sm:$0x1]
      %v9065 = vlaneseq
      %v9066 = vshrl.u32 %v9065, 7
      %v9067 = vsub.s32 0, %v9066
      %v9068 = vrot.slane %v9062, %v9067
      %v9070 = vmul.f32 %v9030, %v9068
      %v9071 = vmul.f32 %v9031, %v9068
      %v9072 = vmul.f32 %v9032, %v9068
      %v9073 = vmul.f32 %v9033, %v9068
      %v9074 = vmul.f32 %v9034, %v9068
      %v9075 = vmul.f32 %v9035, %v9068
      %v9076 = vmul.f32 %v9036, %v9068
      %v9077 = vmul.f32 %v9037, %v9068
      %v9078 = vmul.f32 %v9038, %v9068
      %v9079 = vmul.f32 %v9039, %v9068
      %v9080 = vmul.f32 %v9040, %v9068
      %v9081 = vmul.f32 %v9041, %v9068
      %v9082 = vmul.f32 %v9042, %v9068
      %v9083 = vmul.f32 %v9043, %v9068
      %v9084 = vmul.f32 %v9044, %v9068
      %v9085 = vmul.f32 %v9045, %v9068
      %v9086 = vmul.f32 %v9046, %v9068
      %v9087 = vmul.f32 %v9047, %v9068
      %v9088 = vmul.f32 %v9048, %v9068
      %v9089 = vmul.f32 %v9049, %v9068
      %v9090 = vmul.f32 %v9050, %v9068
      %v9091 = vmul.f32 %v9051, %v9068
      %v9092 = vmul.f32 %v9052, %v9068
      %v9093 = vmul.f32 %v9053, %v9068
      %v9094 = vmul.f32 %v9054, %v9068
      %v9095 = vmul.f32 %v9055, %v9068
      %v9096 = vmul.f32 %v9056, %v9068
      %v9097 = vmul.f32 %v9057, %v9068
      %v9098 = vmul.f32 %v9058, %v9068
      %v9099 = vmul.f32 %v9059, %v9068
      %v9100 = vmul.f32 %v9060, %v9068
      %v9101 = vmul.f32 %v9061, %v9068
      %v9103 = vlaneseq
      %v9104 = vshrl.u32 %v9103, 7
      %v9105 = vsub.s32 0, %v9104
      %v9106 = vrot.slane %v9063, %v9105
      %v9108 = vadd.f32 %v9070, %v9106
      %v9109 = vadd.f32 %v9071, %v9106
      %v9110 = vadd.f32 %v9072, %v9106
      %v9111 = vadd.f32 %v9073, %v9106
      %v9112 = vadd.f32 %v9074, %v9106
      %v9113 = vadd.f32 %v9075, %v9106
      %v9114 = vadd.f32 %v9076, %v9106
      %v9115 = vadd.f32 %v9077, %v9106
      %v9116 = vadd.f32 %v9078, %v9106
      %v9117 = vadd.f32 %v9079, %v9106
      %v9118 = vadd.f32 %v9080, %v9106
      %v9119 = vadd.f32 %v9081, %v9106
      %v9120 = vadd.f32 %v9082, %v9106
      %v9121 = vadd.f32 %v9083, %v9106
      %v9122 = vadd.f32 %v9084, %v9106
      %v9123 = vadd.f32 %v9085, %v9106
      %v9124 = vadd.f32 %v9086, %v9106
      %v9125 = vadd.f32 %v9087, %v9106
      %v9126 = vadd.f32 %v9088, %v9106
      %v9127 = vadd.f32 %v9089, %v9106
      %v9128 = vadd.f32 %v9090, %v9106
      %v9129 = vadd.f32 %v9091, %v9106
      %v9130 = vadd.f32 %v9092, %v9106
      %v9131 = vadd.f32 %v9093, %v9106
      %v9132 = vadd.f32 %v9094, %v9106
      %v9133 = vadd.f32 %v9095, %v9106
      %v9134 = vadd.f32 %v9096, %v9106
      %v9135 = vadd.f32 %v9097, %v9106
      %v9136 = vadd.f32 %v9098, %v9106
      %v9137 = vadd.f32 %v9099, %v9106
      %v9138 = vadd.f32 %v9100, %v9106
      %v9139 = vadd.f32 %v9101, %v9106
      %v9140 = vmax.f32 %v9108, 0.0
      %v9141 = vmax.f32 %v9109, 0.0
      %v9142 = vmax.f32 %v9110, 0.0
      %v9143 = vmax.f32 %v9111, 0.0
      %v9144 = vmax.f32 %v9112, 0.0
      %v9145 = vmax.f32 %v9113, 0.0
      %v9146 = vmax.f32 %v9114, 0.0
      %v9147 = vmax.f32 %v9115, 0.0
      %v9148 = vmax.f32 %v9116, 0.0
      %v9149 = vmax.f32 %v9117, 0.0
      %v9150 = vmax.f32 %v9118, 0.0
      %v9151 = vmax.f32 %v9119, 0.0
      %v9152 = vmax.f32 %v9120, 0.0
      %v9153 = vmax.f32 %v9121, 0.0
      %v9154 = vmax.f32 %v9122, 0.0
      %v9155 = vmax.f32 %v9123, 0.0
      %v9156 = vmax.f32 %v9124, 0.0
      %v9157 = vmax.f32 %v9125, 0.0
      %v9158 = vmax.f32 %v9126, 0.0
      %v9159 = vmax.f32 %v9127, 0.0
      %v9160 = vmax.f32 %v9128, 0.0
      %v9161 = vmax.f32 %v9129, 0.0
      %v9162 = vmax.f32 %v9130, 0.0
      %v9163 = vmax.f32 %v9131, 0.0
      %v9164 = vmax.f32 %v9132, 0.0
      %v9165 = vmax.f32 %v9133, 0.0
      %v9166 = vmax.f32 %v9134, 0.0
      %v9167 = vmax.f32 %v9135, 0.0
      %v9168 = vmax.f32 %v9136, 0.0
      %v9169 = vmax.f32 %v9137, 0.0
      %v9170 = vmax.f32 %v9138, 0.0
      %v9171 = vmax.f32 %v9139, 0.0
      %v9172 = vld [vmem:[%s13] sm:$0xff]
      %v9173 = vld [vmem:[%s13 + $0x8] sm:$0xff]
      %v9174 = vld [vmem:[%s13 + $0x10] sm:$0xff]
      %v9175 = vld [vmem:[%s13 + $0x18] sm:$0xff]
      %v9176 = vld [vmem:[%s13 + $0x20] sm:$0xff]
      %v9177 = vld [vmem:[%s13 + $0x28] sm:$0xff]
      %v9178 = vld [vmem:[%s13 + $0x30] sm:$0xff]
      %v9179 = vld [vmem:[%s13 + $0x38] sm:$0xff]
      %v9180 = vld [vmem:[%s13 + $0x40] sm:$0xff]
      %v9181 = vld [vmem:[%s13 + $0x48] sm:$0xff]
      %v9182 = vld [vmem:[%s13 + $0x50] sm:$0xff]
      %v9183 = vld [vmem:[%s13 + $0x58] sm:$0xff]
      %v9184 = vld [vmem:[%s13 + $0x60] sm:$0xff]
      %v9185 = vld [vmem:[%s13 + $0x68] sm:$0xff]
      %v9186 = vld [vmem:[%s13 + $0x70] sm:$0xff]
      %v9187 = vld [vmem:[%s13 + $0x78] sm:$0xff]
      %v9188 = vld [vmem:[%s13 + $0x80] sm:$0xff]
      %v9189 = vld [vmem:[%s13 + $0x88] sm:$0xff]
      %v9206 = vrot.slane %v9171, 7
      %v9207 = vrot.slane %v9141, 7
      %v9208 = vrot.slane %v9143, 7
      %v9209 = vrot.slane %v9145, 7
      %v9210 = vrot.slane %v9147, 7
      %v9211 = vrot.slane %v9149, 7
      %v9212 = vrot.slane %v9151, 7
      %v9213 = vrot.slane %v9153, 7
      %v9214 = vrot.slane %v9155, 7
      %v9215 = vrot.slane %v9157, 7
      %v9216 = vrot.slane %v9159, 7
      %v9217 = vrot.slane %v9161, 7
      %v9218 = vrot.slane %v9163, 7
      %v9219 = vrot.slane %v9165, 7
      %v9220 = vrot.slane %v9167, 7
      %v9221 = vrot.slane %v9169, 7
      %v9254 = vrot.slane %v9170, 7
      %v9255 = vsel %vm570, %v9254, %v9206
      %v9256 = vrot.slane %v9140, 7
      %v9257 = vsel %vm570, %v9256, %v9207
      %v9258 = vrot.slane %v9142, 7
      %v9259 = vsel %vm570, %v9258, %v9208
      %v9260 = vrot.slane %v9144, 7
      %v9261 = vsel %vm570, %v9260, %v9209
      %v9262 = vrot.slane %v9146, 7
      %v9263 = vsel %vm570, %v9262, %v9210
      %v9264 = vrot.slane %v9148, 7
      %v9265 = vsel %vm570, %v9264, %v9211
      %v9266 = vrot.slane %v9150, 7
      %v9267 = vsel %vm570, %v9266, %v9212
      %v9268 = vrot.slane %v9152, 7
      %v9269 = vsel %vm570, %v9268, %v9213
      %v9270 = vrot.slane %v9154, 7
      %v9271 = vsel %vm570, %v9270, %v9214
      %v9272 = vrot.slane %v9156, 7
      %v9273 = vsel %vm570, %v9272, %v9215
      %v9274 = vrot.slane %v9158, 7
      %v9275 = vsel %vm570, %v9274, %v9216
      %v9276 = vrot.slane %v9160, 7
      %v9277 = vsel %vm570, %v9276, %v9217
      %v9278 = vrot.slane %v9162, 7
      %v9279 = vsel %vm570, %v9278, %v9218
      %v9280 = vrot.slane %v9164, 7
      %v9281 = vsel %vm570, %v9280, %v9219
      %v9282 = vrot.slane %v9166, 7
      %v9283 = vsel %vm570, %v9282, %v9220
      %v9284 = vrot.slane %v9168, 7
      %v9285 = vsel %vm570, %v9284, %v9221
      %v9318 = vsel %vm570, %v9206, %v9254
      %v9319 = vsel %vm570, %v9207, %v9256
      %v9320 = vsel %vm570, %v9208, %v9258
      %v9321 = vsel %vm570, %v9209, %v9260
      %v9322 = vsel %vm570, %v9210, %v9262
      %v9323 = vsel %vm570, %v9211, %v9264
      %v9324 = vsel %vm570, %v9212, %v9266
      %v9325 = vsel %vm570, %v9213, %v9268
      %v9326 = vsel %vm570, %v9214, %v9270
      %v9327 = vsel %vm570, %v9215, %v9272
      %v9328 = vsel %vm570, %v9216, %v9274
      %v9329 = vsel %vm570, %v9217, %v9276
      %v9330 = vsel %vm570, %v9218, %v9278
      %v9331 = vsel %vm570, %v9219, %v9280
      %v9332 = vsel %vm570, %v9220, %v9282
      %v9333 = vsel %vm570, %v9221, %v9284
      %v9350 = vrot.slane %v9318, 1
      %v9351 = vrot.slane %v9255, 1
      %v9352 = vsel %vm667, %v9350, %v9351
      %v9353 = vsel %vm667, %v9351, %v9350
      %v9354 = vrot.slane %v9319, 1
      %v9355 = vrot.slane %v9257, 1
      %v9356 = vsel %vm667, %v9354, %v9355
      %v9357 = vsel %vm667, %v9355, %v9354
      %v9358 = vrot.slane %v9320, 1
      %v9359 = vrot.slane %v9259, 1
      %v9360 = vsel %vm667, %v9358, %v9359
      %v9361 = vsel %vm667, %v9359, %v9358
      %v9362 = vrot.slane %v9321, 1
      %v9363 = vrot.slane %v9261, 1
      %v9364 = vsel %vm667, %v9362, %v9363
      %v9365 = vsel %vm667, %v9363, %v9362
      %v9366 = vrot.slane %v9322, 1
      %v9367 = vrot.slane %v9263, 1
      %v9368 = vsel %vm667, %v9366, %v9367
      %v9369 = vsel %vm667, %v9367, %v9366
      %v9370 = vrot.slane %v9323, 1
      %v9371 = vrot.slane %v9265, 1
      %v9372 = vsel %vm667, %v9370, %v9371
      %v9373 = vsel %vm667, %v9371, %v9370
      %v9374 = vrot.slane %v9324, 1
      %v9375 = vrot.slane %v9267, 1
      %v9376 = vsel %vm667, %v9374, %v9375
      %v9377 = vsel %vm667, %v9375, %v9374
      %v9378 = vrot.slane %v9325, 1
      %v9379 = vrot.slane %v9269, 1
      %v9380 = vsel %vm667, %v9378, %v9379
      %v9381 = vsel %vm667, %v9379, %v9378
      %v9382 = vrot.slane %v9326, 1
      %v9383 = vrot.slane %v9271, 1
      %v9384 = vsel %vm667, %v9382, %v9383
      %v9385 = vsel %vm667, %v9383, %v9382
      %v9386 = vrot.slane %v9327, 1
      %v9387 = vrot.slane %v9273, 1
      %v9388 = vsel %vm667, %v9386, %v9387
      %v9389 = vsel %vm667, %v9387, %v9386
      %v9390 = vrot.slane %v9328, 1
      %v9391 = vrot.slane %v9275, 1
      %v9392 = vsel %vm667, %v9390, %v9391
      %v9393 = vsel %vm667, %v9391, %v9390
      %v9394 = vrot.slane %v9329, 1
      %v9395 = vrot.slane %v9277, 1
      %v9396 = vsel %vm667, %v9394, %v9395
      %v9397 = vsel %vm667, %v9395, %v9394
      %v9398 = vrot.slane %v9330, 1
      %v9399 = vrot.slane %v9279, 1
      %v9400 = vsel %vm667, %v9398, %v9399
      %v9401 = vsel %vm667, %v9399, %v9398
      %v9402 = vrot.slane %v9331, 1
      %v9403 = vrot.slane %v9281, 1
      %v9404 = vsel %vm667, %v9402, %v9403
      %v9405 = vsel %vm667, %v9403, %v9402
      %v9406 = vrot.slane %v9332, 1
      %v9407 = vrot.slane %v9283, 1
      %v9408 = vsel %vm667, %v9406, %v9407
      %v9409 = vsel %vm667, %v9407, %v9406
      %v9410 = vrot.slane %v9333, 1
      %v9411 = vrot.slane %v9285, 1
      %v9412 = vsel %vm667, %v9410, %v9411
      %v9413 = vsel %vm667, %v9411, %v9410
      %9414 = vrot.lane.b32.xlu0 %v9352, 16
      %v9415 = vpop.permute.xlu0 %9414
      %9416 = vrot.lane.b32.xlu0 %v9353, 16
      %v9417 = vpop.permute.xlu0 %9416
      %9418 = vrot.lane.b32.xlu0 %v9356, 16
      %v9419 = vpop.permute.xlu0 %9418
      %9420 = vrot.lane.b32.xlu0 %v9357, 16
      %v9421 = vpop.permute.xlu0 %9420
      %9422 = vrot.lane.b32.xlu0 %v9360, 16
      %v9423 = vpop.permute.xlu0 %9422
      %9424 = vrot.lane.b32.xlu0 %v9361, 16
      %v9425 = vpop.permute.xlu0 %9424
      %9426 = vrot.lane.b32.xlu0 %v9364, 16
      %v9427 = vpop.permute.xlu0 %9426
      %9428 = vrot.lane.b32.xlu0 %v9365, 16
      %v9429 = vpop.permute.xlu0 %9428
      %9430 = vrot.lane.b32.xlu0 %v9368, 16
      %v9431 = vpop.permute.xlu0 %9430
      %9432 = vrot.lane.b32.xlu0 %v9369, 16
      %v9433 = vpop.permute.xlu0 %9432
      %9434 = vrot.lane.b32.xlu0 %v9372, 16
      %v9435 = vpop.permute.xlu0 %9434
      %9436 = vrot.lane.b32.xlu0 %v9373, 16
      %v9437 = vpop.permute.xlu0 %9436
      %9438 = vrot.lane.b32.xlu0 %v9376, 16
      %v9439 = vpop.permute.xlu0 %9438
      %9440 = vrot.lane.b32.xlu0 %v9377, 16
      %v9441 = vpop.permute.xlu0 %9440
      %9442 = vrot.lane.b32.xlu0 %v9380, 16
      %v9443 = vpop.permute.xlu0 %9442
      %9444 = vrot.lane.b32.xlu0 %v9381, 16
      %v9445 = vpop.permute.xlu0 %9444
      %9446 = vrot.lane.b32.xlu0 %v9384, 16
      %v9447 = vpop.permute.xlu0 %9446
      %9448 = vrot.lane.b32.xlu0 %v9385, 16
      %v9449 = vpop.permute.xlu0 %9448
      %9450 = vrot.lane.b32.xlu0 %v9388, 16
      %v9451 = vpop.permute.xlu0 %9450
      %9452 = vrot.lane.b32.xlu0 %v9389, 16
      %v9453 = vpop.permute.xlu0 %9452
      %9454 = vrot.lane.b32.xlu0 %v9392, 16
      %v9455 = vpop.permute.xlu0 %9454
      %9456 = vrot.lane.b32.xlu0 %v9393, 16
      %v9457 = vpop.permute.xlu0 %9456
      %9458 = vrot.lane.b32.xlu0 %v9396, 16
      %v9459 = vpop.permute.xlu0 %9458
      %9460 = vrot.lane.b32.xlu0 %v9397, 16
      %v9461 = vpop.permute.xlu0 %9460
      %9462 = vrot.lane.b32.xlu0 %v9400, 16
      %v9463 = vpop.permute.xlu0 %9462
      %9464 = vrot.lane.b32.xlu0 %v9401, 16
      %v9465 = vpop.permute.xlu0 %9464
      %9466 = vrot.lane.b32.xlu0 %v9404, 16
      %v9467 = vpop.permute.xlu0 %9466
      %9468 = vrot.lane.b32.xlu0 %v9405, 16
      %v9469 = vpop.permute.xlu0 %9468
      %9470 = vrot.lane.b32.xlu0 %v9408, 16
      %v9471 = vpop.permute.xlu0 %9470
      %9472 = vrot.lane.b32.xlu0 %v9409, 16
      %v9473 = vpop.permute.xlu0 %9472
      %9474 = vrot.lane.b32.xlu0 %v9412, 16
      %v9475 = vpop.permute.xlu0 %9474
      %9476 = vrot.lane.b32.xlu0 %v9413, 16
      %v9477 = vpop.permute.xlu0 %9476
      %v9510 = vrot.slane %v9318, 2
      %v9511 = vrot.slane %v9255, 2
      %v9512 = vsel %vm828, %v9510, %v9511
      %v9513 = vsel %vm828, %v9511, %v9510
      %v9514 = vrot.slane %v9319, 2
      %v9515 = vrot.slane %v9257, 2
      %v9516 = vsel %vm828, %v9514, %v9515
      %v9517 = vsel %vm828, %v9515, %v9514
      %v9518 = vrot.slane %v9320, 2
      %v9519 = vrot.slane %v9259, 2
      %v9520 = vsel %vm828, %v9518, %v9519
      %v9521 = vsel %vm828, %v9519, %v9518
      %v9522 = vrot.slane %v9321, 2
      %v9523 = vrot.slane %v9261, 2
      %v9524 = vsel %vm828, %v9522, %v9523
      %v9525 = vsel %vm828, %v9523, %v9522
      %v9526 = vrot.slane %v9322, 2
      %v9527 = vrot.slane %v9263, 2
      %v9528 = vsel %vm828, %v9526, %v9527
      %v9529 = vsel %vm828, %v9527, %v9526
      %v9530 = vrot.slane %v9323, 2
      %v9531 = vrot.slane %v9265, 2
      %v9532 = vsel %vm828, %v9530, %v9531
      %v9533 = vsel %vm828, %v9531, %v9530
      %v9534 = vrot.slane %v9324, 2
      %v9535 = vrot.slane %v9267, 2
      %v9536 = vsel %vm828, %v9534, %v9535
      %v9537 = vsel %vm828, %v9535, %v9534
      %v9538 = vrot.slane %v9325, 2
      %v9539 = vrot.slane %v9269, 2
      %v9540 = vsel %vm828, %v9538, %v9539
      %v9541 = vsel %vm828, %v9539, %v9538
      %v9542 = vrot.slane %v9326, 2
      %v9543 = vrot.slane %v9271, 2
      %v9544 = vsel %vm828, %v9542, %v9543
      %v9545 = vsel %vm828, %v9543, %v9542
      %v9546 = vrot.slane %v9327, 2
      %v9547 = vrot.slane %v9273, 2
      %v9548 = vsel %vm828, %v9546, %v9547
      %v9549 = vsel %vm828, %v9547, %v9546
      %v9550 = vrot.slane %v9328, 2
      %v9551 = vrot.slane %v9275, 2
      %v9552 = vsel %vm828, %v9550, %v9551
      %v9553 = vsel %vm828, %v9551, %v9550
      %v9554 = vrot.slane %v9329, 2
      %v9555 = vrot.slane %v9277, 2
      %v9556 = vsel %vm828, %v9554, %v9555
      %v9557 = vsel %vm828, %v9555, %v9554
      %v9558 = vrot.slane %v9330, 2
      %v9559 = vrot.slane %v9279, 2
      %v9560 = vsel %vm828, %v9558, %v9559
      %v9561 = vsel %vm828, %v9559, %v9558
      %v9562 = vrot.slane %v9331, 2
      %v9563 = vrot.slane %v9281, 2
      %v9564 = vsel %vm828, %v9562, %v9563
      %v9565 = vsel %vm828, %v9563, %v9562
      %v9566 = vrot.slane %v9332, 2
      %v9567 = vrot.slane %v9283, 2
      %v9568 = vsel %vm828, %v9566, %v9567
      %v9569 = vsel %vm828, %v9567, %v9566
      %v9570 = vrot.slane %v9333, 2
      %v9571 = vrot.slane %v9285, 2
      %v9572 = vsel %vm828, %v9570, %v9571
      %v9573 = vsel %vm828, %v9571, %v9570
      %9574 = vrot.lane.b32.xlu0 %v9512, 32
      %v9575 = vpop.permute.xlu0 %9574
      %9576 = vrot.lane.b32.xlu0 %v9513, 32
      %v9577 = vpop.permute.xlu0 %9576
      %9578 = vrot.lane.b32.xlu0 %v9516, 32
      %v9579 = vpop.permute.xlu0 %9578
      %9580 = vrot.lane.b32.xlu0 %v9517, 32
      %v9581 = vpop.permute.xlu0 %9580
      %9582 = vrot.lane.b32.xlu0 %v9520, 32
      %v9583 = vpop.permute.xlu0 %9582
      %9584 = vrot.lane.b32.xlu0 %v9521, 32
      %v9585 = vpop.permute.xlu0 %9584
      %9586 = vrot.lane.b32.xlu0 %v9524, 32
      %v9587 = vpop.permute.xlu0 %9586
      %9588 = vrot.lane.b32.xlu0 %v9525, 32
      %v9589 = vpop.permute.xlu0 %9588
      %9590 = vrot.lane.b32.xlu0 %v9528, 32
      %v9591 = vpop.permute.xlu0 %9590
      %9592 = vrot.lane.b32.xlu0 %v9529, 32
      %v9593 = vpop.permute.xlu0 %9592
      %9594 = vrot.lane.b32.xlu0 %v9532, 32
      %v9595 = vpop.permute.xlu0 %9594
      %9596 = vrot.lane.b32.xlu0 %v9533, 32
      %v9597 = vpop.permute.xlu0 %9596
      %9598 = vrot.lane.b32.xlu0 %v9536, 32
      %v9599 = vpop.permute.xlu0 %9598
      %9600 = vrot.lane.b32.xlu0 %v9537, 32
      %v9601 = vpop.permute.xlu0 %9600
      %9602 = vrot.lane.b32.xlu0 %v9540, 32
      %v9603 = vpop.permute.xlu0 %9602
      %9604 = vrot.lane.b32.xlu0 %v9541, 32
      %v9605 = vpop.permute.xlu0 %9604
      %9606 = vrot.lane.b32.xlu0 %v9544, 32
      %v9607 = vpop.permute.xlu0 %9606
      %9608 = vrot.lane.b32.xlu0 %v9545, 32
      %v9609 = vpop.permute.xlu0 %9608
      %9610 = vrot.lane.b32.xlu0 %v9548, 32
      %v9611 = vpop.permute.xlu0 %9610
      %9612 = vrot.lane.b32.xlu0 %v9549, 32
      %v9613 = vpop.permute.xlu0 %9612
      %9614 = vrot.lane.b32.xlu0 %v9552, 32
      %v9615 = vpop.permute.xlu0 %9614
      %9616 = vrot.lane.b32.xlu0 %v9553, 32
      %v9617 = vpop.permute.xlu0 %9616
      %9618 = vrot.lane.b32.xlu0 %v9556, 32
      %v9619 = vpop.permute.xlu0 %9618
      %9620 = vrot.lane.b32.xlu0 %v9557, 32
      %v9621 = vpop.permute.xlu0 %9620
      %9622 = vrot.lane.b32.xlu0 %v9560, 32
      %v9623 = vpop.permute.xlu0 %9622
      %9624 = vrot.lane.b32.xlu0 %v9561, 32
      %v9625 = vpop.permute.xlu0 %9624
      %9626 = vrot.lane.b32.xlu0 %v9564, 32
      %v9627 = vpop.permute.xlu0 %9626
      %9628 = vrot.lane.b32.xlu0 %v9565, 32
      %v9629 = vpop.permute.xlu0 %9628
      %9630 = vrot.lane.b32.xlu0 %v9568, 32
      %v9631 = vpop.permute.xlu0 %9630
      %9632 = vrot.lane.b32.xlu0 %v9569, 32
      %v9633 = vpop.permute.xlu0 %9632
      %9634 = vrot.lane.b32.xlu0 %v9572, 32
      %v9635 = vpop.permute.xlu0 %9634
      %9636 = vrot.lane.b32.xlu0 %v9573, 32
      %v9637 = vpop.permute.xlu0 %9636
      %9670 = vrot.lane.b32.xlu0 %v9319, 48
      %v9671 = vpop.permute.xlu0 %9670
      %9672 = vrot.lane.b32.xlu0 %v9257, 48
      %v9673 = vpop.permute.xlu0 %9672
      %9674 = vrot.lane.b32.xlu0 %v9320, 48
      %v9675 = vpop.permute.xlu0 %9674
      %9676 = vrot.lane.b32.xlu0 %v9259, 48
      %v9677 = vpop.permute.xlu0 %9676
      %9678 = vrot.lane.b32.xlu0 %v9321, 48
      %v9679 = vpop.permute.xlu0 %9678
      %9680 = vrot.lane.b32.xlu0 %v9261, 48
      %v9681 = vpop.permute.xlu0 %9680
      %9682 = vrot.lane.b32.xlu0 %v9322, 48
      %v9683 = vpop.permute.xlu0 %9682
      %9684 = vrot.lane.b32.xlu0 %v9263, 48
      %v9685 = vpop.permute.xlu0 %9684
      %9686 = vrot.lane.b32.xlu0 %v9323, 48
      %v9687 = vpop.permute.xlu0 %9686
      %9688 = vrot.lane.b32.xlu0 %v9265, 48
      %v9689 = vpop.permute.xlu0 %9688
      %9690 = vrot.lane.b32.xlu0 %v9324, 48
      %v9691 = vpop.permute.xlu0 %9690
      %9692 = vrot.lane.b32.xlu0 %v9267, 48
      %v9693 = vpop.permute.xlu0 %9692
      %9694 = vrot.lane.b32.xlu0 %v9325, 48
      %v9695 = vpop.permute.xlu0 %9694
      %9696 = vrot.lane.b32.xlu0 %v9269, 48
      %v9697 = vpop.permute.xlu0 %9696
      %9698 = vrot.lane.b32.xlu0 %v9326, 48
      %v9699 = vpop.permute.xlu0 %9698
      %9700 = vrot.lane.b32.xlu0 %v9271, 48
      %v9701 = vpop.permute.xlu0 %9700
      %9702 = vrot.lane.b32.xlu0 %v9327, 48
      %v9703 = vpop.permute.xlu0 %9702
      %9704 = vrot.lane.b32.xlu0 %v9273, 48
      %v9705 = vpop.permute.xlu0 %9704
      %9706 = vrot.lane.b32.xlu0 %v9328, 48
      %v9707 = vpop.permute.xlu0 %9706
      %9708 = vrot.lane.b32.xlu0 %v9275, 48
      %v9709 = vpop.permute.xlu0 %9708
      %9710 = vrot.lane.b32.xlu0 %v9329, 48
      %v9711 = vpop.permute.xlu0 %9710
      %9712 = vrot.lane.b32.xlu0 %v9277, 48
      %v9713 = vpop.permute.xlu0 %9712
      %9714 = vrot.lane.b32.xlu0 %v9330, 48
      %v9715 = vpop.permute.xlu0 %9714
      %9716 = vrot.lane.b32.xlu0 %v9279, 48
      %v9717 = vpop.permute.xlu0 %9716
      %9718 = vrot.lane.b32.xlu0 %v9331, 48
      %v9719 = vpop.permute.xlu0 %9718
      %9720 = vrot.lane.b32.xlu0 %v9281, 48
      %v9721 = vpop.permute.xlu0 %9720
      %9722 = vrot.lane.b32.xlu0 %v9332, 48
      %v9723 = vpop.permute.xlu0 %9722
      %9724 = vrot.lane.b32.xlu0 %v9283, 48
      %v9725 = vpop.permute.xlu0 %9724
      %9726 = vrot.lane.b32.xlu0 %v9333, 48
      %v9727 = vpop.permute.xlu0 %9726
      %9728 = vrot.lane.b32.xlu0 %v9285, 48
      %v9729 = vpop.permute.xlu0 %9728
      %9730 = vrot.lane.b32.xlu0 %v9318, 48
      %v9731 = vpop.permute.xlu0 %9730
      %9732 = vrot.lane.b32.xlu0 %v9255, 48
      %v9733 = vpop.permute.xlu0 %9732
      %9766 = vrot.lane.b32.xlu0 %v9356, 64
      %v9767 = vpop.permute.xlu0 %9766
      %9768 = vrot.lane.b32.xlu0 %v9357, 64
      %v9769 = vpop.permute.xlu0 %9768
      %9770 = vrot.lane.b32.xlu0 %v9360, 64
      %v9771 = vpop.permute.xlu0 %9770
      %9772 = vrot.lane.b32.xlu0 %v9361, 64
      %v9773 = vpop.permute.xlu0 %9772
      %9774 = vrot.lane.b32.xlu0 %v9364, 64
      %v9775 = vpop.permute.xlu0 %9774
      %9776 = vrot.lane.b32.xlu0 %v9365, 64
      %v9777 = vpop.permute.xlu0 %9776
      %9778 = vrot.lane.b32.xlu0 %v9368, 64
      %v9779 = vpop.permute.xlu0 %9778
      %9780 = vrot.lane.b32.xlu0 %v9369, 64
      %v9781 = vpop.permute.xlu0 %9780
      %9782 = vrot.lane.b32.xlu0 %v9372, 64
      %v9783 = vpop.permute.xlu0 %9782
      %9784 = vrot.lane.b32.xlu0 %v9373, 64
      %v9785 = vpop.permute.xlu0 %9784
      %9786 = vrot.lane.b32.xlu0 %v9376, 64
      %v9787 = vpop.permute.xlu0 %9786
      %9788 = vrot.lane.b32.xlu0 %v9377, 64
      %v9789 = vpop.permute.xlu0 %9788
      %9790 = vrot.lane.b32.xlu0 %v9380, 64
      %v9791 = vpop.permute.xlu0 %9790
      %9792 = vrot.lane.b32.xlu0 %v9381, 64
      %v9793 = vpop.permute.xlu0 %9792
      %9794 = vrot.lane.b32.xlu0 %v9384, 64
      %v9795 = vpop.permute.xlu0 %9794
      %9796 = vrot.lane.b32.xlu0 %v9385, 64
      %v9797 = vpop.permute.xlu0 %9796
      %9798 = vrot.lane.b32.xlu0 %v9388, 64
      %v9799 = vpop.permute.xlu0 %9798
      %9800 = vrot.lane.b32.xlu0 %v9389, 64
      %v9801 = vpop.permute.xlu0 %9800
      %9802 = vrot.lane.b32.xlu0 %v9392, 64
      %v9803 = vpop.permute.xlu0 %9802
      %9804 = vrot.lane.b32.xlu0 %v9393, 64
      %v9805 = vpop.permute.xlu0 %9804
      %9806 = vrot.lane.b32.xlu0 %v9396, 64
      %v9807 = vpop.permute.xlu0 %9806
      %9808 = vrot.lane.b32.xlu0 %v9397, 64
      %v9809 = vpop.permute.xlu0 %9808
      %9810 = vrot.lane.b32.xlu0 %v9400, 64
      %v9811 = vpop.permute.xlu0 %9810
      %9812 = vrot.lane.b32.xlu0 %v9401, 64
      %v9813 = vpop.permute.xlu0 %9812
      %9814 = vrot.lane.b32.xlu0 %v9404, 64
      %v9815 = vpop.permute.xlu0 %9814
      %9816 = vrot.lane.b32.xlu0 %v9405, 64
      %v9817 = vpop.permute.xlu0 %9816
      %9818 = vrot.lane.b32.xlu0 %v9408, 64
      %v9819 = vpop.permute.xlu0 %9818
      %9820 = vrot.lane.b32.xlu0 %v9409, 64
      %v9821 = vpop.permute.xlu0 %9820
      %9822 = vrot.lane.b32.xlu0 %v9412, 64
      %v9823 = vpop.permute.xlu0 %9822
      %9824 = vrot.lane.b32.xlu0 %v9413, 64
      %v9825 = vpop.permute.xlu0 %9824
      %9826 = vrot.lane.b32.xlu0 %v9352, 64
      %v9827 = vpop.permute.xlu0 %9826
      %9828 = vrot.lane.b32.xlu0 %v9353, 64
      %v9829 = vpop.permute.xlu0 %9828
      %9862 = vrot.lane.b32.xlu0 %v9516, 80
      %v9863 = vpop.permute.xlu0 %9862
      %9864 = vrot.lane.b32.xlu0 %v9517, 80
      %v9865 = vpop.permute.xlu0 %9864
      %9866 = vrot.lane.b32.xlu0 %v9520, 80
      %v9867 = vpop.permute.xlu0 %9866
      %9868 = vrot.lane.b32.xlu0 %v9521, 80
      %v9869 = vpop.permute.xlu0 %9868
      %9870 = vrot.lane.b32.xlu0 %v9524, 80
      %v9871 = vpop.permute.xlu0 %9870
      %9872 = vrot.lane.b32.xlu0 %v9525, 80
      %v9873 = vpop.permute.xlu0 %9872
      %9874 = vrot.lane.b32.xlu0 %v9528, 80
      %v9875 = vpop.permute.xlu0 %9874
      %9876 = vrot.lane.b32.xlu0 %v9529, 80
      %v9877 = vpop.permute.xlu0 %9876
      %9878 = vrot.lane.b32.xlu0 %v9532, 80
      %v9879 = vpop.permute.xlu0 %9878
      %9880 = vrot.lane.b32.xlu0 %v9533, 80
      %v9881 = vpop.permute.xlu0 %9880
      %9882 = vrot.lane.b32.xlu0 %v9536, 80
      %v9883 = vpop.permute.xlu0 %9882
      %9884 = vrot.lane.b32.xlu0 %v9537, 80
      %v9885 = vpop.permute.xlu0 %9884
      %9886 = vrot.lane.b32.xlu0 %v9540, 80
      %v9887 = vpop.permute.xlu0 %9886
      %9888 = vrot.lane.b32.xlu0 %v9541, 80
      %v9889 = vpop.permute.xlu0 %9888
      %9890 = vrot.lane.b32.xlu0 %v9544, 80
      %v9891 = vpop.permute.xlu0 %9890
      %9892 = vrot.lane.b32.xlu0 %v9545, 80
      %v9893 = vpop.permute.xlu0 %9892
      %9894 = vrot.lane.b32.xlu0 %v9548, 80
      %v9895 = vpop.permute.xlu0 %9894
      %9896 = vrot.lane.b32.xlu0 %v9549, 80
      %v9897 = vpop.permute.xlu0 %9896
      %9898 = vrot.lane.b32.xlu0 %v9552, 80
      %v9899 = vpop.permute.xlu0 %9898
      %9900 = vrot.lane.b32.xlu0 %v9553, 80
      %v9901 = vpop.permute.xlu0 %9900
      %9902 = vrot.lane.b32.xlu0 %v9556, 80
      %v9903 = vpop.permute.xlu0 %9902
      %9904 = vrot.lane.b32.xlu0 %v9557, 80
      %v9905 = vpop.permute.xlu0 %9904
      %9906 = vrot.lane.b32.xlu0 %v9560, 80
      %v9907 = vpop.permute.xlu0 %9906
      %9908 = vrot.lane.b32.xlu0 %v9561, 80
      %v9909 = vpop.permute.xlu0 %9908
      %9910 = vrot.lane.b32.xlu0 %v9564, 80
      %v9911 = vpop.permute.xlu0 %9910
      %9912 = vrot.lane.b32.xlu0 %v9565, 80
      %v9913 = vpop.permute.xlu0 %9912
      %9914 = vrot.lane.b32.xlu0 %v9568, 80
      %v9915 = vpop.permute.xlu0 %9914
      %9916 = vrot.lane.b32.xlu0 %v9569, 80
      %v9917 = vpop.permute.xlu0 %9916
      %9918 = vrot.lane.b32.xlu0 %v9572, 80
      %v9919 = vpop.permute.xlu0 %9918
      %9920 = vrot.lane.b32.xlu0 %v9573, 80
      %v9921 = vpop.permute.xlu0 %9920
      %9922 = vrot.lane.b32.xlu0 %v9512, 80
      %v9923 = vpop.permute.xlu0 %9922
      %9924 = vrot.lane.b32.xlu0 %v9513, 80
      %v9925 = vpop.permute.xlu0 %9924
      %9958 = vrot.lane.b32.xlu0 %v9320, 96
      %v9959 = vpop.permute.xlu0 %9958
      %9960 = vrot.lane.b32.xlu0 %v9259, 96
      %v9961 = vpop.permute.xlu0 %9960
      %9962 = vrot.lane.b32.xlu0 %v9321, 96
      %v9963 = vpop.permute.xlu0 %9962
      %9964 = vrot.lane.b32.xlu0 %v9261, 96
      %v9965 = vpop.permute.xlu0 %9964
      %9966 = vrot.lane.b32.xlu0 %v9322, 96
      %v9967 = vpop.permute.xlu0 %9966
      %9968 = vrot.lane.b32.xlu0 %v9263, 96
      %v9969 = vpop.permute.xlu0 %9968
      %9970 = vrot.lane.b32.xlu0 %v9323, 96
      %v9971 = vpop.permute.xlu0 %9970
      %9972 = vrot.lane.b32.xlu0 %v9265, 96
      %v9973 = vpop.permute.xlu0 %9972
      %9974 = vrot.lane.b32.xlu0 %v9324, 96
      %v9975 = vpop.permute.xlu0 %9974
      %9976 = vrot.lane.b32.xlu0 %v9267, 96
      %v9977 = vpop.permute.xlu0 %9976
      %9978 = vrot.lane.b32.xlu0 %v9325, 96
      %v9979 = vpop.permute.xlu0 %9978
      %9980 = vrot.lane.b32.xlu0 %v9269, 96
      %v9981 = vpop.permute.xlu0 %9980
      %9982 = vrot.lane.b32.xlu0 %v9326, 96
      %v9983 = vpop.permute.xlu0 %9982
      %9984 = vrot.lane.b32.xlu0 %v9271, 96
      %v9985 = vpop.permute.xlu0 %9984
      %9986 = vrot.lane.b32.xlu0 %v9327, 96
      %v9987 = vpop.permute.xlu0 %9986
      %9988 = vrot.lane.b32.xlu0 %v9273, 96
      %v9989 = vpop.permute.xlu0 %9988
      %9990 = vrot.lane.b32.xlu0 %v9328, 96
      %v9991 = vpop.permute.xlu0 %9990
      %9992 = vrot.lane.b32.xlu0 %v9275, 96
      %v9993 = vpop.permute.xlu0 %9992
      %9994 = vrot.lane.b32.xlu0 %v9329, 96
      %v9995 = vpop.permute.xlu0 %9994
      %9996 = vrot.lane.b32.xlu0 %v9277, 96
      %v9997 = vpop.permute.xlu0 %9996
      %9998 = vrot.lane.b32.xlu0 %v9330, 96
      %v9999 = vpop.permute.xlu0 %9998
      %10000 = vrot.lane.b32.xlu0 %v9279, 96
      %v10001 = vpop.permute.xlu0 %10000
      %10002 = vrot.lane.b32.xlu0 %v9331, 96
      %v10003 = vpop.permute.xlu0 %10002
      %10004 = vrot.lane.b32.xlu0 %v9281, 96
      %v10005 = vpop.permute.xlu0 %10004
      %10006 = vrot.lane.b32.xlu0 %v9332, 96
      %v10007 = vpop.permute.xlu0 %10006
      %10008 = vrot.lane.b32.xlu0 %v9283, 96
      %v10009 = vpop.permute.xlu0 %10008
      %10010 = vrot.lane.b32.xlu0 %v9333, 96
      %v10011 = vpop.permute.xlu0 %10010
      %10012 = vrot.lane.b32.xlu0 %v9285, 96
      %v10013 = vpop.permute.xlu0 %10012
      %10014 = vrot.lane.b32.xlu0 %v9318, 96
      %v10015 = vpop.permute.xlu0 %10014
      %10016 = vrot.lane.b32.xlu0 %v9255, 96
      %v10017 = vpop.permute.xlu0 %10016
      %10018 = vrot.lane.b32.xlu0 %v9319, 96
      %v10019 = vpop.permute.xlu0 %10018
      %10020 = vrot.lane.b32.xlu0 %v9257, 96
      %v10021 = vpop.permute.xlu0 %10020
      %10054 = vrot.lane.b32.xlu0 %v9360, 112
      %v10055 = vpop.permute.xlu0 %10054
      %10056 = vrot.lane.b32.xlu0 %v9361, 112
      %v10057 = vpop.permute.xlu0 %10056
      %10058 = vrot.lane.b32.xlu0 %v9364, 112
      %v10059 = vpop.permute.xlu0 %10058
      %10060 = vrot.lane.b32.xlu0 %v9365, 112
      %v10061 = vpop.permute.xlu0 %10060
      %10062 = vrot.lane.b32.xlu0 %v9368, 112
      %v10063 = vpop.permute.xlu0 %10062
      %10064 = vrot.lane.b32.xlu0 %v9369, 112
      %v10065 = vpop.permute.xlu0 %10064
      %10066 = vrot.lane.b32.xlu0 %v9372, 112
      %v10067 = vpop.permute.xlu0 %10066
      %10068 = vrot.lane.b32.xlu0 %v9373, 112
      %v10069 = vpop.permute.xlu0 %10068
      %10070 = vrot.lane.b32.xlu0 %v9376, 112
      %v10071 = vpop.permute.xlu0 %10070
      %10072 = vrot.lane.b32.xlu0 %v9377, 112
      %v10073 = vpop.permute.xlu0 %10072
      %10074 = vrot.lane.b32.xlu0 %v9380, 112
      %v10075 = vpop.permute.xlu0 %10074
      %10076 = vrot.lane.b32.xlu0 %v9381, 112
      %v10077 = vpop.permute.xlu0 %10076
      %10078 = vrot.lane.b32.xlu0 %v9384, 112
      %v10079 = vpop.permute.xlu0 %10078
      %10080 = vrot.lane.b32.xlu0 %v9385, 112
      %v10081 = vpop.permute.xlu0 %10080
      %10082 = vrot.lane.b32.xlu0 %v9388, 112
      %v10083 = vpop.permute.xlu0 %10082
      %10084 = vrot.lane.b32.xlu0 %v9389, 112
      %v10085 = vpop.permute.xlu0 %10084
      %10086 = vrot.lane.b32.xlu0 %v9392, 112
      %v10087 = vpop.permute.xlu0 %10086
      %10088 = vrot.lane.b32.xlu0 %v9393, 112
      %v10089 = vpop.permute.xlu0 %10088
      %10090 = vrot.lane.b32.xlu0 %v9396, 112
      %v10091 = vpop.permute.xlu0 %10090
      %10092 = vrot.lane.b32.xlu0 %v9397, 112
      %v10093 = vpop.permute.xlu0 %10092
      %10094 = vrot.lane.b32.xlu0 %v9400, 112
      %v10095 = vpop.permute.xlu0 %10094
      %10096 = vrot.lane.b32.xlu0 %v9401, 112
      %v10097 = vpop.permute.xlu0 %10096
      %10098 = vrot.lane.b32.xlu0 %v9404, 112
      %v10099 = vpop.permute.xlu0 %10098
      %10100 = vrot.lane.b32.xlu0 %v9405, 112
      %v10101 = vpop.permute.xlu0 %10100
      %10102 = vrot.lane.b32.xlu0 %v9408, 112
      %v10103 = vpop.permute.xlu0 %10102
      %10104 = vrot.lane.b32.xlu0 %v9409, 112
      %v10105 = vpop.permute.xlu0 %10104
      %10106 = vrot.lane.b32.xlu0 %v9412, 112
      %v10107 = vpop.permute.xlu0 %10106
      %10108 = vrot.lane.b32.xlu0 %v9413, 112
      %v10109 = vpop.permute.xlu0 %10108
      %10110 = vrot.lane.b32.xlu0 %v9352, 112
      %v10111 = vpop.permute.xlu0 %10110
      %10112 = vrot.lane.b32.xlu0 %v9353, 112
      %v10113 = vpop.permute.xlu0 %10112
      %10114 = vrot.lane.b32.xlu0 %v9356, 112
      %v10115 = vpop.permute.xlu0 %10114
      %10116 = vrot.lane.b32.xlu0 %v9357, 112
      %v10117 = vpop.permute.xlu0 %10116
      %v10150 = vsel %vm1664, %v9318, %v9415
      %v10151 = vsel %vm1664, %v9255, %v9417
      %v10152 = vsel %vm1664, %v9319, %v9419
      %v10153 = vsel %vm1664, %v9257, %v9421
      %v10154 = vsel %vm1664, %v9320, %v9423
      %v10155 = vsel %vm1664, %v9259, %v9425
      %v10156 = vsel %vm1664, %v9321, %v9427
      %v10157 = vsel %vm1664, %v9261, %v9429
      %v10158 = vsel %vm1664, %v9322, %v9431
      %v10159 = vsel %vm1664, %v9263, %v9433
      %v10160 = vsel %vm1664, %v9323, %v9435
      %v10161 = vsel %vm1664, %v9265, %v9437
      %v10162 = vsel %vm1664, %v9324, %v9439
      %v10163 = vsel %vm1664, %v9267, %v9441
      %v10164 = vsel %vm1664, %v9325, %v9443
      %v10165 = vsel %vm1664, %v9269, %v9445
      %v10166 = vsel %vm1664, %v9326, %v9447
      %v10167 = vsel %vm1664, %v9271, %v9449
      %v10168 = vsel %vm1664, %v9327, %v9451
      %v10169 = vsel %vm1664, %v9273, %v9453
      %v10170 = vsel %vm1664, %v9328, %v9455
      %v10171 = vsel %vm1664, %v9275, %v9457
      %v10172 = vsel %vm1664, %v9329, %v9459
      %v10173 = vsel %vm1664, %v9277, %v9461
      %v10174 = vsel %vm1664, %v9330, %v9463
      %v10175 = vsel %vm1664, %v9279, %v9465
      %v10176 = vsel %vm1664, %v9331, %v9467
      %v10177 = vsel %vm1664, %v9281, %v9469
      %v10178 = vsel %vm1664, %v9332, %v9471
      %v10179 = vsel %vm1664, %v9283, %v9473
      %v10180 = vsel %vm1664, %v9333, %v9475
      %v10181 = vsel %vm1664, %v9285, %v9477
      %v10182 = vsel %vm1796, %v10150, %v9575
      %v10183 = vsel %vm1796, %v10151, %v9577
      %v10184 = vsel %vm1796, %v10152, %v9579
      %v10185 = vsel %vm1796, %v10153, %v9581
      %v10186 = vsel %vm1796, %v10154, %v9583
      %v10187 = vsel %vm1796, %v10155, %v9585
      %v10188 = vsel %vm1796, %v10156, %v9587
      %v10189 = vsel %vm1796, %v10157, %v9589
      %v10190 = vsel %vm1796, %v10158, %v9591
      %v10191 = vsel %vm1796, %v10159, %v9593
      %v10192 = vsel %vm1796, %v10160, %v9595
      %v10193 = vsel %vm1796, %v10161, %v9597
      %v10194 = vsel %vm1796, %v10162, %v9599
      %v10195 = vsel %vm1796, %v10163, %v9601
      %v10196 = vsel %vm1796, %v10164, %v9603
      %v10197 = vsel %vm1796, %v10165, %v9605
      %v10198 = vsel %vm1796, %v10166, %v9607
      %v10199 = vsel %vm1796, %v10167, %v9609
      %v10200 = vsel %vm1796, %v10168, %v9611
      %v10201 = vsel %vm1796, %v10169, %v9613
      %v10202 = vsel %vm1796, %v10170, %v9615
      %v10203 = vsel %vm1796, %v10171, %v9617
      %v10204 = vsel %vm1796, %v10172, %v9619
      %v10205 = vsel %vm1796, %v10173, %v9621
      %v10206 = vsel %vm1796, %v10174, %v9623
      %v10207 = vsel %vm1796, %v10175, %v9625
      %v10208 = vsel %vm1796, %v10176, %v9627
      %v10209 = vsel %vm1796, %v10177, %v9629
      %v10210 = vsel %vm1796, %v10178, %v9631
      %v10211 = vsel %vm1796, %v10179, %v9633
      %v10212 = vsel %vm1796, %v10180, %v9635
      %v10213 = vsel %vm1796, %v10181, %v9637
      %v10214 = vsel %vm3420, %v10182, %v9671
      %v10215 = vsel %vm3420, %v10183, %v9673
      %v10216 = vsel %vm3420, %v10184, %v9675
      %v10217 = vsel %vm3420, %v10185, %v9677
      %v10218 = vsel %vm3420, %v10186, %v9679
      %v10219 = vsel %vm3420, %v10187, %v9681
      %v10220 = vsel %vm3420, %v10188, %v9683
      %v10221 = vsel %vm3420, %v10189, %v9685
      %v10222 = vsel %vm3420, %v10190, %v9687
      %v10223 = vsel %vm3420, %v10191, %v9689
      %v10224 = vsel %vm3420, %v10192, %v9691
      %v10225 = vsel %vm3420, %v10193, %v9693
      %v10226 = vsel %vm3420, %v10194, %v9695
      %v10227 = vsel %vm3420, %v10195, %v9697
      %v10228 = vsel %vm3420, %v10196, %v9699
      %v10229 = vsel %vm3420, %v10197, %v9701
      %v10230 = vsel %vm3420, %v10198, %v9703
      %v10231 = vsel %vm3420, %v10199, %v9705
      %v10232 = vsel %vm3420, %v10200, %v9707
      %v10233 = vsel %vm3420, %v10201, %v9709
      %v10234 = vsel %vm3420, %v10202, %v9711
      %v10235 = vsel %vm3420, %v10203, %v9713
      %v10236 = vsel %vm3420, %v10204, %v9715
      %v10237 = vsel %vm3420, %v10205, %v9717
      %v10238 = vsel %vm3420, %v10206, %v9719
      %v10239 = vsel %vm3420, %v10207, %v9721
      %v10240 = vsel %vm3420, %v10208, %v9723
      %v10241 = vsel %vm3420, %v10209, %v9725
      %v10242 = vsel %vm3420, %v10210, %v9727
      %v10243 = vsel %vm3420, %v10211, %v9729
      %v10244 = vsel %vm3420, %v10212, %v9731
      %v10245 = vsel %vm3420, %v10213, %v9733
      %v10246 = vsel %vm3486, %v10214, %v9767
      %v10247 = vsel %vm3486, %v10215, %v9769
      %v10248 = vsel %vm3486, %v10216, %v9771
      %v10249 = vsel %vm3486, %v10217, %v9773
      %v10250 = vsel %vm3486, %v10218, %v9775
      %v10251 = vsel %vm3486, %v10219, %v9777
      %v10252 = vsel %vm3486, %v10220, %v9779
      %v10253 = vsel %vm3486, %v10221, %v9781
      %v10254 = vsel %vm3486, %v10222, %v9783
      %v10255 = vsel %vm3486, %v10223, %v9785
      %v10256 = vsel %vm3486, %v10224, %v9787
      %v10257 = vsel %vm3486, %v10225, %v9789
      %v10258 = vsel %vm3486, %v10226, %v9791
      %v10259 = vsel %vm3486, %v10227, %v9793
      %v10260 = vsel %vm3486, %v10228, %v9795
      %v10261 = vsel %vm3486, %v10229, %v9797
      %v10262 = vsel %vm3486, %v10230, %v9799
      %v10263 = vsel %vm3486, %v10231, %v9801
      %v10264 = vsel %vm3486, %v10232, %v9803
      %v10265 = vsel %vm3486, %v10233, %v9805
      %v10266 = vsel %vm3486, %v10234, %v9807
      %v10267 = vsel %vm3486, %v10235, %v9809
      %v10268 = vsel %vm3486, %v10236, %v9811
      %v10269 = vsel %vm3486, %v10237, %v9813
      %v10270 = vsel %vm3486, %v10238, %v9815
      %v10271 = vsel %vm3486, %v10239, %v9817
      %v10272 = vsel %vm3486, %v10240, %v9819
      %v10273 = vsel %vm3486, %v10241, %v9821
      %v10274 = vsel %vm3486, %v10242, %v9823
      %v10275 = vsel %vm3486, %v10243, %v9825
      %v10276 = vsel %vm3486, %v10244, %v9827
      %v10277 = vsel %vm3486, %v10245, %v9829
      %v10278 = vsel %vm8450, %v10246, %v9863
      %v10279 = vsel %vm8450, %v10247, %v9865
      %v10280 = vsel %vm8450, %v10248, %v9867
      %v10281 = vsel %vm8450, %v10249, %v9869
      %v10282 = vsel %vm8450, %v10250, %v9871
      %v10283 = vsel %vm8450, %v10251, %v9873
      %v10284 = vsel %vm8450, %v10252, %v9875
      %v10285 = vsel %vm8450, %v10253, %v9877
      %v10286 = vsel %vm8450, %v10254, %v9879
      %v10287 = vsel %vm8450, %v10255, %v9881
      %v10288 = vsel %vm8450, %v10256, %v9883
      %v10289 = vsel %vm8450, %v10257, %v9885
      %v10290 = vsel %vm8450, %v10258, %v9887
      %v10291 = vsel %vm8450, %v10259, %v9889
      %v10292 = vsel %vm8450, %v10260, %v9891
      %v10293 = vsel %vm8450, %v10261, %v9893
      %v10294 = vsel %vm8450, %v10262, %v9895
      %v10295 = vsel %vm8450, %v10263, %v9897
      %v10296 = vsel %vm8450, %v10264, %v9899
      %v10297 = vsel %vm8450, %v10265, %v9901
      %v10298 = vsel %vm8450, %v10266, %v9903
      %v10299 = vsel %vm8450, %v10267, %v9905
      %v10300 = vsel %vm8450, %v10268, %v9907
      %v10301 = vsel %vm8450, %v10269, %v9909
      %v10302 = vsel %vm8450, %v10270, %v9911
      %v10303 = vsel %vm8450, %v10271, %v9913
      %v10304 = vsel %vm8450, %v10272, %v9915
      %v10305 = vsel %vm8450, %v10273, %v9917
      %v10306 = vsel %vm8450, %v10274, %v9919
      %v10307 = vsel %vm8450, %v10275, %v9921
      %v10308 = vsel %vm8450, %v10276, %v9923
      %v10309 = vsel %vm8450, %v10277, %v9925
      %v10310 = vsel %vm8483, %v10278, %v9959
      %v10311 = vsel %vm8483, %v10279, %v9961
      %v10312 = vsel %vm8483, %v10280, %v9963
      %v10313 = vsel %vm8483, %v10281, %v9965
      %v10314 = vsel %vm8483, %v10282, %v9967
      %v10315 = vsel %vm8483, %v10283, %v9969
      %v10316 = vsel %vm8483, %v10284, %v9971
      %v10317 = vsel %vm8483, %v10285, %v9973
      %v10318 = vsel %vm8483, %v10286, %v9975
      %v10319 = vsel %vm8483, %v10287, %v9977
      %v10320 = vsel %vm8483, %v10288, %v9979
      %v10321 = vsel %vm8483, %v10289, %v9981
      %v10322 = vsel %vm8483, %v10290, %v9983
      %v10323 = vsel %vm8483, %v10291, %v9985
      %v10324 = vsel %vm8483, %v10292, %v9987
      %v10325 = vsel %vm8483, %v10293, %v9989
      %v10326 = vsel %vm8483, %v10294, %v9991
      %v10327 = vsel %vm8483, %v10295, %v9993
      %v10328 = vsel %vm8483, %v10296, %v9995
      %v10329 = vsel %vm8483, %v10297, %v9997
      %v10330 = vsel %vm8483, %v10298, %v9999
      %v10331 = vsel %vm8483, %v10299, %v10001
      %v10332 = vsel %vm8483, %v10300, %v10003
      %v10333 = vsel %vm8483, %v10301, %v10005
      %v10334 = vsel %vm8483, %v10302, %v10007
      %v10335 = vsel %vm8483, %v10303, %v10009
      %v10336 = vsel %vm8483, %v10304, %v10011
      %v10337 = vsel %vm8483, %v10305, %v10013
      %v10338 = vsel %vm8483, %v10306, %v10015
      %v10339 = vsel %vm8483, %v10307, %v10017
      %v10340 = vsel %vm8483, %v10308, %v10019
      %v10341 = vsel %vm8483, %v10309, %v10021
      %v10342 = vsel %vm8516, %v10310, %v10055
      %v10343 = vsel %vm8516, %v10311, %v10057
      %v10344 = vsel %vm8516, %v10312, %v10059
      %v10345 = vsel %vm8516, %v10313, %v10061
      %v10346 = vsel %vm8516, %v10314, %v10063
      %v10347 = vsel %vm8516, %v10315, %v10065
      %v10348 = vsel %vm8516, %v10316, %v10067
      %v10349 = vsel %vm8516, %v10317, %v10069
      %v10350 = vsel %vm8516, %v10318, %v10071
      %v10351 = vsel %vm8516, %v10319, %v10073
      %v10352 = vsel %vm8516, %v10320, %v10075
      %v10353 = vsel %vm8516, %v10321, %v10077
      %v10354 = vsel %vm8516, %v10322, %v10079
      %v10355 = vsel %vm8516, %v10323, %v10081
      %v10356 = vsel %vm8516, %v10324, %v10083
      %v10357 = vsel %vm8516, %v10325, %v10085
      %v10358 = vsel %vm8516, %v10326, %v10087
      %v10359 = vsel %vm8516, %v10327, %v10089
      %v10360 = vsel %vm8516, %v10328, %v10091
      %v10361 = vsel %vm8516, %v10329, %v10093
      %v10362 = vsel %vm8516, %v10330, %v10095
      %v10363 = vsel %vm8516, %v10331, %v10097
      %v10364 = vsel %vm8516, %v10332, %v10099
      %v10365 = vsel %vm8516, %v10333, %v10101
      %v10366 = vsel %vm8516, %v10334, %v10103
      %v10367 = vsel %vm8516, %v10335, %v10105
      %v10368 = vsel %vm8516, %v10336, %v10107
      %v10369 = vsel %vm8516, %v10337, %v10109
      %v10370 = vsel %vm8516, %v10338, %v10111
      %v10371 = vsel %vm8516, %v10339, %v10113
      %v10372 = vsel %vm8516, %v10340, %v10115
      %v10373 = vsel %vm8516, %v10341, %v10117
      %v10374 = vsel %vm1664, %v9520, 0
      %v10376 = vsel %vm1664, %v9521, 0
      %v10378 = vsel %vm1664, %v9524, 0
      %v10380 = vsel %vm1664, %v9525, 0
      %v10382 = vsel %vm1664, %v9528, 0
      %v10384 = vsel %vm1664, %v9529, 0
      %v10386 = vsel %vm1664, %v9532, 0
      %v10388 = vsel %vm1664, %v9533, 0
      %v10390 = vsel %vm1664, %v9536, 0
      %v10392 = vsel %vm1664, %v9537, 0
      %v10394 = vsel %vm1664, %v9540, 0
      %v10396 = vsel %vm1664, %v9541, 0
      %v10398 = vsel %vm1664, %v9544, 0
      %v10400 = vsel %vm1664, %v9545, 0
      %v10402 = vsel %vm1664, %v9548, 0
      %v10404 = vsel %vm1664, %v9549, 0
      %v10406 = vsel %vm1664, %v9552, 0
      %v10408 = vsel %vm1664, %v9553, 0
      %v10410 = vsel %vm1664, %v9556, 0
      %v10412 = vsel %vm1664, %v9557, 0
      %v10414 = vsel %vm1664, %v9560, 0
      %v10416 = vsel %vm1664, %v9561, 0
      %v10418 = vsel %vm1664, %v9564, 0
      %v10420 = vsel %vm1664, %v9565, 0
      %v10422 = vsel %vm1664, %v9568, 0
      %v10424 = vsel %vm1664, %v9569, 0
      %v10426 = vsel %vm1664, %v9572, 0
      %v10428 = vsel %vm1664, %v9573, 0
      %v10430 = vsel %vm1664, %v9512, 0
      %v10432 = vsel %vm1664, %v9513, 0
      %v10434 = vsel %vm1664, %v9516, 0
      %v10436 = vsel %vm1664, %v9517, 0
      %10438 = vmatprep.subr.mxu0 0.0
      %10439 = vmatpush1.msra.mxu0 %v9187
      %10440 = vmatprep.subr.mxu0 0.0
      %10441 = vmatpush1.msra.mxu0 %v9186
      %10442 = vmatprep.subr.mxu0 0.0
      %10443 = vmatpush1.msra.mxu0 %v9185
      %10444 = vmatprep.subr.mxu0 0.0
      %10445 = vmatpush1.msra.mxu0 %v9184
      %10446 = vmatprep.subr.mxu0 0.0
      %10447 = vmatpush1.msra.mxu0 %v9183
      %10448 = vmatprep.subr.mxu0 0.0
      %10449 = vmatpush1.msra.mxu0 %v9182
      %10450 = vmatprep.subr.mxu0 0.0
      %10451 = vmatpush1.msra.mxu0 %v9181
      %10452 = vmatprep.subr.mxu0 0.0
      %10453 = vmatpush1.msra.mxu0 %v9180
      %10454 = vmatprep.subr.mxu0 0.0
      %10455 = vmatpush1.msra.mxu0 %v9179
      %10456 = vmatprep.subr.mxu0 0.0
      %10457 = vmatpush1.msra.mxu0 %v9178
      %10458 = vmatprep.subr.mxu0 0.0
      %10459 = vmatpush1.msra.mxu0 %v9177
      %10460 = vmatprep.subr.mxu0 0.0
      %10461 = vmatpush1.msra.mxu0 %v9176
      %10462 = vmatprep.subr.mxu0 0.0
      %10463 = vmatpush1.msra.mxu0 %v9175
      %10464 = vmatprep.subr.mxu0 0.0
      %10465 = vmatpush1.msra.mxu0 %v9174
      %10466 = vmatprep.subr.mxu0 0.0
      %10467 = vmatpush1.msra.mxu0 %v9173
      %10468 = vmatprep.subr.mxu0 0.0
      %10469 = vmatpush1.msra.mxu0 %v9172
      %10470 = vmatprep.subr.mxu0 0.0
      %10471 = vmatpush2.msra.mxu0 0.0
      %10472 = vmatprep.subr.mxu0 0.0
      %10473 = vmatpush2.msra.mxu0 0.0
      %10474 = vmatprep.subr.mxu0 0.0
      %10475 = vmatpush2.msra.mxu0 0.0
      %10476 = vmatprep.subr.mxu0 0.0
      %10477 = vmatpush2.msra.mxu0 0.0
      %10478 = vmatprep.subr.mxu0 0.0
      %10479 = vmatpush2.msra.mxu0 0.0
      %10480 = vmatprep.subr.mxu0 0.0
      %10481 = vmatpush2.msra.mxu0 0.0
      %10482 = vmatprep.subr.mxu0 0.0
      %10483 = vmatpush2.msra.mxu0 0.0
      %10484 = vmatprep.subr.mxu0 0.0
      %10485 = vmatpush2.msra.mxu0 0.0
      %10486 = vmatprep.subr.mxu0 0.0
      %10487 = vmatpush2.msra.mxu0 0.0
      %10488 = vmatprep.subr.mxu0 0.0
      %10489 = vmatpush2.msra.mxu0 0.0
      %10490 = vmatprep.subr.mxu0 0.0
      %10491 = vmatpush2.msra.mxu0 0.0
      %10492 = vmatprep.subr.mxu0 0.0
      %10493 = vmatpush2.msra.mxu0 0.0
      %10494 = vmatprep.subr.mxu0 0.0
      %10495 = vmatpush2.msra.mxu0 0.0
      %10496 = vmatprep.subr.mxu0 0.0
      %10497 = vmatpush2.msra.mxu0 0.0
      %10498 = vmatprep.subr.mxu0 0.0
      %10499 = vmatpush2.msra.mxu0 %v9189
      %10500 = vmatprep.subr.mxu0 0.0
      %10501 = vmatpush2.msra.mxu0 %v9188
      %10502 = vmatprep.mubr.f32.mxu0 %v10374
      %10503 = vmatmul.mubr.f32.gmra.mxu0 %v10342
      %v10504 = vpop.f32.mrf.mxu0
      %v10505 = vadd.f32 0.0, %v10504
      %v10506 = vpop.f32.mrf.mxu0
      %10507 = vmatprep.mubr.f32.mxu0 %v10376
      %10508 = vmatmul.mubr.f32.gmra.mxu0 %v10343
      %v10509 = vpop.f32.mrf.mxu0
      %v10510 = vadd.f32 0.0, %v10509
      %v10511 = vpop.f32.mrf.mxu0
      %10512 = vmatprep.mubr.f32.mxu0 %v10378
      %10513 = vmatmul.mubr.f32.gmra.mxu0 %v10344
      %v10514 = vpop.f32.mrf.mxu0
      %v10515 = vadd.f32 0.0, %v10514
      %v10516 = vpop.f32.mrf.mxu0
      %10517 = vmatprep.mubr.f32.mxu0 %v10380
      %10518 = vmatmul.mubr.f32.gmra.mxu0 %v10345
      %v10519 = vpop.f32.mrf.mxu0
      %v10520 = vadd.f32 0.0, %v10519
      %v10521 = vpop.f32.mrf.mxu0
      %10522 = vmatprep.mubr.f32.mxu0 %v10382
      %10523 = vmatmul.mubr.f32.gmra.mxu0 %v10346
      %v10524 = vpop.f32.mrf.mxu0
      %v10525 = vadd.f32 0.0, %v10524
      %v10526 = vpop.f32.mrf.mxu0
      %10527 = vmatprep.mubr.f32.mxu0 %v10384
      %10528 = vmatmul.mubr.f32.gmra.mxu0 %v10347
      %v10529 = vpop.f32.mrf.mxu0
      %v10530 = vadd.f32 0.0, %v10529
      %v10531 = vpop.f32.mrf.mxu0
      %10532 = vmatprep.mubr.f32.mxu0 %v10386
      %10533 = vmatmul.mubr.f32.gmra.mxu0 %v10348
      %v10534 = vpop.f32.mrf.mxu0
      %v10535 = vadd.f32 0.0, %v10534
      %v10536 = vpop.f32.mrf.mxu0
      %10537 = vmatprep.mubr.f32.mxu0 %v10388
      %10538 = vmatmul.mubr.f32.gmra.mxu0 %v10349
      %v10539 = vpop.f32.mrf.mxu0
      %v10540 = vadd.f32 0.0, %v10539
      %v10541 = vpop.f32.mrf.mxu0
      %10542 = vmatprep.mubr.f32.mxu0 %v10390
      %10543 = vmatmul.mubr.f32.gmra.mxu0 %v10350
      %v10544 = vpop.f32.mrf.mxu0
      %v10545 = vadd.f32 0.0, %v10544
      %v10546 = vpop.f32.mrf.mxu0
      %10547 = vmatprep.mubr.f32.mxu0 %v10392
      %10548 = vmatmul.mubr.f32.gmra.mxu0 %v10351
      %v10549 = vpop.f32.mrf.mxu0
      %v10550 = vadd.f32 0.0, %v10549
      %v10551 = vpop.f32.mrf.mxu0
      %10552 = vmatprep.mubr.f32.mxu0 %v10394
      %10553 = vmatmul.mubr.f32.gmra.mxu0 %v10352
      %v10554 = vpop.f32.mrf.mxu0
      %v10555 = vadd.f32 0.0, %v10554
      %v10556 = vpop.f32.mrf.mxu0
      %10557 = vmatprep.mubr.f32.mxu0 %v10396
      %10558 = vmatmul.mubr.f32.gmra.mxu0 %v10353
      %v10559 = vpop.f32.mrf.mxu0
      %v10560 = vadd.f32 0.0, %v10559
      %v10561 = vpop.f32.mrf.mxu0
      %10562 = vmatprep.mubr.f32.mxu0 %v10398
      %10563 = vmatmul.mubr.f32.gmra.mxu0 %v10354
      %v10564 = vpop.f32.mrf.mxu0
      %v10565 = vadd.f32 0.0, %v10564
      %v10566 = vpop.f32.mrf.mxu0
      %10567 = vmatprep.mubr.f32.mxu0 %v10400
      %10568 = vmatmul.mubr.f32.gmra.mxu0 %v10355
      %v10569 = vpop.f32.mrf.mxu0
      %v10570 = vadd.f32 0.0, %v10569
      %v10571 = vpop.f32.mrf.mxu0
      %10572 = vmatprep.mubr.f32.mxu0 %v10402
      %10573 = vmatmul.mubr.f32.gmra.mxu0 %v10356
      %v10574 = vpop.f32.mrf.mxu0
      %v10575 = vadd.f32 0.0, %v10574
      %v10576 = vpop.f32.mrf.mxu0
      %10577 = vmatprep.mubr.f32.mxu0 %v10404
      %10578 = vmatmul.mubr.f32.gmra.mxu0 %v10357
      %v10579 = vpop.f32.mrf.mxu0
      %v10580 = vadd.f32 0.0, %v10579
      %v10581 = vpop.f32.mrf.mxu0
      %10582 = vmatprep.mubr.f32.mxu0 %v10406
      %10583 = vmatmul.mubr.f32.gmra.mxu0 %v10358
      %v10584 = vpop.f32.mrf.mxu0
      %v10585 = vadd.f32 0.0, %v10584
      %v10586 = vpop.f32.mrf.mxu0
      %10587 = vmatprep.mubr.f32.mxu0 %v10408
      %10588 = vmatmul.mubr.f32.gmra.mxu0 %v10359
      %v10589 = vpop.f32.mrf.mxu0
      %v10590 = vadd.f32 0.0, %v10589
      %v10591 = vpop.f32.mrf.mxu0
      %10592 = vmatprep.mubr.f32.mxu0 %v10410
      %10593 = vmatmul.mubr.f32.gmra.mxu0 %v10360
      %v10594 = vpop.f32.mrf.mxu0
      %v10595 = vadd.f32 0.0, %v10594
      %v10596 = vpop.f32.mrf.mxu0
      %10597 = vmatprep.mubr.f32.mxu0 %v10412
      %10598 = vmatmul.mubr.f32.gmra.mxu0 %v10361
      %v10599 = vpop.f32.mrf.mxu0
      %v10600 = vadd.f32 0.0, %v10599
      %v10601 = vpop.f32.mrf.mxu0
      %10602 = vmatprep.mubr.f32.mxu0 %v10414
      %10603 = vmatmul.mubr.f32.gmra.mxu0 %v10362
      %v10604 = vpop.f32.mrf.mxu0
      %v10605 = vadd.f32 0.0, %v10604
      %v10606 = vpop.f32.mrf.mxu0
      %10607 = vmatprep.mubr.f32.mxu0 %v10416
      %10608 = vmatmul.mubr.f32.gmra.mxu0 %v10363
      %v10609 = vpop.f32.mrf.mxu0
      %v10610 = vadd.f32 0.0, %v10609
      %v10611 = vpop.f32.mrf.mxu0
      %10612 = vmatprep.mubr.f32.mxu0 %v10418
      %10613 = vmatmul.mubr.f32.gmra.mxu0 %v10364
      %v10614 = vpop.f32.mrf.mxu0
      %v10615 = vadd.f32 0.0, %v10614
      %v10616 = vpop.f32.mrf.mxu0
      %10617 = vmatprep.mubr.f32.mxu0 %v10420
      %10618 = vmatmul.mubr.f32.gmra.mxu0 %v10365
      %v10619 = vpop.f32.mrf.mxu0
      %v10620 = vadd.f32 0.0, %v10619
      %v10621 = vpop.f32.mrf.mxu0
      %10622 = vmatprep.mubr.f32.mxu0 %v10422
      %10623 = vmatmul.mubr.f32.gmra.mxu0 %v10366
      %v10624 = vpop.f32.mrf.mxu0
      %v10625 = vadd.f32 0.0, %v10624
      %v10626 = vpop.f32.mrf.mxu0
      %10627 = vmatprep.mubr.f32.mxu0 %v10424
      %10628 = vmatmul.mubr.f32.gmra.mxu0 %v10367
      %v10629 = vpop.f32.mrf.mxu0
      %v10630 = vadd.f32 0.0, %v10629
      %v10631 = vpop.f32.mrf.mxu0
      %10632 = vmatprep.mubr.f32.mxu0 %v10426
      %10633 = vmatmul.mubr.f32.gmra.mxu0 %v10368
      %v10634 = vpop.f32.mrf.mxu0
      %v10635 = vadd.f32 0.0, %v10634
      %v10636 = vpop.f32.mrf.mxu0
      %10637 = vmatprep.mubr.f32.mxu0 %v10428
      %10638 = vmatmul.mubr.f32.gmra.mxu0 %v10369
      %v10639 = vpop.f32.mrf.mxu0
      %v10640 = vadd.f32 0.0, %v10639
      %v10641 = vpop.f32.mrf.mxu0
      %10642 = vmatprep.mubr.f32.mxu0 %v10430
      %10643 = vmatmul.mubr.f32.gmra.mxu0 %v10370
      %v10644 = vpop.f32.mrf.mxu0
      %v10645 = vadd.f32 0.0, %v10644
      %v10646 = vpop.f32.mrf.mxu0
      %10647 = vmatprep.mubr.f32.mxu0 %v10432
      %10648 = vmatmul.mubr.f32.gmra.mxu0 %v10371
      %v10649 = vpop.f32.mrf.mxu0
      %v10650 = vadd.f32 0.0, %v10649
      %v10651 = vpop.f32.mrf.mxu0
      %10652 = vmatprep.mubr.f32.mxu0 %v10434
      %10653 = vmatmul.mubr.f32.gmra.mxu0 %v10372
      %v10654 = vpop.f32.mrf.mxu0
      %v10655 = vadd.f32 0.0, %v10654
      %v10656 = vpop.f32.mrf.mxu0
      %10657 = vmatprep.mubr.f32.mxu0 %v10436
      %10658 = vmatmul.mubr.f32.gmra.mxu0 %v10373
      %v10659 = vpop.f32.mrf.mxu0
      %v10660 = vadd.f32 0.0, %v10659
      %v10661 = vpop.f32.mrf.mxu0
      %10662 = vdwg.mxu0
      %10663 = vst.msk [vmem:[%s467] sm:$0xff] %vm1565, %v10505
      %10664 = vst.msk [vmem:[%s467 + $0x8] sm:$0xff] %vm1565, %v10510
      %10665 = vst.msk [vmem:[%s467 + $0x10] sm:$0xff] %vm1565, %v10515
      %10666 = vst.msk [vmem:[%s467 + $0x18] sm:$0xff] %vm1565, %v10520
      %10667 = vst.msk [vmem:[%s467 + $0x20] sm:$0xff] %vm1565, %v10525
      %10668 = vst.msk [vmem:[%s467 + $0x28] sm:$0xff] %vm1565, %v10530
      %10669 = vst.msk [vmem:[%s467 + $0x30] sm:$0xff] %vm1565, %v10535
      %10670 = vst.msk [vmem:[%s467 + $0x38] sm:$0xff] %vm1565, %v10540
      %10671 = vst.msk [vmem:[%s467 + $0x40] sm:$0xff] %vm1565, %v10545
      %10672 = vst.msk [vmem:[%s467 + $0x48] sm:$0xff] %vm1565, %v10550
      %10673 = vst.msk [vmem:[%s467 + $0x50] sm:$0xff] %vm1565, %v10555
      %10674 = vst.msk [vmem:[%s467 + $0x58] sm:$0xff] %vm1565, %v10560
      %10675 = vst.msk [vmem:[%s467 + $0x60] sm:$0xff] %vm1565, %v10565
      %10676 = vst.msk [vmem:[%s467 + $0x68] sm:$0xff] %vm1565, %v10570
      %10677 = vst.msk [vmem:[%s467 + $0x70] sm:$0xff] %vm1565, %v10575
      %10678 = vst.msk [vmem:[%s467 + $0x78] sm:$0xff] %vm1565, %v10580
      %10679 = vst.msk [vmem:[%s467 + $0x80] sm:$0xff] %vm1565, %v10585
      %10680 = vst.msk [vmem:[%s467 + $0x88] sm:$0xff] %vm1565, %v10590
      %10681 = vst.msk [vmem:[%s467 + $0x90] sm:$0xff] %vm1565, %v10595
      %10682 = vst.msk [vmem:[%s467 + $0x98] sm:$0xff] %vm1565, %v10600
      %10683 = vst.msk [vmem:[%s467 + $0xa0] sm:$0xff] %vm1565, %v10605
      %10684 = vst.msk [vmem:[%s467 + $0xa8] sm:$0xff] %vm1565, %v10610
      %10685 = vst.msk [vmem:[%s467 + $0xb0] sm:$0xff] %vm1565, %v10615
      %10686 = vst.msk [vmem:[%s467 + $0xb8] sm:$0xff] %vm1565, %v10620
      %10687 = vst.msk [vmem:[%s467 + $0xc0] sm:$0xff] %vm1565, %v10625
      %10688 = vst.msk [vmem:[%s467 + $0xc8] sm:$0xff] %vm1565, %v10630
      %10689 = vst.msk [vmem:[%s467 + $0xd0] sm:$0xff] %vm1565, %v10635
      %10690 = vst.msk [vmem:[%s467 + $0xd8] sm:$0xff] %vm1565, %v10640
      %10691 = vst.msk [vmem:[%s467 + $0xe0] sm:$0xff] %vm1565, %v10645
      %10692 = vst.msk [vmem:[%s467 + $0xe8] sm:$0xff] %vm1565, %v10650
      %10693 = vst.msk [vmem:[%s467 + $0xf0] sm:$0xff] %vm1565, %v10655
      %10694 = vst.msk [vmem:[%s467 + $0xf8] sm:$0xff] %vm1565, %v10660
      %p10695 = scmp.lt.s32.totalorder %s25, 1
      %s10696 = scalar_select %p10695, %s25, 1
      %s10697 = smul.addr %s10696, 32
      %s10698 = smul.addr %s10697, 8
      %s10699 = scalar_lea.vmem %s14, %s10698
      // Predicated region
      $region77: #{resnet2d_forward.1} parent=75 // pred_check
        %p10700 = pneg %p342
      $region78: #{resnet2d_forward.1} parent=75 // pred_check_branch
        %10702 = sbr.rel (%p10700) target = $region80
      $region79: #{resnet2d_forward.1} parent=75 // pred_region
        _
      $region80: #{resnet2d_forward.1} parent=75 // pred_fallthru
        _
    $region76: #{resnet2d_forward.1} parent=5 // pred_fallthru
      _
    %p10703 = scmp.le.s32.totalorder 2, %s20
    // Predicated region
    $region81: #{resnet2d_forward.1} parent=5 // pred_check
      %p10704 = pneg %p10703
    $region82: #{resnet2d_forward.1} parent=5 // pred_check_branch
      %10706 = sbr.rel (%p10704) target = $region84
    $region83: #{resnet2d_forward.1} parent=5 // pred_region
      %s10707 = ssub.s32 %s20, 2
      // Predicated region
      $region85: #{resnet2d_forward.1} parent=83 // pred_check
        %p10708 = pneg %p348
      $region86: #{resnet2d_forward.1} parent=83 // pred_check_branch
        %10710 = sbr.rel (%p10708) target = $region88
      $region87: #{resnet2d_forward.1} parent=83 // pred_region
        %p10711 = scmp.lt.s32.totalorder %s26, 1
        %s10712 = scalar_select %p10711, %s26, 1
        %s10713 = smul.addr %s10712, 32
        %s10714 = smul.addr %s10713, 8
        %s10715 = scalar_lea.vmem %s14, %s10714
      $region88: #{resnet2d_forward.1} parent=83 // pred_fallthru
        _
    $region84: #{resnet2d_forward.1} parent=5 // pred_fallthru
      _
  $region6: #{resnet2d_forward.1} parent=0 // loop_footer
    %s24 = sadd.s32 1, %s20
  $region7: #{resnet2d_forward.1} parent=0 // loop_footer_branch
    %19 = sbr.rel target = $region3
  $region8: #{resnet2d_forward.1} parent=0 // loop_exit
    _

</llo_original>
